<compile_context>
chip_gen: v6e
topology: v6e:2x2x1
jax: 0.10.0
libtpu: 0.0.40
codegen_flags: <defaults>
</compile_context>

<pallas_src>
import functools

import jax
import jax.numpy as jnp
from jax.experimental import pallas as pl
from jax.experimental.pallas import tpu as pltpu


def rcab_kernel(x_ref, ml_ref, mr_ref,
                w1_ref, b1_ref, w2_ref, b2_ref,
                wd_ref, bd_ref, wu_ref, bu_ref,
                o_ref,
                xpad_ref, a_ref, *, H, W, C, PAD):
    """One batch element of RCAB, fully fused.

    x_ref   : (1, H*W, C)  bf16   input, pixel-major (p = h*W + w)
    ml_ref  : (H*W, C)     bf16   0/1 mask: pixel has a valid left  neighbour (w != 0)
    mr_ref  : (H*W, C)     bf16   0/1 mask: pixel has a valid right neighbour (w != W-1)
    w1_ref  : (9*C, C)     bf16   conv1 weights, tap-major (ky*3+kx, Cin) x Cout
    b1_ref  : (1, C)       f32
    w2_ref  : (9*C, C)     bf16   conv2 weights
    b2_ref  : (1, C)       f32
    wd_ref  : (C, Cr)      f32    CA squeeze 1x1
    bd_ref  : (1, Cr)      f32
    wu_ref  : (Cr, C)      f32    CA excite 1x1
    bu_ref  : (1, C)       f32
    o_ref   : (1, H*W, C)  f32    output
    xpad_ref: (H*W + 2*PAD, C) bf16  flat zero-padded activation scratch
    a_ref   : (H*W, 9*C)   bf16   grouped im2col matrix scratch
    """
    HW = H * W

    # Zero only the padding borders (PAD is a multiple of 8 -> aligned stores);
    # the interior is always fully overwritten by build_a.
    xpad_ref[0:PAD, :] = jnp.zeros((PAD, C), dtype=xpad_ref.dtype)
    xpad_ref[PAD + HW:PAD + HW + PAD, :] = jnp.zeros((PAD, C), dtype=xpad_ref.dtype)

    # Hoisted, already lane-wide masks (no per-tap broadcast inside the loop).
    keep_left = ml_ref[...]     # (HW, C) bf16
    keep_right = mr_ref[...]    # (HW, C) bf16

    def build_a(src2d):
        """Fill a_ref with the 9-tap im2col matrix (HW, 9C) for `src2d`."""
        xpad_ref[PAD:PAD + HW, :] = src2d
        for k in range(9):
            dy, dx = k // 3 - 1, k % 3 - 1
            s = dy * W + dx                            # static flat-pixel shift
            piece = xpad_ref[PAD + s:PAD + s + HW, :]  # (HW, C) bf16
            if dx == 1:
                piece = piece * keep_right             # kill horizontal wrap taps
            elif dx == -1:
                piece = piece * keep_left
            a_ref[:, k * C:(k + 1) * C] = piece
        return a_ref[...]                              # (HW, 9C) bf16

    x = x_ref[0]                                       # (HW, C) bf16

    # ---- conv1 (3x3, same) -> bias -> ReLU : single K=9C MXU matmul ----
    a1 = build_a(x)
    y1 = jnp.dot(a1, w1_ref[...], preferred_element_type=jnp.float32)
    y1 = jnp.maximum(y1 + b1_ref[...], 0.0)            # (HW, C) f32

    # ---- conv2 (3x3, same) -> bias ----
    a2 = build_a(y1.astype(xpad_ref.dtype))
    y2 = jnp.dot(a2, w2_ref[...], preferred_element_type=jnp.float32)
    y2 = y2 + b2_ref[...]                              # (HW, C) f32

    # ---- channel attention: GAP -> 1x1 -> ReLU -> 1x1 -> sigmoid ----
    gap = jnp.mean(y2, axis=0, keepdims=True)          # (1, C) f32
    z = jnp.maximum(
        jnp.dot(gap, wd_ref[...], preferred_element_type=jnp.float32)
        + bd_ref[...], 0.0)                            # (1, Cr)
    s = jax.nn.sigmoid(
        jnp.dot(z, wu_ref[...], preferred_element_type=jnp.float32)
        + bu_ref[...])                                 # (1, C)

    # ---- scale + residual add ----
    o_ref[0] = (y2 * s + x.astype(jnp.float32)).astype(o_ref.dtype)


@jax.jit
def rcab_forward(x_nchw, w1_hwio, b1, w2_hwio, b2, wd, bd, wu, bu):
    """RCAB forward. x_nchw: (B, C, H, W) float32 (PyTorch layout)."""
    B, C, H, W = x_nchw.shape
    Cr = wd.shape[1]
    HW = H * W
    # Flat pad must cover a one-pixel shift in every direction (W+1 rows);
    # round up to a multiple of 8 so interior accesses are sublane-aligned.
    PAD = ((W + 1 + 7) // 8) * 8

    # NCHW -> NHWC -> (B, H*W, C); bf16 for the MXU path. No jnp.pad HBM pass.
    x = jnp.transpose(x_nchw, (0, 2, 3, 1)).reshape(B, HW, C).astype(jnp.bfloat16)

    # Tap-major flattened conv weights: (3,3,Cin,Cout) -> (9*Cin, Cout), bf16.
    w1 = w1_hwio.astype(jnp.bfloat16).reshape(9 * C, C)
    w2 = w2_hwio.astype(jnp.bfloat16).reshape(9 * C, C)

    # 0/1 edge masks for the horizontal (dx = -1 / +1) taps, pre-broadcast to (HW, C).
    w_idx = jnp.arange(HW, dtype=jnp.int32) % W
    wmask_l = jnp.broadcast_to(
        (w_idx != 0).astype(jnp.bfloat16).reshape(HW, 1), (HW, C))
    wmask_r = jnp.broadcast_to(
        (w_idx != (W - 1)).astype(jnp.bfloat16).reshape(HW, 1), (HW, C))

    kernel = functools.partial(rcab_kernel, H=H, W=W, C=C, PAD=PAD)

    out = pl.pallas_call(
        kernel,
        out_shape=jax.ShapeDtypeStruct((B, HW, C), jnp.float32),
        grid_spec=pltpu.PrefetchScalarGridSpec(
            num_scalar_prefetch=0,
            grid=(B,),
            in_specs=[
                pl.BlockSpec((1, HW, C), lambda b: (b, 0, 0)),   # x
                pl.BlockSpec((HW, C), lambda b: (0, 0)),         # wmask_l
                pl.BlockSpec((HW, C), lambda b: (0, 0)),         # wmask_r
                pl.BlockSpec((9 * C, C), lambda b: (0, 0)),      # w1
                pl.BlockSpec((1, C), lambda b: (0, 0)),          # b1
                pl.BlockSpec((9 * C, C), lambda b: (0, 0)),      # w2
                pl.BlockSpec((1, C), lambda b: (0, 0)),          # b2
                pl.BlockSpec((C, Cr), lambda b: (0, 0)),         # wd
                pl.BlockSpec((1, Cr), lambda b: (0, 0)),         # bd
                pl.BlockSpec((Cr, C), lambda b: (0, 0)),         # wu
                pl.BlockSpec((1, C), lambda b: (0, 0)),          # bu
            ],
            out_specs=pl.BlockSpec((1, HW, C), lambda b: (b, 0, 0)),
            scratch_shapes=[
                pltpu.VMEM((HW + 2 * PAD, C), jnp.bfloat16),      # flat pad buffer
                pltpu.VMEM((HW, 9 * C), jnp.bfloat16),            # im2col matrix
            ],
        ),
        compiler_params=pltpu.CompilerParams(
            dimension_semantics=("parallel",)),
    )(x, wmask_l, wmask_r, w1,
      b1.astype(jnp.float32), w2, b2.astype(jnp.float32),
      wd.astype(jnp.float32), bd.astype(jnp.float32),
      wu.astype(jnp.float32), bu.astype(jnp.float32))

    out = out.reshape(B, H, W, C)
    return jnp.transpose(out, (0, 3, 1, 2))            # back to NCHW


def rcab_reference(x_nchw, w1_hwio, b1, w2_hwio, b2, wd, bd, wu, bu):
    """Pure-JAX (XLA, full f32) reference for correctness checking."""
    x = jnp.transpose(x_nchw, (0, 2, 3, 1))            # NHWC
    dn = ('NHWC', 'HWIO', 'NHWC')
    hp = jax.lax.Precision.HIGHEST
    y = jax.lax.conv_general_dilated(x, w1_hwio, (1, 1), 'SAME',
                                     dimension_numbers=dn, precision=hp) + b1
    y = jnp.maximum(y, 0.0)
    y = jax.lax.conv_general_dilated(y, w2_hwio, (1, 1), 'SAME',
                                     dimension_numbers=dn, precision=hp) + b2
    g = jnp.mean(y, axis=(1, 2), keepdims=True)        # (B,1,1,C)
    z = jnp.maximum(jnp.einsum('bijc,cr->bijr', g, wd) + bd, 0.0)
    s = jax.nn.sigmoid(jnp.einsum('bijr,rc->bijc', z, wu) + bu)
    out = y * s + x
    return jnp.transpose(out, (0, 3, 1, 2))


if __name__ == "__main__":
    # Shapes consistent with RCAB(conv, n_feat=32, kernel_size=3, reduction=4)
    B, C, H, W = 2, 32, 16, 16
    KS, RED = 3, 4
    CR = C // RED

    key = jax.random.PRNGKey(0)
    keys = jax.random.split(key, 9)

    x = jax.random.normal(keys[0], (B, C, H, W), jnp.float32)

    w1 = 0.05 * jax.random.normal(keys[1], (KS, KS, C, C), jnp.float32)
    b1 = 0.05 * jax.random.normal(keys[2], (1, C), jnp.float32)
    w2 = 0.05 * jax.random.normal(keys[3], (KS, KS, C, C), jnp.float32)
    b2 = 0.05 * jax.random.normal(keys[4], (1, C), jnp.float32)
    wd = 0.1 * jax.random.normal(keys[5], (C, CR), jnp.float32)
    bd = 0.1 * jax.random.normal(keys[6], (1, CR), jnp.float32)
    wu = 0.1 * jax.random.normal(keys[7], (CR, C), jnp.float32)
    bu = 0.1 * jax.random.normal(keys[8], (1, C), jnp.float32)

    out = jax.block_until_ready(rcab_forward(x, w1, b1, w2, b2, wd, bd, wu, bu))
    ref = jax.block_until_ready(rcab_reference(x, w1, b1, w2, b2, wd, bd, wu, bu))

    assert out.shape == (B, C, H, W), out.shape
    assert bool(jnp.all(jnp.isfinite(out)))
    # bf16 MXU inputs (f32 accumulation) vs. an all-f32 HIGHEST-precision
    # reference: tolerance is loosened accordingly.
    assert jnp.allclose(out, ref, rtol=3e-2, atol=5e-2), (
        float(jnp.max(jnp.abs(out - ref))))

    print("KERNEL_OK")
</pallas_src>

<mosaic_0001>
module attributes {stable_mosaic.version = 11 : i64} {
  func.func @rcab_kernel(%arg0: i32, %arg1: memref<1x256x32xbf16, #tpu.memory_space<vmem>>, %arg2: memref<256x32xbf16, #tpu.memory_space<vmem>>, %arg3: memref<256x32xbf16, #tpu.memory_space<vmem>>, %arg4: memref<288x32xbf16, #tpu.memory_space<vmem>>, %arg5: memref<1x32xf32, #tpu.memory_space<vmem>>, %arg6: memref<288x32xbf16, #tpu.memory_space<vmem>>, %arg7: memref<1x32xf32, #tpu.memory_space<vmem>>, %arg8: memref<32x8xf32, #tpu.memory_space<vmem>>, %arg9: memref<1x8xf32, #tpu.memory_space<vmem>>, %arg10: memref<8x32xf32, #tpu.memory_space<vmem>>, %arg11: memref<1x32xf32, #tpu.memory_space<vmem>>, %arg12: memref<1x256x32xf32, #tpu.memory_space<vmem>>, %arg13: memref<304x32xbf16, #tpu.memory_space<vmem>>, %arg14: memref<256x288xbf16, #tpu.memory_space<vmem>>) attributes {dimension_semantics = [#tpu.dimension_semantics<parallel>], iteration_bounds = array<i64: 2>, scalar_prefetch = 0 : i64, scratch_operands = 2 : i64, tpu.core_type = #tpu.core_type<tc>, window_params = [{transform_indices = @transform_0, window_bounds = array<i64: 1, 256, 32>}, {pipeline_mode = #tpu.pipeline_mode<synchronous>, transform_indices = @transform_1, window_bounds = array<i64: 256, 32>}, {pipeline_mode = #tpu.pipeline_mode<synchronous>, transform_indices = @transform_2, window_bounds = array<i64: 256, 32>}, {pipeline_mode = #tpu.pipeline_mode<synchronous>, transform_indices = @transform_3, window_bounds = array<i64: 288, 32>}, {pipeline_mode = #tpu.pipeline_mode<synchronous>, transform_indices = @transform_4, window_bounds = array<i64: 1, 32>}, {pipeline_mode = #tpu.pipeline_mode<synchronous>, transform_indices = @transform_5, window_bounds = array<i64: 288, 32>}, {pipeline_mode = #tpu.pipeline_mode<synchronous>, transform_indices = @transform_6, window_bounds = array<i64: 1, 32>}, {pipeline_mode = #tpu.pipeline_mode<synchronous>, transform_indices = @transform_7, window_bounds = array<i64: 32, 8>}, {pipeline_mode = #tpu.pipeline_mode<synchronous>, transform_indices = @transform_8, window_bounds = array<i64: 1, 8>}, {pipeline_mode = #tpu.pipeline_mode<synchronous>, transform_indices = @transform_9, window_bounds = array<i64: 8, 32>}, {pipeline_mode = #tpu.pipeline_mode<synchronous>, transform_indices = @transform_10, window_bounds = array<i64: 1, 32>}, {transform_indices = @transform_11, window_bounds = array<i64: 1, 256, 32>}]} {
    %cst = arith.constant 0.000000e+00 : bf16
    %0 = vector.broadcast %cst : bf16 to vector<24x32xbf16>
    %c0 = arith.constant 0 : index
    %c0_0 = arith.constant 0 : index
    %1 = vector.load %arg13[%c0, %c0_0] : memref<304x32xbf16, #tpu.memory_space<vmem>>, vector<24x32xbf16>
    tpu.vector_store %arg13[%c0, %c0_0], %0 {strides = array<i32>} : memref<304x32xbf16, #tpu.memory_space<vmem>>, vector<24x32xbf16>,
    %cst_1 = arith.constant 0.000000e+00 : bf16
    %2 = vector.broadcast %cst_1 : bf16 to vector<24x32xbf16>
    %c280 = arith.constant 280 : index
    %c0_2 = arith.constant 0 : index
    %3 = vector.load %arg13[%c280, %c0_2] : memref<304x32xbf16, #tpu.memory_space<vmem>>, vector<24x32xbf16>
    tpu.vector_store %arg13[%c280, %c0_2], %2 {strides = array<i32>} : memref<304x32xbf16, #tpu.memory_space<vmem>>, vector<24x32xbf16>,
    %c0_3 = arith.constant 0 : index
    %c0_4 = arith.constant 0 : index
    %4 = vector.load %arg2[%c0_3, %c0_4] : memref<256x32xbf16, #tpu.memory_space<vmem>>, vector<256x32xbf16>
    %c0_5 = arith.constant 0 : index
    %c0_6 = arith.constant 0 : index
    %5 = vector.load %arg3[%c0_5, %c0_6] : memref<256x32xbf16, #tpu.memory_space<vmem>>, vector<256x32xbf16>
    %c0_7 = arith.constant 0 : index
    %c0_8 = arith.constant 0 : index
    %c0_9 = arith.constant 0 : index
    %6 = vector.load %arg1[%c0_7, %c0_8, %c0_9] : memref<1x256x32xbf16, #tpu.memory_space<vmem>>, vector<1x256x32xbf16>
    %7 = vector.shape_cast %6 : vector<1x256x32xbf16> to vector<256x32xbf16>
    %c24 = arith.constant 24 : index
    %c0_10 = arith.constant 0 : index
    %8 = vector.load %arg13[%c24, %c0_10] : memref<304x32xbf16, #tpu.memory_space<vmem>>, vector<256x32xbf16>
    tpu.vector_store %arg13[%c24, %c0_10], %7 {strides = array<i32>} : memref<304x32xbf16, #tpu.memory_space<vmem>>, vector<256x32xbf16>,
    %c7 = arith.constant 7 : index
    %c0_11 = arith.constant 0 : index
    %9 = vector.load %arg13[%c7, %c0_11] : memref<304x32xbf16, #tpu.memory_space<vmem>>, vector<256x32xbf16>
    %10 = arith.mulf %9, %4 : vector<256x32xbf16>
    %c0_12 = arith.constant 0 : index
    %c0_13 = arith.constant 0 : index
    %11 = vector.load %arg14[%c0_12, %c0_13] : memref<256x288xbf16, #tpu.memory_space<vmem>>, vector<256x32xbf16>
    tpu.vector_store %arg14[%c0_12, %c0_13], %10 {strides = array<i32>} : memref<256x288xbf16, #tpu.memory_space<vmem>>, vector<256x32xbf16>,
    %c8 = arith.constant 8 : index
    %c0_14 = arith.constant 0 : index
    %12 = vector.load %arg13[%c8, %c0_14] : memref<304x32xbf16, #tpu.memory_space<vmem>>, vector<256x32xbf16>
    %c0_15 = arith.constant 0 : index
    %c32 = arith.constant 32 : index
    %13 = vector.load %arg14[%c0_15, %c32] : memref<256x288xbf16, #tpu.memory_space<vmem>>, vector<256x32xbf16>
    tpu.vector_store %arg14[%c0_15, %c32], %12 {strides = array<i32>} : memref<256x288xbf16, #tpu.memory_space<vmem>>, vector<256x32xbf16>,
    %c9 = arith.constant 9 : index
    %c0_16 = arith.constant 0 : index
    %14 = vector.load %arg13[%c9, %c0_16] : memref<304x32xbf16, #tpu.memory_space<vmem>>, vector<256x32xbf16>
    %15 = arith.mulf %14, %5 : vector<256x32xbf16>
    %c0_17 = arith.constant 0 : index
    %c64 = arith.constant 64 : index
    %16 = vector.load %arg14[%c0_17, %c64] : memref<256x288xbf16, #tpu.memory_space<vmem>>, vector<256x32xbf16>
    tpu.vector_store %arg14[%c0_17, %c64], %15 {strides = array<i32>} : memref<256x288xbf16, #tpu.memory_space<vmem>>, vector<256x32xbf16>,
    %c23 = arith.constant 23 : index
    %c0_18 = arith.constant 0 : index
    %17 = vector.load %arg13[%c23, %c0_18] : memref<304x32xbf16, #tpu.memory_space<vmem>>, vector<256x32xbf16>
    %18 = arith.mulf %17, %4 : vector<256x32xbf16>
    %c0_19 = arith.constant 0 : index
    %c96 = arith.constant 96 : index
    %19 = vector.load %arg14[%c0_19, %c96] : memref<256x288xbf16, #tpu.memory_space<vmem>>, vector<256x32xbf16>
    tpu.vector_store %arg14[%c0_19, %c96], %18 {strides = array<i32>} : memref<256x288xbf16, #tpu.memory_space<vmem>>, vector<256x32xbf16>,
    %c24_20 = arith.constant 24 : index
    %c0_21 = arith.constant 0 : index
    %20 = vector.load %arg13[%c24_20, %c0_21] : memref<304x32xbf16, #tpu.memory_space<vmem>>, vector<256x32xbf16>
    %c0_22 = arith.constant 0 : index
    %c128 = arith.constant 128 : index
    %21 = vector.load %arg14[%c0_22, %c128] : memref<256x288xbf16, #tpu.memory_space<vmem>>, vector<256x32xbf16>
    tpu.vector_store %arg14[%c0_22, %c128], %20 {strides = array<i32>} : memref<256x288xbf16, #tpu.memory_space<vmem>>, vector<256x32xbf16>,
    %c25 = arith.constant 25 : index
    %c0_23 = arith.constant 0 : index
    %22 = vector.load %arg13[%c25, %c0_23] : memref<304x32xbf16, #tpu.memory_space<vmem>>, vector<256x32xbf16>
    %23 = arith.mulf %22, %5 : vector<256x32xbf16>
    %c0_24 = arith.constant 0 : index
    %c160 = arith.constant 160 : index
    %24 = vector.load %arg14[%c0_24, %c160] : memref<256x288xbf16, #tpu.memory_space<vmem>>, vector<256x32xbf16>
    tpu.vector_store %arg14[%c0_24, %c160], %23 {strides = array<i32>} : memref<256x288xbf16, #tpu.memory_space<vmem>>, vector<256x32xbf16>,
    %c39 = arith.constant 39 : index
    %c0_25 = arith.constant 0 : index
    %25 = vector.load %arg13[%c39, %c0_25] : memref<304x32xbf16, #tpu.memory_space<vmem>>, vector<256x32xbf16>
    %26 = arith.mulf %25, %4 : vector<256x32xbf16>
    %c0_26 = arith.constant 0 : index
    %c192 = arith.constant 192 : index
    %27 = vector.load %arg14[%c0_26, %c192] : memref<256x288xbf16, #tpu.memory_space<vmem>>, vector<256x32xbf16>
    tpu.vector_store %arg14[%c0_26, %c192], %26 {strides = array<i32>} : memref<256x288xbf16, #tpu.memory_space<vmem>>, vector<256x32xbf16>,
    %c40 = arith.constant 40 : index
    %c0_27 = arith.constant 0 : index
    %28 = vector.load %arg13[%c40, %c0_27] : memref<304x32xbf16, #tpu.memory_space<vmem>>, vector<256x32xbf16>
    %c0_28 = arith.constant 0 : index
    %c224 = arith.constant 224 : index
    %29 = vector.load %arg14[%c0_28, %c224] : memref<256x288xbf16, #tpu.memory_space<vmem>>, vector<256x32xbf16>
    tpu.vector_store %arg14[%c0_28, %c224], %28 {strides = array<i32>} : memref<256x288xbf16, #tpu.memory_space<vmem>>, vector<256x32xbf16>,
    %c41 = arith.constant 41 : index
    %c0_29 = arith.constant 0 : index
    %30 = vector.load %arg13[%c41, %c0_29] : memref<304x32xbf16, #tpu.memory_space<vmem>>, vector<256x32xbf16>
    %31 = arith.mulf %30, %5 : vector<256x32xbf16>
    %c0_30 = arith.constant 0 : index
    %c256 = arith.constant 256 : index
    %32 = vector.load %arg14[%c0_30, %c256] : memref<256x288xbf16, #tpu.memory_space<vmem>>, vector<256x32xbf16>
    tpu.vector_store %arg14[%c0_30, %c256], %31 {strides = array<i32>} : memref<256x288xbf16, #tpu.memory_space<vmem>>, vector<256x32xbf16>,
    %c0_31 = arith.constant 0 : index
    %c0_32 = arith.constant 0 : index
    %33 = vector.load %arg14[%c0_31, %c0_32] : memref<256x288xbf16, #tpu.memory_space<vmem>>, vector<256x288xbf16>
    %c0_33 = arith.constant 0 : index
    %c0_34 = arith.constant 0 : index
    %34 = vector.load %arg4[%c0_33, %c0_34] : memref<288x32xbf16, #tpu.memory_space<vmem>>, vector<288x32xbf16>
    %cst_35 = arith.constant dense<0.000000e+00> : vector<256x32xf32>
    %35 = tpu.matmul %33, %34, %cst_35 {dimension_numbers = #tpu.dot_dimension_numbers<[1], [0], [0], [1], [0, 0, 1, 1], [], []>} : vector<256x288xbf16>, vector<288x32xbf16>, vector<256x32xf32> -> vector<256x32xf32>
    %c0_36 = arith.constant 0 : index
    %c0_37 = arith.constant 0 : index
    %36 = vector.load %arg5[%c0_36, %c0_37] : memref<1x32xf32, #tpu.memory_space<vmem>>, vector<1x32xf32>
    %37 = vector.broadcast %36 : vector<1x32xf32> to vector<256x32xf32>
    %38 = arith.addf %35, %37 : vector<256x32xf32>
    %cst_38 = arith.constant 0.000000e+00 : f32
    %39 = vector.broadcast %cst_38 : f32 to vector<256x32xf32>
    %40 = arith.maximumf %38, %39 : vector<256x32xf32>
    %41 = arith.truncf %40 : vector<256x32xf32> to vector<256x32xbf16>
    %c24_39 = arith.constant 24 : index
    %c0_40 = arith.constant 0 : index
    %42 = vector.load %arg13[%c24_39, %c0_40] : memref<304x32xbf16, #tpu.memory_space<vmem>>, vector<256x32xbf16>
    tpu.vector_store %arg13[%c24_39, %c0_40], %41 {strides = array<i32>} : memref<304x32xbf16, #tpu.memory_space<vmem>>, vector<256x32xbf16>,
    %c7_41 = arith.constant 7 : index
    %c0_42 = arith.constant 0 : index
    %43 = vector.load %arg13[%c7_41, %c0_42] : memref<304x32xbf16, #tpu.memory_space<vmem>>, vector<256x32xbf16>
    %44 = arith.mulf %43, %4 : vector<256x32xbf16>
    %c0_43 = arith.constant 0 : index
    %c0_44 = arith.constant 0 : index
    %45 = vector.load %arg14[%c0_43, %c0_44] : memref<256x288xbf16, #tpu.memory_space<vmem>>, vector<256x32xbf16>
    tpu.vector_store %arg14[%c0_43, %c0_44], %44 {strides = array<i32>} : memref<256x288xbf16, #tpu.memory_space<vmem>>, vector<256x32xbf16>,
    %c8_45 = arith.constant 8 : index
    %c0_46 = arith.constant 0 : index
    %46 = vector.load %arg13[%c8_45, %c0_46] : memref<304x32xbf16, #tpu.memory_space<vmem>>, vector<256x32xbf16>
    %c0_47 = arith.constant 0 : index
    %c32_48 = arith.constant 32 : index
    %47 = vector.load %arg14[%c0_47, %c32_48] : memref<256x288xbf16, #tpu.memory_space<vmem>>, vector<256x32xbf16>
    tpu.vector_store %arg14[%c0_47, %c32_48], %46 {strides = array<i32>} : memref<256x288xbf16, #tpu.memory_space<vmem>>, vector<256x32xbf16>,
    %c9_49 = arith.constant 9 : index
    %c0_50 = arith.constant 0 : index
    %48 = vector.load %arg13[%c9_49, %c0_50] : memref<304x32xbf16, #tpu.memory_space<vmem>>, vector<256x32xbf16>
    %49 = arith.mulf %48, %5 : vector<256x32xbf16>
    %c0_51 = arith.constant 0 : index
    %c64_52 = arith.constant 64 : index
    %50 = vector.load %arg14[%c0_51, %c64_52] : memref<256x288xbf16, #tpu.memory_space<vmem>>, vector<256x32xbf16>
    tpu.vector_store %arg14[%c0_51, %c64_52], %49 {strides = array<i32>} : memref<256x288xbf16, #tpu.memory_space<vmem>>, vector<256x32xbf16>,
    %c23_53 = arith.constant 23 : index
    %c0_54 = arith.constant 0 : index
    %51 = vector.load %arg13[%c23_53, %c0_54] : memref<304x32xbf16, #tpu.memory_space<vmem>>, vector<256x32xbf16>
    %52 = arith.mulf %51, %4 : vector<256x32xbf16>
    %c0_55 = arith.constant 0 : index
    %c96_56 = arith.constant 96 : index
    %53 = vector.load %arg14[%c0_55, %c96_56] : memref<256x288xbf16, #tpu.memory_space<vmem>>, vector<256x32xbf16>
    tpu.vector_store %arg14[%c0_55, %c96_56], %52 {strides = array<i32>} : memref<256x288xbf16, #tpu.memory_space<vmem>>, vector<256x32xbf16>,
    %c24_57 = arith.constant 24 : index
    %c0_58 = arith.constant 0 : index
    %54 = vector.load %arg13[%c24_57, %c0_58] : memref<304x32xbf16, #tpu.memory_space<vmem>>, vector<256x32xbf16>
    %c0_59 = arith.constant 0 : index
    %c128_60 = arith.constant 128 : index
    %55 = vector.load %arg14[%c0_59, %c128_60] : memref<256x288xbf16, #tpu.memory_space<vmem>>, vector<256x32xbf16>
    tpu.vector_store %arg14[%c0_59, %c128_60], %54 {strides = array<i32>} : memref<256x288xbf16, #tpu.memory_space<vmem>>, vector<256x32xbf16>,
    %c25_61 = arith.constant 25 : index
    %c0_62 = arith.constant 0 : index
    %56 = vector.load %arg13[%c25_61, %c0_62] : memref<304x32xbf16, #tpu.memory_space<vmem>>, vector<256x32xbf16>
    %57 = arith.mulf %56, %5 : vector<256x32xbf16>
    %c0_63 = arith.constant 0 : index
    %c160_64 = arith.constant 160 : index
    %58 = vector.load %arg14[%c0_63, %c160_64] : memref<256x288xbf16, #tpu.memory_space<vmem>>, vector<256x32xbf16>
    tpu.vector_store %arg14[%c0_63, %c160_64], %57 {strides = array<i32>} : memref<256x288xbf16, #tpu.memory_space<vmem>>, vector<256x32xbf16>,
    %c39_65 = arith.constant 39 : index
    %c0_66 = arith.constant 0 : index
    %59 = vector.load %arg13[%c39_65, %c0_66] : memref<304x32xbf16, #tpu.memory_space<vmem>>, vector<256x32xbf16>
    %60 = arith.mulf %59, %4 : vector<256x32xbf16>
    %c0_67 = arith.constant 0 : index
    %c192_68 = arith.constant 192 : index
    %61 = vector.load %arg14[%c0_67, %c192_68] : memref<256x288xbf16, #tpu.memory_space<vmem>>, vector<256x32xbf16>
    tpu.vector_store %arg14[%c0_67, %c192_68], %60 {strides = array<i32>} : memref<256x288xbf16, #tpu.memory_space<vmem>>, vector<256x32xbf16>,
    %c40_69 = arith.constant 40 : index
    %c0_70 = arith.constant 0 : index
    %62 = vector.load %arg13[%c40_69, %c0_70] : memref<304x32xbf16, #tpu.memory_space<vmem>>, vector<256x32xbf16>
    %c0_71 = arith.constant 0 : index
    %c224_72 = arith.constant 224 : index
    %63 = vector.load %arg14[%c0_71, %c224_72] : memref<256x288xbf16, #tpu.memory_space<vmem>>, vector<256x32xbf16>
    tpu.vector_store %arg14[%c0_71, %c224_72], %62 {strides = array<i32>} : memref<256x288xbf16, #tpu.memory_space<vmem>>, vector<256x32xbf16>,
    %c41_73 = arith.constant 41 : index
    %c0_74 = arith.constant 0 : index
    %64 = vector.load %arg13[%c41_73, %c0_74] : memref<304x32xbf16, #tpu.memory_space<vmem>>, vector<256x32xbf16>
    %65 = arith.mulf %64, %5 : vector<256x32xbf16>
    %c0_75 = arith.constant 0 : index
    %c256_76 = arith.constant 256 : index
    %66 = vector.load %arg14[%c0_75, %c256_76] : memref<256x288xbf16, #tpu.memory_space<vmem>>, vector<256x32xbf16>
    tpu.vector_store %arg14[%c0_75, %c256_76], %65 {strides = array<i32>} : memref<256x288xbf16, #tpu.memory_space<vmem>>, vector<256x32xbf16>,
    %c0_77 = arith.constant 0 : index
    %c0_78 = arith.constant 0 : index
    %67 = vector.load %arg14[%c0_77, %c0_78] : memref<256x288xbf16, #tpu.memory_space<vmem>>, vector<256x288xbf16>
    %c0_79 = arith.constant 0 : index
    %c0_80 = arith.constant 0 : index
    %68 = vector.load %arg6[%c0_79, %c0_80] : memref<288x32xbf16, #tpu.memory_space<vmem>>, vector<288x32xbf16>
    %cst_81 = arith.constant dense<0.000000e+00> : vector<256x32xf32>
    %69 = tpu.matmul %67, %68, %cst_81 {dimension_numbers = #tpu.dot_dimension_numbers<[1], [0], [0], [1], [0, 0, 1, 1], [], []>} : vector<256x288xbf16>, vector<288x32xbf16>, vector<256x32xf32> -> vector<256x32xf32>
    %c0_82 = arith.constant 0 : index
    %c0_83 = arith.constant 0 : index
    %70 = vector.load %arg7[%c0_82, %c0_83] : memref<1x32xf32, #tpu.memory_space<vmem>>, vector<1x32xf32>
    %71 = vector.broadcast %70 : vector<1x32xf32> to vector<256x32xf32>
    %72 = arith.addf %69, %71 : vector<256x32xf32>
    %cst_84 = arith.constant dense<0.000000e+00> : vector<32xf32>
    %73 = vector.multi_reduction <add>, %72, %cst_84 [0] : vector<256x32xf32> to vector<32xf32>
    %74 = vector.shape_cast %73 : vector<32xf32> to vector<1x32xf32>
    %cst_85 = arith.constant 2.560000e+02 : f32
    %75 = vector.broadcast %cst_85 : f32 to vector<1x32xf32>
    %76 = arith.divf %74, %75 : vector<1x32xf32>
    %c0_86 = arith.constant 0 : index
    %c0_87 = arith.constant 0 : index
    %77 = vector.load %arg8[%c0_86, %c0_87] : memref<32x8xf32, #tpu.memory_space<vmem>>, vector<32x8xf32>
    %cst_88 = arith.constant dense<0.000000e+00> : vector<1x8xf32>
    %78 = tpu.matmul %76, %77, %cst_88 {dimension_numbers = #tpu.dot_dimension_numbers<[1], [0], [0], [1], [0, 0, 1, 1], [], []>} : vector<1x32xf32>, vector<32x8xf32>, vector<1x8xf32> -> vector<1x8xf32>
    %c0_89 = arith.constant 0 : index
    %c0_90 = arith.constant 0 : index
    %79 = vector.load %arg9[%c0_89, %c0_90] : memref<1x8xf32, #tpu.memory_space<vmem>>, vector<1x8xf32>
    %80 = arith.addf %78, %79 : vector<1x8xf32>
    %cst_91 = arith.constant 0.000000e+00 : f32
    %81 = vector.broadcast %cst_91 : f32 to vector<1x8xf32>
    %82 = arith.maximumf %80, %81 : vector<1x8xf32>
    %c0_92 = arith.constant 0 : index
    %c0_93 = arith.constant 0 : index
    %83 = vector.load %arg10[%c0_92, %c0_93] : memref<8x32xf32, #tpu.memory_space<vmem>>, vector<8x32xf32>
    %cst_94 = arith.constant dense<0.000000e+00> : vector<1x32xf32>
    %84 = tpu.matmul %82, %83, %cst_94 {dimension_numbers = #tpu.dot_dimension_numbers<[1], [0], [0], [1], [0, 0, 1, 1], [], []>} : vector<1x8xf32>, vector<8x32xf32>, vector<1x32xf32> -> vector<1x32xf32>
    %c0_95 = arith.constant 0 : index
    %c0_96 = arith.constant 0 : index
    %85 = vector.load %arg11[%c0_95, %c0_96] : memref<1x32xf32, #tpu.memory_space<vmem>>, vector<1x32xf32>
    %86 = arith.addf %84, %85 : vector<1x32xf32>
    %87 = arith.negf %86 : vector<1x32xf32>
    %88 = math.exp %87 : vector<1x32xf32>
    %cst_97 = arith.constant 1.000000e+00 : f32
    %89 = vector.broadcast %cst_97 : f32 to vector<1x32xf32>
    %90 = arith.addf %89, %88 : vector<1x32xf32>
    %91 = arith.divf %89, %90 : vector<1x32xf32>
    %92 = vector.broadcast %91 : vector<1x32xf32> to vector<256x32xf32>
    %93 = arith.mulf %72, %92 : vector<256x32xf32>
    %94 = arith.extf %7 : vector<256x32xbf16> to vector<256x32xf32>
    %95 = arith.addf %93, %94 : vector<256x32xf32>
    %c0_98 = arith.constant 0 : index
    %c0_99 = arith.constant 0 : index
    %c0_100 = arith.constant 0 : index
    %96 = vector.load %arg12[%c0_98, %c0_99, %c0_100] : memref<1x256x32xf32, #tpu.memory_space<vmem>>, vector<1x256x32xf32>
    %97 = vector.shape_cast %96 : vector<1x256x32xf32> to vector<256x32xf32>
    %98 = vector.shape_cast %95 : vector<256x32xf32> to vector<1x256x32xf32>
    tpu.vector_store %arg12[%c0_98, %c0_99, %c0_100], %98 {strides = array<i32>} : memref<1x256x32xf32, #tpu.memory_space<vmem>>, vector<1x256x32xf32>,
    return
  }
  func.func @transform_0(%arg0: i32) -> (i32, i32, i32) {
    %c0_i32 = arith.constant 0 : i32
    %c0_i32_0 = arith.constant 0 : i32
    %c0_i32_1 = arith.constant 0 : i32
    return %arg0, %c0_i32, %c0_i32_0 : i32, i32, i32
  }
  func.func @transform_1(%arg0: i32) -> (i32, i32) {
    %c0_i32 = arith.constant 0 : i32
    %c0_i32_0 = arith.constant 0 : i32
    %c0_i32_1 = arith.constant 0 : i32
    return %c0_i32, %c0_i32_0 : i32, i32
  }
  func.func @transform_2(%arg0: i32) -> (i32, i32) {
    %c0_i32 = arith.constant 0 : i32
    %c0_i32_0 = arith.constant 0 : i32
    %c0_i32_1 = arith.constant 0 : i32
    return %c0_i32, %c0_i32_0 : i32, i32
  }
  func.func @transform_3(%arg0: i32) -> (i32, i32) {
    %c0_i32 = arith.constant 0 : i32
    %c0_i32_0 = arith.constant 0 : i32
    %c0_i32_1 = arith.constant 0 : i32
    return %c0_i32, %c0_i32_0 : i32, i32
  }
  func.func @transform_4(%arg0: i32) -> (i32, i32) {
    %c0_i32 = arith.constant 0 : i32
    %c0_i32_0 = arith.constant 0 : i32
    %c0_i32_1 = arith.constant 0 : i32
    return %c0_i32, %c0_i32_0 : i32, i32
  }
  func.func @transform_5(%arg0: i32) -> (i32, i32) {
    %c0_i32 = arith.constant 0 : i32
    %c0_i32_0 = arith.constant 0 : i32
    %c0_i32_1 = arith.constant 0 : i32
    return %c0_i32, %c0_i32_0 : i32, i32
  }
  func.func @transform_6(%arg0: i32) -> (i32, i32) {
    %c0_i32 = arith.constant 0 : i32
    %c0_i32_0 = arith.constant 0 : i32
    %c0_i32_1 = arith.constant 0 : i32
    return %c0_i32, %c0_i32_0 : i32, i32
  }
  func.func @transform_7(%arg0: i32) -> (i32, i32) {
    %c0_i32 = arith.constant 0 : i32
    %c0_i32_0 = arith.constant 0 : i32
    %c0_i32_1 = arith.constant 0 : i32
    return %c0_i32, %c0_i32_0 : i32, i32
  }
  func.func @transform_8(%arg0: i32) -> (i32, i32) {
    %c0_i32 = arith.constant 0 : i32
    %c0_i32_0 = arith.constant 0 : i32
    %c0_i32_1 = arith.constant 0 : i32
    return %c0_i32, %c0_i32_0 : i32, i32
  }
  func.func @transform_9(%arg0: i32) -> (i32, i32) {
    %c0_i32 = arith.constant 0 : i32
    %c0_i32_0 = arith.constant 0 : i32
    %c0_i32_1 = arith.constant 0 : i32
    return %c0_i32, %c0_i32_0 : i32, i32
  }
  func.func @transform_10(%arg0: i32) -> (i32, i32) {
    %c0_i32 = arith.constant 0 : i32
    %c0_i32_0 = arith.constant 0 : i32
    %c0_i32_1 = arith.constant 0 : i32
    return %c0_i32, %c0_i32_0 : i32, i32
  }
  func.func @transform_11(%arg0: i32) -> (i32, i32, i32) {
    %c0_i32 = arith.constant 0 : i32
    %c0_i32_0 = arith.constant 0 : i32
    %c0_i32_1 = arith.constant 0 : i32
    return %arg0, %c0_i32, %c0_i32_0 : i32, i32, i32
  }
}

</mosaic_0001>

<llo_original>
// kernel: rcab_forward.1
$region0: #{rcab_forward.1}
  #allocation0 [shape = 'u32[]', space=smem, size = 0x4, offset = 0x4, fixed_abs, tag = 'smem constant byte address 0x4 - core index']
  #allocation1 [shape = 'u32[144,128]{1,0:T(1,128)}', space=vmem, size = 0x12000, scoped, tag = 'internal scratch']
  #allocation2 [shape = 'bf16[304,32]{1,0:T(8,128)(2,1)}', space=vmem, size = 0x13000, scoped, tag = 'scratch operand']
  #allocation3 [shape = 'bf16[256,288]{1,0:T(8,128)(2,1)}', space=vmem, size = 0x30000, scoped, tag = 'scratch operand']
  %s0 = inlined_call_operand.vmem [shape: bf16[2,256,32], index: 0, kind: input, shape index: {}]
  %s1 = inlined_call_operand.vmem [shape: bf16[256,32], index: 1, kind: input, shape index: {}]
  %s2 = inlined_call_operand.vmem [shape: bf16[256,32], index: 2, kind: input, shape index: {}]
  %s3 = inlined_call_operand.vmem [shape: bf16[288,32], index: 3, kind: input, shape index: {}]
  %s4 = inlined_call_operand.vmem [shape: f32[1,32], index: 4, kind: input, shape index: {}]
  %s5 = inlined_call_operand.vmem [shape: bf16[288,32], index: 5, kind: input, shape index: {}]
  %s6 = inlined_call_operand.vmem [shape: f32[1,32], index: 6, kind: input, shape index: {}]
  %s7 = inlined_call_operand.vmem [shape: f32[32,8], index: 7, kind: input, shape index: {}]
  %s8 = inlined_call_operand.vmem [shape: f32[1,8], index: 8, kind: input, shape index: {}]
  %s9 = inlined_call_operand.vmem [shape: f32[8,32], index: 9, kind: input, shape index: {}]
  %s10 = inlined_call_operand.vmem [shape: f32[1,32], index: 10, kind: input, shape index: {}]
  %s11 = inlined_call_operand.hbm [shape: f32[2,256,32], index: 11, kind: output, shape index: {}]
  %s12 = sld [smem:[#allocation0]]
  $region77: #{rcab_forward.1} parent=0
    _
  %s14 = ssub.s32 1, %s12
  %s15 = scalar_select 0, %s14, %s12
  $region1: #{rcab_forward.1} parent=0
    #allocation4 [shape = 'u8[262144]{0}', space=vmem, size = 0x40000, scoped, tag = 'output window, operand 0']
    #allocation5 [shape = 's32[2]{0}', space=sflag, size = 0x8, scoped, tag = 'scoped memory for rcab_forward.1']
    %16 = vsyncpa [#allocation5], 0
    %s17 = scalar_lea.sflag [#allocation5], 1
    %18 = vsyncpa %s17, 0
    loop: start=0, step=1, limit=4
    $region2: #{rcab_forward.1} parent=1 // loop_pre_header
      _
    $region3: #{rcab_forward.1} parent=1 // loop_header
      %s20 = sphi 0, %s24
      %p21 = scmp.ge.s32.totalorder %s20, 4
      %s30 = sphi 0, %s32
      %s33 = sphi 0, %s30
      %s34 = sphi 0, %s33
      %s50 = sphi 0, %s34
      %s54 = sphi 0, %s54
      %s56 = sphi 0, %s54
      %s57 = sphi 0, %s56
      %s71 = sphi 0, %s57
      %s75 = sphi 0, %s75
      %s77 = sphi 0, %s75
      %s78 = sphi 0, %s77
      %s92 = sphi 0, %s78
      %s96 = sphi 0, %s96
      %s98 = sphi 0, %s96
      %s99 = sphi 0, %s98
      %s113 = sphi 0, %s99
      %s117 = sphi 0, %s117
      %s119 = sphi 0, %s117
      %s120 = sphi 0, %s119
      %s134 = sphi 0, %s120
      %s138 = sphi 0, %s138
      %s140 = sphi 0, %s138
      %s141 = sphi 0, %s140
      %s155 = sphi 0, %s141
      %s159 = sphi 0, %s159
      %s161 = sphi 0, %s159
      %s162 = sphi 0, %s161
      %s176 = sphi 0, %s162
      %s180 = sphi 0, %s180
      %s182 = sphi 0, %s180
      %s183 = sphi 0, %s182
      %s197 = sphi 0, %s183
      %s201 = sphi 0, %s201
      %s203 = sphi 0, %s201
      %s204 = sphi 0, %s203
      %s218 = sphi 0, %s204
      %s222 = sphi 0, %s222
      %s224 = sphi 0, %s222
      %s225 = sphi 0, %s224
      %s239 = sphi 0, %s225
      %s243 = sphi 0, %s243
      %s245 = sphi 0, %s243
      %s246 = sphi 0, %s245
      %s260 = sphi 0, %s246
      %s266 = sphi 0, %s268
      %s269 = sphi 0, %s266
      %s270 = sphi 0, %s269
      %s286 = sphi 0, %s270
    $region4: #{rcab_forward.1} parent=1 // loop_header_branch
      %23 = sbr.rel (%p21) target = $region8
    $region5: #{rcab_forward.1} parent=1 // loop_body
      %s25 = ssub.s32 %s20, 1
      %s26 = ssub.s32 %s20, 2
      %s27 = sadd.s32 %s20, 1
      %s28 = ssub.s32 %s20, %s27
      %p29 = scmp.eq.s32.totalorder %s28, 0
      %s31 = sadd.s32 %s30, 1
      %s32 = scalar_select %p29, %s30, %s31
      %p35 = pneg %p29
      %p36 = scmp.eq.s32.totalorder %s20, 1
      %p37 = por %p35, %p36
      %p38 = scmp.ne.s32.totalorder %s30, %s33
      %p39 = scmp.eq.s32.totalorder %s20, 0
      %p40 = por %p38, %p39
      %p41 = scmp.ne.s32.totalorder %s30, %s33
      %p42 = scmp.eq.s32.totalorder %s25, 1
      %p43 = por %p41, %p42
      %p44 = scmp.ne.s32.totalorder %s33, %s34
      %p45 = scmp.eq.s32.totalorder %s25, 0
      %p46 = por %p44, %p45
      %p47 = scmp.ne.s32.totalorder %s33, %s34
      %p48 = scmp.eq.s32.totalorder %s26, 1
      %p49 = por %p47, %p48
      %p51 = scmp.ne.s32.totalorder %s34, %s50
      %p52 = scmp.eq.s32.totalorder %s26, 0
      %p53 = por %p51, %p52
      %s55 = sadd.s32 %s54, 1
      %p58 = scmp.eq.s32.totalorder %s20, 1
      %p59 = scmp.ne.s32.totalorder %s54, %s56
      %p60 = scmp.eq.s32.totalorder %s20, 0
      %p61 = por %p59, %p60
      %p62 = scmp.ne.s32.totalorder %s54, %s56
      %p63 = scmp.eq.s32.totalorder %s25, 1
      %p64 = por %p62, %p63
      %p65 = scmp.ne.s32.totalorder %s56, %s57
      %p66 = scmp.eq.s32.totalorder %s25, 0
      %p67 = por %p65, %p66
      %p68 = scmp.ne.s32.totalorder %s56, %s57
      %p69 = scmp.eq.s32.totalorder %s26, 1
      %p70 = por %p68, %p69
      %p72 = scmp.ne.s32.totalorder %s57, %s71
      %p73 = scmp.eq.s32.totalorder %s26, 0
      %p74 = por %p72, %p73
      %s76 = sadd.s32 %s75, 1
      %p79 = scmp.eq.s32.totalorder %s20, 1
      %p80 = scmp.ne.s32.totalorder %s75, %s77
      %p81 = scmp.eq.s32.totalorder %s20, 0
      %p82 = por %p80, %p81
      %p83 = scmp.ne.s32.totalorder %s75, %s77
      %p84 = scmp.eq.s32.totalorder %s25, 1
      %p85 = por %p83, %p84
      %p86 = scmp.ne.s32.totalorder %s77, %s78
      %p87 = scmp.eq.s32.totalorder %s25, 0
      %p88 = por %p86, %p87
      %p89 = scmp.ne.s32.totalorder %s77, %s78
      %p90 = scmp.eq.s32.totalorder %s26, 1
      %p91 = por %p89, %p90
      %p93 = scmp.ne.s32.totalorder %s78, %s92
      %p94 = scmp.eq.s32.totalorder %s26, 0
      %p95 = por %p93, %p94
      %s97 = sadd.s32 %s96, 1
      %p100 = scmp.eq.s32.totalorder %s20, 1
      %p101 = scmp.ne.s32.totalorder %s96, %s98
      %p102 = scmp.eq.s32.totalorder %s20, 0
      %p103 = por %p101, %p102
      %p104 = scmp.ne.s32.totalorder %s96, %s98
      %p105 = scmp.eq.s32.totalorder %s25, 1
      %p106 = por %p104, %p105
      %p107 = scmp.ne.s32.totalorder %s98, %s99
      %p108 = scmp.eq.s32.totalorder %s25, 0
      %p109 = por %p107, %p108
      %p110 = scmp.ne.s32.totalorder %s98, %s99
      %p111 = scmp.eq.s32.totalorder %s26, 1
      %p112 = por %p110, %p111
      %p114 = scmp.ne.s32.totalorder %s99, %s113
      %p115 = scmp.eq.s32.totalorder %s26, 0
      %p116 = por %p114, %p115
      %s118 = sadd.s32 %s117, 1
      %p121 = scmp.eq.s32.totalorder %s20, 1
      %p122 = scmp.ne.s32.totalorder %s117, %s119
      %p123 = scmp.eq.s32.totalorder %s20, 0
      %p124 = por %p122, %p123
      %p125 = scmp.ne.s32.totalorder %s117, %s119
      %p126 = scmp.eq.s32.totalorder %s25, 1
      %p127 = por %p125, %p126
      %p128 = scmp.ne.s32.totalorder %s119, %s120
      %p129 = scmp.eq.s32.totalorder %s25, 0
      %p130 = por %p128, %p129
      %p131 = scmp.ne.s32.totalorder %s119, %s120
      %p132 = scmp.eq.s32.totalorder %s26, 1
      %p133 = por %p131, %p132
      %p135 = scmp.ne.s32.totalorder %s120, %s134
      %p136 = scmp.eq.s32.totalorder %s26, 0
      %p137 = por %p135, %p136
      %s139 = sadd.s32 %s138, 1
      %p142 = scmp.eq.s32.totalorder %s20, 1
      %p143 = scmp.ne.s32.totalorder %s138, %s140
      %p144 = scmp.eq.s32.totalorder %s20, 0
      %p145 = por %p143, %p144
      %p146 = scmp.ne.s32.totalorder %s138, %s140
      %p147 = scmp.eq.s32.totalorder %s25, 1
      %p148 = por %p146, %p147
      %p149 = scmp.ne.s32.totalorder %s140, %s141
      %p150 = scmp.eq.s32.totalorder %s25, 0
      %p151 = por %p149, %p150
      %p152 = scmp.ne.s32.totalorder %s140, %s141
      %p153 = scmp.eq.s32.totalorder %s26, 1
      %p154 = por %p152, %p153
      %p156 = scmp.ne.s32.totalorder %s141, %s155
      %p157 = scmp.eq.s32.totalorder %s26, 0
      %p158 = por %p156, %p157
      %s160 = sadd.s32 %s159, 1
      %p163 = scmp.eq.s32.totalorder %s20, 1
      %p164 = scmp.ne.s32.totalorder %s159, %s161
      %p165 = scmp.eq.s32.totalorder %s20, 0
      %p166 = por %p164, %p165
      %p167 = scmp.ne.s32.totalorder %s159, %s161
      %p168 = scmp.eq.s32.totalorder %s25, 1
      %p169 = por %p167, %p168
      %p170 = scmp.ne.s32.totalorder %s161, %s162
      %p171 = scmp.eq.s32.totalorder %s25, 0
      %p172 = por %p170, %p171
      %p173 = scmp.ne.s32.totalorder %s161, %s162
      %p174 = scmp.eq.s32.totalorder %s26, 1
      %p175 = por %p173, %p174
      %p177 = scmp.ne.s32.totalorder %s162, %s176
      %p178 = scmp.eq.s32.totalorder %s26, 0
      %p179 = por %p177, %p178
      %s181 = sadd.s32 %s180, 1
      %p184 = scmp.eq.s32.totalorder %s20, 1
      %p185 = scmp.ne.s32.totalorder %s180, %s182
      %p186 = scmp.eq.s32.totalorder %s20, 0
      %p187 = por %p185, %p186
      %p188 = scmp.ne.s32.totalorder %s180, %s182
      %p189 = scmp.eq.s32.totalorder %s25, 1
      %p190 = por %p188, %p189
      %p191 = scmp.ne.s32.totalorder %s182, %s183
      %p192 = scmp.eq.s32.totalorder %s25, 0
      %p193 = por %p191, %p192
      %p194 = scmp.ne.s32.totalorder %s182, %s183
      %p195 = scmp.eq.s32.totalorder %s26, 1
      %p196 = por %p194, %p195
      %p198 = scmp.ne.s32.totalorder %s183, %s197
      %p199 = scmp.eq.s32.totalorder %s26, 0
      %p200 = por %p198, %p199
      %s202 = sadd.s32 %s201, 1
      %p205 = scmp.eq.s32.totalorder %s20, 1
      %p206 = scmp.ne.s32.totalorder %s201, %s203
      %p207 = scmp.eq.s32.totalorder %s20, 0
      %p208 = por %p206, %p207
      %p209 = scmp.ne.s32.totalorder %s201, %s203
      %p210 = scmp.eq.s32.totalorder %s25, 1
      %p211 = por %p209, %p210
      %p212 = scmp.ne.s32.totalorder %s203, %s204
      %p213 = scmp.eq.s32.totalorder %s25, 0
      %p214 = por %p212, %p213
      %p215 = scmp.ne.s32.totalorder %s203, %s204
      %p216 = scmp.eq.s32.totalorder %s26, 1
      %p217 = por %p215, %p216
      %p219 = scmp.ne.s32.totalorder %s204, %s218
      %p220 = scmp.eq.s32.totalorder %s26, 0
      %p221 = por %p219, %p220
      %s223 = sadd.s32 %s222, 1
      %p226 = scmp.eq.s32.totalorder %s20, 1
      %p227 = scmp.ne.s32.totalorder %s222, %s224
      %p228 = scmp.eq.s32.totalorder %s20, 0
      %p229 = por %p227, %p228
      %p230 = scmp.ne.s32.totalorder %s222, %s224
      %p231 = scmp.eq.s32.totalorder %s25, 1
      %p232 = por %p230, %p231
      %p233 = scmp.ne.s32.totalorder %s224, %s225
      %p234 = scmp.eq.s32.totalorder %s25, 0
      %p235 = por %p233, %p234
      %p236 = scmp.ne.s32.totalorder %s224, %s225
      %p237 = scmp.eq.s32.totalorder %s26, 1
      %p238 = por %p236, %p237
      %p240 = scmp.ne.s32.totalorder %s225, %s239
      %p241 = scmp.eq.s32.totalorder %s26, 0
      %p242 = por %p240, %p241
      %s244 = sadd.s32 %s243, 1
      %p247 = scmp.eq.s32.totalorder %s20, 1
      %p248 = scmp.ne.s32.totalorder %s243, %s245
      %p249 = scmp.eq.s32.totalorder %s20, 0
      %p250 = por %p248, %p249
      %p251 = scmp.ne.s32.totalorder %s243, %s245
      %p252 = scmp.eq.s32.totalorder %s25, 1
      %p253 = por %p251, %p252
      %p254 = scmp.ne.s32.totalorder %s245, %s246
      %p255 = scmp.eq.s32.totalorder %s25, 0
      %p256 = por %p254, %p255
      %p257 = scmp.ne.s32.totalorder %s245, %s246
      %p258 = scmp.eq.s32.totalorder %s26, 1
      %p259 = por %p257, %p258
      %p261 = scmp.ne.s32.totalorder %s246, %s260
      %p262 = scmp.eq.s32.totalorder %s26, 0
      %p263 = por %p261, %p262
      %s264 = ssub.s32 %s20, %s27
      %p265 = scmp.eq.s32.totalorder %s264, 0
      %s267 = sadd.s32 %s266, 1
      %s268 = scalar_select %p265, %s266, %s267
      %p271 = pneg %p265
      %p272 = scmp.eq.s32.totalorder %s20, 1
      %p273 = por %p271, %p272
      %p274 = scmp.ne.s32.totalorder %s266, %s269
      %p275 = scmp.eq.s32.totalorder %s20, 0
      %p276 = por %p274, %p275
      %p277 = scmp.ne.s32.totalorder %s266, %s269
      %p278 = scmp.eq.s32.totalorder %s25, 1
      %p279 = por %p277, %p278
      %p280 = scmp.ne.s32.totalorder %s269, %s270
      %p281 = scmp.eq.s32.totalorder %s25, 0
      %p282 = por %p280, %p281
      %p283 = scmp.ne.s32.totalorder %s269, %s270
      %p284 = scmp.eq.s32.totalorder %s26, 1
      %p285 = por %p283, %p284
      %p287 = scmp.ne.s32.totalorder %s270, %s286
      %p288 = scmp.eq.s32.totalorder %s26, 0
      %p289 = por %p287, %p288
      %p290 = scmp.le.s32.totalorder 1, %s20
      %p291 = scmp.lt.s32.totalorder %s20, 3
      %p292 = pnand %p290, %p291
      %p293 = pneg %p292
      // Predicated region
      $region9: #{rcab_forward.1} parent=5 // pred_check
        _
      $region10: #{rcab_forward.1} parent=5 // pred_check_branch
        %295 = sbr.rel (%p292) target = $region12
      $region11: #{rcab_forward.1} parent=5 // pred_region
        %s296 = ssub.s32 %s20, 1
        // Predicated region
        $region13: #{rcab_forward.1} parent=11 // pred_check
          %p297 = pneg %p67
        $region14: #{rcab_forward.1} parent=11 // pred_check_branch
          %299 = sbr.rel (%p297) target = $region16
        $region15: #{rcab_forward.1} parent=11 // pred_region
          _
        $region16: #{rcab_forward.1} parent=11 // pred_fallthru
          _
        // Predicated region
        $region17: #{rcab_forward.1} parent=11 // pred_check
          %p300 = pneg %p88
        $region18: #{rcab_forward.1} parent=11 // pred_check_branch
          %302 = sbr.rel (%p300) target = $region20
        $region19: #{rcab_forward.1} parent=11 // pred_region
          _
        $region20: #{rcab_forward.1} parent=11 // pred_fallthru
          _
        // Predicated region
        $region21: #{rcab_forward.1} parent=11 // pred_check
          %p303 = pneg %p109
        $region22: #{rcab_forward.1} parent=11 // pred_check_branch
          %305 = sbr.rel (%p303) target = $region24
        $region23: #{rcab_forward.1} parent=11 // pred_region
          _
        $region24: #{rcab_forward.1} parent=11 // pred_fallthru
          _
        // Predicated region
        $region25: #{rcab_forward.1} parent=11 // pred_check
          %p306 = pneg %p130
        $region26: #{rcab_forward.1} parent=11 // pred_check_branch
          %308 = sbr.rel (%p306) target = $region28
        $region27: #{rcab_forward.1} parent=11 // pred_region
          _
        $region28: #{rcab_forward.1} parent=11 // pred_fallthru
          _
        // Predicated region
        $region29: #{rcab_forward.1} parent=11 // pred_check
          %p309 = pneg %p151
        $region30: #{rcab_forward.1} parent=11 // pred_check_branch
          %311 = sbr.rel (%p309) target = $region32
        $region31: #{rcab_forward.1} parent=11 // pred_region
          _
        $region32: #{rcab_forward.1} parent=11 // pred_fallthru
          _
        // Predicated region
        $region33: #{rcab_forward.1} parent=11 // pred_check
          %p312 = pneg %p172
        $region34: #{rcab_forward.1} parent=11 // pred_check_branch
          %314 = sbr.rel (%p312) target = $region36
        $region35: #{rcab_forward.1} parent=11 // pred_region
          _
        $region36: #{rcab_forward.1} parent=11 // pred_fallthru
          _
        // Predicated region
        $region37: #{rcab_forward.1} parent=11 // pred_check
          %p315 = pneg %p193
        $region38: #{rcab_forward.1} parent=11 // pred_check_branch
          %317 = sbr.rel (%p315) target = $region40
        $region39: #{rcab_forward.1} parent=11 // pred_region
          _
        $region40: #{rcab_forward.1} parent=11 // pred_fallthru
          _
        // Predicated region
        $region41: #{rcab_forward.1} parent=11 // pred_check
          %p318 = pneg %p214
        $region42: #{rcab_forward.1} parent=11 // pred_check_branch
          %320 = sbr.rel (%p318) target = $region44
        $region43: #{rcab_forward.1} parent=11 // pred_region
          _
        $region44: #{rcab_forward.1} parent=11 // pred_fallthru
          _
        // Predicated region
        $region45: #{rcab_forward.1} parent=11 // pred_check
          %p321 = pneg %p235
        $region46: #{rcab_forward.1} parent=11 // pred_check_branch
          %323 = sbr.rel (%p321) target = $region48
        $region47: #{rcab_forward.1} parent=11 // pred_region
          _
        $region48: #{rcab_forward.1} parent=11 // pred_fallthru
          _
        // Predicated region
        $region49: #{rcab_forward.1} parent=11 // pred_check
          %p324 = pneg %p256
        $region50: #{rcab_forward.1} parent=11 // pred_check_branch
          %326 = sbr.rel (%p324) target = $region52
        $region51: #{rcab_forward.1} parent=11 // pred_region
          _
        $region52: #{rcab_forward.1} parent=11 // pred_fallthru
          _
      $region12: #{rcab_forward.1} parent=5 // pred_fallthru
        _
      %p327 = scmp.lt.s32.totalorder %s20, 2
      // Predicated region
      $region53: #{rcab_forward.1} parent=5 // pred_check
        %p328 = pneg %p327
      $region54: #{rcab_forward.1} parent=5 // pred_check_branch
        %330 = sbr.rel (%p328) target = $region56
      $region55: #{rcab_forward.1} parent=5 // pred_region
        // Predicated region
        $region57: #{rcab_forward.1} parent=55 // pred_check
          %p331 = pneg %p40
        $region58: #{rcab_forward.1} parent=55 // pred_check_branch
          %333 = sbr.rel (%p331) target = $region60
        $region59: #{rcab_forward.1} parent=55 // pred_region
          %p334 = scmp.lt.s32.totalorder %s20, 1
          %s335 = scalar_select %p334, %s20, 1
          %s336 = smul.addr %s335, 32
          %s337 = smul.addr %s336, 4
          %s338 = scalar_lea.vmem %s0, %s337
        $region60: #{rcab_forward.1} parent=55 // pred_fallthru
          _
      $region56: #{rcab_forward.1} parent=5 // pred_fallthru
        _
      %p339 = scmp.le.s32.totalorder 1, %s20
      %p340 = scmp.lt.s32.totalorder %s20, 3
      %p341 = pnand %p339, %p340
      %p342 = pneg %p341
      // Predicated region
      $region61: #{rcab_forward.1} parent=5 // pred_check
        _
      $region62: #{rcab_forward.1} parent=5 // pred_check_branch
        %344 = sbr.rel (%p341) target = $region64
      $region63: #{rcab_forward.1} parent=5 // pred_region
        %s345 = ssub.s32 %s20, 1
        %p346 = scmp.lt.s32.totalorder %s25, 1
        %s347 = scalar_select %p346, %s25, 1
        %s348 = smul.addr %s347, 32
        %s349 = smul.addr %s348, 4
        %s350 = scalar_lea.vmem %s0, %s349
        %p351 = pneg %p46
        %p352 = pneg %p43
        %p353 = pneg %p67
        %p354 = pneg %p64
        %p355 = pneg %p88
        %p356 = pneg %p85
        %p357 = pneg %p109
        %p358 = pneg %p106
        %p359 = pneg %p130
        %p360 = pneg %p127
        %p361 = pneg %p151
        %p362 = pneg %p148
        %p363 = pneg %p172
        %p364 = pneg %p169
        %p365 = pneg %p193
        %p366 = pneg %p190
        %p367 = pneg %p214
        %p368 = pneg %p211
        %p369 = pneg %p235
        %p370 = pneg %p232
        %p371 = pneg %p256
        %p372 = pneg %p253
        %p373 = pneg %p282
        %p374 = pneg %p279
        %s375 = sand.u32 %s269, 1
        %s376 = scalar_lea.sflag [#allocation5], %s375
        %s377 = sand.u32 %s269, 1
        %s378 = smul.addr %s377, 256
        %s379 = scalar_lea.vmem [#allocation4], %s378
        %p380 = scmp.lt.s32.totalorder %s25, 1
        %s381 = scalar_select %p380, %s25, 1
        %s382 = smul.addr %s381, 32
        %s383 = smul.addr %s382, 4
        %s384 = scalar_lea.vmem %s0, %s383
        %vm386 = vcmask 257024
        %387 = vst.msk [vmem:[#allocation2] sm:$0xf] %vm386, 0
        %388 = vst.msk [vmem:[#allocation2 + $0x4] sm:$0xf] %vm386, 0
        %389 = vst.msk [vmem:[#allocation2 + $0x8] sm:$0xf] %vm386, 0
        %390 = vst.msk [vmem:[#allocation2 + $0x8c] sm:$0xf] %vm386, 0
        %391 = vst.msk [vmem:[#allocation2 + $0x90] sm:$0xf] %vm386, 0
        %392 = vst.msk [vmem:[#allocation2 + $0x94] sm:$0xf] %vm386, 0
        %v393 = vld [vmem:[%s1] sm:$0xf]
        %v394 = vld [vmem:[%s1 + $0x4] sm:$0xf]
        %v395 = vld [vmem:[%s1 + $0x8] sm:$0xf]
        %v396 = vld [vmem:[%s1 + $0xc] sm:$0xf]
        %v397 = vld [vmem:[%s1 + $0x10] sm:$0xf]
        %v398 = vld [vmem:[%s1 + $0x14] sm:$0xf]
        %v399 = vld [vmem:[%s1 + $0x18] sm:$0xf]
        %v400 = vld [vmem:[%s1 + $0x1c] sm:$0xf]
        %v401 = vld [vmem:[%s1 + $0x20] sm:$0xf]
        %v402 = vld [vmem:[%s1 + $0x24] sm:$0xf]
        %v403 = vld [vmem:[%s1 + $0x28] sm:$0xf]
        %v404 = vld [vmem:[%s1 + $0x2c] sm:$0xf]
        %v405 = vld [vmem:[%s1 + $0x30] sm:$0xf]
        %v406 = vld [vmem:[%s1 + $0x34] sm:$0xf]
        %v407 = vld [vmem:[%s1 + $0x38] sm:$0xf]
        %v408 = vld [vmem:[%s1 + $0x3c] sm:$0xf]
        %v409 = vld [vmem:[%s1 + $0x40] sm:$0xf]
        %v410 = vld [vmem:[%s1 + $0x44] sm:$0xf]
        %v411 = vld [vmem:[%s1 + $0x48] sm:$0xf]
        %v412 = vld [vmem:[%s1 + $0x4c] sm:$0xf]
        %v413 = vld [vmem:[%s1 + $0x50] sm:$0xf]
        %v414 = vld [vmem:[%s1 + $0x54] sm:$0xf]
        %v415 = vld [vmem:[%s1 + $0x58] sm:$0xf]
        %v416 = vld [vmem:[%s1 + $0x5c] sm:$0xf]
        %v417 = vld [vmem:[%s1 + $0x60] sm:$0xf]
        %v418 = vld [vmem:[%s1 + $0x64] sm:$0xf]
        %v419 = vld [vmem:[%s1 + $0x68] sm:$0xf]
        %v420 = vld [vmem:[%s1 + $0x6c] sm:$0xf]
        %v421 = vld [vmem:[%s1 + $0x70] sm:$0xf]
        %v422 = vld [vmem:[%s1 + $0x74] sm:$0xf]
        %v423 = vld [vmem:[%s1 + $0x78] sm:$0xf]
        %v424 = vld [vmem:[%s1 + $0x7c] sm:$0xf]
        %v425 = vld [vmem:[%s2] sm:$0xf]
        %v426 = vld [vmem:[%s2 + $0x4] sm:$0xf]
        %v427 = vld [vmem:[%s2 + $0x8] sm:$0xf]
        %v428 = vld [vmem:[%s2 + $0xc] sm:$0xf]
        %v429 = vld [vmem:[%s2 + $0x10] sm:$0xf]
        %v430 = vld [vmem:[%s2 + $0x14] sm:$0xf]
        %v431 = vld [vmem:[%s2 + $0x18] sm:$0xf]
        %v432 = vld [vmem:[%s2 + $0x1c] sm:$0xf]
        %v433 = vld [vmem:[%s2 + $0x20] sm:$0xf]
        %v434 = vld [vmem:[%s2 + $0x24] sm:$0xf]
        %v435 = vld [vmem:[%s2 + $0x28] sm:$0xf]
        %v436 = vld [vmem:[%s2 + $0x2c] sm:$0xf]
        %v437 = vld [vmem:[%s2 + $0x30] sm:$0xf]
        %v438 = vld [vmem:[%s2 + $0x34] sm:$0xf]
        %v439 = vld [vmem:[%s2 + $0x38] sm:$0xf]
        %v440 = vld [vmem:[%s2 + $0x3c] sm:$0xf]
        %v441 = vld [vmem:[%s2 + $0x40] sm:$0xf]
        %v442 = vld [vmem:[%s2 + $0x44] sm:$0xf]
        %v443 = vld [vmem:[%s2 + $0x48] sm:$0xf]
        %v444 = vld [vmem:[%s2 + $0x4c] sm:$0xf]
        %v445 = vld [vmem:[%s2 + $0x50] sm:$0xf]
        %v446 = vld [vmem:[%s2 + $0x54] sm:$0xf]
        %v447 = vld [vmem:[%s2 + $0x58] sm:$0xf]
        %v448 = vld [vmem:[%s2 + $0x5c] sm:$0xf]
        %v449 = vld [vmem:[%s2 + $0x60] sm:$0xf]
        %v450 = vld [vmem:[%s2 + $0x64] sm:$0xf]
        %v451 = vld [vmem:[%s2 + $0x68] sm:$0xf]
        %v452 = vld [vmem:[%s2 + $0x6c] sm:$0xf]
        %v453 = vld [vmem:[%s2 + $0x70] sm:$0xf]
        %v454 = vld [vmem:[%s2 + $0x74] sm:$0xf]
        %v455 = vld [vmem:[%s2 + $0x78] sm:$0xf]
        %v456 = vld [vmem:[%s2 + $0x7c] sm:$0xf]
        %v457 = vld [vmem:[%s384] sm:$0xf]
        %v458 = vld [vmem:[%s384 + $0x4] sm:$0xf]
        %v459 = vld [vmem:[%s384 + $0x8] sm:$0xf]
        %v460 = vld [vmem:[%s384 + $0xc] sm:$0xf]
        %v461 = vld [vmem:[%s384 + $0x10] sm:$0xf]
        %v462 = vld [vmem:[%s384 + $0x14] sm:$0xf]
        %v463 = vld [vmem:[%s384 + $0x18] sm:$0xf]
        %v464 = vld [vmem:[%s384 + $0x1c] sm:$0xf]
        %v465 = vld [vmem:[%s384 + $0x20] sm:$0xf]
        %v466 = vld [vmem:[%s384 + $0x24] sm:$0xf]
        %v467 = vld [vmem:[%s384 + $0x28] sm:$0xf]
        %v468 = vld [vmem:[%s384 + $0x2c] sm:$0xf]
        %v469 = vld [vmem:[%s384 + $0x30] sm:$0xf]
        %v470 = vld [vmem:[%s384 + $0x34] sm:$0xf]
        %v471 = vld [vmem:[%s384 + $0x38] sm:$0xf]
        %v472 = vld [vmem:[%s384 + $0x3c] sm:$0xf]
        %v473 = vld [vmem:[%s384 + $0x40] sm:$0xf]
        %v474 = vld [vmem:[%s384 + $0x44] sm:$0xf]
        %v475 = vld [vmem:[%s384 + $0x48] sm:$0xf]
        %v476 = vld [vmem:[%s384 + $0x4c] sm:$0xf]
        %v477 = vld [vmem:[%s384 + $0x50] sm:$0xf]
        %v478 = vld [vmem:[%s384 + $0x54] sm:$0xf]
        %v479 = vld [vmem:[%s384 + $0x58] sm:$0xf]
        %v480 = vld [vmem:[%s384 + $0x5c] sm:$0xf]
        %v481 = vld [vmem:[%s384 + $0x60] sm:$0xf]
        %v482 = vld [vmem:[%s384 + $0x64] sm:$0xf]
        %v483 = vld [vmem:[%s384 + $0x68] sm:$0xf]
        %v484 = vld [vmem:[%s384 + $0x6c] sm:$0xf]
        %v485 = vld [vmem:[%s384 + $0x70] sm:$0xf]
        %v486 = vld [vmem:[%s384 + $0x74] sm:$0xf]
        %v487 = vld [vmem:[%s384 + $0x78] sm:$0xf]
        %v488 = vld [vmem:[%s384 + $0x7c] sm:$0xf]
        %489 = vst.msk [vmem:[#allocation2 + $0xc] sm:$0xf] %vm386, %v457
        %490 = vst.msk [vmem:[#allocation2 + $0x10] sm:$0xf] %vm386, %v458
        %491 = vst.msk [vmem:[#allocation2 + $0x14] sm:$0xf] %vm386, %v459
        %492 = vst.msk [vmem:[#allocation2 + $0x18] sm:$0xf] %vm386, %v460
        %493 = vst.msk [vmem:[#allocation2 + $0x1c] sm:$0xf] %vm386, %v461
        %494 = vst.msk [vmem:[#allocation2 + $0x20] sm:$0xf] %vm386, %v462
        %495 = vst.msk [vmem:[#allocation2 + $0x24] sm:$0xf] %vm386, %v463
        %496 = vst.msk [vmem:[#allocation2 + $0x28] sm:$0xf] %vm386, %v464
        %497 = vst.msk [vmem:[#allocation2 + $0x2c] sm:$0xf] %vm386, %v465
        %498 = vst.msk [vmem:[#allocation2 + $0x30] sm:$0xf] %vm386, %v466
        %499 = vst.msk [vmem:[#allocation2 + $0x34] sm:$0xf] %vm386, %v467
        %500 = vst.msk [vmem:[#allocation2 + $0x38] sm:$0xf] %vm386, %v468
        %501 = vst.msk [vmem:[#allocation2 + $0x3c] sm:$0xf] %vm386, %v469
        %502 = vst.msk [vmem:[#allocation2 + $0x40] sm:$0xf] %vm386, %v470
        %503 = vst.msk [vmem:[#allocation2 + $0x44] sm:$0xf] %vm386, %v471
        %504 = vst.msk [vmem:[#allocation2 + $0x48] sm:$0xf] %vm386, %v472
        %505 = vst.msk [vmem:[#allocation2 + $0x4c] sm:$0xf] %vm386, %v473
        %506 = vst.msk [vmem:[#allocation2 + $0x50] sm:$0xf] %vm386, %v474
        %507 = vst.msk [vmem:[#allocation2 + $0x54] sm:$0xf] %vm386, %v475
        %508 = vst.msk [vmem:[#allocation2 + $0x58] sm:$0xf] %vm386, %v476
        %509 = vst.msk [vmem:[#allocation2 + $0x5c] sm:$0xf] %vm386, %v477
        %510 = vst.msk [vmem:[#allocation2 + $0x60] sm:$0xf] %vm386, %v478
        %511 = vst.msk [vmem:[#allocation2 + $0x64] sm:$0xf] %vm386, %v479
        %512 = vst.msk [vmem:[#allocation2 + $0x68] sm:$0xf] %vm386, %v480
        %513 = vst.msk [vmem:[#allocation2 + $0x6c] sm:$0xf] %vm386, %v481
        %514 = vst.msk [vmem:[#allocation2 + $0x70] sm:$0xf] %vm386, %v482
        %515 = vst.msk [vmem:[#allocation2 + $0x74] sm:$0xf] %vm386, %v483
        %516 = vst.msk [vmem:[#allocation2 + $0x78] sm:$0xf] %vm386, %v484
        %517 = vst.msk [vmem:[#allocation2 + $0x7c] sm:$0xf] %vm386, %v485
        %518 = vst.msk [vmem:[#allocation2 + $0x80] sm:$0xf] %vm386, %v486
        %519 = vst.msk [vmem:[#allocation2 + $0x84] sm:$0xf] %vm386, %v487
        %520 = vst.msk [vmem:[#allocation2 + $0x88] sm:$0xf] %vm386, %v488
        %v521 = vld [vmem:[#allocation2] sm:$0x8]
        %v522 = vld [vmem:[#allocation2 + $0x4] sm:$0xf]
        %v523 = vld [vmem:[#allocation2 + $0x8] sm:$0xf]
        %v524 = vld [vmem:[#allocation2 + $0xc] sm:$0xf]
        %v525 = vld [vmem:[#allocation2 + $0x10] sm:$0xf]
        %v526 = vld [vmem:[#allocation2 + $0x14] sm:$0xf]
        %v527 = vld [vmem:[#allocation2 + $0x18] sm:$0xf]
        %v528 = vld [vmem:[#allocation2 + $0x1c] sm:$0xf]
        %v529 = vld [vmem:[#allocation2 + $0x20] sm:$0xf]
        %v530 = vld [vmem:[#allocation2 + $0x24] sm:$0xf]
        %v531 = vld [vmem:[#allocation2 + $0x28] sm:$0xf]
        %v532 = vld [vmem:[#allocation2 + $0x2c] sm:$0xf]
        %v533 = vld [vmem:[#allocation2 + $0x30] sm:$0xf]
        %v534 = vld [vmem:[#allocation2 + $0x34] sm:$0xf]
        %v535 = vld [vmem:[#allocation2 + $0x38] sm:$0xf]
        %v536 = vld [vmem:[#allocation2 + $0x3c] sm:$0xf]
        %v537 = vld [vmem:[#allocation2 + $0x40] sm:$0xf]
        %v538 = vld [vmem:[#allocation2 + $0x44] sm:$0xf]
        %v539 = vld [vmem:[#allocation2 + $0x48] sm:$0xf]
        %v540 = vld [vmem:[#allocation2 + $0x4c] sm:$0xf]
        %v541 = vld [vmem:[#allocation2 + $0x50] sm:$0xf]
        %v542 = vld [vmem:[#allocation2 + $0x54] sm:$0xf]
        %v543 = vld [vmem:[#allocation2 + $0x58] sm:$0xf]
        %v544 = vld [vmem:[#allocation2 + $0x5c] sm:$0xf]
        %v545 = vld [vmem:[#allocation2 + $0x60] sm:$0xf]
        %v546 = vld [vmem:[#allocation2 + $0x64] sm:$0xf]
        %v547 = vld [vmem:[#allocation2 + $0x68] sm:$0xf]
        %v548 = vld [vmem:[#allocation2 + $0x6c] sm:$0xf]
        %v549 = vld [vmem:[#allocation2 + $0x70] sm:$0xf]
        %v550 = vld [vmem:[#allocation2 + $0x74] sm:$0xf]
        %v551 = vld [vmem:[#allocation2 + $0x78] sm:$0xf]
        %v552 = vld [vmem:[#allocation2 + $0x7c] sm:$0xf]
        %v553 = vld [vmem:[#allocation2 + $0x80] sm:$0xf]
        %vm554 = vsmask.f32 3328
        %vm555 = vsmask.f32 7440
        %vm556 = vmor %vm554, %vm555
        %v558 = vshll.u32 %v393, 16
        %v560 = vrot.slane %v558, 5
        %v561 = vshrl.u32 %v393, 16
        %v563 = vrot.slane %v561, 4
        %v564 = vor.u32 %v563, %v560
        %v565 = vrot.slane %v564, 4
        %v567 = vshll.u32 %v394, 16
        %v569 = vrot.slane %v567, 5
        %v570 = vsel %vm556, %v565, %v569
        %v571 = vshrl.u32 %v394, 16
        %v573 = vrot.slane %v571, 4
        %v574 = vor.u32 %v573, %v569
        %v575 = vrot.slane %v574, 4
        %v577 = vshll.u32 %v395, 16
        %v579 = vrot.slane %v577, 5
        %v580 = vsel %vm556, %v575, %v579
        %v581 = vshrl.u32 %v395, 16
        %v583 = vrot.slane %v581, 4
        %v584 = vor.u32 %v583, %v579
        %v585 = vrot.slane %v584, 4
        %v587 = vshll.u32 %v396, 16
        %v589 = vrot.slane %v587, 5
        %v590 = vsel %vm556, %v585, %v589
        %v591 = vshrl.u32 %v396, 16
        %v593 = vrot.slane %v591, 4
        %v594 = vor.u32 %v593, %v589
        %v595 = vrot.slane %v594, 4
        %v597 = vshll.u32 %v397, 16
        %v599 = vrot.slane %v597, 5
        %v600 = vsel %vm556, %v595, %v599
        %v601 = vshrl.u32 %v397, 16
        %v603 = vrot.slane %v601, 4
        %v604 = vor.u32 %v603, %v599
        %v605 = vrot.slane %v604, 4
        %v607 = vshll.u32 %v398, 16
        %v609 = vrot.slane %v607, 5
        %v610 = vsel %vm556, %v605, %v609
        %v611 = vshrl.u32 %v398, 16
        %v613 = vrot.slane %v611, 4
        %v614 = vor.u32 %v613, %v609
        %v615 = vrot.slane %v614, 4
        %v617 = vshll.u32 %v399, 16
        %v619 = vrot.slane %v617, 5
        %v620 = vsel %vm556, %v615, %v619
        %v621 = vshrl.u32 %v399, 16
        %v623 = vrot.slane %v621, 4
        %v624 = vor.u32 %v623, %v619
        %v625 = vrot.slane %v624, 4
        %v627 = vshll.u32 %v400, 16
        %v629 = vrot.slane %v627, 5
        %v630 = vsel %vm556, %v625, %v629
        %v631 = vshrl.u32 %v400, 16
        %v633 = vrot.slane %v631, 4
        %v634 = vor.u32 %v633, %v629
        %v635 = vrot.slane %v634, 4
        %v637 = vshll.u32 %v401, 16
        %v639 = vrot.slane %v637, 5
        %v640 = vsel %vm556, %v635, %v639
        %v641 = vshrl.u32 %v401, 16
        %v643 = vrot.slane %v641, 4
        %v644 = vor.u32 %v643, %v639
        %v645 = vrot.slane %v644, 4
        %v647 = vshll.u32 %v402, 16
        %v649 = vrot.slane %v647, 5
        %v650 = vsel %vm556, %v645, %v649
        %v651 = vshrl.u32 %v402, 16
        %v653 = vrot.slane %v651, 4
        %v654 = vor.u32 %v653, %v649
        %v655 = vrot.slane %v654, 4
        %v657 = vshll.u32 %v403, 16
        %v659 = vrot.slane %v657, 5
        %v660 = vsel %vm556, %v655, %v659
        %v661 = vshrl.u32 %v403, 16
        %v663 = vrot.slane %v661, 4
        %v664 = vor.u32 %v663, %v659
        %v665 = vrot.slane %v664, 4
        %v667 = vshll.u32 %v404, 16
        %v669 = vrot.slane %v667, 5
        %v670 = vsel %vm556, %v665, %v669
        %v671 = vshrl.u32 %v404, 16
        %v673 = vrot.slane %v671, 4
        %v674 = vor.u32 %v673, %v669
        %v675 = vrot.slane %v674, 4
        %v677 = vshll.u32 %v405, 16
        %v679 = vrot.slane %v677, 5
        %v680 = vsel %vm556, %v675, %v679
        %v681 = vshrl.u32 %v405, 16
        %v683 = vrot.slane %v681, 4
        %v684 = vor.u32 %v683, %v679
        %v685 = vrot.slane %v684, 4
        %v687 = vshll.u32 %v406, 16
        %v689 = vrot.slane %v687, 5
        %v690 = vsel %vm556, %v685, %v689
        %v691 = vshrl.u32 %v406, 16
        %v693 = vrot.slane %v691, 4
        %v694 = vor.u32 %v693, %v689
        %v695 = vrot.slane %v694, 4
        %v697 = vshll.u32 %v407, 16
        %v699 = vrot.slane %v697, 5
        %v700 = vsel %vm556, %v695, %v699
        %v701 = vshrl.u32 %v407, 16
        %v703 = vrot.slane %v701, 4
        %v704 = vor.u32 %v703, %v699
        %v705 = vrot.slane %v704, 4
        %v707 = vshll.u32 %v408, 16
        %v709 = vrot.slane %v707, 5
        %v710 = vsel %vm556, %v705, %v709
        %v711 = vshrl.u32 %v408, 16
        %v713 = vrot.slane %v711, 4
        %v714 = vor.u32 %v713, %v709
        %v715 = vrot.slane %v714, 4
        %v717 = vshll.u32 %v409, 16
        %v719 = vrot.slane %v717, 5
        %v720 = vsel %vm556, %v715, %v719
        %v721 = vshrl.u32 %v409, 16
        %v723 = vrot.slane %v721, 4
        %v724 = vor.u32 %v723, %v719
        %v725 = vrot.slane %v724, 4
        %v727 = vshll.u32 %v410, 16
        %v729 = vrot.slane %v727, 5
        %v730 = vsel %vm556, %v725, %v729
        %v731 = vshrl.u32 %v410, 16
        %v733 = vrot.slane %v731, 4
        %v734 = vor.u32 %v733, %v729
        %v735 = vrot.slane %v734, 4
        %v737 = vshll.u32 %v411, 16
        %v739 = vrot.slane %v737, 5
        %v740 = vsel %vm556, %v735, %v739
        %v741 = vshrl.u32 %v411, 16
        %v743 = vrot.slane %v741, 4
        %v744 = vor.u32 %v743, %v739
        %v745 = vrot.slane %v744, 4
        %v747 = vshll.u32 %v412, 16
        %v749 = vrot.slane %v747, 5
        %v750 = vsel %vm556, %v745, %v749
        %v751 = vshrl.u32 %v412, 16
        %v753 = vrot.slane %v751, 4
        %v754 = vor.u32 %v753, %v749
        %v755 = vrot.slane %v754, 4
        %v757 = vshll.u32 %v413, 16
        %v759 = vrot.slane %v757, 5
        %v760 = vsel %vm556, %v755, %v759
        %v761 = vshrl.u32 %v413, 16
        %v763 = vrot.slane %v761, 4
        %v764 = vor.u32 %v763, %v759
        %v765 = vrot.slane %v764, 4
        %v767 = vshll.u32 %v414, 16
        %v769 = vrot.slane %v767, 5
        %v770 = vsel %vm556, %v765, %v769
        %v771 = vshrl.u32 %v414, 16
        %v773 = vrot.slane %v771, 4
        %v774 = vor.u32 %v773, %v769
        %v775 = vrot.slane %v774, 4
        %v777 = vshll.u32 %v415, 16
        %v779 = vrot.slane %v777, 5
        %v780 = vsel %vm556, %v775, %v779
        %v781 = vshrl.u32 %v415, 16
        %v783 = vrot.slane %v781, 4
        %v784 = vor.u32 %v783, %v779
        %v785 = vrot.slane %v784, 4
        %v787 = vshll.u32 %v416, 16
        %v789 = vrot.slane %v787, 5
        %v790 = vsel %vm556, %v785, %v789
        %v791 = vshrl.u32 %v416, 16
        %v793 = vrot.slane %v791, 4
        %v794 = vor.u32 %v793, %v789
        %v795 = vrot.slane %v794, 4
        %v797 = vshll.u32 %v417, 16
        %v799 = vrot.slane %v797, 5
        %v800 = vsel %vm556, %v795, %v799
        %v801 = vshrl.u32 %v417, 16
        %v803 = vrot.slane %v801, 4
        %v804 = vor.u32 %v803, %v799
        %v805 = vrot.slane %v804, 4
        %v807 = vshll.u32 %v418, 16
        %v809 = vrot.slane %v807, 5
        %v810 = vsel %vm556, %v805, %v809
        %v811 = vshrl.u32 %v418, 16
        %v813 = vrot.slane %v811, 4
        %v814 = vor.u32 %v813, %v809
        %v815 = vrot.slane %v814, 4
        %v817 = vshll.u32 %v419, 16
        %v819 = vrot.slane %v817, 5
        %v820 = vsel %vm556, %v815, %v819
        %v821 = vshrl.u32 %v419, 16
        %v823 = vrot.slane %v821, 4
        %v824 = vor.u32 %v823, %v819
        %v825 = vrot.slane %v824, 4
        %v827 = vshll.u32 %v420, 16
        %v829 = vrot.slane %v827, 5
        %v830 = vsel %vm556, %v825, %v829
        %v831 = vshrl.u32 %v420, 16
        %v833 = vrot.slane %v831, 4
        %v834 = vor.u32 %v833, %v829
        %v835 = vrot.slane %v834, 4
        %v837 = vshll.u32 %v421, 16
        %v839 = vrot.slane %v837, 5
        %v840 = vsel %vm556, %v835, %v839
        %v841 = vshrl.u32 %v421, 16
        %v843 = vrot.slane %v841, 4
        %v844 = vor.u32 %v843, %v839
        %v845 = vrot.slane %v844, 4
        %v847 = vshll.u32 %v422, 16
        %v849 = vrot.slane %v847, 5
        %v850 = vsel %vm556, %v845, %v849
        %v851 = vshrl.u32 %v422, 16
        %v853 = vrot.slane %v851, 4
        %v854 = vor.u32 %v853, %v849
        %v855 = vrot.slane %v854, 4
        %v857 = vshll.u32 %v423, 16
        %v859 = vrot.slane %v857, 5
        %v860 = vsel %vm556, %v855, %v859
        %v861 = vshrl.u32 %v423, 16
        %v863 = vrot.slane %v861, 4
        %v864 = vor.u32 %v863, %v859
        %v865 = vrot.slane %v864, 4
        %v867 = vshll.u32 %v424, 16
        %v869 = vrot.slane %v867, 5
        %v870 = vsel %vm556, %v865, %v869
        %v871 = vshrl.u32 %v424, 16
        %v873 = vrot.slane %v871, 4
        %v874 = vor.u32 %v873, %v869
        %v875 = vrot.slane %v874, 4
        %v909 = vmul.bf16 %v521, %v560
        %v910 = vmul.bf16 %v522, %v570
        %v911 = vmul.bf16 %v523, %v580
        %v912 = vmul.bf16 %v524, %v590
        %v913 = vmul.bf16 %v525, %v600
        %v914 = vmul.bf16 %v526, %v610
        %v915 = vmul.bf16 %v527, %v620
        %v916 = vmul.bf16 %v528, %v630
        %v917 = vmul.bf16 %v529, %v640
        %v918 = vmul.bf16 %v530, %v650
        %v919 = vmul.bf16 %v531, %v660
        %v920 = vmul.bf16 %v532, %v670
        %v921 = vmul.bf16 %v533, %v680
        %v922 = vmul.bf16 %v534, %v690
        %v923 = vmul.bf16 %v535, %v700
        %v924 = vmul.bf16 %v536, %v710
        %v925 = vmul.bf16 %v537, %v720
        %v926 = vmul.bf16 %v538, %v730
        %v927 = vmul.bf16 %v539, %v740
        %v928 = vmul.bf16 %v540, %v750
        %v929 = vmul.bf16 %v541, %v760
        %v930 = vmul.bf16 %v542, %v770
        %v931 = vmul.bf16 %v543, %v780
        %v932 = vmul.bf16 %v544, %v790
        %v933 = vmul.bf16 %v545, %v800
        %v934 = vmul.bf16 %v546, %v810
        %v935 = vmul.bf16 %v547, %v820
        %v936 = vmul.bf16 %v548, %v830
        %v937 = vmul.bf16 %v549, %v840
        %v938 = vmul.bf16 %v550, %v850
        %v939 = vmul.bf16 %v551, %v860
        %v940 = vmul.bf16 %v552, %v870
        %v941 = vmul.bf16 %v553, %v875
        %vm942 = vsmask.f32 256
        %vm943 = vsmask.f32 4368
        %vm944 = vmor %vm942, %vm943
        %v946 = vshrl.u32 %v909, 16
        %v948 = vrot.slane %v946, 7
        %v949 = vrot.slane %v948, 4
        %v951 = vshrl.u32 %v910, 16
        %v953 = vrot.slane %v951, 7
        %v954 = vshll.u32 %v910, 16
        %v956 = vor.u32 %v953, %v954
        %v957 = vsel %vm944, %v949, %v956
        %v958 = vrot.slane %v953, 4
        %v960 = vshrl.u32 %v911, 16
        %v962 = vrot.slane %v960, 7
        %v963 = vshll.u32 %v911, 16
        %v965 = vor.u32 %v962, %v963
        %v966 = vsel %vm944, %v958, %v965
        %v967 = vrot.slane %v962, 4
        %v969 = vshrl.u32 %v912, 16
        %v971 = vrot.slane %v969, 7
        %v972 = vshll.u32 %v912, 16
        %v974 = vor.u32 %v971, %v972
        %v975 = vsel %vm944, %v967, %v974
        %v976 = vrot.slane %v971, 4
        %v978 = vshrl.u32 %v913, 16
        %v980 = vrot.slane %v978, 7
        %v981 = vshll.u32 %v913, 16
        %v983 = vor.u32 %v980, %v981
        %v984 = vsel %vm944, %v976, %v983
        %v985 = vrot.slane %v980, 4
        %v987 = vshrl.u32 %v914, 16
        %v989 = vrot.slane %v987, 7
        %v990 = vshll.u32 %v914, 16
        %v992 = vor.u32 %v989, %v990
        %v993 = vsel %vm944, %v985, %v992
        %v994 = vrot.slane %v989, 4
        %v996 = vshrl.u32 %v915, 16
        %v998 = vrot.slane %v996, 7
        %v999 = vshll.u32 %v915, 16
        %v1001 = vor.u32 %v998, %v999
        %v1002 = vsel %vm944, %v994, %v1001
        %v1003 = vrot.slane %v998, 4
        %v1005 = vshrl.u32 %v916, 16
        %v1007 = vrot.slane %v1005, 7
        %v1008 = vshll.u32 %v916, 16
        %v1010 = vor.u32 %v1007, %v1008
        %v1011 = vsel %vm944, %v1003, %v1010
        %v1012 = vrot.slane %v1007, 4
        %v1014 = vshrl.u32 %v917, 16
        %v1016 = vrot.slane %v1014, 7
        %v1017 = vshll.u32 %v917, 16
        %v1019 = vor.u32 %v1016, %v1017
        %v1020 = vsel %vm944, %v1012, %v1019
        %v1021 = vrot.slane %v1016, 4
        %v1023 = vshrl.u32 %v918, 16
        %v1025 = vrot.slane %v1023, 7
        %v1026 = vshll.u32 %v918, 16
        %v1028 = vor.u32 %v1025, %v1026
        %v1029 = vsel %vm944, %v1021, %v1028
        %v1030 = vrot.slane %v1025, 4
        %v1032 = vshrl.u32 %v919, 16
        %v1034 = vrot.slane %v1032, 7
        %v1035 = vshll.u32 %v919, 16
        %v1037 = vor.u32 %v1034, %v1035
        %v1038 = vsel %vm944, %v1030, %v1037
        %v1039 = vrot.slane %v1034, 4
        %v1041 = vshrl.u32 %v920, 16
        %v1043 = vrot.slane %v1041, 7
        %v1044 = vshll.u32 %v920, 16
        %v1046 = vor.u32 %v1043, %v1044
        %v1047 = vsel %vm944, %v1039, %v1046
        %v1048 = vrot.slane %v1043, 4
        %v1050 = vshrl.u32 %v921, 16
        %v1052 = vrot.slane %v1050, 7
        %v1053 = vshll.u32 %v921, 16
        %v1055 = vor.u32 %v1052, %v1053
        %v1056 = vsel %vm944, %v1048, %v1055
        %v1057 = vrot.slane %v1052, 4
        %v1059 = vshrl.u32 %v922, 16
        %v1061 = vrot.slane %v1059, 7
        %v1062 = vshll.u32 %v922, 16
        %v1064 = vor.u32 %v1061, %v1062
        %v1065 = vsel %vm944, %v1057, %v1064
        %v1066 = vrot.slane %v1061, 4
        %v1068 = vshrl.u32 %v923, 16
        %v1070 = vrot.slane %v1068, 7
        %v1071 = vshll.u32 %v923, 16
        %v1073 = vor.u32 %v1070, %v1071
        %v1074 = vsel %vm944, %v1066, %v1073
        %v1075 = vrot.slane %v1070, 4
        %v1077 = vshrl.u32 %v924, 16
        %v1079 = vrot.slane %v1077, 7
        %v1080 = vshll.u32 %v924, 16
        %v1082 = vor.u32 %v1079, %v1080
        %v1083 = vsel %vm944, %v1075, %v1082
        %v1084 = vrot.slane %v1079, 4
        %v1086 = vshrl.u32 %v925, 16
        %v1088 = vrot.slane %v1086, 7
        %v1089 = vshll.u32 %v925, 16
        %v1091 = vor.u32 %v1088, %v1089
        %v1092 = vsel %vm944, %v1084, %v1091
        %v1093 = vrot.slane %v1088, 4
        %v1095 = vshrl.u32 %v926, 16
        %v1097 = vrot.slane %v1095, 7
        %v1098 = vshll.u32 %v926, 16
        %v1100 = vor.u32 %v1097, %v1098
        %v1101 = vsel %vm944, %v1093, %v1100
        %v1102 = vrot.slane %v1097, 4
        %v1104 = vshrl.u32 %v927, 16
        %v1106 = vrot.slane %v1104, 7
        %v1107 = vshll.u32 %v927, 16
        %v1109 = vor.u32 %v1106, %v1107
        %v1110 = vsel %vm944, %v1102, %v1109
        %v1111 = vrot.slane %v1106, 4
        %v1113 = vshrl.u32 %v928, 16
        %v1115 = vrot.slane %v1113, 7
        %v1116 = vshll.u32 %v928, 16
        %v1118 = vor.u32 %v1115, %v1116
        %v1119 = vsel %vm944, %v1111, %v1118
        %v1120 = vrot.slane %v1115, 4
        %v1122 = vshrl.u32 %v929, 16
        %v1124 = vrot.slane %v1122, 7
        %v1125 = vshll.u32 %v929, 16
        %v1127 = vor.u32 %v1124, %v1125
        %v1128 = vsel %vm944, %v1120, %v1127
        %v1129 = vrot.slane %v1124, 4
        %v1131 = vshrl.u32 %v930, 16
        %v1133 = vrot.slane %v1131, 7
        %v1134 = vshll.u32 %v930, 16
        %v1136 = vor.u32 %v1133, %v1134
        %v1137 = vsel %vm944, %v1129, %v1136
        %v1138 = vrot.slane %v1133, 4
        %v1140 = vshrl.u32 %v931, 16
        %v1142 = vrot.slane %v1140, 7
        %v1143 = vshll.u32 %v931, 16
        %v1145 = vor.u32 %v1142, %v1143
        %v1146 = vsel %vm944, %v1138, %v1145
        %v1147 = vrot.slane %v1142, 4
        %v1149 = vshrl.u32 %v932, 16
        %v1151 = vrot.slane %v1149, 7
        %v1152 = vshll.u32 %v932, 16
        %v1154 = vor.u32 %v1151, %v1152
        %v1155 = vsel %vm944, %v1147, %v1154
        %v1156 = vrot.slane %v1151, 4
        %v1158 = vshrl.u32 %v933, 16
        %v1160 = vrot.slane %v1158, 7
        %v1161 = vshll.u32 %v933, 16
        %v1163 = vor.u32 %v1160, %v1161
        %v1164 = vsel %vm944, %v1156, %v1163
        %v1165 = vrot.slane %v1160, 4
        %v1167 = vshrl.u32 %v934, 16
        %v1169 = vrot.slane %v1167, 7
        %v1170 = vshll.u32 %v934, 16
        %v1172 = vor.u32 %v1169, %v1170
        %v1173 = vsel %vm944, %v1165, %v1172
        %v1174 = vrot.slane %v1169, 4
        %v1176 = vshrl.u32 %v935, 16
        %v1178 = vrot.slane %v1176, 7
        %v1179 = vshll.u32 %v935, 16
        %v1181 = vor.u32 %v1178, %v1179
        %v1182 = vsel %vm944, %v1174, %v1181
        %v1183 = vrot.slane %v1178, 4
        %v1185 = vshrl.u32 %v936, 16
        %v1187 = vrot.slane %v1185, 7
        %v1188 = vshll.u32 %v936, 16
        %v1190 = vor.u32 %v1187, %v1188
        %v1191 = vsel %vm944, %v1183, %v1190
        %v1192 = vrot.slane %v1187, 4
        %v1194 = vshrl.u32 %v937, 16
        %v1196 = vrot.slane %v1194, 7
        %v1197 = vshll.u32 %v937, 16
        %v1199 = vor.u32 %v1196, %v1197
        %v1200 = vsel %vm944, %v1192, %v1199
        %v1201 = vrot.slane %v1196, 4
        %v1203 = vshrl.u32 %v938, 16
        %v1205 = vrot.slane %v1203, 7
        %v1206 = vshll.u32 %v938, 16
        %v1208 = vor.u32 %v1205, %v1206
        %v1209 = vsel %vm944, %v1201, %v1208
        %v1210 = vrot.slane %v1205, 4
        %v1212 = vshrl.u32 %v939, 16
        %v1214 = vrot.slane %v1212, 7
        %v1215 = vshll.u32 %v939, 16
        %v1217 = vor.u32 %v1214, %v1215
        %v1218 = vsel %vm944, %v1210, %v1217
        %v1219 = vrot.slane %v1214, 4
        %v1221 = vshrl.u32 %v940, 16
        %v1223 = vrot.slane %v1221, 7
        %v1224 = vshll.u32 %v940, 16
        %v1226 = vor.u32 %v1223, %v1224
        %v1227 = vsel %vm944, %v1219, %v1226
        %v1228 = vrot.slane %v1223, 4
        %v1230 = vshrl.u32 %v941, 16
        %v1232 = vrot.slane %v1230, 7
        %v1233 = vshll.u32 %v941, 16
        %v1235 = vor.u32 %v1232, %v1233
        %v1236 = vsel %vm944, %v1228, %v1235
        %1269 = vst.msk [vmem:[#allocation3] sm:$0xf] %vm386, %v957
        %1270 = vst.msk [vmem:[#allocation3 + $0xc] sm:$0xf] %vm386, %v966
        %1271 = vst.msk [vmem:[#allocation3 + $0x18] sm:$0xf] %vm386, %v975
        %1272 = vst.msk [vmem:[#allocation3 + $0x24] sm:$0xf] %vm386, %v984
        %1273 = vst.msk [vmem:[#allocation3 + $0x30] sm:$0xf] %vm386, %v993
        %1274 = vst.msk [vmem:[#allocation3 + $0x3c] sm:$0xf] %vm386, %v1002
        %1275 = vst.msk [vmem:[#allocation3 + $0x48] sm:$0xf] %vm386, %v1011
        %1276 = vst.msk [vmem:[#allocation3 + $0x54] sm:$0xf] %vm386, %v1020
        %1277 = vst.msk [vmem:[#allocation3 + $0x60] sm:$0xf] %vm386, %v1029
        %1278 = vst.msk [vmem:[#allocation3 + $0x6c] sm:$0xf] %vm386, %v1038
        %1279 = vst.msk [vmem:[#allocation3 + $0x78] sm:$0xf] %vm386, %v1047
        %1280 = vst.msk [vmem:[#allocation3 + $0x84] sm:$0xf] %vm386, %v1056
        %1281 = vst.msk [vmem:[#allocation3 + $0x90] sm:$0xf] %vm386, %v1065
        %1282 = vst.msk [vmem:[#allocation3 + $0x9c] sm:$0xf] %vm386, %v1074
        %1283 = vst.msk [vmem:[#allocation3 + $0xa8] sm:$0xf] %vm386, %v1083
        %1284 = vst.msk [vmem:[#allocation3 + $0xb4] sm:$0xf] %vm386, %v1092
        %1285 = vst.msk [vmem:[#allocation3 + $0xc0] sm:$0xf] %vm386, %v1101
        %1286 = vst.msk [vmem:[#allocation3 + $0xcc] sm:$0xf] %vm386, %v1110
        %1287 = vst.msk [vmem:[#allocation3 + $0xd8] sm:$0xf] %vm386, %v1119
        %1288 = vst.msk [vmem:[#allocation3 + $0xe4] sm:$0xf] %vm386, %v1128
        %1289 = vst.msk [vmem:[#allocation3 + $0xf0] sm:$0xf] %vm386, %v1137
        %1290 = vst.msk [vmem:[#allocation3 + $0xfc] sm:$0xf] %vm386, %v1146
        %1291 = vst.msk [vmem:[#allocation3 + $0x108] sm:$0xf] %vm386, %v1155
        %1292 = vst.msk [vmem:[#allocation3 + $0x114] sm:$0xf] %vm386, %v1164
        %1293 = vst.msk [vmem:[#allocation3 + $0x120] sm:$0xf] %vm386, %v1173
        %1294 = vst.msk [vmem:[#allocation3 + $0x12c] sm:$0xf] %vm386, %v1182
        %1295 = vst.msk [vmem:[#allocation3 + $0x138] sm:$0xf] %vm386, %v1191
        %1296 = vst.msk [vmem:[#allocation3 + $0x144] sm:$0xf] %vm386, %v1200
        %1297 = vst.msk [vmem:[#allocation3 + $0x150] sm:$0xf] %vm386, %v1209
        %1298 = vst.msk [vmem:[#allocation3 + $0x15c] sm:$0xf] %vm386, %v1218
        %1299 = vst.msk [vmem:[#allocation3 + $0x168] sm:$0xf] %vm386, %v1227
        %1300 = vst.msk [vmem:[#allocation3 + $0x174] sm:$0xf] %vm386, %v1236
        %v1301 = vld [vmem:[#allocation2 + $0x4] sm:$0xf]
        %v1302 = vld [vmem:[#allocation2 + $0x8] sm:$0xf]
        %v1303 = vld [vmem:[#allocation2 + $0xc] sm:$0xf]
        %v1304 = vld [vmem:[#allocation2 + $0x10] sm:$0xf]
        %v1305 = vld [vmem:[#allocation2 + $0x14] sm:$0xf]
        %v1306 = vld [vmem:[#allocation2 + $0x18] sm:$0xf]
        %v1307 = vld [vmem:[#allocation2 + $0x1c] sm:$0xf]
        %v1308 = vld [vmem:[#allocation2 + $0x20] sm:$0xf]
        %v1309 = vld [vmem:[#allocation2 + $0x24] sm:$0xf]
        %v1310 = vld [vmem:[#allocation2 + $0x28] sm:$0xf]
        %v1311 = vld [vmem:[#allocation2 + $0x2c] sm:$0xf]
        %v1312 = vld [vmem:[#allocation2 + $0x30] sm:$0xf]
        %v1313 = vld [vmem:[#allocation2 + $0x34] sm:$0xf]
        %v1314 = vld [vmem:[#allocation2 + $0x38] sm:$0xf]
        %v1315 = vld [vmem:[#allocation2 + $0x3c] sm:$0xf]
        %v1316 = vld [vmem:[#allocation2 + $0x40] sm:$0xf]
        %v1317 = vld [vmem:[#allocation2 + $0x44] sm:$0xf]
        %v1318 = vld [vmem:[#allocation2 + $0x48] sm:$0xf]
        %v1319 = vld [vmem:[#allocation2 + $0x4c] sm:$0xf]
        %v1320 = vld [vmem:[#allocation2 + $0x50] sm:$0xf]
        %v1321 = vld [vmem:[#allocation2 + $0x54] sm:$0xf]
        %v1322 = vld [vmem:[#allocation2 + $0x58] sm:$0xf]
        %v1323 = vld [vmem:[#allocation2 + $0x5c] sm:$0xf]
        %v1324 = vld [vmem:[#allocation2 + $0x60] sm:$0xf]
        %v1325 = vld [vmem:[#allocation2 + $0x64] sm:$0xf]
        %v1326 = vld [vmem:[#allocation2 + $0x68] sm:$0xf]
        %v1327 = vld [vmem:[#allocation2 + $0x6c] sm:$0xf]
        %v1328 = vld [vmem:[#allocation2 + $0x70] sm:$0xf]
        %v1329 = vld [vmem:[#allocation2 + $0x74] sm:$0xf]
        %v1330 = vld [vmem:[#allocation2 + $0x78] sm:$0xf]
        %v1331 = vld [vmem:[#allocation2 + $0x7c] sm:$0xf]
        %v1332 = vld [vmem:[#allocation2 + $0x80] sm:$0xf]
        %1365 = vrot.lane.b32.xlu0 %v1301, 32
        %v1366 = vpop.permute.xlu0 %1365
        %1367 = vrot.lane.b32.xlu0 %v1302, 32
        %v1368 = vpop.permute.xlu0 %1367
        %1369 = vrot.lane.b32.xlu0 %v1303, 32
        %v1370 = vpop.permute.xlu0 %1369
        %1371 = vrot.lane.b32.xlu0 %v1304, 32
        %v1372 = vpop.permute.xlu0 %1371
        %1373 = vrot.lane.b32.xlu0 %v1305, 32
        %v1374 = vpop.permute.xlu0 %1373
        %1375 = vrot.lane.b32.xlu0 %v1306, 32
        %v1376 = vpop.permute.xlu0 %1375
        %1377 = vrot.lane.b32.xlu0 %v1307, 32
        %v1378 = vpop.permute.xlu0 %1377
        %1379 = vrot.lane.b32.xlu0 %v1308, 32
        %v1380 = vpop.permute.xlu0 %1379
        %1381 = vrot.lane.b32.xlu0 %v1309, 32
        %v1382 = vpop.permute.xlu0 %1381
        %1383 = vrot.lane.b32.xlu0 %v1310, 32
        %v1384 = vpop.permute.xlu0 %1383
        %1385 = vrot.lane.b32.xlu0 %v1311, 32
        %v1386 = vpop.permute.xlu0 %1385
        %1387 = vrot.lane.b32.xlu0 %v1312, 32
        %v1388 = vpop.permute.xlu0 %1387
        %1389 = vrot.lane.b32.xlu0 %v1313, 32
        %v1390 = vpop.permute.xlu0 %1389
        %1391 = vrot.lane.b32.xlu0 %v1314, 32
        %v1392 = vpop.permute.xlu0 %1391
        %1393 = vrot.lane.b32.xlu0 %v1315, 32
        %v1394 = vpop.permute.xlu0 %1393
        %1395 = vrot.lane.b32.xlu0 %v1316, 32
        %v1396 = vpop.permute.xlu0 %1395
        %1397 = vrot.lane.b32.xlu0 %v1317, 32
        %v1398 = vpop.permute.xlu0 %1397
        %1399 = vrot.lane.b32.xlu0 %v1318, 32
        %v1400 = vpop.permute.xlu0 %1399
        %1401 = vrot.lane.b32.xlu0 %v1319, 32
        %v1402 = vpop.permute.xlu0 %1401
        %1403 = vrot.lane.b32.xlu0 %v1320, 32
        %v1404 = vpop.permute.xlu0 %1403
        %1405 = vrot.lane.b32.xlu0 %v1321, 32
        %v1406 = vpop.permute.xlu0 %1405
        %1407 = vrot.lane.b32.xlu0 %v1322, 32
        %v1408 = vpop.permute.xlu0 %1407
        %1409 = vrot.lane.b32.xlu0 %v1323, 32
        %v1410 = vpop.permute.xlu0 %1409
        %1411 = vrot.lane.b32.xlu0 %v1324, 32
        %v1412 = vpop.permute.xlu0 %1411
        %1413 = vrot.lane.b32.xlu0 %v1325, 32
        %v1414 = vpop.permute.xlu0 %1413
        %1415 = vrot.lane.b32.xlu0 %v1326, 32
        %v1416 = vpop.permute.xlu0 %1415
        %1417 = vrot.lane.b32.xlu0 %v1327, 32
        %v1418 = vpop.permute.xlu0 %1417
        %1419 = vrot.lane.b32.xlu0 %v1328, 32
        %v1420 = vpop.permute.xlu0 %1419
        %1421 = vrot.lane.b32.xlu0 %v1329, 32
        %v1422 = vpop.permute.xlu0 %1421
        %1423 = vrot.lane.b32.xlu0 %v1330, 32
        %v1424 = vpop.permute.xlu0 %1423
        %1425 = vrot.lane.b32.xlu0 %v1331, 32
        %v1426 = vpop.permute.xlu0 %1425
        %1427 = vrot.lane.b32.xlu0 %v1332, 32
        %v1428 = vpop.permute.xlu0 %1427
        %vm1461 = vcmask 519424
        %1462 = vst.msk [vmem:[#allocation3] sm:$0xf] %vm1461, %v1366
        %1463 = vst.msk [vmem:[#allocation3 + $0xc] sm:$0xf] %vm1461, %v1368
        %1464 = vst.msk [vmem:[#allocation3 + $0x18] sm:$0xf] %vm1461, %v1370
        %1465 = vst.msk [vmem:[#allocation3 + $0x24] sm:$0xf] %vm1461, %v1372
        %1466 = vst.msk [vmem:[#allocation3 + $0x30] sm:$0xf] %vm1461, %v1374
        %1467 = vst.msk [vmem:[#allocation3 + $0x3c] sm:$0xf] %vm1461, %v1376
        %1468 = vst.msk [vmem:[#allocation3 + $0x48] sm:$0xf] %vm1461, %v1378
        %1469 = vst.msk [vmem:[#allocation3 + $0x54] sm:$0xf] %vm1461, %v1380
        %1470 = vst.msk [vmem:[#allocation3 + $0x60] sm:$0xf] %vm1461, %v1382
        %1471 = vst.msk [vmem:[#allocation3 + $0x6c] sm:$0xf] %vm1461, %v1384
        %1472 = vst.msk [vmem:[#allocation3 + $0x78] sm:$0xf] %vm1461, %v1386
        %1473 = vst.msk [vmem:[#allocation3 + $0x84] sm:$0xf] %vm1461, %v1388
        %1474 = vst.msk [vmem:[#allocation3 + $0x90] sm:$0xf] %vm1461, %v1390
        %1475 = vst.msk [vmem:[#allocation3 + $0x9c] sm:$0xf] %vm1461, %v1392
        %1476 = vst.msk [vmem:[#allocation3 + $0xa8] sm:$0xf] %vm1461, %v1394
        %1477 = vst.msk [vmem:[#allocation3 + $0xb4] sm:$0xf] %vm1461, %v1396
        %1478 = vst.msk [vmem:[#allocation3 + $0xc0] sm:$0xf] %vm1461, %v1398
        %1479 = vst.msk [vmem:[#allocation3 + $0xcc] sm:$0xf] %vm1461, %v1400
        %1480 = vst.msk [vmem:[#allocation3 + $0xd8] sm:$0xf] %vm1461, %v1402
        %1481 = vst.msk [vmem:[#allocation3 + $0xe4] sm:$0xf] %vm1461, %v1404
        %1482 = vst.msk [vmem:[#allocation3 + $0xf0] sm:$0xf] %vm1461, %v1406
        %1483 = vst.msk [vmem:[#allocation3 + $0xfc] sm:$0xf] %vm1461, %v1408
        %1484 = vst.msk [vmem:[#allocation3 + $0x108] sm:$0xf] %vm1461, %v1410
        %1485 = vst.msk [vmem:[#allocation3 + $0x114] sm:$0xf] %vm1461, %v1412
        %1486 = vst.msk [vmem:[#allocation3 + $0x120] sm:$0xf] %vm1461, %v1414
        %1487 = vst.msk [vmem:[#allocation3 + $0x12c] sm:$0xf] %vm1461, %v1416
        %1488 = vst.msk [vmem:[#allocation3 + $0x138] sm:$0xf] %vm1461, %v1418
        %1489 = vst.msk [vmem:[#allocation3 + $0x144] sm:$0xf] %vm1461, %v1420
        %1490 = vst.msk [vmem:[#allocation3 + $0x150] sm:$0xf] %vm1461, %v1422
        %1491 = vst.msk [vmem:[#allocation3 + $0x15c] sm:$0xf] %vm1461, %v1424
        %1492 = vst.msk [vmem:[#allocation3 + $0x168] sm:$0xf] %vm1461, %v1426
        %1493 = vst.msk [vmem:[#allocation3 + $0x174] sm:$0xf] %vm1461, %v1428
        %v1494 = vld [vmem:[#allocation2 + $0x4] sm:$0xf]
        %v1495 = vld [vmem:[#allocation2 + $0x8] sm:$0xf]
        %v1496 = vld [vmem:[#allocation2 + $0xc] sm:$0xf]
        %v1497 = vld [vmem:[#allocation2 + $0x10] sm:$0xf]
        %v1498 = vld [vmem:[#allocation2 + $0x14] sm:$0xf]
        %v1499 = vld [vmem:[#allocation2 + $0x18] sm:$0xf]
        %v1500 = vld [vmem:[#allocation2 + $0x1c] sm:$0xf]
        %v1501 = vld [vmem:[#allocation2 + $0x20] sm:$0xf]
        %v1502 = vld [vmem:[#allocation2 + $0x24] sm:$0xf]
        %v1503 = vld [vmem:[#allocation2 + $0x28] sm:$0xf]
        %v1504 = vld [vmem:[#allocation2 + $0x2c] sm:$0xf]
        %v1505 = vld [vmem:[#allocation2 + $0x30] sm:$0xf]
        %v1506 = vld [vmem:[#allocation2 + $0x34] sm:$0xf]
        %v1507 = vld [vmem:[#allocation2 + $0x38] sm:$0xf]
        %v1508 = vld [vmem:[#allocation2 + $0x3c] sm:$0xf]
        %v1509 = vld [vmem:[#allocation2 + $0x40] sm:$0xf]
        %v1510 = vld [vmem:[#allocation2 + $0x44] sm:$0xf]
        %v1511 = vld [vmem:[#allocation2 + $0x48] sm:$0xf]
        %v1512 = vld [vmem:[#allocation2 + $0x4c] sm:$0xf]
        %v1513 = vld [vmem:[#allocation2 + $0x50] sm:$0xf]
        %v1514 = vld [vmem:[#allocation2 + $0x54] sm:$0xf]
        %v1515 = vld [vmem:[#allocation2 + $0x58] sm:$0xf]
        %v1516 = vld [vmem:[#allocation2 + $0x5c] sm:$0xf]
        %v1517 = vld [vmem:[#allocation2 + $0x60] sm:$0xf]
        %v1518 = vld [vmem:[#allocation2 + $0x64] sm:$0xf]
        %v1519 = vld [vmem:[#allocation2 + $0x68] sm:$0xf]
        %v1520 = vld [vmem:[#allocation2 + $0x6c] sm:$0xf]
        %v1521 = vld [vmem:[#allocation2 + $0x70] sm:$0xf]
        %v1522 = vld [vmem:[#allocation2 + $0x74] sm:$0xf]
        %v1523 = vld [vmem:[#allocation2 + $0x78] sm:$0xf]
        %v1524 = vld [vmem:[#allocation2 + $0x7c] sm:$0xf]
        %v1525 = vld [vmem:[#allocation2 + $0x80] sm:$0xf]
        %v1526 = vld [vmem:[#allocation2 + $0x84] sm:$0x1]
        %v1528 = vshrl.u32 %v425, 16
        %v1530 = vrot.slane %v1528, 7
        %v1531 = vshll.u32 %v425, 16
        %v1533 = vor.u32 %v1530, %v1531
        %v1534 = vrot.slane %v1530, 4
        %v1536 = vshrl.u32 %v426, 16
        %v1538 = vrot.slane %v1536, 7
        %v1539 = vshll.u32 %v426, 16
        %v1541 = vor.u32 %v1538, %v1539
        %v1542 = vsel %vm944, %v1534, %v1541
        %v1543 = vrot.slane %v1538, 4
        %v1545 = vshrl.u32 %v427, 16
        %v1547 = vrot.slane %v1545, 7
        %v1548 = vshll.u32 %v427, 16
        %v1550 = vor.u32 %v1547, %v1548
        %v1551 = vsel %vm944, %v1543, %v1550
        %v1552 = vrot.slane %v1547, 4
        %v1554 = vshrl.u32 %v428, 16
        %v1556 = vrot.slane %v1554, 7
        %v1557 = vshll.u32 %v428, 16
        %v1559 = vor.u32 %v1556, %v1557
        %v1560 = vsel %vm944, %v1552, %v1559
        %v1561 = vrot.slane %v1556, 4
        %v1563 = vshrl.u32 %v429, 16
        %v1565 = vrot.slane %v1563, 7
        %v1566 = vshll.u32 %v429, 16
        %v1568 = vor.u32 %v1565, %v1566
        %v1569 = vsel %vm944, %v1561, %v1568
        %v1570 = vrot.slane %v1565, 4
        %v1572 = vshrl.u32 %v430, 16
        %v1574 = vrot.slane %v1572, 7
        %v1575 = vshll.u32 %v430, 16
        %v1577 = vor.u32 %v1574, %v1575
        %v1578 = vsel %vm944, %v1570, %v1577
        %v1579 = vrot.slane %v1574, 4
        %v1581 = vshrl.u32 %v431, 16
        %v1583 = vrot.slane %v1581, 7
        %v1584 = vshll.u32 %v431, 16
        %v1586 = vor.u32 %v1583, %v1584
        %v1587 = vsel %vm944, %v1579, %v1586
        %v1588 = vrot.slane %v1583, 4
        %v1590 = vshrl.u32 %v432, 16
        %v1592 = vrot.slane %v1590, 7
        %v1593 = vshll.u32 %v432, 16
        %v1595 = vor.u32 %v1592, %v1593
        %v1596 = vsel %vm944, %v1588, %v1595
        %v1597 = vrot.slane %v1592, 4
        %v1599 = vshrl.u32 %v433, 16
        %v1601 = vrot.slane %v1599, 7
        %v1602 = vshll.u32 %v433, 16
        %v1604 = vor.u32 %v1601, %v1602
        %v1605 = vsel %vm944, %v1597, %v1604
        %v1606 = vrot.slane %v1601, 4
        %v1608 = vshrl.u32 %v434, 16
        %v1610 = vrot.slane %v1608, 7
        %v1611 = vshll.u32 %v434, 16
        %v1613 = vor.u32 %v1610, %v1611
        %v1614 = vsel %vm944, %v1606, %v1613
        %v1615 = vrot.slane %v1610, 4
        %v1617 = vshrl.u32 %v435, 16
        %v1619 = vrot.slane %v1617, 7
        %v1620 = vshll.u32 %v435, 16
        %v1622 = vor.u32 %v1619, %v1620
        %v1623 = vsel %vm944, %v1615, %v1622
        %v1624 = vrot.slane %v1619, 4
        %v1626 = vshrl.u32 %v436, 16
        %v1628 = vrot.slane %v1626, 7
        %v1629 = vshll.u32 %v436, 16
        %v1631 = vor.u32 %v1628, %v1629
        %v1632 = vsel %vm944, %v1624, %v1631
        %v1633 = vrot.slane %v1628, 4
        %v1635 = vshrl.u32 %v437, 16
        %v1637 = vrot.slane %v1635, 7
        %v1638 = vshll.u32 %v437, 16
        %v1640 = vor.u32 %v1637, %v1638
        %v1641 = vsel %vm944, %v1633, %v1640
        %v1642 = vrot.slane %v1637, 4
        %v1644 = vshrl.u32 %v438, 16
        %v1646 = vrot.slane %v1644, 7
        %v1647 = vshll.u32 %v438, 16
        %v1649 = vor.u32 %v1646, %v1647
        %v1650 = vsel %vm944, %v1642, %v1649
        %v1651 = vrot.slane %v1646, 4
        %v1653 = vshrl.u32 %v439, 16
        %v1655 = vrot.slane %v1653, 7
        %v1656 = vshll.u32 %v439, 16
        %v1658 = vor.u32 %v1655, %v1656
        %v1659 = vsel %vm944, %v1651, %v1658
        %v1660 = vrot.slane %v1655, 4
        %v1662 = vshrl.u32 %v440, 16
        %v1664 = vrot.slane %v1662, 7
        %v1665 = vshll.u32 %v440, 16
        %v1667 = vor.u32 %v1664, %v1665
        %v1668 = vsel %vm944, %v1660, %v1667
        %v1669 = vrot.slane %v1664, 4
        %v1671 = vshrl.u32 %v441, 16
        %v1673 = vrot.slane %v1671, 7
        %v1674 = vshll.u32 %v441, 16
        %v1676 = vor.u32 %v1673, %v1674
        %v1677 = vsel %vm944, %v1669, %v1676
        %v1678 = vrot.slane %v1673, 4
        %v1680 = vshrl.u32 %v442, 16
        %v1682 = vrot.slane %v1680, 7
        %v1683 = vshll.u32 %v442, 16
        %v1685 = vor.u32 %v1682, %v1683
        %v1686 = vsel %vm944, %v1678, %v1685
        %v1687 = vrot.slane %v1682, 4
        %v1689 = vshrl.u32 %v443, 16
        %v1691 = vrot.slane %v1689, 7
        %v1692 = vshll.u32 %v443, 16
        %v1694 = vor.u32 %v1691, %v1692
        %v1695 = vsel %vm944, %v1687, %v1694
        %v1696 = vrot.slane %v1691, 4
        %v1698 = vshrl.u32 %v444, 16
        %v1700 = vrot.slane %v1698, 7
        %v1701 = vshll.u32 %v444, 16
        %v1703 = vor.u32 %v1700, %v1701
        %v1704 = vsel %vm944, %v1696, %v1703
        %v1705 = vrot.slane %v1700, 4
        %v1707 = vshrl.u32 %v445, 16
        %v1709 = vrot.slane %v1707, 7
        %v1710 = vshll.u32 %v445, 16
        %v1712 = vor.u32 %v1709, %v1710
        %v1713 = vsel %vm944, %v1705, %v1712
        %v1714 = vrot.slane %v1709, 4
        %v1716 = vshrl.u32 %v446, 16
        %v1718 = vrot.slane %v1716, 7
        %v1719 = vshll.u32 %v446, 16
        %v1721 = vor.u32 %v1718, %v1719
        %v1722 = vsel %vm944, %v1714, %v1721
        %v1723 = vrot.slane %v1718, 4
        %v1725 = vshrl.u32 %v447, 16
        %v1727 = vrot.slane %v1725, 7
        %v1728 = vshll.u32 %v447, 16
        %v1730 = vor.u32 %v1727, %v1728
        %v1731 = vsel %vm944, %v1723, %v1730
        %v1732 = vrot.slane %v1727, 4
        %v1734 = vshrl.u32 %v448, 16
        %v1736 = vrot.slane %v1734, 7
        %v1737 = vshll.u32 %v448, 16
        %v1739 = vor.u32 %v1736, %v1737
        %v1740 = vsel %vm944, %v1732, %v1739
        %v1741 = vrot.slane %v1736, 4
        %v1743 = vshrl.u32 %v449, 16
        %v1745 = vrot.slane %v1743, 7
        %v1746 = vshll.u32 %v449, 16
        %v1748 = vor.u32 %v1745, %v1746
        %v1749 = vsel %vm944, %v1741, %v1748
        %v1750 = vrot.slane %v1745, 4
        %v1752 = vshrl.u32 %v450, 16
        %v1754 = vrot.slane %v1752, 7
        %v1755 = vshll.u32 %v450, 16
        %v1757 = vor.u32 %v1754, %v1755
        %v1758 = vsel %vm944, %v1750, %v1757
        %v1759 = vrot.slane %v1754, 4
        %v1761 = vshrl.u32 %v451, 16
        %v1763 = vrot.slane %v1761, 7
        %v1764 = vshll.u32 %v451, 16
        %v1766 = vor.u32 %v1763, %v1764
        %v1767 = vsel %vm944, %v1759, %v1766
        %v1768 = vrot.slane %v1763, 4
        %v1770 = vshrl.u32 %v452, 16
        %v1772 = vrot.slane %v1770, 7
        %v1773 = vshll.u32 %v452, 16
        %v1775 = vor.u32 %v1772, %v1773
        %v1776 = vsel %vm944, %v1768, %v1775
        %v1777 = vrot.slane %v1772, 4
        %v1779 = vshrl.u32 %v453, 16
        %v1781 = vrot.slane %v1779, 7
        %v1782 = vshll.u32 %v453, 16
        %v1784 = vor.u32 %v1781, %v1782
        %v1785 = vsel %vm944, %v1777, %v1784
        %v1786 = vrot.slane %v1781, 4
        %v1788 = vshrl.u32 %v454, 16
        %v1790 = vrot.slane %v1788, 7
        %v1791 = vshll.u32 %v454, 16
        %v1793 = vor.u32 %v1790, %v1791
        %v1794 = vsel %vm944, %v1786, %v1793
        %v1795 = vrot.slane %v1790, 4
        %v1797 = vshrl.u32 %v455, 16
        %v1799 = vrot.slane %v1797, 7
        %v1800 = vshll.u32 %v455, 16
        %v1802 = vor.u32 %v1799, %v1800
        %v1803 = vsel %vm944, %v1795, %v1802
        %v1804 = vrot.slane %v1799, 4
        %v1806 = vshrl.u32 %v456, 16
        %v1808 = vrot.slane %v1806, 7
        %v1809 = vshll.u32 %v456, 16
        %v1811 = vor.u32 %v1808, %v1809
        %v1812 = vsel %vm944, %v1804, %v1811
        %v1813 = vrot.slane %v1808, 4
        %v1847 = vmul.bf16 %v1494, %v1533
        %v1848 = vmul.bf16 %v1495, %v1542
        %v1849 = vmul.bf16 %v1496, %v1551
        %v1850 = vmul.bf16 %v1497, %v1560
        %v1851 = vmul.bf16 %v1498, %v1569
        %v1852 = vmul.bf16 %v1499, %v1578
        %v1853 = vmul.bf16 %v1500, %v1587
        %v1854 = vmul.bf16 %v1501, %v1596
        %v1855 = vmul.bf16 %v1502, %v1605
        %v1856 = vmul.bf16 %v1503, %v1614
        %v1857 = vmul.bf16 %v1504, %v1623
        %v1858 = vmul.bf16 %v1505, %v1632
        %v1859 = vmul.bf16 %v1506, %v1641
        %v1860 = vmul.bf16 %v1507, %v1650
        %v1861 = vmul.bf16 %v1508, %v1659
        %v1862 = vmul.bf16 %v1509, %v1668
        %v1863 = vmul.bf16 %v1510, %v1677
        %v1864 = vmul.bf16 %v1511, %v1686
        %v1865 = vmul.bf16 %v1512, %v1695
        %v1866 = vmul.bf16 %v1513, %v1704
        %v1867 = vmul.bf16 %v1514, %v1713
        %v1868 = vmul.bf16 %v1515, %v1722
        %v1869 = vmul.bf16 %v1516, %v1731
        %v1870 = vmul.bf16 %v1517, %v1740
        %v1871 = vmul.bf16 %v1518, %v1749
        %v1872 = vmul.bf16 %v1519, %v1758
        %v1873 = vmul.bf16 %v1520, %v1767
        %v1874 = vmul.bf16 %v1521, %v1776
        %v1875 = vmul.bf16 %v1522, %v1785
        %v1876 = vmul.bf16 %v1523, %v1794
        %v1877 = vmul.bf16 %v1524, %v1803
        %v1878 = vmul.bf16 %v1525, %v1812
        %v1879 = vmul.bf16 %v1526, %v1813
        %v1881 = vshrl.u32 %v1847, 16
        %v1883 = vrot.slane %v1881, 4
        %v1884 = vshll.u32 %v1847, 16
        %v1886 = vrot.slane %v1884, 5
        %v1887 = vor.u32 %v1883, %v1886
        %v1888 = vrot.slane %v1887, 4
        %v1890 = vshll.u32 %v1848, 16
        %v1892 = vrot.slane %v1890, 5
        %v1893 = vsel %vm556, %v1888, %v1892
        %v1894 = vshrl.u32 %v1848, 16
        %v1896 = vrot.slane %v1894, 4
        %v1897 = vor.u32 %v1896, %v1892
        %v1898 = vrot.slane %v1897, 4
        %v1900 = vshll.u32 %v1849, 16
        %v1902 = vrot.slane %v1900, 5
        %v1903 = vsel %vm556, %v1898, %v1902
        %v1904 = vshrl.u32 %v1849, 16
        %v1906 = vrot.slane %v1904, 4
        %v1907 = vor.u32 %v1906, %v1902
        %v1908 = vrot.slane %v1907, 4
        %v1910 = vshll.u32 %v1850, 16
        %v1912 = vrot.slane %v1910, 5
        %v1913 = vsel %vm556, %v1908, %v1912
        %v1914 = vshrl.u32 %v1850, 16
        %v1916 = vrot.slane %v1914, 4
        %v1917 = vor.u32 %v1916, %v1912
        %v1918 = vrot.slane %v1917, 4
        %v1920 = vshll.u32 %v1851, 16
        %v1922 = vrot.slane %v1920, 5
        %v1923 = vsel %vm556, %v1918, %v1922
        %v1924 = vshrl.u32 %v1851, 16
        %v1926 = vrot.slane %v1924, 4
        %v1927 = vor.u32 %v1926, %v1922
        %v1928 = vrot.slane %v1927, 4
        %v1930 = vshll.u32 %v1852, 16
        %v1932 = vrot.slane %v1930, 5
        %v1933 = vsel %vm556, %v1928, %v1932
        %v1934 = vshrl.u32 %v1852, 16
        %v1936 = vrot.slane %v1934, 4
        %v1937 = vor.u32 %v1936, %v1932
        %v1938 = vrot.slane %v1937, 4
        %v1940 = vshll.u32 %v1853, 16
        %v1942 = vrot.slane %v1940, 5
        %v1943 = vsel %vm556, %v1938, %v1942
        %v1944 = vshrl.u32 %v1853, 16
        %v1946 = vrot.slane %v1944, 4
        %v1947 = vor.u32 %v1946, %v1942
        %v1948 = vrot.slane %v1947, 4
        %v1950 = vshll.u32 %v1854, 16
        %v1952 = vrot.slane %v1950, 5
        %v1953 = vsel %vm556, %v1948, %v1952
        %v1954 = vshrl.u32 %v1854, 16
        %v1956 = vrot.slane %v1954, 4
        %v1957 = vor.u32 %v1956, %v1952
        %v1958 = vrot.slane %v1957, 4
        %v1960 = vshll.u32 %v1855, 16
        %v1962 = vrot.slane %v1960, 5
        %v1963 = vsel %vm556, %v1958, %v1962
        %v1964 = vshrl.u32 %v1855, 16
        %v1966 = vrot.slane %v1964, 4
        %v1967 = vor.u32 %v1966, %v1962
        %v1968 = vrot.slane %v1967, 4
        %v1970 = vshll.u32 %v1856, 16
        %v1972 = vrot.slane %v1970, 5
        %v1973 = vsel %vm556, %v1968, %v1972
        %v1974 = vshrl.u32 %v1856, 16
        %v1976 = vrot.slane %v1974, 4
        %v1977 = vor.u32 %v1976, %v1972
        %v1978 = vrot.slane %v1977, 4
        %v1980 = vshll.u32 %v1857, 16
        %v1982 = vrot.slane %v1980, 5
        %v1983 = vsel %vm556, %v1978, %v1982
        %v1984 = vshrl.u32 %v1857, 16
        %v1986 = vrot.slane %v1984, 4
        %v1987 = vor.u32 %v1986, %v1982
        %v1988 = vrot.slane %v1987, 4
        %v1990 = vshll.u32 %v1858, 16
        %v1992 = vrot.slane %v1990, 5
        %v1993 = vsel %vm556, %v1988, %v1992
        %v1994 = vshrl.u32 %v1858, 16
        %v1996 = vrot.slane %v1994, 4
        %v1997 = vor.u32 %v1996, %v1992
        %v1998 = vrot.slane %v1997, 4
        %v2000 = vshll.u32 %v1859, 16
        %v2002 = vrot.slane %v2000, 5
        %v2003 = vsel %vm556, %v1998, %v2002
        %v2004 = vshrl.u32 %v1859, 16
        %v2006 = vrot.slane %v2004, 4
        %v2007 = vor.u32 %v2006, %v2002
        %v2008 = vrot.slane %v2007, 4
        %v2010 = vshll.u32 %v1860, 16
        %v2012 = vrot.slane %v2010, 5
        %v2013 = vsel %vm556, %v2008, %v2012
        %v2014 = vshrl.u32 %v1860, 16
        %v2016 = vrot.slane %v2014, 4
        %v2017 = vor.u32 %v2016, %v2012
        %v2018 = vrot.slane %v2017, 4
        %v2020 = vshll.u32 %v1861, 16
        %v2022 = vrot.slane %v2020, 5
        %v2023 = vsel %vm556, %v2018, %v2022
        %v2024 = vshrl.u32 %v1861, 16
        %v2026 = vrot.slane %v2024, 4
        %v2027 = vor.u32 %v2026, %v2022
        %v2028 = vrot.slane %v2027, 4
        %v2030 = vshll.u32 %v1862, 16
        %v2032 = vrot.slane %v2030, 5
        %v2033 = vsel %vm556, %v2028, %v2032
        %v2034 = vshrl.u32 %v1862, 16
        %v2036 = vrot.slane %v2034, 4
        %v2037 = vor.u32 %v2036, %v2032
        %v2038 = vrot.slane %v2037, 4
        %v2040 = vshll.u32 %v1863, 16
        %v2042 = vrot.slane %v2040, 5
        %v2043 = vsel %vm556, %v2038, %v2042
        %v2044 = vshrl.u32 %v1863, 16
        %v2046 = vrot.slane %v2044, 4
        %v2047 = vor.u32 %v2046, %v2042
        %v2048 = vrot.slane %v2047, 4
        %v2050 = vshll.u32 %v1864, 16
        %v2052 = vrot.slane %v2050, 5
        %v2053 = vsel %vm556, %v2048, %v2052
        %v2054 = vshrl.u32 %v1864, 16
        %v2056 = vrot.slane %v2054, 4
        %v2057 = vor.u32 %v2056, %v2052
        %v2058 = vrot.slane %v2057, 4
        %v2060 = vshll.u32 %v1865, 16
        %v2062 = vrot.slane %v2060, 5
        %v2063 = vsel %vm556, %v2058, %v2062
        %v2064 = vshrl.u32 %v1865, 16
        %v2066 = vrot.slane %v2064, 4
        %v2067 = vor.u32 %v2066, %v2062
        %v2068 = vrot.slane %v2067, 4
        %v2070 = vshll.u32 %v1866, 16
        %v2072 = vrot.slane %v2070, 5
        %v2073 = vsel %vm556, %v2068, %v2072
        %v2074 = vshrl.u32 %v1866, 16
        %v2076 = vrot.slane %v2074, 4
        %v2077 = vor.u32 %v2076, %v2072
        %v2078 = vrot.slane %v2077, 4
        %v2080 = vshll.u32 %v1867, 16
        %v2082 = vrot.slane %v2080, 5
        %v2083 = vsel %vm556, %v2078, %v2082
        %v2084 = vshrl.u32 %v1867, 16
        %v2086 = vrot.slane %v2084, 4
        %v2087 = vor.u32 %v2086, %v2082
        %v2088 = vrot.slane %v2087, 4
        %v2090 = vshll.u32 %v1868, 16
        %v2092 = vrot.slane %v2090, 5
        %v2093 = vsel %vm556, %v2088, %v2092
        %v2094 = vshrl.u32 %v1868, 16
        %v2096 = vrot.slane %v2094, 4
        %v2097 = vor.u32 %v2096, %v2092
        %v2098 = vrot.slane %v2097, 4
        %v2100 = vshll.u32 %v1869, 16
        %v2102 = vrot.slane %v2100, 5
        %v2103 = vsel %vm556, %v2098, %v2102
        %v2104 = vshrl.u32 %v1869, 16
        %v2106 = vrot.slane %v2104, 4
        %v2107 = vor.u32 %v2106, %v2102
        %v2108 = vrot.slane %v2107, 4
        %v2110 = vshll.u32 %v1870, 16
        %v2112 = vrot.slane %v2110, 5
        %v2113 = vsel %vm556, %v2108, %v2112
        %v2114 = vshrl.u32 %v1870, 16
        %v2116 = vrot.slane %v2114, 4
        %v2117 = vor.u32 %v2116, %v2112
        %v2118 = vrot.slane %v2117, 4
        %v2120 = vshll.u32 %v1871, 16
        %v2122 = vrot.slane %v2120, 5
        %v2123 = vsel %vm556, %v2118, %v2122
        %v2124 = vshrl.u32 %v1871, 16
        %v2126 = vrot.slane %v2124, 4
        %v2127 = vor.u32 %v2126, %v2122
        %v2128 = vrot.slane %v2127, 4
        %v2130 = vshll.u32 %v1872, 16
        %v2132 = vrot.slane %v2130, 5
        %v2133 = vsel %vm556, %v2128, %v2132
        %v2134 = vshrl.u32 %v1872, 16
        %v2136 = vrot.slane %v2134, 4
        %v2137 = vor.u32 %v2136, %v2132
        %v2138 = vrot.slane %v2137, 4
        %v2140 = vshll.u32 %v1873, 16
        %v2142 = vrot.slane %v2140, 5
        %v2143 = vsel %vm556, %v2138, %v2142
        %v2144 = vshrl.u32 %v1873, 16
        %v2146 = vrot.slane %v2144, 4
        %v2147 = vor.u32 %v2146, %v2142
        %v2148 = vrot.slane %v2147, 4
        %v2150 = vshll.u32 %v1874, 16
        %v2152 = vrot.slane %v2150, 5
        %v2153 = vsel %vm556, %v2148, %v2152
        %v2154 = vshrl.u32 %v1874, 16
        %v2156 = vrot.slane %v2154, 4
        %v2157 = vor.u32 %v2156, %v2152
        %v2158 = vrot.slane %v2157, 4
        %v2160 = vshll.u32 %v1875, 16
        %v2162 = vrot.slane %v2160, 5
        %v2163 = vsel %vm556, %v2158, %v2162
        %v2164 = vshrl.u32 %v1875, 16
        %v2166 = vrot.slane %v2164, 4
        %v2167 = vor.u32 %v2166, %v2162
        %v2168 = vrot.slane %v2167, 4
        %v2170 = vshll.u32 %v1876, 16
        %v2172 = vrot.slane %v2170, 5
        %v2173 = vsel %vm556, %v2168, %v2172
        %v2174 = vshrl.u32 %v1876, 16
        %v2176 = vrot.slane %v2174, 4
        %v2177 = vor.u32 %v2176, %v2172
        %v2178 = vrot.slane %v2177, 4
        %v2180 = vshll.u32 %v1877, 16
        %v2182 = vrot.slane %v2180, 5
        %v2183 = vsel %vm556, %v2178, %v2182
        %v2184 = vshrl.u32 %v1877, 16
        %v2186 = vrot.slane %v2184, 4
        %v2187 = vor.u32 %v2186, %v2182
        %v2188 = vrot.slane %v2187, 4
        %v2190 = vshll.u32 %v1878, 16
        %v2192 = vrot.slane %v2190, 5
        %v2193 = vsel %vm556, %v2188, %v2192
        %v2194 = vshrl.u32 %v1878, 16
        %v2196 = vrot.slane %v2194, 4
        %v2197 = vor.u32 %v2196, %v2192
        %v2198 = vrot.slane %v2197, 4
        %v2200 = vshll.u32 %v1879, 16
        %v2202 = vrot.slane %v2200, 5
        %v2203 = vsel %vm556, %v2198, %v2202
        %2204 = vrot.lane.b32.xlu0 %v1893, 64
        %v2205 = vpop.permute.xlu0 %2204
        %2206 = vrot.lane.b32.xlu0 %v1903, 64
        %v2207 = vpop.permute.xlu0 %2206
        %2208 = vrot.lane.b32.xlu0 %v1913, 64
        %v2209 = vpop.permute.xlu0 %2208
        %2210 = vrot.lane.b32.xlu0 %v1923, 64
        %v2211 = vpop.permute.xlu0 %2210
        %2212 = vrot.lane.b32.xlu0 %v1933, 64
        %v2213 = vpop.permute.xlu0 %2212
        %2214 = vrot.lane.b32.xlu0 %v1943, 64
        %v2215 = vpop.permute.xlu0 %2214
        %2216 = vrot.lane.b32.xlu0 %v1953, 64
        %v2217 = vpop.permute.xlu0 %2216
        %2218 = vrot.lane.b32.xlu0 %v1963, 64
        %v2219 = vpop.permute.xlu0 %2218
        %2220 = vrot.lane.b32.xlu0 %v1973, 64
        %v2221 = vpop.permute.xlu0 %2220
        %2222 = vrot.lane.b32.xlu0 %v1983, 64
        %v2223 = vpop.permute.xlu0 %2222
        %2224 = vrot.lane.b32.xlu0 %v1993, 64
        %v2225 = vpop.permute.xlu0 %2224
        %2226 = vrot.lane.b32.xlu0 %v2003, 64
        %v2227 = vpop.permute.xlu0 %2226
        %2228 = vrot.lane.b32.xlu0 %v2013, 64
        %v2229 = vpop.permute.xlu0 %2228
        %2230 = vrot.lane.b32.xlu0 %v2023, 64
        %v2231 = vpop.permute.xlu0 %2230
        %2232 = vrot.lane.b32.xlu0 %v2033, 64
        %v2233 = vpop.permute.xlu0 %2232
        %2234 = vrot.lane.b32.xlu0 %v2043, 64
        %v2235 = vpop.permute.xlu0 %2234
        %2236 = vrot.lane.b32.xlu0 %v2053, 64
        %v2237 = vpop.permute.xlu0 %2236
        %2238 = vrot.lane.b32.xlu0 %v2063, 64
        %v2239 = vpop.permute.xlu0 %2238
        %2240 = vrot.lane.b32.xlu0 %v2073, 64
        %v2241 = vpop.permute.xlu0 %2240
        %2242 = vrot.lane.b32.xlu0 %v2083, 64
        %v2243 = vpop.permute.xlu0 %2242
        %2244 = vrot.lane.b32.xlu0 %v2093, 64
        %v2245 = vpop.permute.xlu0 %2244
        %2246 = vrot.lane.b32.xlu0 %v2103, 64
        %v2247 = vpop.permute.xlu0 %2246
        %2248 = vrot.lane.b32.xlu0 %v2113, 64
        %v2249 = vpop.permute.xlu0 %2248
        %2250 = vrot.lane.b32.xlu0 %v2123, 64
        %v2251 = vpop.permute.xlu0 %2250
        %2252 = vrot.lane.b32.xlu0 %v2133, 64
        %v2253 = vpop.permute.xlu0 %2252
        %2254 = vrot.lane.b32.xlu0 %v2143, 64
        %v2255 = vpop.permute.xlu0 %2254
        %2256 = vrot.lane.b32.xlu0 %v2153, 64
        %v2257 = vpop.permute.xlu0 %2256
        %2258 = vrot.lane.b32.xlu0 %v2163, 64
        %v2259 = vpop.permute.xlu0 %2258
        %2260 = vrot.lane.b32.xlu0 %v2173, 64
        %v2261 = vpop.permute.xlu0 %2260
        %2262 = vrot.lane.b32.xlu0 %v2183, 64
        %v2263 = vpop.permute.xlu0 %2262
        %2264 = vrot.lane.b32.xlu0 %v2193, 64
        %v2265 = vpop.permute.xlu0 %2264
        %2266 = vrot.lane.b32.xlu0 %v2203, 64
        %v2267 = vpop.permute.xlu0 %2266
        %vm2300 = vcmask 781824
        %2301 = vst.msk [vmem:[#allocation3] sm:$0xf] %vm2300, %v2205
        %2302 = vst.msk [vmem:[#allocation3 + $0xc] sm:$0xf] %vm2300, %v2207
        %2303 = vst.msk [vmem:[#allocation3 + $0x18] sm:$0xf] %vm2300, %v2209
        %2304 = vst.msk [vmem:[#allocation3 + $0x24] sm:$0xf] %vm2300, %v2211
        %2305 = vst.msk [vmem:[#allocation3 + $0x30] sm:$0xf] %vm2300, %v2213
        %2306 = vst.msk [vmem:[#allocation3 + $0x3c] sm:$0xf] %vm2300, %v2215
        %2307 = vst.msk [vmem:[#allocation3 + $0x48] sm:$0xf] %vm2300, %v2217
        %2308 = vst.msk [vmem:[#allocation3 + $0x54] sm:$0xf] %vm2300, %v2219
        %2309 = vst.msk [vmem:[#allocation3 + $0x60] sm:$0xf] %vm2300, %v2221
        %2310 = vst.msk [vmem:[#allocation3 + $0x6c] sm:$0xf] %vm2300, %v2223
        %2311 = vst.msk [vmem:[#allocation3 + $0x78] sm:$0xf] %vm2300, %v2225
        %2312 = vst.msk [vmem:[#allocation3 + $0x84] sm:$0xf] %vm2300, %v2227
        %2313 = vst.msk [vmem:[#allocation3 + $0x90] sm:$0xf] %vm2300, %v2229
        %2314 = vst.msk [vmem:[#allocation3 + $0x9c] sm:$0xf] %vm2300, %v2231
        %2315 = vst.msk [vmem:[#allocation3 + $0xa8] sm:$0xf] %vm2300, %v2233
        %2316 = vst.msk [vmem:[#allocation3 + $0xb4] sm:$0xf] %vm2300, %v2235
        %2317 = vst.msk [vmem:[#allocation3 + $0xc0] sm:$0xf] %vm2300, %v2237
        %2318 = vst.msk [vmem:[#allocation3 + $0xcc] sm:$0xf] %vm2300, %v2239
        %2319 = vst.msk [vmem:[#allocation3 + $0xd8] sm:$0xf] %vm2300, %v2241
        %2320 = vst.msk [vmem:[#allocation3 + $0xe4] sm:$0xf] %vm2300, %v2243
        %2321 = vst.msk [vmem:[#allocation3 + $0xf0] sm:$0xf] %vm2300, %v2245
        %2322 = vst.msk [vmem:[#allocation3 + $0xfc] sm:$0xf] %vm2300, %v2247
        %2323 = vst.msk [vmem:[#allocation3 + $0x108] sm:$0xf] %vm2300, %v2249
        %2324 = vst.msk [vmem:[#allocation3 + $0x114] sm:$0xf] %vm2300, %v2251
        %2325 = vst.msk [vmem:[#allocation3 + $0x120] sm:$0xf] %vm2300, %v2253
        %2326 = vst.msk [vmem:[#allocation3 + $0x12c] sm:$0xf] %vm2300, %v2255
        %2327 = vst.msk [vmem:[#allocation3 + $0x138] sm:$0xf] %vm2300, %v2257
        %2328 = vst.msk [vmem:[#allocation3 + $0x144] sm:$0xf] %vm2300, %v2259
        %2329 = vst.msk [vmem:[#allocation3 + $0x150] sm:$0xf] %vm2300, %v2261
        %2330 = vst.msk [vmem:[#allocation3 + $0x15c] sm:$0xf] %vm2300, %v2263
        %2331 = vst.msk [vmem:[#allocation3 + $0x168] sm:$0xf] %vm2300, %v2265
        %2332 = vst.msk [vmem:[#allocation3 + $0x174] sm:$0xf] %vm2300, %v2267
        %v2333 = vld [vmem:[#allocation2 + $0x8] sm:$0x8]
        %v2334 = vld [vmem:[#allocation2 + $0xc] sm:$0xf]
        %v2335 = vld [vmem:[#allocation2 + $0x10] sm:$0xf]
        %v2336 = vld [vmem:[#allocation2 + $0x14] sm:$0xf]
        %v2337 = vld [vmem:[#allocation2 + $0x18] sm:$0xf]
        %v2338 = vld [vmem:[#allocation2 + $0x1c] sm:$0xf]
        %v2339 = vld [vmem:[#allocation2 + $0x20] sm:$0xf]
        %v2340 = vld [vmem:[#allocation2 + $0x24] sm:$0xf]
        %v2341 = vld [vmem:[#allocation2 + $0x28] sm:$0xf]
        %v2342 = vld [vmem:[#allocation2 + $0x2c] sm:$0xf]
        %v2343 = vld [vmem:[#allocation2 + $0x30] sm:$0xf]
        %v2344 = vld [vmem:[#allocation2 + $0x34] sm:$0xf]
        %v2345 = vld [vmem:[#allocation2 + $0x38] sm:$0xf]
        %v2346 = vld [vmem:[#allocation2 + $0x3c] sm:$0xf]
        %v2347 = vld [vmem:[#allocation2 + $0x40] sm:$0xf]
        %v2348 = vld [vmem:[#allocation2 + $0x44] sm:$0xf]
        %v2349 = vld [vmem:[#allocation2 + $0x48] sm:$0xf]
        %v2350 = vld [vmem:[#allocation2 + $0x4c] sm:$0xf]
        %v2351 = vld [vmem:[#allocation2 + $0x50] sm:$0xf]
        %v2352 = vld [vmem:[#allocation2 + $0x54] sm:$0xf]
        %v2353 = vld [vmem:[#allocation2 + $0x58] sm:$0xf]
        %v2354 = vld [vmem:[#allocation2 + $0x5c] sm:$0xf]
        %v2355 = vld [vmem:[#allocation2 + $0x60] sm:$0xf]
        %v2356 = vld [vmem:[#allocation2 + $0x64] sm:$0xf]
        %v2357 = vld [vmem:[#allocation2 + $0x68] sm:$0xf]
        %v2358 = vld [vmem:[#allocation2 + $0x6c] sm:$0xf]
        %v2359 = vld [vmem:[#allocation2 + $0x70] sm:$0xf]
        %v2360 = vld [vmem:[#allocation2 + $0x74] sm:$0xf]
        %v2361 = vld [vmem:[#allocation2 + $0x78] sm:$0xf]
        %v2362 = vld [vmem:[#allocation2 + $0x7c] sm:$0xf]
        %v2363 = vld [vmem:[#allocation2 + $0x80] sm:$0xf]
        %v2364 = vld [vmem:[#allocation2 + $0x84] sm:$0xf]
        %v2365 = vld [vmem:[#allocation2 + $0x88] sm:$0xf]
        %v2366 = vmul.bf16 %v2333, %v560
        %v2367 = vmul.bf16 %v2334, %v570
        %v2368 = vmul.bf16 %v2335, %v580
        %v2369 = vmul.bf16 %v2336, %v590
        %v2370 = vmul.bf16 %v2337, %v600
        %v2371 = vmul.bf16 %v2338, %v610
        %v2372 = vmul.bf16 %v2339, %v620
        %v2373 = vmul.bf16 %v2340, %v630
        %v2374 = vmul.bf16 %v2341, %v640
        %v2375 = vmul.bf16 %v2342, %v650
        %v2376 = vmul.bf16 %v2343, %v660
        %v2377 = vmul.bf16 %v2344, %v670
        %v2378 = vmul.bf16 %v2345, %v680
        %v2379 = vmul.bf16 %v2346, %v690
        %v2380 = vmul.bf16 %v2347, %v700
        %v2381 = vmul.bf16 %v2348, %v710
        %v2382 = vmul.bf16 %v2349, %v720
        %v2383 = vmul.bf16 %v2350, %v730
        %v2384 = vmul.bf16 %v2351, %v740
        %v2385 = vmul.bf16 %v2352, %v750
        %v2386 = vmul.bf16 %v2353, %v760
        %v2387 = vmul.bf16 %v2354, %v770
        %v2388 = vmul.bf16 %v2355, %v780
        %v2389 = vmul.bf16 %v2356, %v790
        %v2390 = vmul.bf16 %v2357, %v800
        %v2391 = vmul.bf16 %v2358, %v810
        %v2392 = vmul.bf16 %v2359, %v820
        %v2393 = vmul.bf16 %v2360, %v830
        %v2394 = vmul.bf16 %v2361, %v840
        %v2395 = vmul.bf16 %v2362, %v850
        %v2396 = vmul.bf16 %v2363, %v860
        %v2397 = vmul.bf16 %v2364, %v870
        %v2398 = vmul.bf16 %v2365, %v875
        %v2400 = vshrl.u32 %v2366, 16
        %v2402 = vrot.slane %v2400, 7
        %v2403 = vrot.slane %v2402, 4
        %v2405 = vshrl.u32 %v2367, 16
        %v2407 = vrot.slane %v2405, 7
        %v2408 = vshll.u32 %v2367, 16
        %v2410 = vor.u32 %v2407, %v2408
        %v2411 = vsel %vm944, %v2403, %v2410
        %v2412 = vrot.slane %v2407, 4
        %v2414 = vshrl.u32 %v2368, 16
        %v2416 = vrot.slane %v2414, 7
        %v2417 = vshll.u32 %v2368, 16
        %v2419 = vor.u32 %v2416, %v2417
        %v2420 = vsel %vm944, %v2412, %v2419
        %v2421 = vrot.slane %v2416, 4
        %v2423 = vshrl.u32 %v2369, 16
        %v2425 = vrot.slane %v2423, 7
        %v2426 = vshll.u32 %v2369, 16
        %v2428 = vor.u32 %v2425, %v2426
        %v2429 = vsel %vm944, %v2421, %v2428
        %v2430 = vrot.slane %v2425, 4
        %v2432 = vshrl.u32 %v2370, 16
        %v2434 = vrot.slane %v2432, 7
        %v2435 = vshll.u32 %v2370, 16
        %v2437 = vor.u32 %v2434, %v2435
        %v2438 = vsel %vm944, %v2430, %v2437
        %v2439 = vrot.slane %v2434, 4
        %v2441 = vshrl.u32 %v2371, 16
        %v2443 = vrot.slane %v2441, 7
        %v2444 = vshll.u32 %v2371, 16
        %v2446 = vor.u32 %v2443, %v2444
        %v2447 = vsel %vm944, %v2439, %v2446
        %v2448 = vrot.slane %v2443, 4
        %v2450 = vshrl.u32 %v2372, 16
        %v2452 = vrot.slane %v2450, 7
        %v2453 = vshll.u32 %v2372, 16
        %v2455 = vor.u32 %v2452, %v2453
        %v2456 = vsel %vm944, %v2448, %v2455
        %v2457 = vrot.slane %v2452, 4
        %v2459 = vshrl.u32 %v2373, 16
        %v2461 = vrot.slane %v2459, 7
        %v2462 = vshll.u32 %v2373, 16
        %v2464 = vor.u32 %v2461, %v2462
        %v2465 = vsel %vm944, %v2457, %v2464
        %v2466 = vrot.slane %v2461, 4
        %v2468 = vshrl.u32 %v2374, 16
        %v2470 = vrot.slane %v2468, 7
        %v2471 = vshll.u32 %v2374, 16
        %v2473 = vor.u32 %v2470, %v2471
        %v2474 = vsel %vm944, %v2466, %v2473
        %v2475 = vrot.slane %v2470, 4
        %v2477 = vshrl.u32 %v2375, 16
        %v2479 = vrot.slane %v2477, 7
        %v2480 = vshll.u32 %v2375, 16
        %v2482 = vor.u32 %v2479, %v2480
        %v2483 = vsel %vm944, %v2475, %v2482
        %v2484 = vrot.slane %v2479, 4
        %v2486 = vshrl.u32 %v2376, 16
        %v2488 = vrot.slane %v2486, 7
        %v2489 = vshll.u32 %v2376, 16
        %v2491 = vor.u32 %v2488, %v2489
        %v2492 = vsel %vm944, %v2484, %v2491
        %v2493 = vrot.slane %v2488, 4
        %v2495 = vshrl.u32 %v2377, 16
        %v2497 = vrot.slane %v2495, 7
        %v2498 = vshll.u32 %v2377, 16
        %v2500 = vor.u32 %v2497, %v2498
        %v2501 = vsel %vm944, %v2493, %v2500
        %v2502 = vrot.slane %v2497, 4
        %v2504 = vshrl.u32 %v2378, 16
        %v2506 = vrot.slane %v2504, 7
        %v2507 = vshll.u32 %v2378, 16
        %v2509 = vor.u32 %v2506, %v2507
        %v2510 = vsel %vm944, %v2502, %v2509
        %v2511 = vrot.slane %v2506, 4
        %v2513 = vshrl.u32 %v2379, 16
        %v2515 = vrot.slane %v2513, 7
        %v2516 = vshll.u32 %v2379, 16
        %v2518 = vor.u32 %v2515, %v2516
        %v2519 = vsel %vm944, %v2511, %v2518
        %v2520 = vrot.slane %v2515, 4
        %v2522 = vshrl.u32 %v2380, 16
        %v2524 = vrot.slane %v2522, 7
        %v2525 = vshll.u32 %v2380, 16
        %v2527 = vor.u32 %v2524, %v2525
        %v2528 = vsel %vm944, %v2520, %v2527
        %v2529 = vrot.slane %v2524, 4
        %v2531 = vshrl.u32 %v2381, 16
        %v2533 = vrot.slane %v2531, 7
        %v2534 = vshll.u32 %v2381, 16
        %v2536 = vor.u32 %v2533, %v2534
        %v2537 = vsel %vm944, %v2529, %v2536
        %v2538 = vrot.slane %v2533, 4
        %v2540 = vshrl.u32 %v2382, 16
        %v2542 = vrot.slane %v2540, 7
        %v2543 = vshll.u32 %v2382, 16
        %v2545 = vor.u32 %v2542, %v2543
        %v2546 = vsel %vm944, %v2538, %v2545
        %v2547 = vrot.slane %v2542, 4
        %v2549 = vshrl.u32 %v2383, 16
        %v2551 = vrot.slane %v2549, 7
        %v2552 = vshll.u32 %v2383, 16
        %v2554 = vor.u32 %v2551, %v2552
        %v2555 = vsel %vm944, %v2547, %v2554
        %v2556 = vrot.slane %v2551, 4
        %v2558 = vshrl.u32 %v2384, 16
        %v2560 = vrot.slane %v2558, 7
        %v2561 = vshll.u32 %v2384, 16
        %v2563 = vor.u32 %v2560, %v2561
        %v2564 = vsel %vm944, %v2556, %v2563
        %v2565 = vrot.slane %v2560, 4
        %v2567 = vshrl.u32 %v2385, 16
        %v2569 = vrot.slane %v2567, 7
        %v2570 = vshll.u32 %v2385, 16
        %v2572 = vor.u32 %v2569, %v2570
        %v2573 = vsel %vm944, %v2565, %v2572
        %v2574 = vrot.slane %v2569, 4
        %v2576 = vshrl.u32 %v2386, 16
        %v2578 = vrot.slane %v2576, 7
        %v2579 = vshll.u32 %v2386, 16
        %v2581 = vor.u32 %v2578, %v2579
        %v2582 = vsel %vm944, %v2574, %v2581
        %v2583 = vrot.slane %v2578, 4
        %v2585 = vshrl.u32 %v2387, 16
        %v2587 = vrot.slane %v2585, 7
        %v2588 = vshll.u32 %v2387, 16
        %v2590 = vor.u32 %v2587, %v2588
        %v2591 = vsel %vm944, %v2583, %v2590
        %v2592 = vrot.slane %v2587, 4
        %v2594 = vshrl.u32 %v2388, 16
        %v2596 = vrot.slane %v2594, 7
        %v2597 = vshll.u32 %v2388, 16
        %v2599 = vor.u32 %v2596, %v2597
        %v2600 = vsel %vm944, %v2592, %v2599
        %v2601 = vrot.slane %v2596, 4
        %v2603 = vshrl.u32 %v2389, 16
        %v2605 = vrot.slane %v2603, 7
        %v2606 = vshll.u32 %v2389, 16
        %v2608 = vor.u32 %v2605, %v2606
        %v2609 = vsel %vm944, %v2601, %v2608
        %v2610 = vrot.slane %v2605, 4
        %v2612 = vshrl.u32 %v2390, 16
        %v2614 = vrot.slane %v2612, 7
        %v2615 = vshll.u32 %v2390, 16
        %v2617 = vor.u32 %v2614, %v2615
        %v2618 = vsel %vm944, %v2610, %v2617
        %v2619 = vrot.slane %v2614, 4
        %v2621 = vshrl.u32 %v2391, 16
        %v2623 = vrot.slane %v2621, 7
        %v2624 = vshll.u32 %v2391, 16
        %v2626 = vor.u32 %v2623, %v2624
        %v2627 = vsel %vm944, %v2619, %v2626
        %v2628 = vrot.slane %v2623, 4
        %v2630 = vshrl.u32 %v2392, 16
        %v2632 = vrot.slane %v2630, 7
        %v2633 = vshll.u32 %v2392, 16
        %v2635 = vor.u32 %v2632, %v2633
        %v2636 = vsel %vm944, %v2628, %v2635
        %v2637 = vrot.slane %v2632, 4
        %v2639 = vshrl.u32 %v2393, 16
        %v2641 = vrot.slane %v2639, 7
        %v2642 = vshll.u32 %v2393, 16
        %v2644 = vor.u32 %v2641, %v2642
        %v2645 = vsel %vm944, %v2637, %v2644
        %v2646 = vrot.slane %v2641, 4
        %v2648 = vshrl.u32 %v2394, 16
        %v2650 = vrot.slane %v2648, 7
        %v2651 = vshll.u32 %v2394, 16
        %v2653 = vor.u32 %v2650, %v2651
        %v2654 = vsel %vm944, %v2646, %v2653
        %v2655 = vrot.slane %v2650, 4
        %v2657 = vshrl.u32 %v2395, 16
        %v2659 = vrot.slane %v2657, 7
        %v2660 = vshll.u32 %v2395, 16
        %v2662 = vor.u32 %v2659, %v2660
        %v2663 = vsel %vm944, %v2655, %v2662
        %v2664 = vrot.slane %v2659, 4
        %v2666 = vshrl.u32 %v2396, 16
        %v2668 = vrot.slane %v2666, 7
        %v2669 = vshll.u32 %v2396, 16
        %v2671 = vor.u32 %v2668, %v2669
        %v2672 = vsel %vm944, %v2664, %v2671
        %v2673 = vrot.slane %v2668, 4
        %v2675 = vshrl.u32 %v2397, 16
        %v2677 = vrot.slane %v2675, 7
        %v2678 = vshll.u32 %v2397, 16
        %v2680 = vor.u32 %v2677, %v2678
        %v2681 = vsel %vm944, %v2673, %v2680
        %v2682 = vrot.slane %v2677, 4
        %v2684 = vshrl.u32 %v2398, 16
        %v2686 = vrot.slane %v2684, 7
        %v2687 = vshll.u32 %v2398, 16
        %v2689 = vor.u32 %v2686, %v2687
        %v2690 = vsel %vm944, %v2682, %v2689
        %2691 = vrot.lane.b32.xlu0 %v2411, 96
        %v2692 = vpop.permute.xlu0 %2691
        %2693 = vrot.lane.b32.xlu0 %v2420, 96
        %v2694 = vpop.permute.xlu0 %2693
        %2695 = vrot.lane.b32.xlu0 %v2429, 96
        %v2696 = vpop.permute.xlu0 %2695
        %2697 = vrot.lane.b32.xlu0 %v2438, 96
        %v2698 = vpop.permute.xlu0 %2697
        %2699 = vrot.lane.b32.xlu0 %v2447, 96
        %v2700 = vpop.permute.xlu0 %2699
        %2701 = vrot.lane.b32.xlu0 %v2456, 96
        %v2702 = vpop.permute.xlu0 %2701
        %2703 = vrot.lane.b32.xlu0 %v2465, 96
        %v2704 = vpop.permute.xlu0 %2703
        %2705 = vrot.lane.b32.xlu0 %v2474, 96
        %v2706 = vpop.permute.xlu0 %2705
        %2707 = vrot.lane.b32.xlu0 %v2483, 96
        %v2708 = vpop.permute.xlu0 %2707
        %2709 = vrot.lane.b32.xlu0 %v2492, 96
        %v2710 = vpop.permute.xlu0 %2709
        %2711 = vrot.lane.b32.xlu0 %v2501, 96
        %v2712 = vpop.permute.xlu0 %2711
        %2713 = vrot.lane.b32.xlu0 %v2510, 96
        %v2714 = vpop.permute.xlu0 %2713
        %2715 = vrot.lane.b32.xlu0 %v2519, 96
        %v2716 = vpop.permute.xlu0 %2715
        %2717 = vrot.lane.b32.xlu0 %v2528, 96
        %v2718 = vpop.permute.xlu0 %2717
        %2719 = vrot.lane.b32.xlu0 %v2537, 96
        %v2720 = vpop.permute.xlu0 %2719
        %2721 = vrot.lane.b32.xlu0 %v2546, 96
        %v2722 = vpop.permute.xlu0 %2721
        %2723 = vrot.lane.b32.xlu0 %v2555, 96
        %v2724 = vpop.permute.xlu0 %2723
        %2725 = vrot.lane.b32.xlu0 %v2564, 96
        %v2726 = vpop.permute.xlu0 %2725
        %2727 = vrot.lane.b32.xlu0 %v2573, 96
        %v2728 = vpop.permute.xlu0 %2727
        %2729 = vrot.lane.b32.xlu0 %v2582, 96
        %v2730 = vpop.permute.xlu0 %2729
        %2731 = vrot.lane.b32.xlu0 %v2591, 96
        %v2732 = vpop.permute.xlu0 %2731
        %2733 = vrot.lane.b32.xlu0 %v2600, 96
        %v2734 = vpop.permute.xlu0 %2733
        %2735 = vrot.lane.b32.xlu0 %v2609, 96
        %v2736 = vpop.permute.xlu0 %2735
        %2737 = vrot.lane.b32.xlu0 %v2618, 96
        %v2738 = vpop.permute.xlu0 %2737
        %2739 = vrot.lane.b32.xlu0 %v2627, 96
        %v2740 = vpop.permute.xlu0 %2739
        %2741 = vrot.lane.b32.xlu0 %v2636, 96
        %v2742 = vpop.permute.xlu0 %2741
        %2743 = vrot.lane.b32.xlu0 %v2645, 96
        %v2744 = vpop.permute.xlu0 %2743
        %2745 = vrot.lane.b32.xlu0 %v2654, 96
        %v2746 = vpop.permute.xlu0 %2745
        %2747 = vrot.lane.b32.xlu0 %v2663, 96
        %v2748 = vpop.permute.xlu0 %2747
        %2749 = vrot.lane.b32.xlu0 %v2672, 96
        %v2750 = vpop.permute.xlu0 %2749
        %2751 = vrot.lane.b32.xlu0 %v2681, 96
        %v2752 = vpop.permute.xlu0 %2751
        %2753 = vrot.lane.b32.xlu0 %v2690, 96
        %v2754 = vpop.permute.xlu0 %2753
        %vm2787 = vcmask 1044224
        %2788 = vst.msk [vmem:[#allocation3] sm:$0xf] %vm2787, %v2692
        %2789 = vst.msk [vmem:[#allocation3 + $0xc] sm:$0xf] %vm2787, %v2694
        %2790 = vst.msk [vmem:[#allocation3 + $0x18] sm:$0xf] %vm2787, %v2696
        %2791 = vst.msk [vmem:[#allocation3 + $0x24] sm:$0xf] %vm2787, %v2698
        %2792 = vst.msk [vmem:[#allocation3 + $0x30] sm:$0xf] %vm2787, %v2700
        %2793 = vst.msk [vmem:[#allocation3 + $0x3c] sm:$0xf] %vm2787, %v2702
        %2794 = vst.msk [vmem:[#allocation3 + $0x48] sm:$0xf] %vm2787, %v2704
        %2795 = vst.msk [vmem:[#allocation3 + $0x54] sm:$0xf] %vm2787, %v2706
        %2796 = vst.msk [vmem:[#allocation3 + $0x60] sm:$0xf] %vm2787, %v2708
        %2797 = vst.msk [vmem:[#allocation3 + $0x6c] sm:$0xf] %vm2787, %v2710
        %2798 = vst.msk [vmem:[#allocation3 + $0x78] sm:$0xf] %vm2787, %v2712
        %2799 = vst.msk [vmem:[#allocation3 + $0x84] sm:$0xf] %vm2787, %v2714
        %2800 = vst.msk [vmem:[#allocation3 + $0x90] sm:$0xf] %vm2787, %v2716
        %2801 = vst.msk [vmem:[#allocation3 + $0x9c] sm:$0xf] %vm2787, %v2718
        %2802 = vst.msk [vmem:[#allocation3 + $0xa8] sm:$0xf] %vm2787, %v2720
        %2803 = vst.msk [vmem:[#allocation3 + $0xb4] sm:$0xf] %vm2787, %v2722
        %2804 = vst.msk [vmem:[#allocation3 + $0xc0] sm:$0xf] %vm2787, %v2724
        %2805 = vst.msk [vmem:[#allocation3 + $0xcc] sm:$0xf] %vm2787, %v2726
        %2806 = vst.msk [vmem:[#allocation3 + $0xd8] sm:$0xf] %vm2787, %v2728
        %2807 = vst.msk [vmem:[#allocation3 + $0xe4] sm:$0xf] %vm2787, %v2730
        %2808 = vst.msk [vmem:[#allocation3 + $0xf0] sm:$0xf] %vm2787, %v2732
        %2809 = vst.msk [vmem:[#allocation3 + $0xfc] sm:$0xf] %vm2787, %v2734
        %2810 = vst.msk [vmem:[#allocation3 + $0x108] sm:$0xf] %vm2787, %v2736
        %2811 = vst.msk [vmem:[#allocation3 + $0x114] sm:$0xf] %vm2787, %v2738
        %2812 = vst.msk [vmem:[#allocation3 + $0x120] sm:$0xf] %vm2787, %v2740
        %2813 = vst.msk [vmem:[#allocation3 + $0x12c] sm:$0xf] %vm2787, %v2742
        %2814 = vst.msk [vmem:[#allocation3 + $0x138] sm:$0xf] %vm2787, %v2744
        %2815 = vst.msk [vmem:[#allocation3 + $0x144] sm:$0xf] %vm2787, %v2746
        %2816 = vst.msk [vmem:[#allocation3 + $0x150] sm:$0xf] %vm2787, %v2748
        %2817 = vst.msk [vmem:[#allocation3 + $0x15c] sm:$0xf] %vm2787, %v2750
        %2818 = vst.msk [vmem:[#allocation3 + $0x168] sm:$0xf] %vm2787, %v2752
        %2819 = vst.msk [vmem:[#allocation3 + $0x174] sm:$0xf] %vm2787, %v2754
        %v2820 = vld [vmem:[#allocation2 + $0xc] sm:$0xf]
        %v2821 = vld [vmem:[#allocation2 + $0x10] sm:$0xf]
        %v2822 = vld [vmem:[#allocation2 + $0x14] sm:$0xf]
        %v2823 = vld [vmem:[#allocation2 + $0x18] sm:$0xf]
        %v2824 = vld [vmem:[#allocation2 + $0x1c] sm:$0xf]
        %v2825 = vld [vmem:[#allocation2 + $0x20] sm:$0xf]
        %v2826 = vld [vmem:[#allocation2 + $0x24] sm:$0xf]
        %v2827 = vld [vmem:[#allocation2 + $0x28] sm:$0xf]
        %v2828 = vld [vmem:[#allocation2 + $0x2c] sm:$0xf]
        %v2829 = vld [vmem:[#allocation2 + $0x30] sm:$0xf]
        %v2830 = vld [vmem:[#allocation2 + $0x34] sm:$0xf]
        %v2831 = vld [vmem:[#allocation2 + $0x38] sm:$0xf]
        %v2832 = vld [vmem:[#allocation2 + $0x3c] sm:$0xf]
        %v2833 = vld [vmem:[#allocation2 + $0x40] sm:$0xf]
        %v2834 = vld [vmem:[#allocation2 + $0x44] sm:$0xf]
        %v2835 = vld [vmem:[#allocation2 + $0x48] sm:$0xf]
        %v2836 = vld [vmem:[#allocation2 + $0x4c] sm:$0xf]
        %v2837 = vld [vmem:[#allocation2 + $0x50] sm:$0xf]
        %v2838 = vld [vmem:[#allocation2 + $0x54] sm:$0xf]
        %v2839 = vld [vmem:[#allocation2 + $0x58] sm:$0xf]
        %v2840 = vld [vmem:[#allocation2 + $0x5c] sm:$0xf]
        %v2841 = vld [vmem:[#allocation2 + $0x60] sm:$0xf]
        %v2842 = vld [vmem:[#allocation2 + $0x64] sm:$0xf]
        %v2843 = vld [vmem:[#allocation2 + $0x68] sm:$0xf]
        %v2844 = vld [vmem:[#allocation2 + $0x6c] sm:$0xf]
        %v2845 = vld [vmem:[#allocation2 + $0x70] sm:$0xf]
        %v2846 = vld [vmem:[#allocation2 + $0x74] sm:$0xf]
        %v2847 = vld [vmem:[#allocation2 + $0x78] sm:$0xf]
        %v2848 = vld [vmem:[#allocation2 + $0x7c] sm:$0xf]
        %v2849 = vld [vmem:[#allocation2 + $0x80] sm:$0xf]
        %v2850 = vld [vmem:[#allocation2 + $0x84] sm:$0xf]
        %v2851 = vld [vmem:[#allocation2 + $0x88] sm:$0xf]
        %2852 = vst.msk [vmem:[#allocation3 + $0x4] sm:$0xf] %vm386, %v2820
        %2853 = vst.msk [vmem:[#allocation3 + $0x10] sm:$0xf] %vm386, %v2821
        %2854 = vst.msk [vmem:[#allocation3 + $0x1c] sm:$0xf] %vm386, %v2822
        %2855 = vst.msk [vmem:[#allocation3 + $0x28] sm:$0xf] %vm386, %v2823
        %2856 = vst.msk [vmem:[#allocation3 + $0x34] sm:$0xf] %vm386, %v2824
        %2857 = vst.msk [vmem:[#allocation3 + $0x40] sm:$0xf] %vm386, %v2825
        %2858 = vst.msk [vmem:[#allocation3 + $0x4c] sm:$0xf] %vm386, %v2826
        %2859 = vst.msk [vmem:[#allocation3 + $0x58] sm:$0xf] %vm386, %v2827
        %2860 = vst.msk [vmem:[#allocation3 + $0x64] sm:$0xf] %vm386, %v2828
        %2861 = vst.msk [vmem:[#allocation3 + $0x70] sm:$0xf] %vm386, %v2829
        %2862 = vst.msk [vmem:[#allocation3 + $0x7c] sm:$0xf] %vm386, %v2830
        %2863 = vst.msk [vmem:[#allocation3 + $0x88] sm:$0xf] %vm386, %v2831
        %2864 = vst.msk [vmem:[#allocation3 + $0x94] sm:$0xf] %vm386, %v2832
        %2865 = vst.msk [vmem:[#allocation3 + $0xa0] sm:$0xf] %vm386, %v2833
        %2866 = vst.msk [vmem:[#allocation3 + $0xac] sm:$0xf] %vm386, %v2834
        %2867 = vst.msk [vmem:[#allocation3 + $0xb8] sm:$0xf] %vm386, %v2835
        %2868 = vst.msk [vmem:[#allocation3 + $0xc4] sm:$0xf] %vm386, %v2836
        %2869 = vst.msk [vmem:[#allocation3 + $0xd0] sm:$0xf] %vm386, %v2837
        %2870 = vst.msk [vmem:[#allocation3 + $0xdc] sm:$0xf] %vm386, %v2838
        %2871 = vst.msk [vmem:[#allocation3 + $0xe8] sm:$0xf] %vm386, %v2839
        %2872 = vst.msk [vmem:[#allocation3 + $0xf4] sm:$0xf] %vm386, %v2840
        %2873 = vst.msk [vmem:[#allocation3 + $0x100] sm:$0xf] %vm386, %v2841
        %2874 = vst.msk [vmem:[#allocation3 + $0x10c] sm:$0xf] %vm386, %v2842
        %2875 = vst.msk [vmem:[#allocation3 + $0x118] sm:$0xf] %vm386, %v2843
        %2876 = vst.msk [vmem:[#allocation3 + $0x124] sm:$0xf] %vm386, %v2844
        %2877 = vst.msk [vmem:[#allocation3 + $0x130] sm:$0xf] %vm386, %v2845
        %2878 = vst.msk [vmem:[#allocation3 + $0x13c] sm:$0xf] %vm386, %v2846
        %2879 = vst.msk [vmem:[#allocation3 + $0x148] sm:$0xf] %vm386, %v2847
        %2880 = vst.msk [vmem:[#allocation3 + $0x154] sm:$0xf] %vm386, %v2848
        %2881 = vst.msk [vmem:[#allocation3 + $0x160] sm:$0xf] %vm386, %v2849
        %2882 = vst.msk [vmem:[#allocation3 + $0x16c] sm:$0xf] %vm386, %v2850
        %2883 = vst.msk [vmem:[#allocation3 + $0x178] sm:$0xf] %vm386, %v2851
        %v2884 = vld [vmem:[#allocation2 + $0xc] sm:$0xf]
        %v2885 = vld [vmem:[#allocation2 + $0x10] sm:$0xf]
        %v2886 = vld [vmem:[#allocation2 + $0x14] sm:$0xf]
        %v2887 = vld [vmem:[#allocation2 + $0x18] sm:$0xf]
        %v2888 = vld [vmem:[#allocation2 + $0x1c] sm:$0xf]
        %v2889 = vld [vmem:[#allocation2 + $0x20] sm:$0xf]
        %v2890 = vld [vmem:[#allocation2 + $0x24] sm:$0xf]
        %v2891 = vld [vmem:[#allocation2 + $0x28] sm:$0xf]
        %v2892 = vld [vmem:[#allocation2 + $0x2c] sm:$0xf]
        %v2893 = vld [vmem:[#allocation2 + $0x30] sm:$0xf]
        %v2894 = vld [vmem:[#allocation2 + $0x34] sm:$0xf]
        %v2895 = vld [vmem:[#allocation2 + $0x38] sm:$0xf]
        %v2896 = vld [vmem:[#allocation2 + $0x3c] sm:$0xf]
        %v2897 = vld [vmem:[#allocation2 + $0x40] sm:$0xf]
        %v2898 = vld [vmem:[#allocation2 + $0x44] sm:$0xf]
        %v2899 = vld [vmem:[#allocation2 + $0x48] sm:$0xf]
        %v2900 = vld [vmem:[#allocation2 + $0x4c] sm:$0xf]
        %v2901 = vld [vmem:[#allocation2 + $0x50] sm:$0xf]
        %v2902 = vld [vmem:[#allocation2 + $0x54] sm:$0xf]
        %v2903 = vld [vmem:[#allocation2 + $0x58] sm:$0xf]
        %v2904 = vld [vmem:[#allocation2 + $0x5c] sm:$0xf]
        %v2905 = vld [vmem:[#allocation2 + $0x60] sm:$0xf]
        %v2906 = vld [vmem:[#allocation2 + $0x64] sm:$0xf]
        %v2907 = vld [vmem:[#allocation2 + $0x68] sm:$0xf]
        %v2908 = vld [vmem:[#allocation2 + $0x6c] sm:$0xf]
        %v2909 = vld [vmem:[#allocation2 + $0x70] sm:$0xf]
        %v2910 = vld [vmem:[#allocation2 + $0x74] sm:$0xf]
        %v2911 = vld [vmem:[#allocation2 + $0x78] sm:$0xf]
        %v2912 = vld [vmem:[#allocation2 + $0x7c] sm:$0xf]
        %v2913 = vld [vmem:[#allocation2 + $0x80] sm:$0xf]
        %v2914 = vld [vmem:[#allocation2 + $0x84] sm:$0xf]
        %v2915 = vld [vmem:[#allocation2 + $0x88] sm:$0xf]
        %v2916 = vld [vmem:[#allocation2 + $0x8c] sm:$0x1]
        %v2917 = vmul.bf16 %v2884, %v1533
        %v2918 = vmul.bf16 %v2885, %v1542
        %v2919 = vmul.bf16 %v2886, %v1551
        %v2920 = vmul.bf16 %v2887, %v1560
        %v2921 = vmul.bf16 %v2888, %v1569
        %v2922 = vmul.bf16 %v2889, %v1578
        %v2923 = vmul.bf16 %v2890, %v1587
        %v2924 = vmul.bf16 %v2891, %v1596
        %v2925 = vmul.bf16 %v2892, %v1605
        %v2926 = vmul.bf16 %v2893, %v1614
        %v2927 = vmul.bf16 %v2894, %v1623
        %v2928 = vmul.bf16 %v2895, %v1632
        %v2929 = vmul.bf16 %v2896, %v1641
        %v2930 = vmul.bf16 %v2897, %v1650
        %v2931 = vmul.bf16 %v2898, %v1659
        %v2932 = vmul.bf16 %v2899, %v1668
        %v2933 = vmul.bf16 %v2900, %v1677
        %v2934 = vmul.bf16 %v2901, %v1686
        %v2935 = vmul.bf16 %v2902, %v1695
        %v2936 = vmul.bf16 %v2903, %v1704
        %v2937 = vmul.bf16 %v2904, %v1713
        %v2938 = vmul.bf16 %v2905, %v1722
        %v2939 = vmul.bf16 %v2906, %v1731
        %v2940 = vmul.bf16 %v2907, %v1740
        %v2941 = vmul.bf16 %v2908, %v1749
        %v2942 = vmul.bf16 %v2909, %v1758
        %v2943 = vmul.bf16 %v2910, %v1767
        %v2944 = vmul.bf16 %v2911, %v1776
        %v2945 = vmul.bf16 %v2912, %v1785
        %v2946 = vmul.bf16 %v2913, %v1794
        %v2947 = vmul.bf16 %v2914, %v1803
        %v2948 = vmul.bf16 %v2915, %v1812
        %v2949 = vmul.bf16 %v2916, %v1813
        %v2951 = vshrl.u32 %v2917, 16
        %v2953 = vrot.slane %v2951, 4
        %v2954 = vshll.u32 %v2917, 16
        %v2956 = vrot.slane %v2954, 5
        %v2957 = vor.u32 %v2953, %v2956
        %v2958 = vrot.slane %v2957, 4
        %v2960 = vshll.u32 %v2918, 16
        %v2962 = vrot.slane %v2960, 5
        %v2963 = vsel %vm556, %v2958, %v2962
        %v2964 = vshrl.u32 %v2918, 16
        %v2966 = vrot.slane %v2964, 4
        %v2967 = vor.u32 %v2966, %v2962
        %v2968 = vrot.slane %v2967, 4
        %v2970 = vshll.u32 %v2919, 16
        %v2972 = vrot.slane %v2970, 5
        %v2973 = vsel %vm556, %v2968, %v2972
        %v2974 = vshrl.u32 %v2919, 16
        %v2976 = vrot.slane %v2974, 4
        %v2977 = vor.u32 %v2976, %v2972
        %v2978 = vrot.slane %v2977, 4
        %v2980 = vshll.u32 %v2920, 16
        %v2982 = vrot.slane %v2980, 5
        %v2983 = vsel %vm556, %v2978, %v2982
        %v2984 = vshrl.u32 %v2920, 16
        %v2986 = vrot.slane %v2984, 4
        %v2987 = vor.u32 %v2986, %v2982
        %v2988 = vrot.slane %v2987, 4
        %v2990 = vshll.u32 %v2921, 16
        %v2992 = vrot.slane %v2990, 5
        %v2993 = vsel %vm556, %v2988, %v2992
        %v2994 = vshrl.u32 %v2921, 16
        %v2996 = vrot.slane %v2994, 4
        %v2997 = vor.u32 %v2996, %v2992
        %v2998 = vrot.slane %v2997, 4
        %v3000 = vshll.u32 %v2922, 16
        %v3002 = vrot.slane %v3000, 5
        %v3003 = vsel %vm556, %v2998, %v3002
        %v3004 = vshrl.u32 %v2922, 16
        %v3006 = vrot.slane %v3004, 4
        %v3007 = vor.u32 %v3006, %v3002
        %v3008 = vrot.slane %v3007, 4
        %v3010 = vshll.u32 %v2923, 16
        %v3012 = vrot.slane %v3010, 5
        %v3013 = vsel %vm556, %v3008, %v3012
        %v3014 = vshrl.u32 %v2923, 16
        %v3016 = vrot.slane %v3014, 4
        %v3017 = vor.u32 %v3016, %v3012
        %v3018 = vrot.slane %v3017, 4
        %v3020 = vshll.u32 %v2924, 16
        %v3022 = vrot.slane %v3020, 5
        %v3023 = vsel %vm556, %v3018, %v3022
        %v3024 = vshrl.u32 %v2924, 16
        %v3026 = vrot.slane %v3024, 4
        %v3027 = vor.u32 %v3026, %v3022
        %v3028 = vrot.slane %v3027, 4
        %v3030 = vshll.u32 %v2925, 16
        %v3032 = vrot.slane %v3030, 5
        %v3033 = vsel %vm556, %v3028, %v3032
        %v3034 = vshrl.u32 %v2925, 16
        %v3036 = vrot.slane %v3034, 4
        %v3037 = vor.u32 %v3036, %v3032
        %v3038 = vrot.slane %v3037, 4
        %v3040 = vshll.u32 %v2926, 16
        %v3042 = vrot.slane %v3040, 5
        %v3043 = vsel %vm556, %v3038, %v3042
        %v3044 = vshrl.u32 %v2926, 16
        %v3046 = vrot.slane %v3044, 4
        %v3047 = vor.u32 %v3046, %v3042
        %v3048 = vrot.slane %v3047, 4
        %v3050 = vshll.u32 %v2927, 16
        %v3052 = vrot.slane %v3050, 5
        %v3053 = vsel %vm556, %v3048, %v3052
        %v3054 = vshrl.u32 %v2927, 16
        %v3056 = vrot.slane %v3054, 4
        %v3057 = vor.u32 %v3056, %v3052
        %v3058 = vrot.slane %v3057, 4
        %v3060 = vshll.u32 %v2928, 16
        %v3062 = vrot.slane %v3060, 5
        %v3063 = vsel %vm556, %v3058, %v3062
        %v3064 = vshrl.u32 %v2928, 16
        %v3066 = vrot.slane %v3064, 4
        %v3067 = vor.u32 %v3066, %v3062
        %v3068 = vrot.slane %v3067, 4
        %v3070 = vshll.u32 %v2929, 16
        %v3072 = vrot.slane %v3070, 5
        %v3073 = vsel %vm556, %v3068, %v3072
        %v3074 = vshrl.u32 %v2929, 16
        %v3076 = vrot.slane %v3074, 4
        %v3077 = vor.u32 %v3076, %v3072
        %v3078 = vrot.slane %v3077, 4
        %v3080 = vshll.u32 %v2930, 16
        %v3082 = vrot.slane %v3080, 5
        %v3083 = vsel %vm556, %v3078, %v3082
        %v3084 = vshrl.u32 %v2930, 16
        %v3086 = vrot.slane %v3084, 4
        %v3087 = vor.u32 %v3086, %v3082
        %v3088 = vrot.slane %v3087, 4
        %v3090 = vshll.u32 %v2931, 16
        %v3092 = vrot.slane %v3090, 5
        %v3093 = vsel %vm556, %v3088, %v3092
        %v3094 = vshrl.u32 %v2931, 16
        %v3096 = vrot.slane %v3094, 4
        %v3097 = vor.u32 %v3096, %v3092
        %v3098 = vrot.slane %v3097, 4
        %v3100 = vshll.u32 %v2932, 16
        %v3102 = vrot.slane %v3100, 5
        %v3103 = vsel %vm556, %v3098, %v3102
        %v3104 = vshrl.u32 %v2932, 16
        %v3106 = vrot.slane %v3104, 4
        %v3107 = vor.u32 %v3106, %v3102
        %v3108 = vrot.slane %v3107, 4
        %v3110 = vshll.u32 %v2933, 16
        %v3112 = vrot.slane %v3110, 5
        %v3113 = vsel %vm556, %v3108, %v3112
        %v3114 = vshrl.u32 %v2933, 16
        %v3116 = vrot.slane %v3114, 4
        %v3117 = vor.u32 %v3116, %v3112
        %v3118 = vrot.slane %v3117, 4
        %v3120 = vshll.u32 %v2934, 16
        %v3122 = vrot.slane %v3120, 5
        %v3123 = vsel %vm556, %v3118, %v3122
        %v3124 = vshrl.u32 %v2934, 16
        %v3126 = vrot.slane %v3124, 4
        %v3127 = vor.u32 %v3126, %v3122
        %v3128 = vrot.slane %v3127, 4
        %v3130 = vshll.u32 %v2935, 16
        %v3132 = vrot.slane %v3130, 5
        %v3133 = vsel %vm556, %v3128, %v3132
        %v3134 = vshrl.u32 %v2935, 16
        %v3136 = vrot.slane %v3134, 4
        %v3137 = vor.u32 %v3136, %v3132
        %v3138 = vrot.slane %v3137, 4
        %v3140 = vshll.u32 %v2936, 16
        %v3142 = vrot.slane %v3140, 5
        %v3143 = vsel %vm556, %v3138, %v3142
        %v3144 = vshrl.u32 %v2936, 16
        %v3146 = vrot.slane %v3144, 4
        %v3147 = vor.u32 %v3146, %v3142
        %v3148 = vrot.slane %v3147, 4
        %v3150 = vshll.u32 %v2937, 16
        %v3152 = vrot.slane %v3150, 5
        %v3153 = vsel %vm556, %v3148, %v3152
        %v3154 = vshrl.u32 %v2937, 16
        %v3156 = vrot.slane %v3154, 4
        %v3157 = vor.u32 %v3156, %v3152
        %v3158 = vrot.slane %v3157, 4
        %v3160 = vshll.u32 %v2938, 16
        %v3162 = vrot.slane %v3160, 5
        %v3163 = vsel %vm556, %v3158, %v3162
        %v3164 = vshrl.u32 %v2938, 16
        %v3166 = vrot.slane %v3164, 4
        %v3167 = vor.u32 %v3166, %v3162
        %v3168 = vrot.slane %v3167, 4
        %v3170 = vshll.u32 %v2939, 16
        %v3172 = vrot.slane %v3170, 5
        %v3173 = vsel %vm556, %v3168, %v3172
        %v3174 = vshrl.u32 %v2939, 16
        %v3176 = vrot.slane %v3174, 4
        %v3177 = vor.u32 %v3176, %v3172
        %v3178 = vrot.slane %v3177, 4
        %v3180 = vshll.u32 %v2940, 16
        %v3182 = vrot.slane %v3180, 5
        %v3183 = vsel %vm556, %v3178, %v3182
        %v3184 = vshrl.u32 %v2940, 16
        %v3186 = vrot.slane %v3184, 4
        %v3187 = vor.u32 %v3186, %v3182
        %v3188 = vrot.slane %v3187, 4
        %v3190 = vshll.u32 %v2941, 16
        %v3192 = vrot.slane %v3190, 5
        %v3193 = vsel %vm556, %v3188, %v3192
        %v3194 = vshrl.u32 %v2941, 16
        %v3196 = vrot.slane %v3194, 4
        %v3197 = vor.u32 %v3196, %v3192
        %v3198 = vrot.slane %v3197, 4
        %v3200 = vshll.u32 %v2942, 16
        %v3202 = vrot.slane %v3200, 5
        %v3203 = vsel %vm556, %v3198, %v3202
        %v3204 = vshrl.u32 %v2942, 16
        %v3206 = vrot.slane %v3204, 4
        %v3207 = vor.u32 %v3206, %v3202
        %v3208 = vrot.slane %v3207, 4
        %v3210 = vshll.u32 %v2943, 16
        %v3212 = vrot.slane %v3210, 5
        %v3213 = vsel %vm556, %v3208, %v3212
        %v3214 = vshrl.u32 %v2943, 16
        %v3216 = vrot.slane %v3214, 4
        %v3217 = vor.u32 %v3216, %v3212
        %v3218 = vrot.slane %v3217, 4
        %v3220 = vshll.u32 %v2944, 16
        %v3222 = vrot.slane %v3220, 5
        %v3223 = vsel %vm556, %v3218, %v3222
        %v3224 = vshrl.u32 %v2944, 16
        %v3226 = vrot.slane %v3224, 4
        %v3227 = vor.u32 %v3226, %v3222
        %v3228 = vrot.slane %v3227, 4
        %v3230 = vshll.u32 %v2945, 16
        %v3232 = vrot.slane %v3230, 5
        %v3233 = vsel %vm556, %v3228, %v3232
        %v3234 = vshrl.u32 %v2945, 16
        %v3236 = vrot.slane %v3234, 4
        %v3237 = vor.u32 %v3236, %v3232
        %v3238 = vrot.slane %v3237, 4
        %v3240 = vshll.u32 %v2946, 16
        %v3242 = vrot.slane %v3240, 5
        %v3243 = vsel %vm556, %v3238, %v3242
        %v3244 = vshrl.u32 %v2946, 16
        %v3246 = vrot.slane %v3244, 4
        %v3247 = vor.u32 %v3246, %v3242
        %v3248 = vrot.slane %v3247, 4
        %v3250 = vshll.u32 %v2947, 16
        %v3252 = vrot.slane %v3250, 5
        %v3253 = vsel %vm556, %v3248, %v3252
        %v3254 = vshrl.u32 %v2947, 16
        %v3256 = vrot.slane %v3254, 4
        %v3257 = vor.u32 %v3256, %v3252
        %v3258 = vrot.slane %v3257, 4
        %v3260 = vshll.u32 %v2948, 16
        %v3262 = vrot.slane %v3260, 5
        %v3263 = vsel %vm556, %v3258, %v3262
        %v3264 = vshrl.u32 %v2948, 16
        %v3266 = vrot.slane %v3264, 4
        %v3267 = vor.u32 %v3266, %v3262
        %v3268 = vrot.slane %v3267, 4
        %v3270 = vshll.u32 %v2949, 16
        %v3272 = vrot.slane %v3270, 5
        %v3273 = vsel %vm556, %v3268, %v3272
        %3274 = vrot.lane.b32.xlu0 %v2963, 32
        %v3275 = vpop.permute.xlu0 %3274
        %3276 = vrot.lane.b32.xlu0 %v2973, 32
        %v3277 = vpop.permute.xlu0 %3276
        %3278 = vrot.lane.b32.xlu0 %v2983, 32
        %v3279 = vpop.permute.xlu0 %3278
        %3280 = vrot.lane.b32.xlu0 %v2993, 32
        %v3281 = vpop.permute.xlu0 %3280
        %3282 = vrot.lane.b32.xlu0 %v3003, 32
        %v3283 = vpop.permute.xlu0 %3282
        %3284 = vrot.lane.b32.xlu0 %v3013, 32
        %v3285 = vpop.permute.xlu0 %3284
        %3286 = vrot.lane.b32.xlu0 %v3023, 32
        %v3287 = vpop.permute.xlu0 %3286
        %3288 = vrot.lane.b32.xlu0 %v3033, 32
        %v3289 = vpop.permute.xlu0 %3288
        %3290 = vrot.lane.b32.xlu0 %v3043, 32
        %v3291 = vpop.permute.xlu0 %3290
        %3292 = vrot.lane.b32.xlu0 %v3053, 32
        %v3293 = vpop.permute.xlu0 %3292
        %3294 = vrot.lane.b32.xlu0 %v3063, 32
        %v3295 = vpop.permute.xlu0 %3294
        %3296 = vrot.lane.b32.xlu0 %v3073, 32
        %v3297 = vpop.permute.xlu0 %3296
        %3298 = vrot.lane.b32.xlu0 %v3083, 32
        %v3299 = vpop.permute.xlu0 %3298
        %3300 = vrot.lane.b32.xlu0 %v3093, 32
        %v3301 = vpop.permute.xlu0 %3300
        %3302 = vrot.lane.b32.xlu0 %v3103, 32
        %v3303 = vpop.permute.xlu0 %3302
        %3304 = vrot.lane.b32.xlu0 %v3113, 32
        %v3305 = vpop.permute.xlu0 %3304
        %3306 = vrot.lane.b32.xlu0 %v3123, 32
        %v3307 = vpop.permute.xlu0 %3306
        %3308 = vrot.lane.b32.xlu0 %v3133, 32
        %v3309 = vpop.permute.xlu0 %3308
        %3310 = vrot.lane.b32.xlu0 %v3143, 32
        %v3311 = vpop.permute.xlu0 %3310
        %3312 = vrot.lane.b32.xlu0 %v3153, 32
        %v3313 = vpop.permute.xlu0 %3312
        %3314 = vrot.lane.b32.xlu0 %v3163, 32
        %v3315 = vpop.permute.xlu0 %3314
        %3316 = vrot.lane.b32.xlu0 %v3173, 32
        %v3317 = vpop.permute.xlu0 %3316
        %3318 = vrot.lane.b32.xlu0 %v3183, 32
        %v3319 = vpop.permute.xlu0 %3318
        %3320 = vrot.lane.b32.xlu0 %v3193, 32
        %v3321 = vpop.permute.xlu0 %3320
        %3322 = vrot.lane.b32.xlu0 %v3203, 32
        %v3323 = vpop.permute.xlu0 %3322
        %3324 = vrot.lane.b32.xlu0 %v3213, 32
        %v3325 = vpop.permute.xlu0 %3324
        %3326 = vrot.lane.b32.xlu0 %v3223, 32
        %v3327 = vpop.permute.xlu0 %3326
        %3328 = vrot.lane.b32.xlu0 %v3233, 32
        %v3329 = vpop.permute.xlu0 %3328
        %3330 = vrot.lane.b32.xlu0 %v3243, 32
        %v3331 = vpop.permute.xlu0 %3330
        %3332 = vrot.lane.b32.xlu0 %v3253, 32
        %v3333 = vpop.permute.xlu0 %3332
        %3334 = vrot.lane.b32.xlu0 %v3263, 32
        %v3335 = vpop.permute.xlu0 %3334
        %3336 = vrot.lane.b32.xlu0 %v3273, 32
        %v3337 = vpop.permute.xlu0 %3336
        %3370 = vst.msk [vmem:[#allocation3 + $0x4] sm:$0xf] %vm1461, %v3275
        %3371 = vst.msk [vmem:[#allocation3 + $0x10] sm:$0xf] %vm1461, %v3277
        %3372 = vst.msk [vmem:[#allocation3 + $0x1c] sm:$0xf] %vm1461, %v3279
        %3373 = vst.msk [vmem:[#allocation3 + $0x28] sm:$0xf] %vm1461, %v3281
        %3374 = vst.msk [vmem:[#allocation3 + $0x34] sm:$0xf] %vm1461, %v3283
        %3375 = vst.msk [vmem:[#allocation3 + $0x40] sm:$0xf] %vm1461, %v3285
        %3376 = vst.msk [vmem:[#allocation3 + $0x4c] sm:$0xf] %vm1461, %v3287
        %3377 = vst.msk [vmem:[#allocation3 + $0x58] sm:$0xf] %vm1461, %v3289
        %3378 = vst.msk [vmem:[#allocation3 + $0x64] sm:$0xf] %vm1461, %v3291
        %3379 = vst.msk [vmem:[#allocation3 + $0x70] sm:$0xf] %vm1461, %v3293
        %3380 = vst.msk [vmem:[#allocation3 + $0x7c] sm:$0xf] %vm1461, %v3295
        %3381 = vst.msk [vmem:[#allocation3 + $0x88] sm:$0xf] %vm1461, %v3297
        %3382 = vst.msk [vmem:[#allocation3 + $0x94] sm:$0xf] %vm1461, %v3299
        %3383 = vst.msk [vmem:[#allocation3 + $0xa0] sm:$0xf] %vm1461, %v3301
        %3384 = vst.msk [vmem:[#allocation3 + $0xac] sm:$0xf] %vm1461, %v3303
        %3385 = vst.msk [vmem:[#allocation3 + $0xb8] sm:$0xf] %vm1461, %v3305
        %3386 = vst.msk [vmem:[#allocation3 + $0xc4] sm:$0xf] %vm1461, %v3307
        %3387 = vst.msk [vmem:[#allocation3 + $0xd0] sm:$0xf] %vm1461, %v3309
        %3388 = vst.msk [vmem:[#allocation3 + $0xdc] sm:$0xf] %vm1461, %v3311
        %3389 = vst.msk [vmem:[#allocation3 + $0xe8] sm:$0xf] %vm1461, %v3313
        %3390 = vst.msk [vmem:[#allocation3 + $0xf4] sm:$0xf] %vm1461, %v3315
        %3391 = vst.msk [vmem:[#allocation3 + $0x100] sm:$0xf] %vm1461, %v3317
        %3392 = vst.msk [vmem:[#allocation3 + $0x10c] sm:$0xf] %vm1461, %v3319
        %3393 = vst.msk [vmem:[#allocation3 + $0x118] sm:$0xf] %vm1461, %v3321
        %3394 = vst.msk [vmem:[#allocation3 + $0x124] sm:$0xf] %vm1461, %v3323
        %3395 = vst.msk [vmem:[#allocation3 + $0x130] sm:$0xf] %vm1461, %v3325
        %3396 = vst.msk [vmem:[#allocation3 + $0x13c] sm:$0xf] %vm1461, %v3327
        %3397 = vst.msk [vmem:[#allocation3 + $0x148] sm:$0xf] %vm1461, %v3329
        %3398 = vst.msk [vmem:[#allocation3 + $0x154] sm:$0xf] %vm1461, %v3331
        %3399 = vst.msk [vmem:[#allocation3 + $0x160] sm:$0xf] %vm1461, %v3333
        %3400 = vst.msk [vmem:[#allocation3 + $0x16c] sm:$0xf] %vm1461, %v3335
        %3401 = vst.msk [vmem:[#allocation3 + $0x178] sm:$0xf] %vm1461, %v3337
        %v3402 = vld [vmem:[#allocation2 + $0x10] sm:$0x8]
        %v3403 = vld [vmem:[#allocation2 + $0x14] sm:$0xf]
        %v3404 = vld [vmem:[#allocation2 + $0x18] sm:$0xf]
        %v3405 = vld [vmem:[#allocation2 + $0x1c] sm:$0xf]
        %v3406 = vld [vmem:[#allocation2 + $0x20] sm:$0xf]
        %v3407 = vld [vmem:[#allocation2 + $0x24] sm:$0xf]
        %v3408 = vld [vmem:[#allocation2 + $0x28] sm:$0xf]
        %v3409 = vld [vmem:[#allocation2 + $0x2c] sm:$0xf]
        %v3410 = vld [vmem:[#allocation2 + $0x30] sm:$0xf]
        %v3411 = vld [vmem:[#allocation2 + $0x34] sm:$0xf]
        %v3412 = vld [vmem:[#allocation2 + $0x38] sm:$0xf]
        %v3413 = vld [vmem:[#allocation2 + $0x3c] sm:$0xf]
        %v3414 = vld [vmem:[#allocation2 + $0x40] sm:$0xf]
        %v3415 = vld [vmem:[#allocation2 + $0x44] sm:$0xf]
        %v3416 = vld [vmem:[#allocation2 + $0x48] sm:$0xf]
        %v3417 = vld [vmem:[#allocation2 + $0x4c] sm:$0xf]
        %v3418 = vld [vmem:[#allocation2 + $0x50] sm:$0xf]
        %v3419 = vld [vmem:[#allocation2 + $0x54] sm:$0xf]
        %v3420 = vld [vmem:[#allocation2 + $0x58] sm:$0xf]
        %v3421 = vld [vmem:[#allocation2 + $0x5c] sm:$0xf]
        %v3422 = vld [vmem:[#allocation2 + $0x60] sm:$0xf]
        %v3423 = vld [vmem:[#allocation2 + $0x64] sm:$0xf]
        %v3424 = vld [vmem:[#allocation2 + $0x68] sm:$0xf]
        %v3425 = vld [vmem:[#allocation2 + $0x6c] sm:$0xf]
        %v3426 = vld [vmem:[#allocation2 + $0x70] sm:$0xf]
        %v3427 = vld [vmem:[#allocation2 + $0x74] sm:$0xf]
        %v3428 = vld [vmem:[#allocation2 + $0x78] sm:$0xf]
        %v3429 = vld [vmem:[#allocation2 + $0x7c] sm:$0xf]
        %v3430 = vld [vmem:[#allocation2 + $0x80] sm:$0xf]
        %v3431 = vld [vmem:[#allocation2 + $0x84] sm:$0xf]
        %v3432 = vld [vmem:[#allocation2 + $0x88] sm:$0xf]
        %v3433 = vld [vmem:[#allocation2 + $0x8c] sm:$0xf]
        %v3434 = vld [vmem:[#allocation2 + $0x90] sm:$0xf]
        %v3435 = vmul.bf16 %v3402, %v560
        %v3436 = vmul.bf16 %v3403, %v570
        %v3437 = vmul.bf16 %v3404, %v580
        %v3438 = vmul.bf16 %v3405, %v590
        %v3439 = vmul.bf16 %v3406, %v600
        %v3440 = vmul.bf16 %v3407, %v610
        %v3441 = vmul.bf16 %v3408, %v620
        %v3442 = vmul.bf16 %v3409, %v630
        %v3443 = vmul.bf16 %v3410, %v640
        %v3444 = vmul.bf16 %v3411, %v650
        %v3445 = vmul.bf16 %v3412, %v660
        %v3446 = vmul.bf16 %v3413, %v670
        %v3447 = vmul.bf16 %v3414, %v680
        %v3448 = vmul.bf16 %v3415, %v690
        %v3449 = vmul.bf16 %v3416, %v700
        %v3450 = vmul.bf16 %v3417, %v710
        %v3451 = vmul.bf16 %v3418, %v720
        %v3452 = vmul.bf16 %v3419, %v730
        %v3453 = vmul.bf16 %v3420, %v740
        %v3454 = vmul.bf16 %v3421, %v750
        %v3455 = vmul.bf16 %v3422, %v760
        %v3456 = vmul.bf16 %v3423, %v770
        %v3457 = vmul.bf16 %v3424, %v780
        %v3458 = vmul.bf16 %v3425, %v790
        %v3459 = vmul.bf16 %v3426, %v800
        %v3460 = vmul.bf16 %v3427, %v810
        %v3461 = vmul.bf16 %v3428, %v820
        %v3462 = vmul.bf16 %v3429, %v830
        %v3463 = vmul.bf16 %v3430, %v840
        %v3464 = vmul.bf16 %v3431, %v850
        %v3465 = vmul.bf16 %v3432, %v860
        %v3466 = vmul.bf16 %v3433, %v870
        %v3467 = vmul.bf16 %v3434, %v875
        %v3469 = vshrl.u32 %v3435, 16
        %v3471 = vrot.slane %v3469, 7
        %v3472 = vrot.slane %v3471, 4
        %v3474 = vshrl.u32 %v3436, 16
        %v3476 = vrot.slane %v3474, 7
        %v3477 = vshll.u32 %v3436, 16
        %v3479 = vor.u32 %v3476, %v3477
        %v3480 = vsel %vm944, %v3472, %v3479
        %v3481 = vrot.slane %v3476, 4
        %v3483 = vshrl.u32 %v3437, 16
        %v3485 = vrot.slane %v3483, 7
        %v3486 = vshll.u32 %v3437, 16
        %v3488 = vor.u32 %v3485, %v3486
        %v3489 = vsel %vm944, %v3481, %v3488
        %v3490 = vrot.slane %v3485, 4
        %v3492 = vshrl.u32 %v3438, 16
        %v3494 = vrot.slane %v3492, 7
        %v3495 = vshll.u32 %v3438, 16
        %v3497 = vor.u32 %v3494, %v3495
        %v3498 = vsel %vm944, %v3490, %v3497
        %v3499 = vrot.slane %v3494, 4
        %v3501 = vshrl.u32 %v3439, 16
        %v3503 = vrot.slane %v3501, 7
        %v3504 = vshll.u32 %v3439, 16
        %v3506 = vor.u32 %v3503, %v3504
        %v3507 = vsel %vm944, %v3499, %v3506
        %v3508 = vrot.slane %v3503, 4
        %v3510 = vshrl.u32 %v3440, 16
        %v3512 = vrot.slane %v3510, 7
        %v3513 = vshll.u32 %v3440, 16
        %v3515 = vor.u32 %v3512, %v3513
        %v3516 = vsel %vm944, %v3508, %v3515
        %v3517 = vrot.slane %v3512, 4
        %v3519 = vshrl.u32 %v3441, 16
        %v3521 = vrot.slane %v3519, 7
        %v3522 = vshll.u32 %v3441, 16
        %v3524 = vor.u32 %v3521, %v3522
        %v3525 = vsel %vm944, %v3517, %v3524
        %v3526 = vrot.slane %v3521, 4
        %v3528 = vshrl.u32 %v3442, 16
        %v3530 = vrot.slane %v3528, 7
        %v3531 = vshll.u32 %v3442, 16
        %v3533 = vor.u32 %v3530, %v3531
        %v3534 = vsel %vm944, %v3526, %v3533
        %v3535 = vrot.slane %v3530, 4
        %v3537 = vshrl.u32 %v3443, 16
        %v3539 = vrot.slane %v3537, 7
        %v3540 = vshll.u32 %v3443, 16
        %v3542 = vor.u32 %v3539, %v3540
        %v3543 = vsel %vm944, %v3535, %v3542
        %v3544 = vrot.slane %v3539, 4
        %v3546 = vshrl.u32 %v3444, 16
        %v3548 = vrot.slane %v3546, 7
        %v3549 = vshll.u32 %v3444, 16
        %v3551 = vor.u32 %v3548, %v3549
        %v3552 = vsel %vm944, %v3544, %v3551
        %v3553 = vrot.slane %v3548, 4
        %v3555 = vshrl.u32 %v3445, 16
        %v3557 = vrot.slane %v3555, 7
        %v3558 = vshll.u32 %v3445, 16
        %v3560 = vor.u32 %v3557, %v3558
        %v3561 = vsel %vm944, %v3553, %v3560
        %v3562 = vrot.slane %v3557, 4
        %v3564 = vshrl.u32 %v3446, 16
        %v3566 = vrot.slane %v3564, 7
        %v3567 = vshll.u32 %v3446, 16
        %v3569 = vor.u32 %v3566, %v3567
        %v3570 = vsel %vm944, %v3562, %v3569
        %v3571 = vrot.slane %v3566, 4
        %v3573 = vshrl.u32 %v3447, 16
        %v3575 = vrot.slane %v3573, 7
        %v3576 = vshll.u32 %v3447, 16
        %v3578 = vor.u32 %v3575, %v3576
        %v3579 = vsel %vm944, %v3571, %v3578
        %v3580 = vrot.slane %v3575, 4
        %v3582 = vshrl.u32 %v3448, 16
        %v3584 = vrot.slane %v3582, 7
        %v3585 = vshll.u32 %v3448, 16
        %v3587 = vor.u32 %v3584, %v3585
        %v3588 = vsel %vm944, %v3580, %v3587
        %v3589 = vrot.slane %v3584, 4
        %v3591 = vshrl.u32 %v3449, 16
        %v3593 = vrot.slane %v3591, 7
        %v3594 = vshll.u32 %v3449, 16
        %v3596 = vor.u32 %v3593, %v3594
        %v3597 = vsel %vm944, %v3589, %v3596
        %v3598 = vrot.slane %v3593, 4
        %v3600 = vshrl.u32 %v3450, 16
        %v3602 = vrot.slane %v3600, 7
        %v3603 = vshll.u32 %v3450, 16
        %v3605 = vor.u32 %v3602, %v3603
        %v3606 = vsel %vm944, %v3598, %v3605
        %v3607 = vrot.slane %v3602, 4
        %v3609 = vshrl.u32 %v3451, 16
        %v3611 = vrot.slane %v3609, 7
        %v3612 = vshll.u32 %v3451, 16
        %v3614 = vor.u32 %v3611, %v3612
        %v3615 = vsel %vm944, %v3607, %v3614
        %v3616 = vrot.slane %v3611, 4
        %v3618 = vshrl.u32 %v3452, 16
        %v3620 = vrot.slane %v3618, 7
        %v3621 = vshll.u32 %v3452, 16
        %v3623 = vor.u32 %v3620, %v3621
        %v3624 = vsel %vm944, %v3616, %v3623
        %v3625 = vrot.slane %v3620, 4
        %v3627 = vshrl.u32 %v3453, 16
        %v3629 = vrot.slane %v3627, 7
        %v3630 = vshll.u32 %v3453, 16
        %v3632 = vor.u32 %v3629, %v3630
        %v3633 = vsel %vm944, %v3625, %v3632
        %v3634 = vrot.slane %v3629, 4
        %v3636 = vshrl.u32 %v3454, 16
        %v3638 = vrot.slane %v3636, 7
        %v3639 = vshll.u32 %v3454, 16
        %v3641 = vor.u32 %v3638, %v3639
        %v3642 = vsel %vm944, %v3634, %v3641
        %v3643 = vrot.slane %v3638, 4
        %v3645 = vshrl.u32 %v3455, 16
        %v3647 = vrot.slane %v3645, 7
        %v3648 = vshll.u32 %v3455, 16
        %v3650 = vor.u32 %v3647, %v3648
        %v3651 = vsel %vm944, %v3643, %v3650
        %v3652 = vrot.slane %v3647, 4
        %v3654 = vshrl.u32 %v3456, 16
        %v3656 = vrot.slane %v3654, 7
        %v3657 = vshll.u32 %v3456, 16
        %v3659 = vor.u32 %v3656, %v3657
        %v3660 = vsel %vm944, %v3652, %v3659
        %v3661 = vrot.slane %v3656, 4
        %v3663 = vshrl.u32 %v3457, 16
        %v3665 = vrot.slane %v3663, 7
        %v3666 = vshll.u32 %v3457, 16
        %v3668 = vor.u32 %v3665, %v3666
        %v3669 = vsel %vm944, %v3661, %v3668
        %v3670 = vrot.slane %v3665, 4
        %v3672 = vshrl.u32 %v3458, 16
        %v3674 = vrot.slane %v3672, 7
        %v3675 = vshll.u32 %v3458, 16
        %v3677 = vor.u32 %v3674, %v3675
        %v3678 = vsel %vm944, %v3670, %v3677
        %v3679 = vrot.slane %v3674, 4
        %v3681 = vshrl.u32 %v3459, 16
        %v3683 = vrot.slane %v3681, 7
        %v3684 = vshll.u32 %v3459, 16
        %v3686 = vor.u32 %v3683, %v3684
        %v3687 = vsel %vm944, %v3679, %v3686
        %v3688 = vrot.slane %v3683, 4
        %v3690 = vshrl.u32 %v3460, 16
        %v3692 = vrot.slane %v3690, 7
        %v3693 = vshll.u32 %v3460, 16
        %v3695 = vor.u32 %v3692, %v3693
        %v3696 = vsel %vm944, %v3688, %v3695
        %v3697 = vrot.slane %v3692, 4
        %v3699 = vshrl.u32 %v3461, 16
        %v3701 = vrot.slane %v3699, 7
        %v3702 = vshll.u32 %v3461, 16
        %v3704 = vor.u32 %v3701, %v3702
        %v3705 = vsel %vm944, %v3697, %v3704
        %v3706 = vrot.slane %v3701, 4
        %v3708 = vshrl.u32 %v3462, 16
        %v3710 = vrot.slane %v3708, 7
        %v3711 = vshll.u32 %v3462, 16
        %v3713 = vor.u32 %v3710, %v3711
        %v3714 = vsel %vm944, %v3706, %v3713
        %v3715 = vrot.slane %v3710, 4
        %v3717 = vshrl.u32 %v3463, 16
        %v3719 = vrot.slane %v3717, 7
        %v3720 = vshll.u32 %v3463, 16
        %v3722 = vor.u32 %v3719, %v3720
        %v3723 = vsel %vm944, %v3715, %v3722
        %v3724 = vrot.slane %v3719, 4
        %v3726 = vshrl.u32 %v3464, 16
        %v3728 = vrot.slane %v3726, 7
        %v3729 = vshll.u32 %v3464, 16
        %v3731 = vor.u32 %v3728, %v3729
        %v3732 = vsel %vm944, %v3724, %v3731
        %v3733 = vrot.slane %v3728, 4
        %v3735 = vshrl.u32 %v3465, 16
        %v3737 = vrot.slane %v3735, 7
        %v3738 = vshll.u32 %v3465, 16
        %v3740 = vor.u32 %v3737, %v3738
        %v3741 = vsel %vm944, %v3733, %v3740
        %v3742 = vrot.slane %v3737, 4
        %v3744 = vshrl.u32 %v3466, 16
        %v3746 = vrot.slane %v3744, 7
        %v3747 = vshll.u32 %v3466, 16
        %v3749 = vor.u32 %v3746, %v3747
        %v3750 = vsel %vm944, %v3742, %v3749
        %v3751 = vrot.slane %v3746, 4
        %v3753 = vshrl.u32 %v3467, 16
        %v3755 = vrot.slane %v3753, 7
        %v3756 = vshll.u32 %v3467, 16
        %v3758 = vor.u32 %v3755, %v3756
        %v3759 = vsel %vm944, %v3751, %v3758
        %3760 = vrot.lane.b32.xlu0 %v3480, 64
        %v3761 = vpop.permute.xlu0 %3760
        %3762 = vrot.lane.b32.xlu0 %v3489, 64
        %v3763 = vpop.permute.xlu0 %3762
        %3764 = vrot.lane.b32.xlu0 %v3498, 64
        %v3765 = vpop.permute.xlu0 %3764
        %3766 = vrot.lane.b32.xlu0 %v3507, 64
        %v3767 = vpop.permute.xlu0 %3766
        %3768 = vrot.lane.b32.xlu0 %v3516, 64
        %v3769 = vpop.permute.xlu0 %3768
        %3770 = vrot.lane.b32.xlu0 %v3525, 64
        %v3771 = vpop.permute.xlu0 %3770
        %3772 = vrot.lane.b32.xlu0 %v3534, 64
        %v3773 = vpop.permute.xlu0 %3772
        %3774 = vrot.lane.b32.xlu0 %v3543, 64
        %v3775 = vpop.permute.xlu0 %3774
        %3776 = vrot.lane.b32.xlu0 %v3552, 64
        %v3777 = vpop.permute.xlu0 %3776
        %3778 = vrot.lane.b32.xlu0 %v3561, 64
        %v3779 = vpop.permute.xlu0 %3778
        %3780 = vrot.lane.b32.xlu0 %v3570, 64
        %v3781 = vpop.permute.xlu0 %3780
        %3782 = vrot.lane.b32.xlu0 %v3579, 64
        %v3783 = vpop.permute.xlu0 %3782
        %3784 = vrot.lane.b32.xlu0 %v3588, 64
        %v3785 = vpop.permute.xlu0 %3784
        %3786 = vrot.lane.b32.xlu0 %v3597, 64
        %v3787 = vpop.permute.xlu0 %3786
        %3788 = vrot.lane.b32.xlu0 %v3606, 64
        %v3789 = vpop.permute.xlu0 %3788
        %3790 = vrot.lane.b32.xlu0 %v3615, 64
        %v3791 = vpop.permute.xlu0 %3790
        %3792 = vrot.lane.b32.xlu0 %v3624, 64
        %v3793 = vpop.permute.xlu0 %3792
        %3794 = vrot.lane.b32.xlu0 %v3633, 64
        %v3795 = vpop.permute.xlu0 %3794
        %3796 = vrot.lane.b32.xlu0 %v3642, 64
        %v3797 = vpop.permute.xlu0 %3796
        %3798 = vrot.lane.b32.xlu0 %v3651, 64
        %v3799 = vpop.permute.xlu0 %3798
        %3800 = vrot.lane.b32.xlu0 %v3660, 64
        %v3801 = vpop.permute.xlu0 %3800
        %3802 = vrot.lane.b32.xlu0 %v3669, 64
        %v3803 = vpop.permute.xlu0 %3802
        %3804 = vrot.lane.b32.xlu0 %v3678, 64
        %v3805 = vpop.permute.xlu0 %3804
        %3806 = vrot.lane.b32.xlu0 %v3687, 64
        %v3807 = vpop.permute.xlu0 %3806
        %3808 = vrot.lane.b32.xlu0 %v3696, 64
        %v3809 = vpop.permute.xlu0 %3808
        %3810 = vrot.lane.b32.xlu0 %v3705, 64
        %v3811 = vpop.permute.xlu0 %3810
        %3812 = vrot.lane.b32.xlu0 %v3714, 64
        %v3813 = vpop.permute.xlu0 %3812
        %3814 = vrot.lane.b32.xlu0 %v3723, 64
        %v3815 = vpop.permute.xlu0 %3814
        %3816 = vrot.lane.b32.xlu0 %v3732, 64
        %v3817 = vpop.permute.xlu0 %3816
        %3818 = vrot.lane.b32.xlu0 %v3741, 64
        %v3819 = vpop.permute.xlu0 %3818
        %3820 = vrot.lane.b32.xlu0 %v3750, 64
        %v3821 = vpop.permute.xlu0 %3820
        %3822 = vrot.lane.b32.xlu0 %v3759, 64
        %v3823 = vpop.permute.xlu0 %3822
        %3856 = vst.msk [vmem:[#allocation3 + $0x4] sm:$0xf] %vm2300, %v3761
        %3857 = vst.msk [vmem:[#allocation3 + $0x10] sm:$0xf] %vm2300, %v3763
        %3858 = vst.msk [vmem:[#allocation3 + $0x1c] sm:$0xf] %vm2300, %v3765
        %3859 = vst.msk [vmem:[#allocation3 + $0x28] sm:$0xf] %vm2300, %v3767
        %3860 = vst.msk [vmem:[#allocation3 + $0x34] sm:$0xf] %vm2300, %v3769
        %3861 = vst.msk [vmem:[#allocation3 + $0x40] sm:$0xf] %vm2300, %v3771
        %3862 = vst.msk [vmem:[#allocation3 + $0x4c] sm:$0xf] %vm2300, %v3773
        %3863 = vst.msk [vmem:[#allocation3 + $0x58] sm:$0xf] %vm2300, %v3775
        %3864 = vst.msk [vmem:[#allocation3 + $0x64] sm:$0xf] %vm2300, %v3777
        %3865 = vst.msk [vmem:[#allocation3 + $0x70] sm:$0xf] %vm2300, %v3779
        %3866 = vst.msk [vmem:[#allocation3 + $0x7c] sm:$0xf] %vm2300, %v3781
        %3867 = vst.msk [vmem:[#allocation3 + $0x88] sm:$0xf] %vm2300, %v3783
        %3868 = vst.msk [vmem:[#allocation3 + $0x94] sm:$0xf] %vm2300, %v3785
        %3869 = vst.msk [vmem:[#allocation3 + $0xa0] sm:$0xf] %vm2300, %v3787
        %3870 = vst.msk [vmem:[#allocation3 + $0xac] sm:$0xf] %vm2300, %v3789
        %3871 = vst.msk [vmem:[#allocation3 + $0xb8] sm:$0xf] %vm2300, %v3791
        %3872 = vst.msk [vmem:[#allocation3 + $0xc4] sm:$0xf] %vm2300, %v3793
        %3873 = vst.msk [vmem:[#allocation3 + $0xd0] sm:$0xf] %vm2300, %v3795
        %3874 = vst.msk [vmem:[#allocation3 + $0xdc] sm:$0xf] %vm2300, %v3797
        %3875 = vst.msk [vmem:[#allocation3 + $0xe8] sm:$0xf] %vm2300, %v3799
        %3876 = vst.msk [vmem:[#allocation3 + $0xf4] sm:$0xf] %vm2300, %v3801
        %3877 = vst.msk [vmem:[#allocation3 + $0x100] sm:$0xf] %vm2300, %v3803
        %3878 = vst.msk [vmem:[#allocation3 + $0x10c] sm:$0xf] %vm2300, %v3805
        %3879 = vst.msk [vmem:[#allocation3 + $0x118] sm:$0xf] %vm2300, %v3807
        %3880 = vst.msk [vmem:[#allocation3 + $0x124] sm:$0xf] %vm2300, %v3809
        %3881 = vst.msk [vmem:[#allocation3 + $0x130] sm:$0xf] %vm2300, %v3811
        %3882 = vst.msk [vmem:[#allocation3 + $0x13c] sm:$0xf] %vm2300, %v3813
        %3883 = vst.msk [vmem:[#allocation3 + $0x148] sm:$0xf] %vm2300, %v3815
        %3884 = vst.msk [vmem:[#allocation3 + $0x154] sm:$0xf] %vm2300, %v3817
        %3885 = vst.msk [vmem:[#allocation3 + $0x160] sm:$0xf] %vm2300, %v3819
        %3886 = vst.msk [vmem:[#allocation3 + $0x16c] sm:$0xf] %vm2300, %v3821
        %3887 = vst.msk [vmem:[#allocation3 + $0x178] sm:$0xf] %vm2300, %v3823
        %v3888 = vld [vmem:[#allocation2 + $0x14] sm:$0xf]
        %v3889 = vld [vmem:[#allocation2 + $0x18] sm:$0xf]
        %v3890 = vld [vmem:[#allocation2 + $0x1c] sm:$0xf]
        %v3891 = vld [vmem:[#allocation2 + $0x20] sm:$0xf]
        %v3892 = vld [vmem:[#allocation2 + $0x24] sm:$0xf]
        %v3893 = vld [vmem:[#allocation2 + $0x28] sm:$0xf]
        %v3894 = vld [vmem:[#allocation2 + $0x2c] sm:$0xf]
        %v3895 = vld [vmem:[#allocation2 + $0x30] sm:$0xf]
        %v3896 = vld [vmem:[#allocation2 + $0x34] sm:$0xf]
        %v3897 = vld [vmem:[#allocation2 + $0x38] sm:$0xf]
        %v3898 = vld [vmem:[#allocation2 + $0x3c] sm:$0xf]
        %v3899 = vld [vmem:[#allocation2 + $0x40] sm:$0xf]
        %v3900 = vld [vmem:[#allocation2 + $0x44] sm:$0xf]
        %v3901 = vld [vmem:[#allocation2 + $0x48] sm:$0xf]
        %v3902 = vld [vmem:[#allocation2 + $0x4c] sm:$0xf]
        %v3903 = vld [vmem:[#allocation2 + $0x50] sm:$0xf]
        %v3904 = vld [vmem:[#allocation2 + $0x54] sm:$0xf]
        %v3905 = vld [vmem:[#allocation2 + $0x58] sm:$0xf]
        %v3906 = vld [vmem:[#allocation2 + $0x5c] sm:$0xf]
        %v3907 = vld [vmem:[#allocation2 + $0x60] sm:$0xf]
        %v3908 = vld [vmem:[#allocation2 + $0x64] sm:$0xf]
        %v3909 = vld [vmem:[#allocation2 + $0x68] sm:$0xf]
        %v3910 = vld [vmem:[#allocation2 + $0x6c] sm:$0xf]
        %v3911 = vld [vmem:[#allocation2 + $0x70] sm:$0xf]
        %v3912 = vld [vmem:[#allocation2 + $0x74] sm:$0xf]
        %v3913 = vld [vmem:[#allocation2 + $0x78] sm:$0xf]
        %v3914 = vld [vmem:[#allocation2 + $0x7c] sm:$0xf]
        %v3915 = vld [vmem:[#allocation2 + $0x80] sm:$0xf]
        %v3916 = vld [vmem:[#allocation2 + $0x84] sm:$0xf]
        %v3917 = vld [vmem:[#allocation2 + $0x88] sm:$0xf]
        %v3918 = vld [vmem:[#allocation2 + $0x8c] sm:$0xf]
        %v3919 = vld [vmem:[#allocation2 + $0x90] sm:$0xf]
        %3952 = vrot.lane.b32.xlu0 %v3888, 96
        %v3953 = vpop.permute.xlu0 %3952
        %3954 = vrot.lane.b32.xlu0 %v3889, 96
        %v3955 = vpop.permute.xlu0 %3954
        %3956 = vrot.lane.b32.xlu0 %v3890, 96
        %v3957 = vpop.permute.xlu0 %3956
        %3958 = vrot.lane.b32.xlu0 %v3891, 96
        %v3959 = vpop.permute.xlu0 %3958
        %3960 = vrot.lane.b32.xlu0 %v3892, 96
        %v3961 = vpop.permute.xlu0 %3960
        %3962 = vrot.lane.b32.xlu0 %v3893, 96
        %v3963 = vpop.permute.xlu0 %3962
        %3964 = vrot.lane.b32.xlu0 %v3894, 96
        %v3965 = vpop.permute.xlu0 %3964
        %3966 = vrot.lane.b32.xlu0 %v3895, 96
        %v3967 = vpop.permute.xlu0 %3966
        %3968 = vrot.lane.b32.xlu0 %v3896, 96
        %v3969 = vpop.permute.xlu0 %3968
        %3970 = vrot.lane.b32.xlu0 %v3897, 96
        %v3971 = vpop.permute.xlu0 %3970
        %3972 = vrot.lane.b32.xlu0 %v3898, 96
        %v3973 = vpop.permute.xlu0 %3972
        %3974 = vrot.lane.b32.xlu0 %v3899, 96
        %v3975 = vpop.permute.xlu0 %3974
        %3976 = vrot.lane.b32.xlu0 %v3900, 96
        %v3977 = vpop.permute.xlu0 %3976
        %3978 = vrot.lane.b32.xlu0 %v3901, 96
        %v3979 = vpop.permute.xlu0 %3978
        %3980 = vrot.lane.b32.xlu0 %v3902, 96
        %v3981 = vpop.permute.xlu0 %3980
        %3982 = vrot.lane.b32.xlu0 %v3903, 96
        %v3983 = vpop.permute.xlu0 %3982
        %3984 = vrot.lane.b32.xlu0 %v3904, 96
        %v3985 = vpop.permute.xlu0 %3984
        %3986 = vrot.lane.b32.xlu0 %v3905, 96
        %v3987 = vpop.permute.xlu0 %3986
        %3988 = vrot.lane.b32.xlu0 %v3906, 96
        %v3989 = vpop.permute.xlu0 %3988
        %3990 = vrot.lane.b32.xlu0 %v3907, 96
        %v3991 = vpop.permute.xlu0 %3990
        %3992 = vrot.lane.b32.xlu0 %v3908, 96
        %v3993 = vpop.permute.xlu0 %3992
        %3994 = vrot.lane.b32.xlu0 %v3909, 96
        %v3995 = vpop.permute.xlu0 %3994
        %3996 = vrot.lane.b32.xlu0 %v3910, 96
        %v3997 = vpop.permute.xlu0 %3996
        %3998 = vrot.lane.b32.xlu0 %v3911, 96
        %v3999 = vpop.permute.xlu0 %3998
        %4000 = vrot.lane.b32.xlu0 %v3912, 96
        %v4001 = vpop.permute.xlu0 %4000
        %4002 = vrot.lane.b32.xlu0 %v3913, 96
        %v4003 = vpop.permute.xlu0 %4002
        %4004 = vrot.lane.b32.xlu0 %v3914, 96
        %v4005 = vpop.permute.xlu0 %4004
        %4006 = vrot.lane.b32.xlu0 %v3915, 96
        %v4007 = vpop.permute.xlu0 %4006
        %4008 = vrot.lane.b32.xlu0 %v3916, 96
        %v4009 = vpop.permute.xlu0 %4008
        %4010 = vrot.lane.b32.xlu0 %v3917, 96
        %v4011 = vpop.permute.xlu0 %4010
        %4012 = vrot.lane.b32.xlu0 %v3918, 96
        %v4013 = vpop.permute.xlu0 %4012
        %4014 = vrot.lane.b32.xlu0 %v3919, 96
        %v4015 = vpop.permute.xlu0 %4014
        %4048 = vst.msk [vmem:[#allocation3 + $0x4] sm:$0xf] %vm2787, %v3953
        %4049 = vst.msk [vmem:[#allocation3 + $0x10] sm:$0xf] %vm2787, %v3955
        %4050 = vst.msk [vmem:[#allocation3 + $0x1c] sm:$0xf] %vm2787, %v3957
        %4051 = vst.msk [vmem:[#allocation3 + $0x28] sm:$0xf] %vm2787, %v3959
        %4052 = vst.msk [vmem:[#allocation3 + $0x34] sm:$0xf] %vm2787, %v3961
        %4053 = vst.msk [vmem:[#allocation3 + $0x40] sm:$0xf] %vm2787, %v3963
        %4054 = vst.msk [vmem:[#allocation3 + $0x4c] sm:$0xf] %vm2787, %v3965
        %4055 = vst.msk [vmem:[#allocation3 + $0x58] sm:$0xf] %vm2787, %v3967
        %4056 = vst.msk [vmem:[#allocation3 + $0x64] sm:$0xf] %vm2787, %v3969
        %4057 = vst.msk [vmem:[#allocation3 + $0x70] sm:$0xf] %vm2787, %v3971
        %4058 = vst.msk [vmem:[#allocation3 + $0x7c] sm:$0xf] %vm2787, %v3973
        %4059 = vst.msk [vmem:[#allocation3 + $0x88] sm:$0xf] %vm2787, %v3975
        %4060 = vst.msk [vmem:[#allocation3 + $0x94] sm:$0xf] %vm2787, %v3977
        %4061 = vst.msk [vmem:[#allocation3 + $0xa0] sm:$0xf] %vm2787, %v3979
        %4062 = vst.msk [vmem:[#allocation3 + $0xac] sm:$0xf] %vm2787, %v3981
        %4063 = vst.msk [vmem:[#allocation3 + $0xb8] sm:$0xf] %vm2787, %v3983
        %4064 = vst.msk [vmem:[#allocation3 + $0xc4] sm:$0xf] %vm2787, %v3985
        %4065 = vst.msk [vmem:[#allocation3 + $0xd0] sm:$0xf] %vm2787, %v3987
        %4066 = vst.msk [vmem:[#allocation3 + $0xdc] sm:$0xf] %vm2787, %v3989
        %4067 = vst.msk [vmem:[#allocation3 + $0xe8] sm:$0xf] %vm2787, %v3991
        %4068 = vst.msk [vmem:[#allocation3 + $0xf4] sm:$0xf] %vm2787, %v3993
        %4069 = vst.msk [vmem:[#allocation3 + $0x100] sm:$0xf] %vm2787, %v3995
        %4070 = vst.msk [vmem:[#allocation3 + $0x10c] sm:$0xf] %vm2787, %v3997
        %4071 = vst.msk [vmem:[#allocation3 + $0x118] sm:$0xf] %vm2787, %v3999
        %4072 = vst.msk [vmem:[#allocation3 + $0x124] sm:$0xf] %vm2787, %v4001
        %4073 = vst.msk [vmem:[#allocation3 + $0x130] sm:$0xf] %vm2787, %v4003
        %4074 = vst.msk [vmem:[#allocation3 + $0x13c] sm:$0xf] %vm2787, %v4005
        %4075 = vst.msk [vmem:[#allocation3 + $0x148] sm:$0xf] %vm2787, %v4007
        %4076 = vst.msk [vmem:[#allocation3 + $0x154] sm:$0xf] %vm2787, %v4009
        %4077 = vst.msk [vmem:[#allocation3 + $0x160] sm:$0xf] %vm2787, %v4011
        %4078 = vst.msk [vmem:[#allocation3 + $0x16c] sm:$0xf] %vm2787, %v4013
        %4079 = vst.msk [vmem:[#allocation3 + $0x178] sm:$0xf] %vm2787, %v4015
        %v4080 = vld [vmem:[#allocation2 + $0x14] sm:$0xf]
        %v4081 = vld [vmem:[#allocation2 + $0x18] sm:$0xf]
        %v4082 = vld [vmem:[#allocation2 + $0x1c] sm:$0xf]
        %v4083 = vld [vmem:[#allocation2 + $0x20] sm:$0xf]
        %v4084 = vld [vmem:[#allocation2 + $0x24] sm:$0xf]
        %v4085 = vld [vmem:[#allocation2 + $0x28] sm:$0xf]
        %v4086 = vld [vmem:[#allocation2 + $0x2c] sm:$0xf]
        %v4087 = vld [vmem:[#allocation2 + $0x30] sm:$0xf]
        %v4088 = vld [vmem:[#allocation2 + $0x34] sm:$0xf]
        %v4089 = vld [vmem:[#allocation2 + $0x38] sm:$0xf]
        %v4090 = vld [vmem:[#allocation2 + $0x3c] sm:$0xf]
        %v4091 = vld [vmem:[#allocation2 + $0x40] sm:$0xf]
        %v4092 = vld [vmem:[#allocation2 + $0x44] sm:$0xf]
        %v4093 = vld [vmem:[#allocation2 + $0x48] sm:$0xf]
        %v4094 = vld [vmem:[#allocation2 + $0x4c] sm:$0xf]
        %v4095 = vld [vmem:[#allocation2 + $0x50] sm:$0xf]
        %v4096 = vld [vmem:[#allocation2 + $0x54] sm:$0xf]
        %v4097 = vld [vmem:[#allocation2 + $0x58] sm:$0xf]
        %v4098 = vld [vmem:[#allocation2 + $0x5c] sm:$0xf]
        %v4099 = vld [vmem:[#allocation2 + $0x60] sm:$0xf]
        %v4100 = vld [vmem:[#allocation2 + $0x64] sm:$0xf]
        %v4101 = vld [vmem:[#allocation2 + $0x68] sm:$0xf]
        %v4102 = vld [vmem:[#allocation2 + $0x6c] sm:$0xf]
        %v4103 = vld [vmem:[#allocation2 + $0x70] sm:$0xf]
        %v4104 = vld [vmem:[#allocation2 + $0x74] sm:$0xf]
        %v4105 = vld [vmem:[#allocation2 + $0x78] sm:$0xf]
        %v4106 = vld [vmem:[#allocation2 + $0x7c] sm:$0xf]
        %v4107 = vld [vmem:[#allocation2 + $0x80] sm:$0xf]
        %v4108 = vld [vmem:[#allocation2 + $0x84] sm:$0xf]
        %v4109 = vld [vmem:[#allocation2 + $0x88] sm:$0xf]
        %v4110 = vld [vmem:[#allocation2 + $0x8c] sm:$0xf]
        %v4111 = vld [vmem:[#allocation2 + $0x90] sm:$0xf]
        %v4112 = vld [vmem:[#allocation2 + $0x94] sm:$0x1]
        %v4113 = vmul.bf16 %v4080, %v1533
        %v4114 = vmul.bf16 %v4081, %v1542
        %v4115 = vmul.bf16 %v4082, %v1551
        %v4116 = vmul.bf16 %v4083, %v1560
        %v4117 = vmul.bf16 %v4084, %v1569
        %v4118 = vmul.bf16 %v4085, %v1578
        %v4119 = vmul.bf16 %v4086, %v1587
        %v4120 = vmul.bf16 %v4087, %v1596
        %v4121 = vmul.bf16 %v4088, %v1605
        %v4122 = vmul.bf16 %v4089, %v1614
        %v4123 = vmul.bf16 %v4090, %v1623
        %v4124 = vmul.bf16 %v4091, %v1632
        %v4125 = vmul.bf16 %v4092, %v1641
        %v4126 = vmul.bf16 %v4093, %v1650
        %v4127 = vmul.bf16 %v4094, %v1659
        %v4128 = vmul.bf16 %v4095, %v1668
        %v4129 = vmul.bf16 %v4096, %v1677
        %v4130 = vmul.bf16 %v4097, %v1686
        %v4131 = vmul.bf16 %v4098, %v1695
        %v4132 = vmul.bf16 %v4099, %v1704
        %v4133 = vmul.bf16 %v4100, %v1713
        %v4134 = vmul.bf16 %v4101, %v1722
        %v4135 = vmul.bf16 %v4102, %v1731
        %v4136 = vmul.bf16 %v4103, %v1740
        %v4137 = vmul.bf16 %v4104, %v1749
        %v4138 = vmul.bf16 %v4105, %v1758
        %v4139 = vmul.bf16 %v4106, %v1767
        %v4140 = vmul.bf16 %v4107, %v1776
        %v4141 = vmul.bf16 %v4108, %v1785
        %v4142 = vmul.bf16 %v4109, %v1794
        %v4143 = vmul.bf16 %v4110, %v1803
        %v4144 = vmul.bf16 %v4111, %v1812
        %v4145 = vmul.bf16 %v4112, %v1813
        %v4147 = vshrl.u32 %v4113, 16
        %v4149 = vrot.slane %v4147, 4
        %v4150 = vshll.u32 %v4113, 16
        %v4152 = vrot.slane %v4150, 5
        %v4153 = vor.u32 %v4149, %v4152
        %v4154 = vrot.slane %v4153, 4
        %v4156 = vshll.u32 %v4114, 16
        %v4158 = vrot.slane %v4156, 5
        %v4159 = vsel %vm556, %v4154, %v4158
        %v4160 = vshrl.u32 %v4114, 16
        %v4162 = vrot.slane %v4160, 4
        %v4163 = vor.u32 %v4162, %v4158
        %v4164 = vrot.slane %v4163, 4
        %v4166 = vshll.u32 %v4115, 16
        %v4168 = vrot.slane %v4166, 5
        %v4169 = vsel %vm556, %v4164, %v4168
        %v4170 = vshrl.u32 %v4115, 16
        %v4172 = vrot.slane %v4170, 4
        %v4173 = vor.u32 %v4172, %v4168
        %v4174 = vrot.slane %v4173, 4
        %v4176 = vshll.u32 %v4116, 16
        %v4178 = vrot.slane %v4176, 5
        %v4179 = vsel %vm556, %v4174, %v4178
        %v4180 = vshrl.u32 %v4116, 16
        %v4182 = vrot.slane %v4180, 4
        %v4183 = vor.u32 %v4182, %v4178
        %v4184 = vrot.slane %v4183, 4
        %v4186 = vshll.u32 %v4117, 16
        %v4188 = vrot.slane %v4186, 5
        %v4189 = vsel %vm556, %v4184, %v4188
        %v4190 = vshrl.u32 %v4117, 16
        %v4192 = vrot.slane %v4190, 4
        %v4193 = vor.u32 %v4192, %v4188
        %v4194 = vrot.slane %v4193, 4
        %v4196 = vshll.u32 %v4118, 16
        %v4198 = vrot.slane %v4196, 5
        %v4199 = vsel %vm556, %v4194, %v4198
        %v4200 = vshrl.u32 %v4118, 16
        %v4202 = vrot.slane %v4200, 4
        %v4203 = vor.u32 %v4202, %v4198
        %v4204 = vrot.slane %v4203, 4
        %v4206 = vshll.u32 %v4119, 16
        %v4208 = vrot.slane %v4206, 5
        %v4209 = vsel %vm556, %v4204, %v4208
        %v4210 = vshrl.u32 %v4119, 16
        %v4212 = vrot.slane %v4210, 4
        %v4213 = vor.u32 %v4212, %v4208
        %v4214 = vrot.slane %v4213, 4
        %v4216 = vshll.u32 %v4120, 16
        %v4218 = vrot.slane %v4216, 5
        %v4219 = vsel %vm556, %v4214, %v4218
        %v4220 = vshrl.u32 %v4120, 16
        %v4222 = vrot.slane %v4220, 4
        %v4223 = vor.u32 %v4222, %v4218
        %v4224 = vrot.slane %v4223, 4
        %v4226 = vshll.u32 %v4121, 16
        %v4228 = vrot.slane %v4226, 5
        %v4229 = vsel %vm556, %v4224, %v4228
        %v4230 = vshrl.u32 %v4121, 16
        %v4232 = vrot.slane %v4230, 4
        %v4233 = vor.u32 %v4232, %v4228
        %v4234 = vrot.slane %v4233, 4
        %v4236 = vshll.u32 %v4122, 16
        %v4238 = vrot.slane %v4236, 5
        %v4239 = vsel %vm556, %v4234, %v4238
        %v4240 = vshrl.u32 %v4122, 16
        %v4242 = vrot.slane %v4240, 4
        %v4243 = vor.u32 %v4242, %v4238
        %v4244 = vrot.slane %v4243, 4
        %v4246 = vshll.u32 %v4123, 16
        %v4248 = vrot.slane %v4246, 5
        %v4249 = vsel %vm556, %v4244, %v4248
        %v4250 = vshrl.u32 %v4123, 16
        %v4252 = vrot.slane %v4250, 4
        %v4253 = vor.u32 %v4252, %v4248
        %v4254 = vrot.slane %v4253, 4
        %v4256 = vshll.u32 %v4124, 16
        %v4258 = vrot.slane %v4256, 5
        %v4259 = vsel %vm556, %v4254, %v4258
        %v4260 = vshrl.u32 %v4124, 16
        %v4262 = vrot.slane %v4260, 4
        %v4263 = vor.u32 %v4262, %v4258
        %v4264 = vrot.slane %v4263, 4
        %v4266 = vshll.u32 %v4125, 16
        %v4268 = vrot.slane %v4266, 5
        %v4269 = vsel %vm556, %v4264, %v4268
        %v4270 = vshrl.u32 %v4125, 16
        %v4272 = vrot.slane %v4270, 4
        %v4273 = vor.u32 %v4272, %v4268
        %v4274 = vrot.slane %v4273, 4
        %v4276 = vshll.u32 %v4126, 16
        %v4278 = vrot.slane %v4276, 5
        %v4279 = vsel %vm556, %v4274, %v4278
        %v4280 = vshrl.u32 %v4126, 16
        %v4282 = vrot.slane %v4280, 4
        %v4283 = vor.u32 %v4282, %v4278
        %v4284 = vrot.slane %v4283, 4
        %v4286 = vshll.u32 %v4127, 16
        %v4288 = vrot.slane %v4286, 5
        %v4289 = vsel %vm556, %v4284, %v4288
        %v4290 = vshrl.u32 %v4127, 16
        %v4292 = vrot.slane %v4290, 4
        %v4293 = vor.u32 %v4292, %v4288
        %v4294 = vrot.slane %v4293, 4
        %v4296 = vshll.u32 %v4128, 16
        %v4298 = vrot.slane %v4296, 5
        %v4299 = vsel %vm556, %v4294, %v4298
        %v4300 = vshrl.u32 %v4128, 16
        %v4302 = vrot.slane %v4300, 4
        %v4303 = vor.u32 %v4302, %v4298
        %v4304 = vrot.slane %v4303, 4
        %v4306 = vshll.u32 %v4129, 16
        %v4308 = vrot.slane %v4306, 5
        %v4309 = vsel %vm556, %v4304, %v4308
        %v4310 = vshrl.u32 %v4129, 16
        %v4312 = vrot.slane %v4310, 4
        %v4313 = vor.u32 %v4312, %v4308
        %v4314 = vrot.slane %v4313, 4
        %v4316 = vshll.u32 %v4130, 16
        %v4318 = vrot.slane %v4316, 5
        %v4319 = vsel %vm556, %v4314, %v4318
        %v4320 = vshrl.u32 %v4130, 16
        %v4322 = vrot.slane %v4320, 4
        %v4323 = vor.u32 %v4322, %v4318
        %v4324 = vrot.slane %v4323, 4
        %v4326 = vshll.u32 %v4131, 16
        %v4328 = vrot.slane %v4326, 5
        %v4329 = vsel %vm556, %v4324, %v4328
        %v4330 = vshrl.u32 %v4131, 16
        %v4332 = vrot.slane %v4330, 4
        %v4333 = vor.u32 %v4332, %v4328
        %v4334 = vrot.slane %v4333, 4
        %v4336 = vshll.u32 %v4132, 16
        %v4338 = vrot.slane %v4336, 5
        %v4339 = vsel %vm556, %v4334, %v4338
        %v4340 = vshrl.u32 %v4132, 16
        %v4342 = vrot.slane %v4340, 4
        %v4343 = vor.u32 %v4342, %v4338
        %v4344 = vrot.slane %v4343, 4
        %v4346 = vshll.u32 %v4133, 16
        %v4348 = vrot.slane %v4346, 5
        %v4349 = vsel %vm556, %v4344, %v4348
        %v4350 = vshrl.u32 %v4133, 16
        %v4352 = vrot.slane %v4350, 4
        %v4353 = vor.u32 %v4352, %v4348
        %v4354 = vrot.slane %v4353, 4
        %v4356 = vshll.u32 %v4134, 16
        %v4358 = vrot.slane %v4356, 5
        %v4359 = vsel %vm556, %v4354, %v4358
        %v4360 = vshrl.u32 %v4134, 16
        %v4362 = vrot.slane %v4360, 4
        %v4363 = vor.u32 %v4362, %v4358
        %v4364 = vrot.slane %v4363, 4
        %v4366 = vshll.u32 %v4135, 16
        %v4368 = vrot.slane %v4366, 5
        %v4369 = vsel %vm556, %v4364, %v4368
        %v4370 = vshrl.u32 %v4135, 16
        %v4372 = vrot.slane %v4370, 4
        %v4373 = vor.u32 %v4372, %v4368
        %v4374 = vrot.slane %v4373, 4
        %v4376 = vshll.u32 %v4136, 16
        %v4378 = vrot.slane %v4376, 5
        %v4379 = vsel %vm556, %v4374, %v4378
        %v4380 = vshrl.u32 %v4136, 16
        %v4382 = vrot.slane %v4380, 4
        %v4383 = vor.u32 %v4382, %v4378
        %v4384 = vrot.slane %v4383, 4
        %v4386 = vshll.u32 %v4137, 16
        %v4388 = vrot.slane %v4386, 5
        %v4389 = vsel %vm556, %v4384, %v4388
        %v4390 = vshrl.u32 %v4137, 16
        %v4392 = vrot.slane %v4390, 4
        %v4393 = vor.u32 %v4392, %v4388
        %v4394 = vrot.slane %v4393, 4
        %v4396 = vshll.u32 %v4138, 16
        %v4398 = vrot.slane %v4396, 5
        %v4399 = vsel %vm556, %v4394, %v4398
        %v4400 = vshrl.u32 %v4138, 16
        %v4402 = vrot.slane %v4400, 4
        %v4403 = vor.u32 %v4402, %v4398
        %v4404 = vrot.slane %v4403, 4
        %v4406 = vshll.u32 %v4139, 16
        %v4408 = vrot.slane %v4406, 5
        %v4409 = vsel %vm556, %v4404, %v4408
        %v4410 = vshrl.u32 %v4139, 16
        %v4412 = vrot.slane %v4410, 4
        %v4413 = vor.u32 %v4412, %v4408
        %v4414 = vrot.slane %v4413, 4
        %v4416 = vshll.u32 %v4140, 16
        %v4418 = vrot.slane %v4416, 5
        %v4419 = vsel %vm556, %v4414, %v4418
        %v4420 = vshrl.u32 %v4140, 16
        %v4422 = vrot.slane %v4420, 4
        %v4423 = vor.u32 %v4422, %v4418
        %v4424 = vrot.slane %v4423, 4
        %v4426 = vshll.u32 %v4141, 16
        %v4428 = vrot.slane %v4426, 5
        %v4429 = vsel %vm556, %v4424, %v4428
        %v4430 = vshrl.u32 %v4141, 16
        %v4432 = vrot.slane %v4430, 4
        %v4433 = vor.u32 %v4432, %v4428
        %v4434 = vrot.slane %v4433, 4
        %v4436 = vshll.u32 %v4142, 16
        %v4438 = vrot.slane %v4436, 5
        %v4439 = vsel %vm556, %v4434, %v4438
        %v4440 = vshrl.u32 %v4142, 16
        %v4442 = vrot.slane %v4440, 4
        %v4443 = vor.u32 %v4442, %v4438
        %v4444 = vrot.slane %v4443, 4
        %v4446 = vshll.u32 %v4143, 16
        %v4448 = vrot.slane %v4446, 5
        %v4449 = vsel %vm556, %v4444, %v4448
        %v4450 = vshrl.u32 %v4143, 16
        %v4452 = vrot.slane %v4450, 4
        %v4453 = vor.u32 %v4452, %v4448
        %v4454 = vrot.slane %v4453, 4
        %v4456 = vshll.u32 %v4144, 16
        %v4458 = vrot.slane %v4456, 5
        %v4459 = vsel %vm556, %v4454, %v4458
        %v4460 = vshrl.u32 %v4144, 16
        %v4462 = vrot.slane %v4460, 4
        %v4463 = vor.u32 %v4462, %v4458
        %v4464 = vrot.slane %v4463, 4
        %v4466 = vshll.u32 %v4145, 16
        %v4468 = vrot.slane %v4466, 5
        %v4469 = vsel %vm556, %v4464, %v4468
        %4502 = vst.msk [vmem:[#allocation3 + $0x8] sm:$0xf] %vm386, %v4159
        %4503 = vst.msk [vmem:[#allocation3 + $0x14] sm:$0xf] %vm386, %v4169
        %4504 = vst.msk [vmem:[#allocation3 + $0x20] sm:$0xf] %vm386, %v4179
        %4505 = vst.msk [vmem:[#allocation3 + $0x2c] sm:$0xf] %vm386, %v4189
        %4506 = vst.msk [vmem:[#allocation3 + $0x38] sm:$0xf] %vm386, %v4199
        %4507 = vst.msk [vmem:[#allocation3 + $0x44] sm:$0xf] %vm386, %v4209
        %4508 = vst.msk [vmem:[#allocation3 + $0x50] sm:$0xf] %vm386, %v4219
        %4509 = vst.msk [vmem:[#allocation3 + $0x5c] sm:$0xf] %vm386, %v4229
        %4510 = vst.msk [vmem:[#allocation3 + $0x68] sm:$0xf] %vm386, %v4239
        %4511 = vst.msk [vmem:[#allocation3 + $0x74] sm:$0xf] %vm386, %v4249
        %4512 = vst.msk [vmem:[#allocation3 + $0x80] sm:$0xf] %vm386, %v4259
        %4513 = vst.msk [vmem:[#allocation3 + $0x8c] sm:$0xf] %vm386, %v4269
        %4514 = vst.msk [vmem:[#allocation3 + $0x98] sm:$0xf] %vm386, %v4279
        %4515 = vst.msk [vmem:[#allocation3 + $0xa4] sm:$0xf] %vm386, %v4289
        %4516 = vst.msk [vmem:[#allocation3 + $0xb0] sm:$0xf] %vm386, %v4299
        %4517 = vst.msk [vmem:[#allocation3 + $0xbc] sm:$0xf] %vm386, %v4309
        %4518 = vst.msk [vmem:[#allocation3 + $0xc8] sm:$0xf] %vm386, %v4319
        %4519 = vst.msk [vmem:[#allocation3 + $0xd4] sm:$0xf] %vm386, %v4329
        %4520 = vst.msk [vmem:[#allocation3 + $0xe0] sm:$0xf] %vm386, %v4339
        %4521 = vst.msk [vmem:[#allocation3 + $0xec] sm:$0xf] %vm386, %v4349
        %4522 = vst.msk [vmem:[#allocation3 + $0xf8] sm:$0xf] %vm386, %v4359
        %4523 = vst.msk [vmem:[#allocation3 + $0x104] sm:$0xf] %vm386, %v4369
        %4524 = vst.msk [vmem:[#allocation3 + $0x110] sm:$0xf] %vm386, %v4379
        %4525 = vst.msk [vmem:[#allocation3 + $0x11c] sm:$0xf] %vm386, %v4389
        %4526 = vst.msk [vmem:[#allocation3 + $0x128] sm:$0xf] %vm386, %v4399
        %4527 = vst.msk [vmem:[#allocation3 + $0x134] sm:$0xf] %vm386, %v4409
        %4528 = vst.msk [vmem:[#allocation3 + $0x140] sm:$0xf] %vm386, %v4419
        %4529 = vst.msk [vmem:[#allocation3 + $0x14c] sm:$0xf] %vm386, %v4429
        %4530 = vst.msk [vmem:[#allocation3 + $0x158] sm:$0xf] %vm386, %v4439
        %4531 = vst.msk [vmem:[#allocation3 + $0x164] sm:$0xf] %vm386, %v4449
        %4532 = vst.msk [vmem:[#allocation3 + $0x170] sm:$0xf] %vm386, %v4459
        %4533 = vst.msk [vmem:[#allocation3 + $0x17c] sm:$0xf] %vm386, %v4469
        %v4534 = vld [vmem:[#allocation3] sm:$0xff]
        %v4535 = vld [vmem:[#allocation3 + $0x8] sm:$0xf]
        %v4536 = vld [vmem:[#allocation3 + $0xc] sm:$0xff]
        %v4537 = vld [vmem:[#allocation3 + $0x14] sm:$0xf]
        %v4538 = vld [vmem:[#allocation3 + $0x18] sm:$0xff]
        %v4539 = vld [vmem:[#allocation3 + $0x20] sm:$0xf]
        %v4540 = vld [vmem:[#allocation3 + $0x24] sm:$0xff]
        %v4541 = vld [vmem:[#allocation3 + $0x2c] sm:$0xf]
        %v4542 = vld [vmem:[#allocation3 + $0x30] sm:$0xff]
        %v4543 = vld [vmem:[#allocation3 + $0x38] sm:$0xf]
        %v4544 = vld [vmem:[#allocation3 + $0x3c] sm:$0xff]
        %v4545 = vld [vmem:[#allocation3 + $0x44] sm:$0xf]
        %v4546 = vld [vmem:[#allocation3 + $0x48] sm:$0xff]
        %v4547 = vld [vmem:[#allocation3 + $0x50] sm:$0xf]
        %v4548 = vld [vmem:[#allocation3 + $0x54] sm:$0xff]
        %v4549 = vld [vmem:[#allocation3 + $0x5c] sm:$0xf]
        %v4550 = vld [vmem:[#allocation3 + $0x60] sm:$0xff]
        %v4551 = vld [vmem:[#allocation3 + $0x68] sm:$0xf]
        %v4552 = vld [vmem:[#allocation3 + $0x6c] sm:$0xff]
        %v4553 = vld [vmem:[#allocation3 + $0x74] sm:$0xf]
        %v4554 = vld [vmem:[#allocation3 + $0x78] sm:$0xff]
        %v4555 = vld [vmem:[#allocation3 + $0x80] sm:$0xf]
        %v4556 = vld [vmem:[#allocation3 + $0x84] sm:$0xff]
        %v4557 = vld [vmem:[#allocation3 + $0x8c] sm:$0xf]
        %v4558 = vld [vmem:[#allocation3 + $0x90] sm:$0xff]
        %v4559 = vld [vmem:[#allocation3 + $0x98] sm:$0xf]
        %v4560 = vld [vmem:[#allocation3 + $0x9c] sm:$0xff]
        %v4561 = vld [vmem:[#allocation3 + $0xa4] sm:$0xf]
        %v4562 = vld [vmem:[#allocation3 + $0xa8] sm:$0xff]
        %v4563 = vld [vmem:[#allocation3 + $0xb0] sm:$0xf]
        %v4564 = vld [vmem:[#allocation3 + $0xb4] sm:$0xff]
        %v4565 = vld [vmem:[#allocation3 + $0xbc] sm:$0xf]
        %v4566 = vld [vmem:[#allocation3 + $0xc0] sm:$0xff]
        %v4567 = vld [vmem:[#allocation3 + $0xc8] sm:$0xf]
        %v4568 = vld [vmem:[#allocation3 + $0xcc] sm:$0xff]
        %v4569 = vld [vmem:[#allocation3 + $0xd4] sm:$0xf]
        %v4570 = vld [vmem:[#allocation3 + $0xd8] sm:$0xff]
        %v4571 = vld [vmem:[#allocation3 + $0xe0] sm:$0xf]
        %v4572 = vld [vmem:[#allocation3 + $0xe4] sm:$0xff]
        %v4573 = vld [vmem:[#allocation3 + $0xec] sm:$0xf]
        %v4574 = vld [vmem:[#allocation3 + $0xf0] sm:$0xff]
        %v4575 = vld [vmem:[#allocation3 + $0xf8] sm:$0xf]
        %v4576 = vld [vmem:[#allocation3 + $0xfc] sm:$0xff]
        %v4577 = vld [vmem:[#allocation3 + $0x104] sm:$0xf]
        %v4578 = vld [vmem:[#allocation3 + $0x108] sm:$0xff]
        %v4579 = vld [vmem:[#allocation3 + $0x110] sm:$0xf]
        %v4580 = vld [vmem:[#allocation3 + $0x114] sm:$0xff]
        %v4581 = vld [vmem:[#allocation3 + $0x11c] sm:$0xf]
        %v4582 = vld [vmem:[#allocation3 + $0x120] sm:$0xff]
        %v4583 = vld [vmem:[#allocation3 + $0x128] sm:$0xf]
        %v4584 = vld [vmem:[#allocation3 + $0x12c] sm:$0xff]
        %v4585 = vld [vmem:[#allocation3 + $0x134] sm:$0xf]
        %v4586 = vld [vmem:[#allocation3 + $0x138] sm:$0xff]
        %v4587 = vld [vmem:[#allocation3 + $0x140] sm:$0xf]
        %v4588 = vld [vmem:[#allocation3 + $0x144] sm:$0xff]
        %v4589 = vld [vmem:[#allocation3 + $0x14c] sm:$0xf]
        %v4590 = vld [vmem:[#allocation3 + $0x150] sm:$0xff]
        %v4591 = vld [vmem:[#allocation3 + $0x158] sm:$0xf]
        %v4592 = vld [vmem:[#allocation3 + $0x15c] sm:$0xff]
        %v4593 = vld [vmem:[#allocation3 + $0x164] sm:$0xf]
        %v4594 = vld [vmem:[#allocation3 + $0x168] sm:$0xff]
        %v4595 = vld [vmem:[#allocation3 + $0x170] sm:$0xf]
        %v4596 = vld [vmem:[#allocation3 + $0x174] sm:$0xff]
        %v4597 = vld [vmem:[#allocation3 + $0x17c] sm:$0xf]
        %v4598 = vld [vmem:[%s3] sm:$0xf]
        %v4599 = vld [vmem:[%s3 + $0x4] sm:$0xf]
        %v4600 = vld [vmem:[%s3 + $0x8] sm:$0xf]
        %v4601 = vld [vmem:[%s3 + $0xc] sm:$0xf]
        %v4602 = vld [vmem:[%s3 + $0x10] sm:$0xf]
        %v4603 = vld [vmem:[%s3 + $0x14] sm:$0xf]
        %v4604 = vld [vmem:[%s3 + $0x18] sm:$0xf]
        %v4605 = vld [vmem:[%s3 + $0x1c] sm:$0xf]
        %v4606 = vld [vmem:[%s3 + $0x20] sm:$0xf]
        %v4607 = vld [vmem:[%s3 + $0x24] sm:$0xf]
        %v4608 = vld [vmem:[%s3 + $0x28] sm:$0xf]
        %v4609 = vld [vmem:[%s3 + $0x2c] sm:$0xf]
        %v4610 = vld [vmem:[%s3 + $0x30] sm:$0xf]
        %v4611 = vld [vmem:[%s3 + $0x34] sm:$0xf]
        %v4612 = vld [vmem:[%s3 + $0x38] sm:$0xf]
        %v4613 = vld [vmem:[%s3 + $0x3c] sm:$0xf]
        %v4614 = vld [vmem:[%s3 + $0x40] sm:$0xf]
        %v4615 = vld [vmem:[%s3 + $0x44] sm:$0xf]
        %v4616 = vld [vmem:[%s3 + $0x48] sm:$0xf]
        %v4617 = vld [vmem:[%s3 + $0x4c] sm:$0xf]
        %v4618 = vld [vmem:[%s3 + $0x50] sm:$0xf]
        %v4619 = vld [vmem:[%s3 + $0x54] sm:$0xf]
        %v4620 = vld [vmem:[%s3 + $0x58] sm:$0xf]
        %v4621 = vld [vmem:[%s3 + $0x5c] sm:$0xf]
        %v4622 = vld [vmem:[%s3 + $0x60] sm:$0xf]
        %v4623 = vld [vmem:[%s3 + $0x64] sm:$0xf]
        %v4624 = vld [vmem:[%s3 + $0x68] sm:$0xf]
        %v4625 = vld [vmem:[%s3 + $0x6c] sm:$0xf]
        %v4626 = vld [vmem:[%s3 + $0x70] sm:$0xf]
        %v4627 = vld [vmem:[%s3 + $0x74] sm:$0xf]
        %v4628 = vld [vmem:[%s3 + $0x78] sm:$0xf]
        %v4629 = vld [vmem:[%s3 + $0x7c] sm:$0xf]
        %v4630 = vld [vmem:[%s3 + $0x80] sm:$0xf]
        %v4631 = vld [vmem:[%s3 + $0x84] sm:$0xf]
        %v4632 = vld [vmem:[%s3 + $0x88] sm:$0xf]
        %v4633 = vld [vmem:[%s3 + $0x8c] sm:$0xf]
        %v4634 = vld [vmem:[%s4] sm:$0x1]
        %v4636 = vlaneseq
        %v4637 = vshrl.u32 %v4636, 7
        %v4638 = vsub.s32 0, %v4637
        %v4639 = vrot.slane %v4634, %v4638
        %v4705 = vunpack.c.l.b16 %v4534
        %v4706 = vunpack.c.h.b16 %v4534
        %v4707 = vunpack.c.l.b16 %v4535
        %v4708 = vunpack.c.l.b16 %v4536
        %v4709 = vunpack.c.h.b16 %v4536
        %v4710 = vunpack.c.l.b16 %v4537
        %v4711 = vunpack.c.l.b16 %v4538
        %v4712 = vunpack.c.h.b16 %v4538
        %v4713 = vunpack.c.l.b16 %v4539
        %v4714 = vunpack.c.l.b16 %v4540
        %v4715 = vunpack.c.h.b16 %v4540
        %v4716 = vunpack.c.l.b16 %v4541
        %v4717 = vunpack.c.l.b16 %v4542
        %v4718 = vunpack.c.h.b16 %v4542
        %v4719 = vunpack.c.l.b16 %v4543
        %v4720 = vunpack.c.l.b16 %v4544
        %v4721 = vunpack.c.h.b16 %v4544
        %v4722 = vunpack.c.l.b16 %v4545
        %v4723 = vunpack.c.l.b16 %v4546
        %v4724 = vunpack.c.h.b16 %v4546
        %v4725 = vunpack.c.l.b16 %v4547
        %v4726 = vunpack.c.l.b16 %v4548
        %v4727 = vunpack.c.h.b16 %v4548
        %v4728 = vunpack.c.l.b16 %v4549
        %v4729 = vunpack.c.l.b16 %v4550
        %v4730 = vunpack.c.h.b16 %v4550
        %v4731 = vunpack.c.l.b16 %v4551
        %v4732 = vunpack.c.l.b16 %v4552
        %v4733 = vunpack.c.h.b16 %v4552
        %v4734 = vunpack.c.l.b16 %v4553
        %v4735 = vunpack.c.l.b16 %v4554
        %v4736 = vunpack.c.h.b16 %v4554
        %v4737 = vunpack.c.l.b16 %v4555
        %v4738 = vunpack.c.l.b16 %v4556
        %v4739 = vunpack.c.h.b16 %v4556
        %v4740 = vunpack.c.l.b16 %v4557
        %v4741 = vunpack.c.l.b16 %v4558
        %v4742 = vunpack.c.h.b16 %v4558
        %v4743 = vunpack.c.l.b16 %v4559
        %v4744 = vunpack.c.l.b16 %v4560
        %v4745 = vunpack.c.h.b16 %v4560
        %v4746 = vunpack.c.l.b16 %v4561
        %v4747 = vunpack.c.l.b16 %v4562
        %v4748 = vunpack.c.h.b16 %v4562
        %v4749 = vunpack.c.l.b16 %v4563
        %v4750 = vunpack.c.l.b16 %v4564
        %v4751 = vunpack.c.h.b16 %v4564
        %v4752 = vunpack.c.l.b16 %v4565
        %v4753 = vunpack.c.l.b16 %v4566
        %v4754 = vunpack.c.h.b16 %v4566
        %v4755 = vunpack.c.l.b16 %v4567
        %v4756 = vunpack.c.l.b16 %v4568
        %v4757 = vunpack.c.h.b16 %v4568
        %v4758 = vunpack.c.l.b16 %v4569
        %v4759 = vunpack.c.l.b16 %v4570
        %v4760 = vunpack.c.h.b16 %v4570
        %v4761 = vunpack.c.l.b16 %v4571
        %v4762 = vunpack.c.l.b16 %v4572
        %v4763 = vunpack.c.h.b16 %v4572
        %v4764 = vunpack.c.l.b16 %v4573
        %v4765 = vunpack.c.l.b16 %v4574
        %v4766 = vunpack.c.h.b16 %v4574
        %v4767 = vunpack.c.l.b16 %v4575
        %v4768 = vunpack.c.l.b16 %v4576
        %v4769 = vunpack.c.h.b16 %v4576
        %v4770 = vunpack.c.l.b16 %v4577
        %v4771 = vunpack.c.l.b16 %v4578
        %v4772 = vunpack.c.h.b16 %v4578
        %v4773 = vunpack.c.l.b16 %v4579
        %v4774 = vunpack.c.l.b16 %v4580
        %v4775 = vunpack.c.h.b16 %v4580
        %v4776 = vunpack.c.l.b16 %v4581
        %v4777 = vunpack.c.l.b16 %v4582
        %v4778 = vunpack.c.h.b16 %v4582
        %v4779 = vunpack.c.l.b16 %v4583
        %v4780 = vunpack.c.l.b16 %v4584
        %v4781 = vunpack.c.h.b16 %v4584
        %v4782 = vunpack.c.l.b16 %v4585
        %v4783 = vunpack.c.l.b16 %v4586
        %v4784 = vunpack.c.h.b16 %v4586
        %v4785 = vunpack.c.l.b16 %v4587
        %v4786 = vunpack.c.l.b16 %v4588
        %v4787 = vunpack.c.h.b16 %v4588
        %v4788 = vunpack.c.l.b16 %v4589
        %v4789 = vunpack.c.l.b16 %v4590
        %v4790 = vunpack.c.h.b16 %v4590
        %v4791 = vunpack.c.l.b16 %v4591
        %v4792 = vunpack.c.l.b16 %v4592
        %v4793 = vunpack.c.h.b16 %v4592
        %v4794 = vunpack.c.l.b16 %v4593
        %v4795 = vunpack.c.l.b16 %v4594
        %v4796 = vunpack.c.h.b16 %v4594
        %v4797 = vunpack.c.l.b16 %v4595
        %v4798 = vunpack.c.l.b16 %v4596
        %v4799 = vunpack.c.h.b16 %v4596
        %v4800 = vunpack.c.l.b16 %v4597
        %v4801 = vpack.c.b16 %v4708, %v4705
        %v4802 = vpack.c.b16 %v4709, %v4706
        %v4803 = vpack.c.b16 %v4710, %v4707
        %v4804 = vpack.c.b16 %v4714, %v4711
        %v4805 = vpack.c.b16 %v4715, %v4712
        %v4806 = vpack.c.b16 %v4716, %v4713
        %v4807 = vpack.c.b16 %v4720, %v4717
        %v4808 = vpack.c.b16 %v4721, %v4718
        %v4809 = vpack.c.b16 %v4722, %v4719
        %v4810 = vpack.c.b16 %v4726, %v4723
        %v4811 = vpack.c.b16 %v4727, %v4724
        %v4812 = vpack.c.b16 %v4728, %v4725
        %v4813 = vpack.c.b16 %v4732, %v4729
        %v4814 = vpack.c.b16 %v4733, %v4730
        %v4815 = vpack.c.b16 %v4734, %v4731
        %v4816 = vpack.c.b16 %v4738, %v4735
        %v4817 = vpack.c.b16 %v4739, %v4736
        %v4818 = vpack.c.b16 %v4740, %v4737
        %v4819 = vpack.c.b16 %v4744, %v4741
        %v4820 = vpack.c.b16 %v4745, %v4742
        %v4821 = vpack.c.b16 %v4746, %v4743
        %v4822 = vpack.c.b16 %v4750, %v4747
        %v4823 = vpack.c.b16 %v4751, %v4748
        %v4824 = vpack.c.b16 %v4752, %v4749
        %v4825 = vpack.c.b16 %v4756, %v4753
        %v4826 = vpack.c.b16 %v4757, %v4754
        %v4827 = vpack.c.b16 %v4758, %v4755
        %v4828 = vpack.c.b16 %v4762, %v4759
        %v4829 = vpack.c.b16 %v4763, %v4760
        %v4830 = vpack.c.b16 %v4764, %v4761
        %v4831 = vpack.c.b16 %v4768, %v4765
        %v4832 = vpack.c.b16 %v4769, %v4766
        %v4833 = vpack.c.b16 %v4770, %v4767
        %v4834 = vpack.c.b16 %v4774, %v4771
        %v4835 = vpack.c.b16 %v4775, %v4772
        %v4836 = vpack.c.b16 %v4776, %v4773
        %v4837 = vpack.c.b16 %v4780, %v4777
        %v4838 = vpack.c.b16 %v4781, %v4778
        %v4839 = vpack.c.b16 %v4782, %v4779
        %v4840 = vpack.c.b16 %v4786, %v4783
        %v4841 = vpack.c.b16 %v4787, %v4784
        %v4842 = vpack.c.b16 %v4788, %v4785
        %v4843 = vpack.c.b16 %v4792, %v4789
        %v4844 = vpack.c.b16 %v4793, %v4790
        %v4845 = vpack.c.b16 %v4794, %v4791
        %v4846 = vpack.c.b16 %v4798, %v4795
        %v4847 = vpack.c.b16 %v4799, %v4796
        %v4848 = vpack.c.b16 %v4800, %v4797
        %v4917 = vunpack.c.l.b16 %v4598
        %v4918 = vunpack.c.l.b16 %v4599
        %v4919 = vunpack.c.l.b16 %v4600
        %v4920 = vunpack.c.l.b16 %v4601
        %v4921 = vunpack.c.l.b16 %v4602
        %v4922 = vunpack.c.l.b16 %v4603
        %v4923 = vunpack.c.l.b16 %v4604
        %v4924 = vunpack.c.l.b16 %v4605
        %v4925 = vunpack.c.l.b16 %v4606
        %v4926 = vunpack.c.l.b16 %v4607
        %v4927 = vunpack.c.l.b16 %v4608
        %v4928 = vunpack.c.l.b16 %v4609
        %v4929 = vunpack.c.l.b16 %v4610
        %v4930 = vunpack.c.l.b16 %v4611
        %v4931 = vunpack.c.l.b16 %v4612
        %v4932 = vunpack.c.l.b16 %v4613
        %v4933 = vunpack.c.l.b16 %v4614
        %v4934 = vunpack.c.l.b16 %v4615
        %v4935 = vunpack.c.l.b16 %v4616
        %v4936 = vunpack.c.l.b16 %v4617
        %v4937 = vunpack.c.l.b16 %v4618
        %v4938 = vunpack.c.l.b16 %v4619
        %v4939 = vunpack.c.l.b16 %v4620
        %v4940 = vunpack.c.l.b16 %v4621
        %v4941 = vunpack.c.l.b16 %v4622
        %v4942 = vunpack.c.l.b16 %v4623
        %v4943 = vunpack.c.l.b16 %v4624
        %v4944 = vunpack.c.l.b16 %v4625
        %v4945 = vunpack.c.l.b16 %v4626
        %v4946 = vunpack.c.l.b16 %v4627
        %v4947 = vunpack.c.l.b16 %v4628
        %v4948 = vunpack.c.l.b16 %v4629
        %v4949 = vunpack.c.l.b16 %v4630
        %v4950 = vunpack.c.l.b16 %v4631
        %v4951 = vunpack.c.l.b16 %v4632
        %v4952 = vunpack.c.l.b16 %v4633
        %v4953 = vpack.c.b16 %v4918, %v4917
        %v4954 = vpack.c.b16 %v4920, %v4919
        %v4955 = vpack.c.b16 %v4922, %v4921
        %v4956 = vpack.c.b16 %v4924, %v4923
        %v4957 = vpack.c.b16 %v4926, %v4925
        %v4958 = vpack.c.b16 %v4928, %v4927
        %v4959 = vpack.c.b16 %v4930, %v4929
        %v4960 = vpack.c.b16 %v4932, %v4931
        %v4961 = vpack.c.b16 %v4934, %v4933
        %v4962 = vpack.c.b16 %v4936, %v4935
        %v4963 = vpack.c.b16 %v4938, %v4937
        %v4964 = vpack.c.b16 %v4940, %v4939
        %v4965 = vpack.c.b16 %v4942, %v4941
        %v4966 = vpack.c.b16 %v4944, %v4943
        %v4967 = vpack.c.b16 %v4946, %v4945
        %v4968 = vpack.c.b16 %v4948, %v4947
        %v4969 = vpack.c.b16 %v4950, %v4949
        %v4970 = vpack.c.b16 %v4952, %v4951
        %vm4989 = vcmask 261120
        %v4991 = vsel %vm4989, %v4803, 0
        %v4994 = vsel %vm4989, %v4806, 0
        %v4997 = vsel %vm4989, %v4809, 0
        %v5000 = vsel %vm4989, %v4812, 0
        %v5003 = vsel %vm4989, %v4815, 0
        %v5006 = vsel %vm4989, %v4818, 0
        %v5009 = vsel %vm4989, %v4821, 0
        %v5012 = vsel %vm4989, %v4824, 0
        %v5015 = vsel %vm4989, %v4827, 0
        %v5018 = vsel %vm4989, %v4830, 0
        %v5021 = vsel %vm4989, %v4833, 0
        %v5024 = vsel %vm4989, %v4836, 0
        %v5027 = vsel %vm4989, %v4839, 0
        %v5030 = vsel %vm4989, %v4842, 0
        %v5033 = vsel %vm4989, %v4845, 0
        %v5036 = vsel %vm4989, %v4848, 0
        %5038 = vmatprep.subr.bf16.mxu0 0
        %5039 = vmatpush1.bf16.msra.mxu0 %v4960
        %5040 = vmatprep.subr.bf16.mxu0 0
        %5041 = vmatpush1.bf16.msra.mxu0 %v4959
        %5042 = vmatprep.subr.bf16.mxu0 0
        %5043 = vmatpush1.bf16.msra.mxu0 %v4958
        %5044 = vmatprep.subr.bf16.mxu0 0
        %5045 = vmatpush1.bf16.msra.mxu0 %v4957
        %5046 = vmatprep.subr.bf16.mxu0 0
        %5047 = vmatpush1.bf16.msra.mxu0 %v4956
        %5048 = vmatprep.subr.bf16.mxu0 0
        %5049 = vmatpush1.bf16.msra.mxu0 %v4955
        %5050 = vmatprep.subr.bf16.mxu0 0
        %5051 = vmatpush1.bf16.msra.mxu0 %v4954
        %5052 = vmatprep.subr.bf16.mxu0 0
        %5053 = vmatpush1.bf16.msra.mxu0 %v4953
        %5054 = vmatprep.subr.bf16.mxu0 0
        %5055 = vmatpush2.bf16.msra.mxu0 %v4968
        %5056 = vmatprep.subr.bf16.mxu0 0
        %5057 = vmatpush2.bf16.msra.mxu0 %v4967
        %5058 = vmatprep.subr.bf16.mxu0 0
        %5059 = vmatpush2.bf16.msra.mxu0 %v4966
        %5060 = vmatprep.subr.bf16.mxu0 0
        %5061 = vmatpush2.bf16.msra.mxu0 %v4965
        %5062 = vmatprep.subr.bf16.mxu0 0
        %5063 = vmatpush2.bf16.msra.mxu0 %v4964
        %5064 = vmatprep.subr.bf16.mxu0 0
        %5065 = vmatpush2.bf16.msra.mxu0 %v4963
        %5066 = vmatprep.subr.bf16.mxu0 0
        %5067 = vmatpush2.bf16.msra.mxu0 %v4962
        %5068 = vmatprep.subr.bf16.mxu0 0
        %5069 = vmatpush2.bf16.msra.mxu0 %v4961
        %5070 = vmatprep.mubr.bf16.mxu0 %v4802
        %5071 = vmatmul.mubr.bf16.gmra.mxu0 %v4801
        %v5072 = vpop.f32.mrf.mxu0
        %v5073 = vadd.f32 %v4639, %v5072
        %v5074 = vpop.f32.mrf.mxu0
        %v5075 = vpop.f32.mrf.mxu0
        %v5076 = vadd.f32 %v4639, %v5075
        %v5077 = vpop.f32.mrf.mxu0
        %5078 = vmatprep.mubr.bf16.mxu0 %v4805
        %5079 = vmatmul.mubr.bf16.gmra.mxu0 %v4804
        %v5080 = vpop.f32.mrf.mxu0
        %v5081 = vadd.f32 %v4639, %v5080
        %v5082 = vpop.f32.mrf.mxu0
        %v5083 = vpop.f32.mrf.mxu0
        %v5084 = vadd.f32 %v4639, %v5083
        %v5085 = vpop.f32.mrf.mxu0
        %5086 = vmatprep.mubr.bf16.mxu0 %v4808
        %5087 = vmatmul.mubr.bf16.gmra.mxu0 %v4807
        %v5088 = vpop.f32.mrf.mxu0
        %v5089 = vadd.f32 %v4639, %v5088
        %v5090 = vpop.f32.mrf.mxu0
        %v5091 = vpop.f32.mrf.mxu0
        %v5092 = vadd.f32 %v4639, %v5091
        %v5093 = vpop.f32.mrf.mxu0
        %5094 = vmatprep.mubr.bf16.mxu0 %v4811
        %5095 = vmatmul.mubr.bf16.gmra.mxu0 %v4810
        %v5096 = vpop.f32.mrf.mxu0
        %v5097 = vadd.f32 %v4639, %v5096
        %v5098 = vpop.f32.mrf.mxu0
        %v5099 = vpop.f32.mrf.mxu0
        %v5100 = vadd.f32 %v4639, %v5099
        %v5101 = vpop.f32.mrf.mxu0
        %5102 = vmatprep.mubr.bf16.mxu0 %v4814
        %5103 = vmatmul.mubr.bf16.gmra.mxu0 %v4813
        %v5104 = vpop.f32.mrf.mxu0
        %v5105 = vadd.f32 %v4639, %v5104
        %v5106 = vpop.f32.mrf.mxu0
        %v5107 = vpop.f32.mrf.mxu0
        %v5108 = vadd.f32 %v4639, %v5107
        %v5109 = vpop.f32.mrf.mxu0
        %5110 = vmatprep.mubr.bf16.mxu0 %v4817
        %5111 = vmatmul.mubr.bf16.gmra.mxu0 %v4816
        %v5112 = vpop.f32.mrf.mxu0
        %v5113 = vadd.f32 %v4639, %v5112
        %v5114 = vpop.f32.mrf.mxu0
        %v5115 = vpop.f32.mrf.mxu0
        %v5116 = vadd.f32 %v4639, %v5115
        %v5117 = vpop.f32.mrf.mxu0
        %5118 = vmatprep.mubr.bf16.mxu0 %v4820
        %5119 = vmatmul.mubr.bf16.gmra.mxu0 %v4819
        %v5120 = vpop.f32.mrf.mxu0
        %v5121 = vadd.f32 %v4639, %v5120
        %v5122 = vpop.f32.mrf.mxu0
        %v5123 = vpop.f32.mrf.mxu0
        %v5124 = vadd.f32 %v4639, %v5123
        %v5125 = vpop.f32.mrf.mxu0
        %5126 = vmatprep.mubr.bf16.mxu0 %v4823
        %5127 = vmatmul.mubr.bf16.gmra.mxu0 %v4822
        %v5128 = vpop.f32.mrf.mxu0
        %v5129 = vadd.f32 %v4639, %v5128
        %v5130 = vpop.f32.mrf.mxu0
        %v5131 = vpop.f32.mrf.mxu0
        %v5132 = vadd.f32 %v4639, %v5131
        %v5133 = vpop.f32.mrf.mxu0
        %5134 = vmatprep.mubr.bf16.mxu0 %v4826
        %5135 = vmatmul.mubr.bf16.gmra.mxu0 %v4825
        %v5136 = vpop.f32.mrf.mxu0
        %v5137 = vadd.f32 %v4639, %v5136
        %v5138 = vpop.f32.mrf.mxu0
        %v5139 = vpop.f32.mrf.mxu0
        %v5140 = vadd.f32 %v4639, %v5139
        %v5141 = vpop.f32.mrf.mxu0
        %5142 = vmatprep.mubr.bf16.mxu0 %v4829
        %5143 = vmatmul.mubr.bf16.gmra.mxu0 %v4828
        %v5144 = vpop.f32.mrf.mxu0
        %v5145 = vadd.f32 %v4639, %v5144
        %v5146 = vpop.f32.mrf.mxu0
        %v5147 = vpop.f32.mrf.mxu0
        %v5148 = vadd.f32 %v4639, %v5147
        %v5149 = vpop.f32.mrf.mxu0
        %5150 = vmatprep.mubr.bf16.mxu0 %v4832
        %5151 = vmatmul.mubr.bf16.gmra.mxu0 %v4831
        %v5152 = vpop.f32.mrf.mxu0
        %v5153 = vadd.f32 %v4639, %v5152
        %v5154 = vpop.f32.mrf.mxu0
        %v5155 = vpop.f32.mrf.mxu0
        %v5156 = vadd.f32 %v4639, %v5155
        %v5157 = vpop.f32.mrf.mxu0
        %5158 = vmatprep.mubr.bf16.mxu0 %v4835
        %5159 = vmatmul.mubr.bf16.gmra.mxu0 %v4834
        %v5160 = vpop.f32.mrf.mxu0
        %v5161 = vadd.f32 %v4639, %v5160
        %v5162 = vpop.f32.mrf.mxu0
        %v5163 = vpop.f32.mrf.mxu0
        %v5164 = vadd.f32 %v4639, %v5163
        %v5165 = vpop.f32.mrf.mxu0
        %5166 = vmatprep.mubr.bf16.mxu0 %v4838
        %5167 = vmatmul.mubr.bf16.gmra.mxu0 %v4837
        %v5168 = vpop.f32.mrf.mxu0
        %v5169 = vadd.f32 %v4639, %v5168
        %v5170 = vpop.f32.mrf.mxu0
        %v5171 = vpop.f32.mrf.mxu0
        %v5172 = vadd.f32 %v4639, %v5171
        %v5173 = vpop.f32.mrf.mxu0
        %5174 = vmatprep.mubr.bf16.mxu0 %v4841
        %5175 = vmatmul.mubr.bf16.gmra.mxu0 %v4840
        %v5176 = vpop.f32.mrf.mxu0
        %v5177 = vadd.f32 %v4639, %v5176
        %v5178 = vpop.f32.mrf.mxu0
        %v5179 = vpop.f32.mrf.mxu0
        %v5180 = vadd.f32 %v4639, %v5179
        %v5181 = vpop.f32.mrf.mxu0
        %5182 = vmatprep.mubr.bf16.mxu0 %v4844
        %5183 = vmatmul.mubr.bf16.gmra.mxu0 %v4843
        %v5184 = vpop.f32.mrf.mxu0
        %v5185 = vadd.f32 %v4639, %v5184
        %v5186 = vpop.f32.mrf.mxu0
        %v5187 = vpop.f32.mrf.mxu0
        %v5188 = vadd.f32 %v4639, %v5187
        %v5189 = vpop.f32.mrf.mxu0
        %5190 = vmatprep.mubr.bf16.mxu0 %v4847
        %5191 = vmatmul.mubr.bf16.gmra.mxu0 %v4846
        %v5192 = vpop.f32.mrf.mxu0
        %v5193 = vadd.f32 %v4639, %v5192
        %v5194 = vpop.f32.mrf.mxu0
        %v5195 = vpop.f32.mrf.mxu0
        %v5196 = vadd.f32 %v4639, %v5195
        %v5197 = vpop.f32.mrf.mxu0
        %5198 = vdwg.mxu0
        %5199 = vmatprep.subr.bf16.mxu0 0
        %5200 = vmatpush1.bf16.msra.mxu0 0
        %5201 = vmatprep.subr.bf16.mxu0 0
        %5202 = vmatpush1.bf16.msra.mxu0 0
        %5203 = vmatprep.subr.bf16.mxu0 0
        %5204 = vmatpush1.bf16.msra.mxu0 0
        %5205 = vmatprep.subr.bf16.mxu0 0
        %5206 = vmatpush1.bf16.msra.mxu0 0
        %5207 = vmatprep.subr.bf16.mxu0 0
        %5208 = vmatpush1.bf16.msra.mxu0 0
        %5209 = vmatprep.subr.bf16.mxu0 0
        %5210 = vmatpush1.bf16.msra.mxu0 0
        %5211 = vmatprep.subr.bf16.mxu0 0
        %5212 = vmatpush1.bf16.msra.mxu0 %v4970
        %5213 = vmatprep.subr.bf16.mxu0 0
        %5214 = vmatpush1.bf16.msra.mxu0 %v4969
        %5215 = vmatprep.subr.bf16.mxu0 0
        %5216 = vmatpush2.bf16.msra.mxu0 0
        %5217 = vmatprep.subr.bf16.mxu0 0
        %5218 = vmatpush2.bf16.msra.mxu0 0
        %5219 = vmatprep.subr.bf16.mxu0 0
        %5220 = vmatpush2.bf16.msra.mxu0 0
        %5221 = vmatprep.subr.bf16.mxu0 0
        %5222 = vmatpush2.bf16.msra.mxu0 0
        %5223 = vmatprep.subr.bf16.mxu0 0
        %5224 = vmatpush2.bf16.msra.mxu0 0
        %5225 = vmatprep.subr.bf16.mxu0 0
        %5226 = vmatpush2.bf16.msra.mxu0 0
        %5227 = vmatprep.subr.bf16.mxu0 0
        %5228 = vmatpush2.bf16.msra.mxu0 0
        %5229 = vmatprep.subr.bf16.mxu0 0
        %5230 = vmatpush2.bf16.msra.mxu0 0
        %5231 = vmatprep.mubr.bf16.mxu0 0
        %5232 = vmatmul.mubr.bf16.gmra.mxu0 %v4991
        %v5233 = vpop.f32.mrf.mxu0
        %v5234 = vadd.f32 %v5073, %v5233
        %v5235 = vpop.f32.mrf.mxu0
        %v5236 = vpop.f32.mrf.mxu0
        %v5237 = vadd.f32 %v5076, %v5236
        %v5238 = vpop.f32.mrf.mxu0
        %5239 = vmatprep.mubr.bf16.mxu0 0
        %5240 = vmatmul.mubr.bf16.gmra.mxu0 %v4994
        %v5241 = vpop.f32.mrf.mxu0
        %v5242 = vadd.f32 %v5081, %v5241
        %v5243 = vpop.f32.mrf.mxu0
        %v5244 = vpop.f32.mrf.mxu0
        %v5245 = vadd.f32 %v5084, %v5244
        %v5246 = vpop.f32.mrf.mxu0
        %5247 = vmatprep.mubr.bf16.mxu0 0
        %5248 = vmatmul.mubr.bf16.gmra.mxu0 %v4997
        %v5249 = vpop.f32.mrf.mxu0
        %v5250 = vadd.f32 %v5089, %v5249
        %v5251 = vpop.f32.mrf.mxu0
        %v5252 = vpop.f32.mrf.mxu0
        %v5253 = vadd.f32 %v5092, %v5252
        %v5254 = vpop.f32.mrf.mxu0
        %5255 = vmatprep.mubr.bf16.mxu0 0
        %5256 = vmatmul.mubr.bf16.gmra.mxu0 %v5000
        %v5257 = vpop.f32.mrf.mxu0
        %v5258 = vadd.f32 %v5097, %v5257
        %v5259 = vpop.f32.mrf.mxu0
        %v5260 = vpop.f32.mrf.mxu0
        %v5261 = vadd.f32 %v5100, %v5260
        %v5262 = vpop.f32.mrf.mxu0
        %5263 = vmatprep.mubr.bf16.mxu0 0
        %5264 = vmatmul.mubr.bf16.gmra.mxu0 %v5003
        %v5265 = vpop.f32.mrf.mxu0
        %v5266 = vadd.f32 %v5105, %v5265
        %v5267 = vpop.f32.mrf.mxu0
        %v5268 = vpop.f32.mrf.mxu0
        %v5269 = vadd.f32 %v5108, %v5268
        %v5270 = vpop.f32.mrf.mxu0
        %5271 = vmatprep.mubr.bf16.mxu0 0
        %5272 = vmatmul.mubr.bf16.gmra.mxu0 %v5006
        %v5273 = vpop.f32.mrf.mxu0
        %v5274 = vadd.f32 %v5113, %v5273
        %v5275 = vpop.f32.mrf.mxu0
        %v5276 = vpop.f32.mrf.mxu0
        %v5277 = vadd.f32 %v5116, %v5276
        %v5278 = vpop.f32.mrf.mxu0
        %5279 = vmatprep.mubr.bf16.mxu0 0
        %5280 = vmatmul.mubr.bf16.gmra.mxu0 %v5009
        %v5281 = vpop.f32.mrf.mxu0
        %v5282 = vadd.f32 %v5121, %v5281
        %v5283 = vpop.f32.mrf.mxu0
        %v5284 = vpop.f32.mrf.mxu0
        %v5285 = vadd.f32 %v5124, %v5284
        %v5286 = vpop.f32.mrf.mxu0
        %5287 = vmatprep.mubr.bf16.mxu0 0
        %5288 = vmatmul.mubr.bf16.gmra.mxu0 %v5012
        %v5289 = vpop.f32.mrf.mxu0
        %v5290 = vadd.f32 %v5129, %v5289
        %v5291 = vpop.f32.mrf.mxu0
        %v5292 = vpop.f32.mrf.mxu0
        %v5293 = vadd.f32 %v5132, %v5292
        %v5294 = vpop.f32.mrf.mxu0
        %5295 = vmatprep.mubr.bf16.mxu0 0
        %5296 = vmatmul.mubr.bf16.gmra.mxu0 %v5015
        %v5297 = vpop.f32.mrf.mxu0
        %v5298 = vadd.f32 %v5137, %v5297
        %v5299 = vpop.f32.mrf.mxu0
        %v5300 = vpop.f32.mrf.mxu0
        %v5301 = vadd.f32 %v5140, %v5300
        %v5302 = vpop.f32.mrf.mxu0
        %5303 = vmatprep.mubr.bf16.mxu0 0
        %5304 = vmatmul.mubr.bf16.gmra.mxu0 %v5018
        %v5305 = vpop.f32.mrf.mxu0
        %v5306 = vadd.f32 %v5145, %v5305
        %v5307 = vpop.f32.mrf.mxu0
        %v5308 = vpop.f32.mrf.mxu0
        %v5309 = vadd.f32 %v5148, %v5308
        %v5310 = vpop.f32.mrf.mxu0
        %5311 = vmatprep.mubr.bf16.mxu0 0
        %5312 = vmatmul.mubr.bf16.gmra.mxu0 %v5021
        %v5313 = vpop.f32.mrf.mxu0
        %v5314 = vadd.f32 %v5153, %v5313
        %v5315 = vpop.f32.mrf.mxu0
        %v5316 = vpop.f32.mrf.mxu0
        %v5317 = vadd.f32 %v5156, %v5316
        %v5318 = vpop.f32.mrf.mxu0
        %5319 = vmatprep.mubr.bf16.mxu0 0
        %5320 = vmatmul.mubr.bf16.gmra.mxu0 %v5024
        %v5321 = vpop.f32.mrf.mxu0
        %v5322 = vadd.f32 %v5161, %v5321
        %v5323 = vpop.f32.mrf.mxu0
        %v5324 = vpop.f32.mrf.mxu0
        %v5325 = vadd.f32 %v5164, %v5324
        %v5326 = vpop.f32.mrf.mxu0
        %5327 = vmatprep.mubr.bf16.mxu0 0
        %5328 = vmatmul.mubr.bf16.gmra.mxu0 %v5027
        %v5329 = vpop.f32.mrf.mxu0
        %v5330 = vadd.f32 %v5169, %v5329
        %v5331 = vpop.f32.mrf.mxu0
        %v5332 = vpop.f32.mrf.mxu0
        %v5333 = vadd.f32 %v5172, %v5332
        %v5334 = vpop.f32.mrf.mxu0
        %5335 = vmatprep.mubr.bf16.mxu0 0
        %5336 = vmatmul.mubr.bf16.gmra.mxu0 %v5030
        %v5337 = vpop.f32.mrf.mxu0
        %v5338 = vadd.f32 %v5177, %v5337
        %v5339 = vpop.f32.mrf.mxu0
        %v5340 = vpop.f32.mrf.mxu0
        %v5341 = vadd.f32 %v5180, %v5340
        %v5342 = vpop.f32.mrf.mxu0
        %5343 = vmatprep.mubr.bf16.mxu0 0
        %5344 = vmatmul.mubr.bf16.gmra.mxu0 %v5033
        %v5345 = vpop.f32.mrf.mxu0
        %v5346 = vadd.f32 %v5185, %v5345
        %v5347 = vpop.f32.mrf.mxu0
        %v5348 = vpop.f32.mrf.mxu0
        %v5349 = vadd.f32 %v5188, %v5348
        %v5350 = vpop.f32.mrf.mxu0
        %5351 = vmatprep.mubr.bf16.mxu0 0
        %5352 = vmatmul.mubr.bf16.gmra.mxu0 %v5036
        %v5353 = vpop.f32.mrf.mxu0
        %v5354 = vadd.f32 %v5193, %v5353
        %v5355 = vpop.f32.mrf.mxu0
        %v5356 = vpop.f32.mrf.mxu0
        %v5357 = vadd.f32 %v5196, %v5356
        %v5358 = vpop.f32.mrf.mxu0
        %5359 = vdwg.mxu0
        %v5360 = vmax.f32 %v5234, 0.0
        %v5361 = vmax.f32 %v5237, 0.0
        %v5362 = vmax.f32 %v5242, 0.0
        %v5363 = vmax.f32 %v5245, 0.0
        %v5364 = vmax.f32 %v5250, 0.0
        %v5365 = vmax.f32 %v5253, 0.0
        %v5366 = vmax.f32 %v5258, 0.0
        %v5367 = vmax.f32 %v5261, 0.0
        %v5368 = vmax.f32 %v5266, 0.0
        %v5369 = vmax.f32 %v5269, 0.0
        %v5370 = vmax.f32 %v5274, 0.0
        %v5371 = vmax.f32 %v5277, 0.0
        %v5372 = vmax.f32 %v5282, 0.0
        %v5373 = vmax.f32 %v5285, 0.0
        %v5374 = vmax.f32 %v5290, 0.0
        %v5375 = vmax.f32 %v5293, 0.0
        %v5376 = vmax.f32 %v5298, 0.0
        %v5377 = vmax.f32 %v5301, 0.0
        %v5378 = vmax.f32 %v5306, 0.0
        %v5379 = vmax.f32 %v5309, 0.0
        %v5380 = vmax.f32 %v5314, 0.0
        %v5381 = vmax.f32 %v5317, 0.0
        %v5382 = vmax.f32 %v5322, 0.0
        %v5383 = vmax.f32 %v5325, 0.0
        %v5384 = vmax.f32 %v5330, 0.0
        %v5385 = vmax.f32 %v5333, 0.0
        %v5386 = vmax.f32 %v5338, 0.0
        %v5387 = vmax.f32 %v5341, 0.0
        %v5388 = vmax.f32 %v5346, 0.0
        %v5389 = vmax.f32 %v5349, 0.0
        %v5390 = vmax.f32 %v5354, 0.0
        %v5391 = vmax.f32 %v5357, 0.0
        %v5392 = vpack.c.bf16 %v5361, %v5360
        %v5393 = vpack.c.bf16 %v5363, %v5362
        %v5394 = vpack.c.bf16 %v5365, %v5364
        %v5395 = vpack.c.bf16 %v5367, %v5366
        %v5396 = vpack.c.bf16 %v5369, %v5368
        %v5397 = vpack.c.bf16 %v5371, %v5370
        %v5398 = vpack.c.bf16 %v5373, %v5372
        %v5399 = vpack.c.bf16 %v5375, %v5374
        %v5400 = vpack.c.bf16 %v5377, %v5376
        %v5401 = vpack.c.bf16 %v5379, %v5378
        %v5402 = vpack.c.bf16 %v5381, %v5380
        %v5403 = vpack.c.bf16 %v5383, %v5382
        %v5404 = vpack.c.bf16 %v5385, %v5384
        %v5405 = vpack.c.bf16 %v5387, %v5386
        %v5406 = vpack.c.bf16 %v5389, %v5388
        %v5407 = vpack.c.bf16 %v5391, %v5390
        %v5424 = vunpack.c.l.b16 %v5392
        %v5425 = vunpack.c.h.b16 %v5392
        %v5426 = vunpack.c.l.b16 %v5393
        %v5427 = vunpack.c.h.b16 %v5393
        %v5428 = vunpack.c.l.b16 %v5394
        %v5429 = vunpack.c.h.b16 %v5394
        %v5430 = vunpack.c.l.b16 %v5395
        %v5431 = vunpack.c.h.b16 %v5395
        %v5432 = vunpack.c.l.b16 %v5396
        %v5433 = vunpack.c.h.b16 %v5396
        %v5434 = vunpack.c.l.b16 %v5397
        %v5435 = vunpack.c.h.b16 %v5397
        %v5436 = vunpack.c.l.b16 %v5398
        %v5437 = vunpack.c.h.b16 %v5398
        %v5438 = vunpack.c.l.b16 %v5399
        %v5439 = vunpack.c.h.b16 %v5399
        %v5440 = vunpack.c.l.b16 %v5400
        %v5441 = vunpack.c.h.b16 %v5400
        %v5442 = vunpack.c.l.b16 %v5401
        %v5443 = vunpack.c.h.b16 %v5401
        %v5444 = vunpack.c.l.b16 %v5402
        %v5445 = vunpack.c.h.b16 %v5402
        %v5446 = vunpack.c.l.b16 %v5403
        %v5447 = vunpack.c.h.b16 %v5403
        %v5448 = vunpack.c.l.b16 %v5404
        %v5449 = vunpack.c.h.b16 %v5404
        %v5450 = vunpack.c.l.b16 %v5405
        %v5451 = vunpack.c.h.b16 %v5405
        %v5452 = vunpack.c.l.b16 %v5406
        %v5453 = vunpack.c.h.b16 %v5406
        %v5454 = vunpack.c.l.b16 %v5407
        %v5455 = vunpack.c.h.b16 %v5407
        %v5456 = vpack.c.b16 %v5424, %v5424
        %v5457 = vpack.c.b16 %v5425, %v5425
        %v5458 = vpack.c.b16 %v5426, %v5426
        %v5459 = vpack.c.b16 %v5427, %v5427
        %v5460 = vpack.c.b16 %v5428, %v5428
        %v5461 = vpack.c.b16 %v5429, %v5429
        %v5462 = vpack.c.b16 %v5430, %v5430
        %v5463 = vpack.c.b16 %v5431, %v5431
        %v5464 = vpack.c.b16 %v5432, %v5432
        %v5465 = vpack.c.b16 %v5433, %v5433
        %v5466 = vpack.c.b16 %v5434, %v5434
        %v5467 = vpack.c.b16 %v5435, %v5435
        %v5468 = vpack.c.b16 %v5436, %v5436
        %v5469 = vpack.c.b16 %v5437, %v5437
        %v5470 = vpack.c.b16 %v5438, %v5438
        %v5471 = vpack.c.b16 %v5439, %v5439
        %v5472 = vpack.c.b16 %v5440, %v5440
        %v5473 = vpack.c.b16 %v5441, %v5441
        %v5474 = vpack.c.b16 %v5442, %v5442
        %v5475 = vpack.c.b16 %v5443, %v5443
        %v5476 = vpack.c.b16 %v5444, %v5444
        %v5477 = vpack.c.b16 %v5445, %v5445
        %v5478 = vpack.c.b16 %v5446, %v5446
        %v5479 = vpack.c.b16 %v5447, %v5447
        %v5480 = vpack.c.b16 %v5448, %v5448
        %v5481 = vpack.c.b16 %v5449, %v5449
        %v5482 = vpack.c.b16 %v5450, %v5450
        %v5483 = vpack.c.b16 %v5451, %v5451
        %v5484 = vpack.c.b16 %v5452, %v5452
        %v5485 = vpack.c.b16 %v5453, %v5453
        %v5486 = vpack.c.b16 %v5454, %v5454
        %v5487 = vpack.c.b16 %v5455, %v5455
        %5520 = vst.msk [vmem:[#allocation2 + $0xc] sm:$0xf] %vm386, %v5456
        %5521 = vst.msk [vmem:[#allocation2 + $0x10] sm:$0xf] %vm386, %v5457
        %5522 = vst.msk [vmem:[#allocation2 + $0x14] sm:$0xf] %vm386, %v5458
        %5523 = vst.msk [vmem:[#allocation2 + $0x18] sm:$0xf] %vm386, %v5459
        %5524 = vst.msk [vmem:[#allocation2 + $0x1c] sm:$0xf] %vm386, %v5460
        %5525 = vst.msk [vmem:[#allocation2 + $0x20] sm:$0xf] %vm386, %v5461
        %5526 = vst.msk [vmem:[#allocation2 + $0x24] sm:$0xf] %vm386, %v5462
        %5527 = vst.msk [vmem:[#allocation2 + $0x28] sm:$0xf] %vm386, %v5463
        %5528 = vst.msk [vmem:[#allocation2 + $0x2c] sm:$0xf] %vm386, %v5464
        %5529 = vst.msk [vmem:[#allocation2 + $0x30] sm:$0xf] %vm386, %v5465
        %5530 = vst.msk [vmem:[#allocation2 + $0x34] sm:$0xf] %vm386, %v5466
        %5531 = vst.msk [vmem:[#allocation2 + $0x38] sm:$0xf] %vm386, %v5467
        %5532 = vst.msk [vmem:[#allocation2 + $0x3c] sm:$0xf] %vm386, %v5468
        %5533 = vst.msk [vmem:[#allocation2 + $0x40] sm:$0xf] %vm386, %v5469
        %5534 = vst.msk [vmem:[#allocation2 + $0x44] sm:$0xf] %vm386, %v5470
        %5535 = vst.msk [vmem:[#allocation2 + $0x48] sm:$0xf] %vm386, %v5471
        %5536 = vst.msk [vmem:[#allocation2 + $0x4c] sm:$0xf] %vm386, %v5472
        %5537 = vst.msk [vmem:[#allocation2 + $0x50] sm:$0xf] %vm386, %v5473
        %5538 = vst.msk [vmem:[#allocation2 + $0x54] sm:$0xf] %vm386, %v5474
        %5539 = vst.msk [vmem:[#allocation2 + $0x58] sm:$0xf] %vm386, %v5475
        %5540 = vst.msk [vmem:[#allocation2 + $0x5c] sm:$0xf] %vm386, %v5476
        %5541 = vst.msk [vmem:[#allocation2 + $0x60] sm:$0xf] %vm386, %v5477
        %5542 = vst.msk [vmem:[#allocation2 + $0x64] sm:$0xf] %vm386, %v5478
        %5543 = vst.msk [vmem:[#allocation2 + $0x68] sm:$0xf] %vm386, %v5479
        %5544 = vst.msk [vmem:[#allocation2 + $0x6c] sm:$0xf] %vm386, %v5480
        %5545 = vst.msk [vmem:[#allocation2 + $0x70] sm:$0xf] %vm386, %v5481
        %5546 = vst.msk [vmem:[#allocation2 + $0x74] sm:$0xf] %vm386, %v5482
        %5547 = vst.msk [vmem:[#allocation2 + $0x78] sm:$0xf] %vm386, %v5483
        %5548 = vst.msk [vmem:[#allocation2 + $0x7c] sm:$0xf] %vm386, %v5484
        %5549 = vst.msk [vmem:[#allocation2 + $0x80] sm:$0xf] %vm386, %v5485
        %5550 = vst.msk [vmem:[#allocation2 + $0x84] sm:$0xf] %vm386, %v5486
        %5551 = vst.msk [vmem:[#allocation2 + $0x88] sm:$0xf] %vm386, %v5487
        %v5552 = vld [vmem:[#allocation2] sm:$0x8]
        %v5553 = vld [vmem:[#allocation2 + $0x4] sm:$0xf]
        %v5554 = vld [vmem:[#allocation2 + $0x8] sm:$0xf]
        %v5555 = vld [vmem:[#allocation2 + $0xc] sm:$0xf]
        %v5556 = vld [vmem:[#allocation2 + $0x10] sm:$0xf]
        %v5557 = vld [vmem:[#allocation2 + $0x14] sm:$0xf]
        %v5558 = vld [vmem:[#allocation2 + $0x18] sm:$0xf]
        %v5559 = vld [vmem:[#allocation2 + $0x1c] sm:$0xf]
        %v5560 = vld [vmem:[#allocation2 + $0x20] sm:$0xf]
        %v5561 = vld [vmem:[#allocation2 + $0x24] sm:$0xf]
        %v5562 = vld [vmem:[#allocation2 + $0x28] sm:$0xf]
        %v5563 = vld [vmem:[#allocation2 + $0x2c] sm:$0xf]
        %v5564 = vld [vmem:[#allocation2 + $0x30] sm:$0xf]
        %v5565 = vld [vmem:[#allocation2 + $0x34] sm:$0xf]
        %v5566 = vld [vmem:[#allocation2 + $0x38] sm:$0xf]
        %v5567 = vld [vmem:[#allocation2 + $0x3c] sm:$0xf]
        %v5568 = vld [vmem:[#allocation2 + $0x40] sm:$0xf]
        %v5569 = vld [vmem:[#allocation2 + $0x44] sm:$0xf]
        %v5570 = vld [vmem:[#allocation2 + $0x48] sm:$0xf]
        %v5571 = vld [vmem:[#allocation2 + $0x4c] sm:$0xf]
        %v5572 = vld [vmem:[#allocation2 + $0x50] sm:$0xf]
        %v5573 = vld [vmem:[#allocation2 + $0x54] sm:$0xf]
        %v5574 = vld [vmem:[#allocation2 + $0x58] sm:$0xf]
        %v5575 = vld [vmem:[#allocation2 + $0x5c] sm:$0xf]
        %v5576 = vld [vmem:[#allocation2 + $0x60] sm:$0xf]
        %v5577 = vld [vmem:[#allocation2 + $0x64] sm:$0xf]
        %v5578 = vld [vmem:[#allocation2 + $0x68] sm:$0xf]
        %v5579 = vld [vmem:[#allocation2 + $0x6c] sm:$0xf]
        %v5580 = vld [vmem:[#allocation2 + $0x70] sm:$0xf]
        %v5581 = vld [vmem:[#allocation2 + $0x74] sm:$0xf]
        %v5582 = vld [vmem:[#allocation2 + $0x78] sm:$0xf]
        %v5583 = vld [vmem:[#allocation2 + $0x7c] sm:$0xf]
        %v5584 = vld [vmem:[#allocation2 + $0x80] sm:$0xf]
        %v5585 = vmul.bf16 %v5552, %v560
        %v5586 = vmul.bf16 %v5553, %v570
        %v5587 = vmul.bf16 %v5554, %v580
        %v5588 = vmul.bf16 %v5555, %v590
        %v5589 = vmul.bf16 %v5556, %v600
        %v5590 = vmul.bf16 %v5557, %v610
        %v5591 = vmul.bf16 %v5558, %v620
        %v5592 = vmul.bf16 %v5559, %v630
        %v5593 = vmul.bf16 %v5560, %v640
        %v5594 = vmul.bf16 %v5561, %v650
        %v5595 = vmul.bf16 %v5562, %v660
        %v5596 = vmul.bf16 %v5563, %v670
        %v5597 = vmul.bf16 %v5564, %v680
        %v5598 = vmul.bf16 %v5565, %v690
        %v5599 = vmul.bf16 %v5566, %v700
        %v5600 = vmul.bf16 %v5567, %v710
        %v5601 = vmul.bf16 %v5568, %v720
        %v5602 = vmul.bf16 %v5569, %v730
        %v5603 = vmul.bf16 %v5570, %v740
        %v5604 = vmul.bf16 %v5571, %v750
        %v5605 = vmul.bf16 %v5572, %v760
        %v5606 = vmul.bf16 %v5573, %v770
        %v5607 = vmul.bf16 %v5574, %v780
        %v5608 = vmul.bf16 %v5575, %v790
        %v5609 = vmul.bf16 %v5576, %v800
        %v5610 = vmul.bf16 %v5577, %v810
        %v5611 = vmul.bf16 %v5578, %v820
        %v5612 = vmul.bf16 %v5579, %v830
        %v5613 = vmul.bf16 %v5580, %v840
        %v5614 = vmul.bf16 %v5581, %v850
        %v5615 = vmul.bf16 %v5582, %v860
        %v5616 = vmul.bf16 %v5583, %v870
        %v5617 = vmul.bf16 %v5584, %v875
        %v5619 = vshrl.u32 %v5585, 16
        %v5621 = vrot.slane %v5619, 7
        %v5622 = vrot.slane %v5621, 4
        %v5624 = vshrl.u32 %v5586, 16
        %v5626 = vrot.slane %v5624, 7
        %v5627 = vshll.u32 %v5586, 16
        %v5629 = vor.u32 %v5626, %v5627
        %v5630 = vsel %vm944, %v5622, %v5629
        %v5631 = vrot.slane %v5626, 4
        %v5633 = vshrl.u32 %v5587, 16
        %v5635 = vrot.slane %v5633, 7
        %v5636 = vshll.u32 %v5587, 16
        %v5638 = vor.u32 %v5635, %v5636
        %v5639 = vsel %vm944, %v5631, %v5638
        %v5640 = vrot.slane %v5635, 4
        %v5642 = vshrl.u32 %v5588, 16
        %v5644 = vrot.slane %v5642, 7
        %v5645 = vshll.u32 %v5588, 16
        %v5647 = vor.u32 %v5644, %v5645
        %v5648 = vsel %vm944, %v5640, %v5647
        %v5649 = vrot.slane %v5644, 4
        %v5651 = vshrl.u32 %v5589, 16
        %v5653 = vrot.slane %v5651, 7
        %v5654 = vshll.u32 %v5589, 16
        %v5656 = vor.u32 %v5653, %v5654
        %v5657 = vsel %vm944, %v5649, %v5656
        %v5658 = vrot.slane %v5653, 4
        %v5660 = vshrl.u32 %v5590, 16
        %v5662 = vrot.slane %v5660, 7
        %v5663 = vshll.u32 %v5590, 16
        %v5665 = vor.u32 %v5662, %v5663
        %v5666 = vsel %vm944, %v5658, %v5665
        %v5667 = vrot.slane %v5662, 4
        %v5669 = vshrl.u32 %v5591, 16
        %v5671 = vrot.slane %v5669, 7
        %v5672 = vshll.u32 %v5591, 16
        %v5674 = vor.u32 %v5671, %v5672
        %v5675 = vsel %vm944, %v5667, %v5674
        %v5676 = vrot.slane %v5671, 4
        %v5678 = vshrl.u32 %v5592, 16
        %v5680 = vrot.slane %v5678, 7
        %v5681 = vshll.u32 %v5592, 16
        %v5683 = vor.u32 %v5680, %v5681
        %v5684 = vsel %vm944, %v5676, %v5683
        %v5685 = vrot.slane %v5680, 4
        %v5687 = vshrl.u32 %v5593, 16
        %v5689 = vrot.slane %v5687, 7
        %v5690 = vshll.u32 %v5593, 16
        %v5692 = vor.u32 %v5689, %v5690
        %v5693 = vsel %vm944, %v5685, %v5692
        %v5694 = vrot.slane %v5689, 4
        %v5696 = vshrl.u32 %v5594, 16
        %v5698 = vrot.slane %v5696, 7
        %v5699 = vshll.u32 %v5594, 16
        %v5701 = vor.u32 %v5698, %v5699
        %v5702 = vsel %vm944, %v5694, %v5701
        %v5703 = vrot.slane %v5698, 4
        %v5705 = vshrl.u32 %v5595, 16
        %v5707 = vrot.slane %v5705, 7
        %v5708 = vshll.u32 %v5595, 16
        %v5710 = vor.u32 %v5707, %v5708
        %v5711 = vsel %vm944, %v5703, %v5710
        %v5712 = vrot.slane %v5707, 4
        %v5714 = vshrl.u32 %v5596, 16
        %v5716 = vrot.slane %v5714, 7
        %v5717 = vshll.u32 %v5596, 16
        %v5719 = vor.u32 %v5716, %v5717
        %v5720 = vsel %vm944, %v5712, %v5719
        %v5721 = vrot.slane %v5716, 4
        %v5723 = vshrl.u32 %v5597, 16
        %v5725 = vrot.slane %v5723, 7
        %v5726 = vshll.u32 %v5597, 16
        %v5728 = vor.u32 %v5725, %v5726
        %v5729 = vsel %vm944, %v5721, %v5728
        %v5730 = vrot.slane %v5725, 4
        %v5732 = vshrl.u32 %v5598, 16
        %v5734 = vrot.slane %v5732, 7
        %v5735 = vshll.u32 %v5598, 16
        %v5737 = vor.u32 %v5734, %v5735
        %v5738 = vsel %vm944, %v5730, %v5737
        %v5739 = vrot.slane %v5734, 4
        %v5741 = vshrl.u32 %v5599, 16
        %v5743 = vrot.slane %v5741, 7
        %v5744 = vshll.u32 %v5599, 16
        %v5746 = vor.u32 %v5743, %v5744
        %v5747 = vsel %vm944, %v5739, %v5746
        %v5748 = vrot.slane %v5743, 4
        %v5750 = vshrl.u32 %v5600, 16
        %v5752 = vrot.slane %v5750, 7
        %v5753 = vshll.u32 %v5600, 16
        %v5755 = vor.u32 %v5752, %v5753
        %v5756 = vsel %vm944, %v5748, %v5755
        %v5757 = vrot.slane %v5752, 4
        %v5759 = vshrl.u32 %v5601, 16
        %v5761 = vrot.slane %v5759, 7
        %v5762 = vshll.u32 %v5601, 16
        %v5764 = vor.u32 %v5761, %v5762
        %v5765 = vsel %vm944, %v5757, %v5764
        %v5766 = vrot.slane %v5761, 4
        %v5768 = vshrl.u32 %v5602, 16
        %v5770 = vrot.slane %v5768, 7
        %v5771 = vshll.u32 %v5602, 16
        %v5773 = vor.u32 %v5770, %v5771
        %v5774 = vsel %vm944, %v5766, %v5773
        %v5775 = vrot.slane %v5770, 4
        %v5777 = vshrl.u32 %v5603, 16
        %v5779 = vrot.slane %v5777, 7
        %v5780 = vshll.u32 %v5603, 16
        %v5782 = vor.u32 %v5779, %v5780
        %v5783 = vsel %vm944, %v5775, %v5782
        %v5784 = vrot.slane %v5779, 4
        %v5786 = vshrl.u32 %v5604, 16
        %v5788 = vrot.slane %v5786, 7
        %v5789 = vshll.u32 %v5604, 16
        %v5791 = vor.u32 %v5788, %v5789
        %v5792 = vsel %vm944, %v5784, %v5791
        %v5793 = vrot.slane %v5788, 4
        %v5795 = vshrl.u32 %v5605, 16
        %v5797 = vrot.slane %v5795, 7
        %v5798 = vshll.u32 %v5605, 16
        %v5800 = vor.u32 %v5797, %v5798
        %v5801 = vsel %vm944, %v5793, %v5800
        %v5802 = vrot.slane %v5797, 4
        %v5804 = vshrl.u32 %v5606, 16
        %v5806 = vrot.slane %v5804, 7
        %v5807 = vshll.u32 %v5606, 16
        %v5809 = vor.u32 %v5806, %v5807
        %v5810 = vsel %vm944, %v5802, %v5809
        %v5811 = vrot.slane %v5806, 4
        %v5813 = vshrl.u32 %v5607, 16
        %v5815 = vrot.slane %v5813, 7
        %v5816 = vshll.u32 %v5607, 16
        %v5818 = vor.u32 %v5815, %v5816
        %v5819 = vsel %vm944, %v5811, %v5818
        %v5820 = vrot.slane %v5815, 4
        %v5822 = vshrl.u32 %v5608, 16
        %v5824 = vrot.slane %v5822, 7
        %v5825 = vshll.u32 %v5608, 16
        %v5827 = vor.u32 %v5824, %v5825
        %v5828 = vsel %vm944, %v5820, %v5827
        %v5829 = vrot.slane %v5824, 4
        %v5831 = vshrl.u32 %v5609, 16
        %v5833 = vrot.slane %v5831, 7
        %v5834 = vshll.u32 %v5609, 16
        %v5836 = vor.u32 %v5833, %v5834
        %v5837 = vsel %vm944, %v5829, %v5836
        %v5838 = vrot.slane %v5833, 4
        %v5840 = vshrl.u32 %v5610, 16
        %v5842 = vrot.slane %v5840, 7
        %v5843 = vshll.u32 %v5610, 16
        %v5845 = vor.u32 %v5842, %v5843
        %v5846 = vsel %vm944, %v5838, %v5845
        %v5847 = vrot.slane %v5842, 4
        %v5849 = vshrl.u32 %v5611, 16
        %v5851 = vrot.slane %v5849, 7
        %v5852 = vshll.u32 %v5611, 16
        %v5854 = vor.u32 %v5851, %v5852
        %v5855 = vsel %vm944, %v5847, %v5854
        %v5856 = vrot.slane %v5851, 4
        %v5858 = vshrl.u32 %v5612, 16
        %v5860 = vrot.slane %v5858, 7
        %v5861 = vshll.u32 %v5612, 16
        %v5863 = vor.u32 %v5860, %v5861
        %v5864 = vsel %vm944, %v5856, %v5863
        %v5865 = vrot.slane %v5860, 4
        %v5867 = vshrl.u32 %v5613, 16
        %v5869 = vrot.slane %v5867, 7
        %v5870 = vshll.u32 %v5613, 16
        %v5872 = vor.u32 %v5869, %v5870
        %v5873 = vsel %vm944, %v5865, %v5872
        %v5874 = vrot.slane %v5869, 4
        %v5876 = vshrl.u32 %v5614, 16
        %v5878 = vrot.slane %v5876, 7
        %v5879 = vshll.u32 %v5614, 16
        %v5881 = vor.u32 %v5878, %v5879
        %v5882 = vsel %vm944, %v5874, %v5881
        %v5883 = vrot.slane %v5878, 4
        %v5885 = vshrl.u32 %v5615, 16
        %v5887 = vrot.slane %v5885, 7
        %v5888 = vshll.u32 %v5615, 16
        %v5890 = vor.u32 %v5887, %v5888
        %v5891 = vsel %vm944, %v5883, %v5890
        %v5892 = vrot.slane %v5887, 4
        %v5894 = vshrl.u32 %v5616, 16
        %v5896 = vrot.slane %v5894, 7
        %v5897 = vshll.u32 %v5616, 16
        %v5899 = vor.u32 %v5896, %v5897
        %v5900 = vsel %vm944, %v5892, %v5899
        %v5901 = vrot.slane %v5896, 4
        %v5903 = vshrl.u32 %v5617, 16
        %v5905 = vrot.slane %v5903, 7
        %v5906 = vshll.u32 %v5617, 16
        %v5908 = vor.u32 %v5905, %v5906
        %v5909 = vsel %vm944, %v5901, %v5908
        %5942 = vst.msk [vmem:[#allocation3] sm:$0xf] %vm386, %v5630
        %5943 = vst.msk [vmem:[#allocation3 + $0xc] sm:$0xf] %vm386, %v5639
        %5944 = vst.msk [vmem:[#allocation3 + $0x18] sm:$0xf] %vm386, %v5648
        %5945 = vst.msk [vmem:[#allocation3 + $0x24] sm:$0xf] %vm386, %v5657
        %5946 = vst.msk [vmem:[#allocation3 + $0x30] sm:$0xf] %vm386, %v5666
        %5947 = vst.msk [vmem:[#allocation3 + $0x3c] sm:$0xf] %vm386, %v5675
        %5948 = vst.msk [vmem:[#allocation3 + $0x48] sm:$0xf] %vm386, %v5684
        %5949 = vst.msk [vmem:[#allocation3 + $0x54] sm:$0xf] %vm386, %v5693
        %5950 = vst.msk [vmem:[#allocation3 + $0x60] sm:$0xf] %vm386, %v5702
        %5951 = vst.msk [vmem:[#allocation3 + $0x6c] sm:$0xf] %vm386, %v5711
        %5952 = vst.msk [vmem:[#allocation3 + $0x78] sm:$0xf] %vm386, %v5720
        %5953 = vst.msk [vmem:[#allocation3 + $0x84] sm:$0xf] %vm386, %v5729
        %5954 = vst.msk [vmem:[#allocation3 + $0x90] sm:$0xf] %vm386, %v5738
        %5955 = vst.msk [vmem:[#allocation3 + $0x9c] sm:$0xf] %vm386, %v5747
        %5956 = vst.msk [vmem:[#allocation3 + $0xa8] sm:$0xf] %vm386, %v5756
        %5957 = vst.msk [vmem:[#allocation3 + $0xb4] sm:$0xf] %vm386, %v5765
        %5958 = vst.msk [vmem:[#allocation3 + $0xc0] sm:$0xf] %vm386, %v5774
        %5959 = vst.msk [vmem:[#allocation3 + $0xcc] sm:$0xf] %vm386, %v5783
        %5960 = vst.msk [vmem:[#allocation3 + $0xd8] sm:$0xf] %vm386, %v5792
        %5961 = vst.msk [vmem:[#allocation3 + $0xe4] sm:$0xf] %vm386, %v5801
        %5962 = vst.msk [vmem:[#allocation3 + $0xf0] sm:$0xf] %vm386, %v5810
        %5963 = vst.msk [vmem:[#allocation3 + $0xfc] sm:$0xf] %vm386, %v5819
        %5964 = vst.msk [vmem:[#allocation3 + $0x108] sm:$0xf] %vm386, %v5828
        %5965 = vst.msk [vmem:[#allocation3 + $0x114] sm:$0xf] %vm386, %v5837
        %5966 = vst.msk [vmem:[#allocation3 + $0x120] sm:$0xf] %vm386, %v5846
        %5967 = vst.msk [vmem:[#allocation3 + $0x12c] sm:$0xf] %vm386, %v5855
        %5968 = vst.msk [vmem:[#allocation3 + $0x138] sm:$0xf] %vm386, %v5864
        %5969 = vst.msk [vmem:[#allocation3 + $0x144] sm:$0xf] %vm386, %v5873
        %5970 = vst.msk [vmem:[#allocation3 + $0x150] sm:$0xf] %vm386, %v5882
        %5971 = vst.msk [vmem:[#allocation3 + $0x15c] sm:$0xf] %vm386, %v5891
        %5972 = vst.msk [vmem:[#allocation3 + $0x168] sm:$0xf] %vm386, %v5900
        %5973 = vst.msk [vmem:[#allocation3 + $0x174] sm:$0xf] %vm386, %v5909
        %v5974 = vld [vmem:[#allocation2 + $0x4] sm:$0xf]
        %v5975 = vld [vmem:[#allocation2 + $0x8] sm:$0xf]
        %v5976 = vld [vmem:[#allocation2 + $0xc] sm:$0xf]
        %v5977 = vld [vmem:[#allocation2 + $0x10] sm:$0xf]
        %v5978 = vld [vmem:[#allocation2 + $0x14] sm:$0xf]
        %v5979 = vld [vmem:[#allocation2 + $0x18] sm:$0xf]
        %v5980 = vld [vmem:[#allocation2 + $0x1c] sm:$0xf]
        %v5981 = vld [vmem:[#allocation2 + $0x20] sm:$0xf]
        %v5982 = vld [vmem:[#allocation2 + $0x24] sm:$0xf]
        %v5983 = vld [vmem:[#allocation2 + $0x28] sm:$0xf]
        %v5984 = vld [vmem:[#allocation2 + $0x2c] sm:$0xf]
        %v5985 = vld [vmem:[#allocation2 + $0x30] sm:$0xf]
        %v5986 = vld [vmem:[#allocation2 + $0x34] sm:$0xf]
        %v5987 = vld [vmem:[#allocation2 + $0x38] sm:$0xf]
        %v5988 = vld [vmem:[#allocation2 + $0x3c] sm:$0xf]
        %v5989 = vld [vmem:[#allocation2 + $0x40] sm:$0xf]
        %v5990 = vld [vmem:[#allocation2 + $0x44] sm:$0xf]
        %v5991 = vld [vmem:[#allocation2 + $0x48] sm:$0xf]
        %v5992 = vld [vmem:[#allocation2 + $0x4c] sm:$0xf]
        %v5993 = vld [vmem:[#allocation2 + $0x50] sm:$0xf]
        %v5994 = vld [vmem:[#allocation2 + $0x54] sm:$0xf]
        %v5995 = vld [vmem:[#allocation2 + $0x58] sm:$0xf]
        %v5996 = vld [vmem:[#allocation2 + $0x5c] sm:$0xf]
        %v5997 = vld [vmem:[#allocation2 + $0x60] sm:$0xf]
        %v5998 = vld [vmem:[#allocation2 + $0x64] sm:$0xf]
        %v5999 = vld [vmem:[#allocation2 + $0x68] sm:$0xf]
        %v6000 = vld [vmem:[#allocation2 + $0x6c] sm:$0xf]
        %v6001 = vld [vmem:[#allocation2 + $0x70] sm:$0xf]
        %v6002 = vld [vmem:[#allocation2 + $0x74] sm:$0xf]
        %v6003 = vld [vmem:[#allocation2 + $0x78] sm:$0xf]
        %v6004 = vld [vmem:[#allocation2 + $0x7c] sm:$0xf]
        %v6005 = vld [vmem:[#allocation2 + $0x80] sm:$0xf]
        %6038 = vrot.lane.b32.xlu0 %v5974, 32
        %v6039 = vpop.permute.xlu0 %6038
        %6040 = vrot.lane.b32.xlu0 %v5975, 32
        %v6041 = vpop.permute.xlu0 %6040
        %6042 = vrot.lane.b32.xlu0 %v5976, 32
        %v6043 = vpop.permute.xlu0 %6042
        %6044 = vrot.lane.b32.xlu0 %v5977, 32
        %v6045 = vpop.permute.xlu0 %6044
        %6046 = vrot.lane.b32.xlu0 %v5978, 32
        %v6047 = vpop.permute.xlu0 %6046
        %6048 = vrot.lane.b32.xlu0 %v5979, 32
        %v6049 = vpop.permute.xlu0 %6048
        %6050 = vrot.lane.b32.xlu0 %v5980, 32
        %v6051 = vpop.permute.xlu0 %6050
        %6052 = vrot.lane.b32.xlu0 %v5981, 32
        %v6053 = vpop.permute.xlu0 %6052
        %6054 = vrot.lane.b32.xlu0 %v5982, 32
        %v6055 = vpop.permute.xlu0 %6054
        %6056 = vrot.lane.b32.xlu0 %v5983, 32
        %v6057 = vpop.permute.xlu0 %6056
        %6058 = vrot.lane.b32.xlu0 %v5984, 32
        %v6059 = vpop.permute.xlu0 %6058
        %6060 = vrot.lane.b32.xlu0 %v5985, 32
        %v6061 = vpop.permute.xlu0 %6060
        %6062 = vrot.lane.b32.xlu0 %v5986, 32
        %v6063 = vpop.permute.xlu0 %6062
        %6064 = vrot.lane.b32.xlu0 %v5987, 32
        %v6065 = vpop.permute.xlu0 %6064
        %6066 = vrot.lane.b32.xlu0 %v5988, 32
        %v6067 = vpop.permute.xlu0 %6066
        %6068 = vrot.lane.b32.xlu0 %v5989, 32
        %v6069 = vpop.permute.xlu0 %6068
        %6070 = vrot.lane.b32.xlu0 %v5990, 32
        %v6071 = vpop.permute.xlu0 %6070
        %6072 = vrot.lane.b32.xlu0 %v5991, 32
        %v6073 = vpop.permute.xlu0 %6072
        %6074 = vrot.lane.b32.xlu0 %v5992, 32
        %v6075 = vpop.permute.xlu0 %6074
        %6076 = vrot.lane.b32.xlu0 %v5993, 32
        %v6077 = vpop.permute.xlu0 %6076
        %6078 = vrot.lane.b32.xlu0 %v5994, 32
        %v6079 = vpop.permute.xlu0 %6078
        %6080 = vrot.lane.b32.xlu0 %v5995, 32
        %v6081 = vpop.permute.xlu0 %6080
        %6082 = vrot.lane.b32.xlu0 %v5996, 32
        %v6083 = vpop.permute.xlu0 %6082
        %6084 = vrot.lane.b32.xlu0 %v5997, 32
        %v6085 = vpop.permute.xlu0 %6084
        %6086 = vrot.lane.b32.xlu0 %v5998, 32
        %v6087 = vpop.permute.xlu0 %6086
        %6088 = vrot.lane.b32.xlu0 %v5999, 32
        %v6089 = vpop.permute.xlu0 %6088
        %6090 = vrot.lane.b32.xlu0 %v6000, 32
        %v6091 = vpop.permute.xlu0 %6090
        %6092 = vrot.lane.b32.xlu0 %v6001, 32
        %v6093 = vpop.permute.xlu0 %6092
        %6094 = vrot.lane.b32.xlu0 %v6002, 32
        %v6095 = vpop.permute.xlu0 %6094
        %6096 = vrot.lane.b32.xlu0 %v6003, 32
        %v6097 = vpop.permute.xlu0 %6096
        %6098 = vrot.lane.b32.xlu0 %v6004, 32
        %v6099 = vpop.permute.xlu0 %6098
        %6100 = vrot.lane.b32.xlu0 %v6005, 32
        %v6101 = vpop.permute.xlu0 %6100
        %6134 = vst.msk [vmem:[#allocation3] sm:$0xf] %vm1461, %v6039
        %6135 = vst.msk [vmem:[#allocation3 + $0xc] sm:$0xf] %vm1461, %v6041
        %6136 = vst.msk [vmem:[#allocation3 + $0x18] sm:$0xf] %vm1461, %v6043
        %6137 = vst.msk [vmem:[#allocation3 + $0x24] sm:$0xf] %vm1461, %v6045
        %6138 = vst.msk [vmem:[#allocation3 + $0x30] sm:$0xf] %vm1461, %v6047
        %6139 = vst.msk [vmem:[#allocation3 + $0x3c] sm:$0xf] %vm1461, %v6049
        %6140 = vst.msk [vmem:[#allocation3 + $0x48] sm:$0xf] %vm1461, %v6051
        %6141 = vst.msk [vmem:[#allocation3 + $0x54] sm:$0xf] %vm1461, %v6053
        %6142 = vst.msk [vmem:[#allocation3 + $0x60] sm:$0xf] %vm1461, %v6055
        %6143 = vst.msk [vmem:[#allocation3 + $0x6c] sm:$0xf] %vm1461, %v6057
        %6144 = vst.msk [vmem:[#allocation3 + $0x78] sm:$0xf] %vm1461, %v6059
        %6145 = vst.msk [vmem:[#allocation3 + $0x84] sm:$0xf] %vm1461, %v6061
        %6146 = vst.msk [vmem:[#allocation3 + $0x90] sm:$0xf] %vm1461, %v6063
        %6147 = vst.msk [vmem:[#allocation3 + $0x9c] sm:$0xf] %vm1461, %v6065
        %6148 = vst.msk [vmem:[#allocation3 + $0xa8] sm:$0xf] %vm1461, %v6067
        %6149 = vst.msk [vmem:[#allocation3 + $0xb4] sm:$0xf] %vm1461, %v6069
        %6150 = vst.msk [vmem:[#allocation3 + $0xc0] sm:$0xf] %vm1461, %v6071
        %6151 = vst.msk [vmem:[#allocation3 + $0xcc] sm:$0xf] %vm1461, %v6073
        %6152 = vst.msk [vmem:[#allocation3 + $0xd8] sm:$0xf] %vm1461, %v6075
        %6153 = vst.msk [vmem:[#allocation3 + $0xe4] sm:$0xf] %vm1461, %v6077
        %6154 = vst.msk [vmem:[#allocation3 + $0xf0] sm:$0xf] %vm1461, %v6079
        %6155 = vst.msk [vmem:[#allocation3 + $0xfc] sm:$0xf] %vm1461, %v6081
        %6156 = vst.msk [vmem:[#allocation3 + $0x108] sm:$0xf] %vm1461, %v6083
        %6157 = vst.msk [vmem:[#allocation3 + $0x114] sm:$0xf] %vm1461, %v6085
        %6158 = vst.msk [vmem:[#allocation3 + $0x120] sm:$0xf] %vm1461, %v6087
        %6159 = vst.msk [vmem:[#allocation3 + $0x12c] sm:$0xf] %vm1461, %v6089
        %6160 = vst.msk [vmem:[#allocation3 + $0x138] sm:$0xf] %vm1461, %v6091
        %6161 = vst.msk [vmem:[#allocation3 + $0x144] sm:$0xf] %vm1461, %v6093
        %6162 = vst.msk [vmem:[#allocation3 + $0x150] sm:$0xf] %vm1461, %v6095
        %6163 = vst.msk [vmem:[#allocation3 + $0x15c] sm:$0xf] %vm1461, %v6097
        %6164 = vst.msk [vmem:[#allocation3 + $0x168] sm:$0xf] %vm1461, %v6099
        %6165 = vst.msk [vmem:[#allocation3 + $0x174] sm:$0xf] %vm1461, %v6101
        %v6166 = vld [vmem:[#allocation2 + $0x4] sm:$0xf]
        %v6167 = vld [vmem:[#allocation2 + $0x8] sm:$0xf]
        %v6168 = vld [vmem:[#allocation2 + $0xc] sm:$0xf]
        %v6169 = vld [vmem:[#allocation2 + $0x10] sm:$0xf]
        %v6170 = vld [vmem:[#allocation2 + $0x14] sm:$0xf]
        %v6171 = vld [vmem:[#allocation2 + $0x18] sm:$0xf]
        %v6172 = vld [vmem:[#allocation2 + $0x1c] sm:$0xf]
        %v6173 = vld [vmem:[#allocation2 + $0x20] sm:$0xf]
        %v6174 = vld [vmem:[#allocation2 + $0x24] sm:$0xf]
        %v6175 = vld [vmem:[#allocation2 + $0x28] sm:$0xf]
        %v6176 = vld [vmem:[#allocation2 + $0x2c] sm:$0xf]
        %v6177 = vld [vmem:[#allocation2 + $0x30] sm:$0xf]
        %v6178 = vld [vmem:[#allocation2 + $0x34] sm:$0xf]
        %v6179 = vld [vmem:[#allocation2 + $0x38] sm:$0xf]
        %v6180 = vld [vmem:[#allocation2 + $0x3c] sm:$0xf]
        %v6181 = vld [vmem:[#allocation2 + $0x40] sm:$0xf]
        %v6182 = vld [vmem:[#allocation2 + $0x44] sm:$0xf]
        %v6183 = vld [vmem:[#allocation2 + $0x48] sm:$0xf]
        %v6184 = vld [vmem:[#allocation2 + $0x4c] sm:$0xf]
        %v6185 = vld [vmem:[#allocation2 + $0x50] sm:$0xf]
        %v6186 = vld [vmem:[#allocation2 + $0x54] sm:$0xf]
        %v6187 = vld [vmem:[#allocation2 + $0x58] sm:$0xf]
        %v6188 = vld [vmem:[#allocation2 + $0x5c] sm:$0xf]
        %v6189 = vld [vmem:[#allocation2 + $0x60] sm:$0xf]
        %v6190 = vld [vmem:[#allocation2 + $0x64] sm:$0xf]
        %v6191 = vld [vmem:[#allocation2 + $0x68] sm:$0xf]
        %v6192 = vld [vmem:[#allocation2 + $0x6c] sm:$0xf]
        %v6193 = vld [vmem:[#allocation2 + $0x70] sm:$0xf]
        %v6194 = vld [vmem:[#allocation2 + $0x74] sm:$0xf]
        %v6195 = vld [vmem:[#allocation2 + $0x78] sm:$0xf]
        %v6196 = vld [vmem:[#allocation2 + $0x7c] sm:$0xf]
        %v6197 = vld [vmem:[#allocation2 + $0x80] sm:$0xf]
        %v6198 = vld [vmem:[#allocation2 + $0x84] sm:$0x1]
        %v6199 = vmul.bf16 %v6166, %v1533
        %v6200 = vmul.bf16 %v6167, %v1542
        %v6201 = vmul.bf16 %v6168, %v1551
        %v6202 = vmul.bf16 %v6169, %v1560
        %v6203 = vmul.bf16 %v6170, %v1569
        %v6204 = vmul.bf16 %v6171, %v1578
        %v6205 = vmul.bf16 %v6172, %v1587
        %v6206 = vmul.bf16 %v6173, %v1596
        %v6207 = vmul.bf16 %v6174, %v1605
        %v6208 = vmul.bf16 %v6175, %v1614
        %v6209 = vmul.bf16 %v6176, %v1623
        %v6210 = vmul.bf16 %v6177, %v1632
        %v6211 = vmul.bf16 %v6178, %v1641
        %v6212 = vmul.bf16 %v6179, %v1650
        %v6213 = vmul.bf16 %v6180, %v1659
        %v6214 = vmul.bf16 %v6181, %v1668
        %v6215 = vmul.bf16 %v6182, %v1677
        %v6216 = vmul.bf16 %v6183, %v1686
        %v6217 = vmul.bf16 %v6184, %v1695
        %v6218 = vmul.bf16 %v6185, %v1704
        %v6219 = vmul.bf16 %v6186, %v1713
        %v6220 = vmul.bf16 %v6187, %v1722
        %v6221 = vmul.bf16 %v6188, %v1731
        %v6222 = vmul.bf16 %v6189, %v1740
        %v6223 = vmul.bf16 %v6190, %v1749
        %v6224 = vmul.bf16 %v6191, %v1758
        %v6225 = vmul.bf16 %v6192, %v1767
        %v6226 = vmul.bf16 %v6193, %v1776
        %v6227 = vmul.bf16 %v6194, %v1785
        %v6228 = vmul.bf16 %v6195, %v1794
        %v6229 = vmul.bf16 %v6196, %v1803
        %v6230 = vmul.bf16 %v6197, %v1812
        %v6231 = vmul.bf16 %v6198, %v1813
        %v6233 = vshrl.u32 %v6199, 16
        %v6235 = vrot.slane %v6233, 4
        %v6236 = vshll.u32 %v6199, 16
        %v6238 = vrot.slane %v6236, 5
        %v6239 = vor.u32 %v6235, %v6238
        %v6240 = vrot.slane %v6239, 4
        %v6242 = vshll.u32 %v6200, 16
        %v6244 = vrot.slane %v6242, 5
        %v6245 = vsel %vm556, %v6240, %v6244
        %v6246 = vshrl.u32 %v6200, 16
        %v6248 = vrot.slane %v6246, 4
        %v6249 = vor.u32 %v6248, %v6244
        %v6250 = vrot.slane %v6249, 4
        %v6252 = vshll.u32 %v6201, 16
        %v6254 = vrot.slane %v6252, 5
        %v6255 = vsel %vm556, %v6250, %v6254
        %v6256 = vshrl.u32 %v6201, 16
        %v6258 = vrot.slane %v6256, 4
        %v6259 = vor.u32 %v6258, %v6254
        %v6260 = vrot.slane %v6259, 4
        %v6262 = vshll.u32 %v6202, 16
        %v6264 = vrot.slane %v6262, 5
        %v6265 = vsel %vm556, %v6260, %v6264
        %v6266 = vshrl.u32 %v6202, 16
        %v6268 = vrot.slane %v6266, 4
        %v6269 = vor.u32 %v6268, %v6264
        %v6270 = vrot.slane %v6269, 4
        %v6272 = vshll.u32 %v6203, 16
        %v6274 = vrot.slane %v6272, 5
        %v6275 = vsel %vm556, %v6270, %v6274
        %v6276 = vshrl.u32 %v6203, 16
        %v6278 = vrot.slane %v6276, 4
        %v6279 = vor.u32 %v6278, %v6274
        %v6280 = vrot.slane %v6279, 4
        %v6282 = vshll.u32 %v6204, 16
        %v6284 = vrot.slane %v6282, 5
        %v6285 = vsel %vm556, %v6280, %v6284
        %v6286 = vshrl.u32 %v6204, 16
        %v6288 = vrot.slane %v6286, 4
        %v6289 = vor.u32 %v6288, %v6284
        %v6290 = vrot.slane %v6289, 4
        %v6292 = vshll.u32 %v6205, 16
        %v6294 = vrot.slane %v6292, 5
        %v6295 = vsel %vm556, %v6290, %v6294
        %v6296 = vshrl.u32 %v6205, 16
        %v6298 = vrot.slane %v6296, 4
        %v6299 = vor.u32 %v6298, %v6294
        %v6300 = vrot.slane %v6299, 4
        %v6302 = vshll.u32 %v6206, 16
        %v6304 = vrot.slane %v6302, 5
        %v6305 = vsel %vm556, %v6300, %v6304
        %v6306 = vshrl.u32 %v6206, 16
        %v6308 = vrot.slane %v6306, 4
        %v6309 = vor.u32 %v6308, %v6304
        %v6310 = vrot.slane %v6309, 4
        %v6312 = vshll.u32 %v6207, 16
        %v6314 = vrot.slane %v6312, 5
        %v6315 = vsel %vm556, %v6310, %v6314
        %v6316 = vshrl.u32 %v6207, 16
        %v6318 = vrot.slane %v6316, 4
        %v6319 = vor.u32 %v6318, %v6314
        %v6320 = vrot.slane %v6319, 4
        %v6322 = vshll.u32 %v6208, 16
        %v6324 = vrot.slane %v6322, 5
        %v6325 = vsel %vm556, %v6320, %v6324
        %v6326 = vshrl.u32 %v6208, 16
        %v6328 = vrot.slane %v6326, 4
        %v6329 = vor.u32 %v6328, %v6324
        %v6330 = vrot.slane %v6329, 4
        %v6332 = vshll.u32 %v6209, 16
        %v6334 = vrot.slane %v6332, 5
        %v6335 = vsel %vm556, %v6330, %v6334
        %v6336 = vshrl.u32 %v6209, 16
        %v6338 = vrot.slane %v6336, 4
        %v6339 = vor.u32 %v6338, %v6334
        %v6340 = vrot.slane %v6339, 4
        %v6342 = vshll.u32 %v6210, 16
        %v6344 = vrot.slane %v6342, 5
        %v6345 = vsel %vm556, %v6340, %v6344
        %v6346 = vshrl.u32 %v6210, 16
        %v6348 = vrot.slane %v6346, 4
        %v6349 = vor.u32 %v6348, %v6344
        %v6350 = vrot.slane %v6349, 4
        %v6352 = vshll.u32 %v6211, 16
        %v6354 = vrot.slane %v6352, 5
        %v6355 = vsel %vm556, %v6350, %v6354
        %v6356 = vshrl.u32 %v6211, 16
        %v6358 = vrot.slane %v6356, 4
        %v6359 = vor.u32 %v6358, %v6354
        %v6360 = vrot.slane %v6359, 4
        %v6362 = vshll.u32 %v6212, 16
        %v6364 = vrot.slane %v6362, 5
        %v6365 = vsel %vm556, %v6360, %v6364
        %v6366 = vshrl.u32 %v6212, 16
        %v6368 = vrot.slane %v6366, 4
        %v6369 = vor.u32 %v6368, %v6364
        %v6370 = vrot.slane %v6369, 4
        %v6372 = vshll.u32 %v6213, 16
        %v6374 = vrot.slane %v6372, 5
        %v6375 = vsel %vm556, %v6370, %v6374
        %v6376 = vshrl.u32 %v6213, 16
        %v6378 = vrot.slane %v6376, 4
        %v6379 = vor.u32 %v6378, %v6374
        %v6380 = vrot.slane %v6379, 4
        %v6382 = vshll.u32 %v6214, 16
        %v6384 = vrot.slane %v6382, 5
        %v6385 = vsel %vm556, %v6380, %v6384
        %v6386 = vshrl.u32 %v6214, 16
        %v6388 = vrot.slane %v6386, 4
        %v6389 = vor.u32 %v6388, %v6384
        %v6390 = vrot.slane %v6389, 4
        %v6392 = vshll.u32 %v6215, 16
        %v6394 = vrot.slane %v6392, 5
        %v6395 = vsel %vm556, %v6390, %v6394
        %v6396 = vshrl.u32 %v6215, 16
        %v6398 = vrot.slane %v6396, 4
        %v6399 = vor.u32 %v6398, %v6394
        %v6400 = vrot.slane %v6399, 4
        %v6402 = vshll.u32 %v6216, 16
        %v6404 = vrot.slane %v6402, 5
        %v6405 = vsel %vm556, %v6400, %v6404
        %v6406 = vshrl.u32 %v6216, 16
        %v6408 = vrot.slane %v6406, 4
        %v6409 = vor.u32 %v6408, %v6404
        %v6410 = vrot.slane %v6409, 4
        %v6412 = vshll.u32 %v6217, 16
        %v6414 = vrot.slane %v6412, 5
        %v6415 = vsel %vm556, %v6410, %v6414
        %v6416 = vshrl.u32 %v6217, 16
        %v6418 = vrot.slane %v6416, 4
        %v6419 = vor.u32 %v6418, %v6414
        %v6420 = vrot.slane %v6419, 4
        %v6422 = vshll.u32 %v6218, 16
        %v6424 = vrot.slane %v6422, 5
        %v6425 = vsel %vm556, %v6420, %v6424
        %v6426 = vshrl.u32 %v6218, 16
        %v6428 = vrot.slane %v6426, 4
        %v6429 = vor.u32 %v6428, %v6424
        %v6430 = vrot.slane %v6429, 4
        %v6432 = vshll.u32 %v6219, 16
        %v6434 = vrot.slane %v6432, 5
        %v6435 = vsel %vm556, %v6430, %v6434
        %v6436 = vshrl.u32 %v6219, 16
        %v6438 = vrot.slane %v6436, 4
        %v6439 = vor.u32 %v6438, %v6434
        %v6440 = vrot.slane %v6439, 4
        %v6442 = vshll.u32 %v6220, 16
        %v6444 = vrot.slane %v6442, 5
        %v6445 = vsel %vm556, %v6440, %v6444
        %v6446 = vshrl.u32 %v6220, 16
        %v6448 = vrot.slane %v6446, 4
        %v6449 = vor.u32 %v6448, %v6444
        %v6450 = vrot.slane %v6449, 4
        %v6452 = vshll.u32 %v6221, 16
        %v6454 = vrot.slane %v6452, 5
        %v6455 = vsel %vm556, %v6450, %v6454
        %v6456 = vshrl.u32 %v6221, 16
        %v6458 = vrot.slane %v6456, 4
        %v6459 = vor.u32 %v6458, %v6454
        %v6460 = vrot.slane %v6459, 4
        %v6462 = vshll.u32 %v6222, 16
        %v6464 = vrot.slane %v6462, 5
        %v6465 = vsel %vm556, %v6460, %v6464
        %v6466 = vshrl.u32 %v6222, 16
        %v6468 = vrot.slane %v6466, 4
        %v6469 = vor.u32 %v6468, %v6464
        %v6470 = vrot.slane %v6469, 4
        %v6472 = vshll.u32 %v6223, 16
        %v6474 = vrot.slane %v6472, 5
        %v6475 = vsel %vm556, %v6470, %v6474
        %v6476 = vshrl.u32 %v6223, 16
        %v6478 = vrot.slane %v6476, 4
        %v6479 = vor.u32 %v6478, %v6474
        %v6480 = vrot.slane %v6479, 4
        %v6482 = vshll.u32 %v6224, 16
        %v6484 = vrot.slane %v6482, 5
        %v6485 = vsel %vm556, %v6480, %v6484
        %v6486 = vshrl.u32 %v6224, 16
        %v6488 = vrot.slane %v6486, 4
        %v6489 = vor.u32 %v6488, %v6484
        %v6490 = vrot.slane %v6489, 4
        %v6492 = vshll.u32 %v6225, 16
        %v6494 = vrot.slane %v6492, 5
        %v6495 = vsel %vm556, %v6490, %v6494
        %v6496 = vshrl.u32 %v6225, 16
        %v6498 = vrot.slane %v6496, 4
        %v6499 = vor.u32 %v6498, %v6494
        %v6500 = vrot.slane %v6499, 4
        %v6502 = vshll.u32 %v6226, 16
        %v6504 = vrot.slane %v6502, 5
        %v6505 = vsel %vm556, %v6500, %v6504
        %v6506 = vshrl.u32 %v6226, 16
        %v6508 = vrot.slane %v6506, 4
        %v6509 = vor.u32 %v6508, %v6504
        %v6510 = vrot.slane %v6509, 4
        %v6512 = vshll.u32 %v6227, 16
        %v6514 = vrot.slane %v6512, 5
        %v6515 = vsel %vm556, %v6510, %v6514
        %v6516 = vshrl.u32 %v6227, 16
        %v6518 = vrot.slane %v6516, 4
        %v6519 = vor.u32 %v6518, %v6514
        %v6520 = vrot.slane %v6519, 4
        %v6522 = vshll.u32 %v6228, 16
        %v6524 = vrot.slane %v6522, 5
        %v6525 = vsel %vm556, %v6520, %v6524
        %v6526 = vshrl.u32 %v6228, 16
        %v6528 = vrot.slane %v6526, 4
        %v6529 = vor.u32 %v6528, %v6524
        %v6530 = vrot.slane %v6529, 4
        %v6532 = vshll.u32 %v6229, 16
        %v6534 = vrot.slane %v6532, 5
        %v6535 = vsel %vm556, %v6530, %v6534
        %v6536 = vshrl.u32 %v6229, 16
        %v6538 = vrot.slane %v6536, 4
        %v6539 = vor.u32 %v6538, %v6534
        %v6540 = vrot.slane %v6539, 4
        %v6542 = vshll.u32 %v6230, 16
        %v6544 = vrot.slane %v6542, 5
        %v6545 = vsel %vm556, %v6540, %v6544
        %v6546 = vshrl.u32 %v6230, 16
        %v6548 = vrot.slane %v6546, 4
        %v6549 = vor.u32 %v6548, %v6544
        %v6550 = vrot.slane %v6549, 4
        %v6552 = vshll.u32 %v6231, 16
        %v6554 = vrot.slane %v6552, 5
        %v6555 = vsel %vm556, %v6550, %v6554
        %6556 = vrot.lane.b32.xlu0 %v6245, 64
        %v6557 = vpop.permute.xlu0 %6556
        %6558 = vrot.lane.b32.xlu0 %v6255, 64
        %v6559 = vpop.permute.xlu0 %6558
        %6560 = vrot.lane.b32.xlu0 %v6265, 64
        %v6561 = vpop.permute.xlu0 %6560
        %6562 = vrot.lane.b32.xlu0 %v6275, 64
        %v6563 = vpop.permute.xlu0 %6562
        %6564 = vrot.lane.b32.xlu0 %v6285, 64
        %v6565 = vpop.permute.xlu0 %6564
        %6566 = vrot.lane.b32.xlu0 %v6295, 64
        %v6567 = vpop.permute.xlu0 %6566
        %6568 = vrot.lane.b32.xlu0 %v6305, 64
        %v6569 = vpop.permute.xlu0 %6568
        %6570 = vrot.lane.b32.xlu0 %v6315, 64
        %v6571 = vpop.permute.xlu0 %6570
        %6572 = vrot.lane.b32.xlu0 %v6325, 64
        %v6573 = vpop.permute.xlu0 %6572
        %6574 = vrot.lane.b32.xlu0 %v6335, 64
        %v6575 = vpop.permute.xlu0 %6574
        %6576 = vrot.lane.b32.xlu0 %v6345, 64
        %v6577 = vpop.permute.xlu0 %6576
        %6578 = vrot.lane.b32.xlu0 %v6355, 64
        %v6579 = vpop.permute.xlu0 %6578
        %6580 = vrot.lane.b32.xlu0 %v6365, 64
        %v6581 = vpop.permute.xlu0 %6580
        %6582 = vrot.lane.b32.xlu0 %v6375, 64
        %v6583 = vpop.permute.xlu0 %6582
        %6584 = vrot.lane.b32.xlu0 %v6385, 64
        %v6585 = vpop.permute.xlu0 %6584
        %6586 = vrot.lane.b32.xlu0 %v6395, 64
        %v6587 = vpop.permute.xlu0 %6586
        %6588 = vrot.lane.b32.xlu0 %v6405, 64
        %v6589 = vpop.permute.xlu0 %6588
        %6590 = vrot.lane.b32.xlu0 %v6415, 64
        %v6591 = vpop.permute.xlu0 %6590
        %6592 = vrot.lane.b32.xlu0 %v6425, 64
        %v6593 = vpop.permute.xlu0 %6592
        %6594 = vrot.lane.b32.xlu0 %v6435, 64
        %v6595 = vpop.permute.xlu0 %6594
        %6596 = vrot.lane.b32.xlu0 %v6445, 64
        %v6597 = vpop.permute.xlu0 %6596
        %6598 = vrot.lane.b32.xlu0 %v6455, 64
        %v6599 = vpop.permute.xlu0 %6598
        %6600 = vrot.lane.b32.xlu0 %v6465, 64
        %v6601 = vpop.permute.xlu0 %6600
        %6602 = vrot.lane.b32.xlu0 %v6475, 64
        %v6603 = vpop.permute.xlu0 %6602
        %6604 = vrot.lane.b32.xlu0 %v6485, 64
        %v6605 = vpop.permute.xlu0 %6604
        %6606 = vrot.lane.b32.xlu0 %v6495, 64
        %v6607 = vpop.permute.xlu0 %6606
        %6608 = vrot.lane.b32.xlu0 %v6505, 64
        %v6609 = vpop.permute.xlu0 %6608
        %6610 = vrot.lane.b32.xlu0 %v6515, 64
        %v6611 = vpop.permute.xlu0 %6610
        %6612 = vrot.lane.b32.xlu0 %v6525, 64
        %v6613 = vpop.permute.xlu0 %6612
        %6614 = vrot.lane.b32.xlu0 %v6535, 64
        %v6615 = vpop.permute.xlu0 %6614
        %6616 = vrot.lane.b32.xlu0 %v6545, 64
        %v6617 = vpop.permute.xlu0 %6616
        %6618 = vrot.lane.b32.xlu0 %v6555, 64
        %v6619 = vpop.permute.xlu0 %6618
        %6652 = vst.msk [vmem:[#allocation3] sm:$0xf] %vm2300, %v6557
        %6653 = vst.msk [vmem:[#allocation3 + $0xc] sm:$0xf] %vm2300, %v6559
        %6654 = vst.msk [vmem:[#allocation3 + $0x18] sm:$0xf] %vm2300, %v6561
        %6655 = vst.msk [vmem:[#allocation3 + $0x24] sm:$0xf] %vm2300, %v6563
        %6656 = vst.msk [vmem:[#allocation3 + $0x30] sm:$0xf] %vm2300, %v6565
        %6657 = vst.msk [vmem:[#allocation3 + $0x3c] sm:$0xf] %vm2300, %v6567
        %6658 = vst.msk [vmem:[#allocation3 + $0x48] sm:$0xf] %vm2300, %v6569
        %6659 = vst.msk [vmem:[#allocation3 + $0x54] sm:$0xf] %vm2300, %v6571
        %6660 = vst.msk [vmem:[#allocation3 + $0x60] sm:$0xf] %vm2300, %v6573
        %6661 = vst.msk [vmem:[#allocation3 + $0x6c] sm:$0xf] %vm2300, %v6575
        %6662 = vst.msk [vmem:[#allocation3 + $0x78] sm:$0xf] %vm2300, %v6577
        %6663 = vst.msk [vmem:[#allocation3 + $0x84] sm:$0xf] %vm2300, %v6579
        %6664 = vst.msk [vmem:[#allocation3 + $0x90] sm:$0xf] %vm2300, %v6581
        %6665 = vst.msk [vmem:[#allocation3 + $0x9c] sm:$0xf] %vm2300, %v6583
        %6666 = vst.msk [vmem:[#allocation3 + $0xa8] sm:$0xf] %vm2300, %v6585
        %6667 = vst.msk [vmem:[#allocation3 + $0xb4] sm:$0xf] %vm2300, %v6587
        %6668 = vst.msk [vmem:[#allocation3 + $0xc0] sm:$0xf] %vm2300, %v6589
        %6669 = vst.msk [vmem:[#allocation3 + $0xcc] sm:$0xf] %vm2300, %v6591
        %6670 = vst.msk [vmem:[#allocation3 + $0xd8] sm:$0xf] %vm2300, %v6593
        %6671 = vst.msk [vmem:[#allocation3 + $0xe4] sm:$0xf] %vm2300, %v6595
        %6672 = vst.msk [vmem:[#allocation3 + $0xf0] sm:$0xf] %vm2300, %v6597
        %6673 = vst.msk [vmem:[#allocation3 + $0xfc] sm:$0xf] %vm2300, %v6599
        %6674 = vst.msk [vmem:[#allocation3 + $0x108] sm:$0xf] %vm2300, %v6601
        %6675 = vst.msk [vmem:[#allocation3 + $0x114] sm:$0xf] %vm2300, %v6603
        %6676 = vst.msk [vmem:[#allocation3 + $0x120] sm:$0xf] %vm2300, %v6605
        %6677 = vst.msk [vmem:[#allocation3 + $0x12c] sm:$0xf] %vm2300, %v6607
        %6678 = vst.msk [vmem:[#allocation3 + $0x138] sm:$0xf] %vm2300, %v6609
        %6679 = vst.msk [vmem:[#allocation3 + $0x144] sm:$0xf] %vm2300, %v6611
        %6680 = vst.msk [vmem:[#allocation3 + $0x150] sm:$0xf] %vm2300, %v6613
        %6681 = vst.msk [vmem:[#allocation3 + $0x15c] sm:$0xf] %vm2300, %v6615
        %6682 = vst.msk [vmem:[#allocation3 + $0x168] sm:$0xf] %vm2300, %v6617
        %6683 = vst.msk [vmem:[#allocation3 + $0x174] sm:$0xf] %vm2300, %v6619
        %v6684 = vld [vmem:[#allocation2 + $0x8] sm:$0x8]
        %v6685 = vld [vmem:[#allocation2 + $0xc] sm:$0xf]
        %v6686 = vld [vmem:[#allocation2 + $0x10] sm:$0xf]
        %v6687 = vld [vmem:[#allocation2 + $0x14] sm:$0xf]
        %v6688 = vld [vmem:[#allocation2 + $0x18] sm:$0xf]
        %v6689 = vld [vmem:[#allocation2 + $0x1c] sm:$0xf]
        %v6690 = vld [vmem:[#allocation2 + $0x20] sm:$0xf]
        %v6691 = vld [vmem:[#allocation2 + $0x24] sm:$0xf]
        %v6692 = vld [vmem:[#allocation2 + $0x28] sm:$0xf]
        %v6693 = vld [vmem:[#allocation2 + $0x2c] sm:$0xf]
        %v6694 = vld [vmem:[#allocation2 + $0x30] sm:$0xf]
        %v6695 = vld [vmem:[#allocation2 + $0x34] sm:$0xf]
        %v6696 = vld [vmem:[#allocation2 + $0x38] sm:$0xf]
        %v6697 = vld [vmem:[#allocation2 + $0x3c] sm:$0xf]
        %v6698 = vld [vmem:[#allocation2 + $0x40] sm:$0xf]
        %v6699 = vld [vmem:[#allocation2 + $0x44] sm:$0xf]
        %v6700 = vld [vmem:[#allocation2 + $0x48] sm:$0xf]
        %v6701 = vld [vmem:[#allocation2 + $0x4c] sm:$0xf]
        %v6702 = vld [vmem:[#allocation2 + $0x50] sm:$0xf]
        %v6703 = vld [vmem:[#allocation2 + $0x54] sm:$0xf]
        %v6704 = vld [vmem:[#allocation2 + $0x58] sm:$0xf]
        %v6705 = vld [vmem:[#allocation2 + $0x5c] sm:$0xf]
        %v6706 = vld [vmem:[#allocation2 + $0x60] sm:$0xf]
        %v6707 = vld [vmem:[#allocation2 + $0x64] sm:$0xf]
        %v6708 = vld [vmem:[#allocation2 + $0x68] sm:$0xf]
        %v6709 = vld [vmem:[#allocation2 + $0x6c] sm:$0xf]
        %v6710 = vld [vmem:[#allocation2 + $0x70] sm:$0xf]
        %v6711 = vld [vmem:[#allocation2 + $0x74] sm:$0xf]
        %v6712 = vld [vmem:[#allocation2 + $0x78] sm:$0xf]
        %v6713 = vld [vmem:[#allocation2 + $0x7c] sm:$0xf]
        %v6714 = vld [vmem:[#allocation2 + $0x80] sm:$0xf]
        %v6715 = vld [vmem:[#allocation2 + $0x84] sm:$0xf]
        %v6716 = vld [vmem:[#allocation2 + $0x88] sm:$0xf]
        %v6717 = vmul.bf16 %v6684, %v560
        %v6718 = vmul.bf16 %v6685, %v570
        %v6719 = vmul.bf16 %v6686, %v580
        %v6720 = vmul.bf16 %v6687, %v590
        %v6721 = vmul.bf16 %v6688, %v600
        %v6722 = vmul.bf16 %v6689, %v610
        %v6723 = vmul.bf16 %v6690, %v620
        %v6724 = vmul.bf16 %v6691, %v630
        %v6725 = vmul.bf16 %v6692, %v640
        %v6726 = vmul.bf16 %v6693, %v650
        %v6727 = vmul.bf16 %v6694, %v660
        %v6728 = vmul.bf16 %v6695, %v670
        %v6729 = vmul.bf16 %v6696, %v680
        %v6730 = vmul.bf16 %v6697, %v690
        %v6731 = vmul.bf16 %v6698, %v700
        %v6732 = vmul.bf16 %v6699, %v710
        %v6733 = vmul.bf16 %v6700, %v720
        %v6734 = vmul.bf16 %v6701, %v730
        %v6735 = vmul.bf16 %v6702, %v740
        %v6736 = vmul.bf16 %v6703, %v750
        %v6737 = vmul.bf16 %v6704, %v760
        %v6738 = vmul.bf16 %v6705, %v770
        %v6739 = vmul.bf16 %v6706, %v780
        %v6740 = vmul.bf16 %v6707, %v790
        %v6741 = vmul.bf16 %v6708, %v800
        %v6742 = vmul.bf16 %v6709, %v810
        %v6743 = vmul.bf16 %v6710, %v820
        %v6744 = vmul.bf16 %v6711, %v830
        %v6745 = vmul.bf16 %v6712, %v840
        %v6746 = vmul.bf16 %v6713, %v850
        %v6747 = vmul.bf16 %v6714, %v860
        %v6748 = vmul.bf16 %v6715, %v870
        %v6749 = vmul.bf16 %v6716, %v875
        %v6751 = vshrl.u32 %v6717, 16
        %v6753 = vrot.slane %v6751, 7
        %v6754 = vrot.slane %v6753, 4
        %v6756 = vshrl.u32 %v6718, 16
        %v6758 = vrot.slane %v6756, 7
        %v6759 = vshll.u32 %v6718, 16
        %v6761 = vor.u32 %v6758, %v6759
        %v6762 = vsel %vm944, %v6754, %v6761
        %v6763 = vrot.slane %v6758, 4
        %v6765 = vshrl.u32 %v6719, 16
        %v6767 = vrot.slane %v6765, 7
        %v6768 = vshll.u32 %v6719, 16
        %v6770 = vor.u32 %v6767, %v6768
        %v6771 = vsel %vm944, %v6763, %v6770
        %v6772 = vrot.slane %v6767, 4
        %v6774 = vshrl.u32 %v6720, 16
        %v6776 = vrot.slane %v6774, 7
        %v6777 = vshll.u32 %v6720, 16
        %v6779 = vor.u32 %v6776, %v6777
        %v6780 = vsel %vm944, %v6772, %v6779
        %v6781 = vrot.slane %v6776, 4
        %v6783 = vshrl.u32 %v6721, 16
        %v6785 = vrot.slane %v6783, 7
        %v6786 = vshll.u32 %v6721, 16
        %v6788 = vor.u32 %v6785, %v6786
        %v6789 = vsel %vm944, %v6781, %v6788
        %v6790 = vrot.slane %v6785, 4
        %v6792 = vshrl.u32 %v6722, 16
        %v6794 = vrot.slane %v6792, 7
        %v6795 = vshll.u32 %v6722, 16
        %v6797 = vor.u32 %v6794, %v6795
        %v6798 = vsel %vm944, %v6790, %v6797
        %v6799 = vrot.slane %v6794, 4
        %v6801 = vshrl.u32 %v6723, 16
        %v6803 = vrot.slane %v6801, 7
        %v6804 = vshll.u32 %v6723, 16
        %v6806 = vor.u32 %v6803, %v6804
        %v6807 = vsel %vm944, %v6799, %v6806
        %v6808 = vrot.slane %v6803, 4
        %v6810 = vshrl.u32 %v6724, 16
        %v6812 = vrot.slane %v6810, 7
        %v6813 = vshll.u32 %v6724, 16
        %v6815 = vor.u32 %v6812, %v6813
        %v6816 = vsel %vm944, %v6808, %v6815
        %v6817 = vrot.slane %v6812, 4
        %v6819 = vshrl.u32 %v6725, 16
        %v6821 = vrot.slane %v6819, 7
        %v6822 = vshll.u32 %v6725, 16
        %v6824 = vor.u32 %v6821, %v6822
        %v6825 = vsel %vm944, %v6817, %v6824
        %v6826 = vrot.slane %v6821, 4
        %v6828 = vshrl.u32 %v6726, 16
        %v6830 = vrot.slane %v6828, 7
        %v6831 = vshll.u32 %v6726, 16
        %v6833 = vor.u32 %v6830, %v6831
        %v6834 = vsel %vm944, %v6826, %v6833
        %v6835 = vrot.slane %v6830, 4
        %v6837 = vshrl.u32 %v6727, 16
        %v6839 = vrot.slane %v6837, 7
        %v6840 = vshll.u32 %v6727, 16
        %v6842 = vor.u32 %v6839, %v6840
        %v6843 = vsel %vm944, %v6835, %v6842
        %v6844 = vrot.slane %v6839, 4
        %v6846 = vshrl.u32 %v6728, 16
        %v6848 = vrot.slane %v6846, 7
        %v6849 = vshll.u32 %v6728, 16
        %v6851 = vor.u32 %v6848, %v6849
        %v6852 = vsel %vm944, %v6844, %v6851
        %v6853 = vrot.slane %v6848, 4
        %v6855 = vshrl.u32 %v6729, 16
        %v6857 = vrot.slane %v6855, 7
        %v6858 = vshll.u32 %v6729, 16
        %v6860 = vor.u32 %v6857, %v6858
        %v6861 = vsel %vm944, %v6853, %v6860
        %v6862 = vrot.slane %v6857, 4
        %v6864 = vshrl.u32 %v6730, 16
        %v6866 = vrot.slane %v6864, 7
        %v6867 = vshll.u32 %v6730, 16
        %v6869 = vor.u32 %v6866, %v6867
        %v6870 = vsel %vm944, %v6862, %v6869
        %v6871 = vrot.slane %v6866, 4
        %v6873 = vshrl.u32 %v6731, 16
        %v6875 = vrot.slane %v6873, 7
        %v6876 = vshll.u32 %v6731, 16
        %v6878 = vor.u32 %v6875, %v6876
        %v6879 = vsel %vm944, %v6871, %v6878
        %v6880 = vrot.slane %v6875, 4
        %v6882 = vshrl.u32 %v6732, 16
        %v6884 = vrot.slane %v6882, 7
        %v6885 = vshll.u32 %v6732, 16
        %v6887 = vor.u32 %v6884, %v6885
        %v6888 = vsel %vm944, %v6880, %v6887
        %v6889 = vrot.slane %v6884, 4
        %v6891 = vshrl.u32 %v6733, 16
        %v6893 = vrot.slane %v6891, 7
        %v6894 = vshll.u32 %v6733, 16
        %v6896 = vor.u32 %v6893, %v6894
        %v6897 = vsel %vm944, %v6889, %v6896
        %v6898 = vrot.slane %v6893, 4
        %v6900 = vshrl.u32 %v6734, 16
        %v6902 = vrot.slane %v6900, 7
        %v6903 = vshll.u32 %v6734, 16
        %v6905 = vor.u32 %v6902, %v6903
        %v6906 = vsel %vm944, %v6898, %v6905
        %v6907 = vrot.slane %v6902, 4
        %v6909 = vshrl.u32 %v6735, 16
        %v6911 = vrot.slane %v6909, 7
        %v6912 = vshll.u32 %v6735, 16
        %v6914 = vor.u32 %v6911, %v6912
        %v6915 = vsel %vm944, %v6907, %v6914
        %v6916 = vrot.slane %v6911, 4
        %v6918 = vshrl.u32 %v6736, 16
        %v6920 = vrot.slane %v6918, 7
        %v6921 = vshll.u32 %v6736, 16
        %v6923 = vor.u32 %v6920, %v6921
        %v6924 = vsel %vm944, %v6916, %v6923
        %v6925 = vrot.slane %v6920, 4
        %v6927 = vshrl.u32 %v6737, 16
        %v6929 = vrot.slane %v6927, 7
        %v6930 = vshll.u32 %v6737, 16
        %v6932 = vor.u32 %v6929, %v6930
        %v6933 = vsel %vm944, %v6925, %v6932
        %v6934 = vrot.slane %v6929, 4
        %v6936 = vshrl.u32 %v6738, 16
        %v6938 = vrot.slane %v6936, 7
        %v6939 = vshll.u32 %v6738, 16
        %v6941 = vor.u32 %v6938, %v6939
        %v6942 = vsel %vm944, %v6934, %v6941
        %v6943 = vrot.slane %v6938, 4
        %v6945 = vshrl.u32 %v6739, 16
        %v6947 = vrot.slane %v6945, 7
        %v6948 = vshll.u32 %v6739, 16
        %v6950 = vor.u32 %v6947, %v6948
        %v6951 = vsel %vm944, %v6943, %v6950
        %v6952 = vrot.slane %v6947, 4
        %v6954 = vshrl.u32 %v6740, 16
        %v6956 = vrot.slane %v6954, 7
        %v6957 = vshll.u32 %v6740, 16
        %v6959 = vor.u32 %v6956, %v6957
        %v6960 = vsel %vm944, %v6952, %v6959
        %v6961 = vrot.slane %v6956, 4
        %v6963 = vshrl.u32 %v6741, 16
        %v6965 = vrot.slane %v6963, 7
        %v6966 = vshll.u32 %v6741, 16
        %v6968 = vor.u32 %v6965, %v6966
        %v6969 = vsel %vm944, %v6961, %v6968
        %v6970 = vrot.slane %v6965, 4
        %v6972 = vshrl.u32 %v6742, 16
        %v6974 = vrot.slane %v6972, 7
        %v6975 = vshll.u32 %v6742, 16
        %v6977 = vor.u32 %v6974, %v6975
        %v6978 = vsel %vm944, %v6970, %v6977
        %v6979 = vrot.slane %v6974, 4
        %v6981 = vshrl.u32 %v6743, 16
        %v6983 = vrot.slane %v6981, 7
        %v6984 = vshll.u32 %v6743, 16
        %v6986 = vor.u32 %v6983, %v6984
        %v6987 = vsel %vm944, %v6979, %v6986
        %v6988 = vrot.slane %v6983, 4
        %v6990 = vshrl.u32 %v6744, 16
        %v6992 = vrot.slane %v6990, 7
        %v6993 = vshll.u32 %v6744, 16
        %v6995 = vor.u32 %v6992, %v6993
        %v6996 = vsel %vm944, %v6988, %v6995
        %v6997 = vrot.slane %v6992, 4
        %v6999 = vshrl.u32 %v6745, 16
        %v7001 = vrot.slane %v6999, 7
        %v7002 = vshll.u32 %v6745, 16
        %v7004 = vor.u32 %v7001, %v7002
        %v7005 = vsel %vm944, %v6997, %v7004
        %v7006 = vrot.slane %v7001, 4
        %v7008 = vshrl.u32 %v6746, 16
        %v7010 = vrot.slane %v7008, 7
        %v7011 = vshll.u32 %v6746, 16
        %v7013 = vor.u32 %v7010, %v7011
        %v7014 = vsel %vm944, %v7006, %v7013
        %v7015 = vrot.slane %v7010, 4
        %v7017 = vshrl.u32 %v6747, 16
        %v7019 = vrot.slane %v7017, 7
        %v7020 = vshll.u32 %v6747, 16
        %v7022 = vor.u32 %v7019, %v7020
        %v7023 = vsel %vm944, %v7015, %v7022
        %v7024 = vrot.slane %v7019, 4
        %v7026 = vshrl.u32 %v6748, 16
        %v7028 = vrot.slane %v7026, 7
        %v7029 = vshll.u32 %v6748, 16
        %v7031 = vor.u32 %v7028, %v7029
        %v7032 = vsel %vm944, %v7024, %v7031
        %v7033 = vrot.slane %v7028, 4
        %v7035 = vshrl.u32 %v6749, 16
        %v7037 = vrot.slane %v7035, 7
        %v7038 = vshll.u32 %v6749, 16
        %v7040 = vor.u32 %v7037, %v7038
        %v7041 = vsel %vm944, %v7033, %v7040
        %7042 = vrot.lane.b32.xlu0 %v6762, 96
        %v7043 = vpop.permute.xlu0 %7042
        %7044 = vrot.lane.b32.xlu0 %v6771, 96
        %v7045 = vpop.permute.xlu0 %7044
        %7046 = vrot.lane.b32.xlu0 %v6780, 96
        %v7047 = vpop.permute.xlu0 %7046
        %7048 = vrot.lane.b32.xlu0 %v6789, 96
        %v7049 = vpop.permute.xlu0 %7048
        %7050 = vrot.lane.b32.xlu0 %v6798, 96
        %v7051 = vpop.permute.xlu0 %7050
        %7052 = vrot.lane.b32.xlu0 %v6807, 96
        %v7053 = vpop.permute.xlu0 %7052
        %7054 = vrot.lane.b32.xlu0 %v6816, 96
        %v7055 = vpop.permute.xlu0 %7054
        %7056 = vrot.lane.b32.xlu0 %v6825, 96
        %v7057 = vpop.permute.xlu0 %7056
        %7058 = vrot.lane.b32.xlu0 %v6834, 96
        %v7059 = vpop.permute.xlu0 %7058
        %7060 = vrot.lane.b32.xlu0 %v6843, 96
        %v7061 = vpop.permute.xlu0 %7060
        %7062 = vrot.lane.b32.xlu0 %v6852, 96
        %v7063 = vpop.permute.xlu0 %7062
        %7064 = vrot.lane.b32.xlu0 %v6861, 96
        %v7065 = vpop.permute.xlu0 %7064
        %7066 = vrot.lane.b32.xlu0 %v6870, 96
        %v7067 = vpop.permute.xlu0 %7066
        %7068 = vrot.lane.b32.xlu0 %v6879, 96
        %v7069 = vpop.permute.xlu0 %7068
        %7070 = vrot.lane.b32.xlu0 %v6888, 96
        %v7071 = vpop.permute.xlu0 %7070
        %7072 = vrot.lane.b32.xlu0 %v6897, 96
        %v7073 = vpop.permute.xlu0 %7072
        %7074 = vrot.lane.b32.xlu0 %v6906, 96
        %v7075 = vpop.permute.xlu0 %7074
        %7076 = vrot.lane.b32.xlu0 %v6915, 96
        %v7077 = vpop.permute.xlu0 %7076
        %7078 = vrot.lane.b32.xlu0 %v6924, 96
        %v7079 = vpop.permute.xlu0 %7078
        %7080 = vrot.lane.b32.xlu0 %v6933, 96
        %v7081 = vpop.permute.xlu0 %7080
        %7082 = vrot.lane.b32.xlu0 %v6942, 96
        %v7083 = vpop.permute.xlu0 %7082
        %7084 = vrot.lane.b32.xlu0 %v6951, 96
        %v7085 = vpop.permute.xlu0 %7084
        %7086 = vrot.lane.b32.xlu0 %v6960, 96
        %v7087 = vpop.permute.xlu0 %7086
        %7088 = vrot.lane.b32.xlu0 %v6969, 96
        %v7089 = vpop.permute.xlu0 %7088
        %7090 = vrot.lane.b32.xlu0 %v6978, 96
        %v7091 = vpop.permute.xlu0 %7090
        %7092 = vrot.lane.b32.xlu0 %v6987, 96
        %v7093 = vpop.permute.xlu0 %7092
        %7094 = vrot.lane.b32.xlu0 %v6996, 96
        %v7095 = vpop.permute.xlu0 %7094
        %7096 = vrot.lane.b32.xlu0 %v7005, 96
        %v7097 = vpop.permute.xlu0 %7096
        %7098 = vrot.lane.b32.xlu0 %v7014, 96
        %v7099 = vpop.permute.xlu0 %7098
        %7100 = vrot.lane.b32.xlu0 %v7023, 96
        %v7101 = vpop.permute.xlu0 %7100
        %7102 = vrot.lane.b32.xlu0 %v7032, 96
        %v7103 = vpop.permute.xlu0 %7102
        %7104 = vrot.lane.b32.xlu0 %v7041, 96
        %v7105 = vpop.permute.xlu0 %7104
        %7138 = vst.msk [vmem:[#allocation3] sm:$0xf] %vm2787, %v7043
        %7139 = vst.msk [vmem:[#allocation3 + $0xc] sm:$0xf] %vm2787, %v7045
        %7140 = vst.msk [vmem:[#allocation3 + $0x18] sm:$0xf] %vm2787, %v7047
        %7141 = vst.msk [vmem:[#allocation3 + $0x24] sm:$0xf] %vm2787, %v7049
        %7142 = vst.msk [vmem:[#allocation3 + $0x30] sm:$0xf] %vm2787, %v7051
        %7143 = vst.msk [vmem:[#allocation3 + $0x3c] sm:$0xf] %vm2787, %v7053
        %7144 = vst.msk [vmem:[#allocation3 + $0x48] sm:$0xf] %vm2787, %v7055
        %7145 = vst.msk [vmem:[#allocation3 + $0x54] sm:$0xf] %vm2787, %v7057
        %7146 = vst.msk [vmem:[#allocation3 + $0x60] sm:$0xf] %vm2787, %v7059
        %7147 = vst.msk [vmem:[#allocation3 + $0x6c] sm:$0xf] %vm2787, %v7061
        %7148 = vst.msk [vmem:[#allocation3 + $0x78] sm:$0xf] %vm2787, %v7063
        %7149 = vst.msk [vmem:[#allocation3 + $0x84] sm:$0xf] %vm2787, %v7065
        %7150 = vst.msk [vmem:[#allocation3 + $0x90] sm:$0xf] %vm2787, %v7067
        %7151 = vst.msk [vmem:[#allocation3 + $0x9c] sm:$0xf] %vm2787, %v7069
        %7152 = vst.msk [vmem:[#allocation3 + $0xa8] sm:$0xf] %vm2787, %v7071
        %7153 = vst.msk [vmem:[#allocation3 + $0xb4] sm:$0xf] %vm2787, %v7073
        %7154 = vst.msk [vmem:[#allocation3 + $0xc0] sm:$0xf] %vm2787, %v7075
        %7155 = vst.msk [vmem:[#allocation3 + $0xcc] sm:$0xf] %vm2787, %v7077
        %7156 = vst.msk [vmem:[#allocation3 + $0xd8] sm:$0xf] %vm2787, %v7079
        %7157 = vst.msk [vmem:[#allocation3 + $0xe4] sm:$0xf] %vm2787, %v7081
        %7158 = vst.msk [vmem:[#allocation3 + $0xf0] sm:$0xf] %vm2787, %v7083
        %7159 = vst.msk [vmem:[#allocation3 + $0xfc] sm:$0xf] %vm2787, %v7085
        %7160 = vst.msk [vmem:[#allocation3 + $0x108] sm:$0xf] %vm2787, %v7087
        %7161 = vst.msk [vmem:[#allocation3 + $0x114] sm:$0xf] %vm2787, %v7089
        %7162 = vst.msk [vmem:[#allocation3 + $0x120] sm:$0xf] %vm2787, %v7091
        %7163 = vst.msk [vmem:[#allocation3 + $0x12c] sm:$0xf] %vm2787, %v7093
        %7164 = vst.msk [vmem:[#allocation3 + $0x138] sm:$0xf] %vm2787, %v7095
        %7165 = vst.msk [vmem:[#allocation3 + $0x144] sm:$0xf] %vm2787, %v7097
        %7166 = vst.msk [vmem:[#allocation3 + $0x150] sm:$0xf] %vm2787, %v7099
        %7167 = vst.msk [vmem:[#allocation3 + $0x15c] sm:$0xf] %vm2787, %v7101
        %7168 = vst.msk [vmem:[#allocation3 + $0x168] sm:$0xf] %vm2787, %v7103
        %7169 = vst.msk [vmem:[#allocation3 + $0x174] sm:$0xf] %vm2787, %v7105
        %v7170 = vld [vmem:[#allocation2 + $0xc] sm:$0xf]
        %v7171 = vld [vmem:[#allocation2 + $0x10] sm:$0xf]
        %v7172 = vld [vmem:[#allocation2 + $0x14] sm:$0xf]
        %v7173 = vld [vmem:[#allocation2 + $0x18] sm:$0xf]
        %v7174 = vld [vmem:[#allocation2 + $0x1c] sm:$0xf]
        %v7175 = vld [vmem:[#allocation2 + $0x20] sm:$0xf]
        %v7176 = vld [vmem:[#allocation2 + $0x24] sm:$0xf]
        %v7177 = vld [vmem:[#allocation2 + $0x28] sm:$0xf]
        %v7178 = vld [vmem:[#allocation2 + $0x2c] sm:$0xf]
        %v7179 = vld [vmem:[#allocation2 + $0x30] sm:$0xf]
        %v7180 = vld [vmem:[#allocation2 + $0x34] sm:$0xf]
        %v7181 = vld [vmem:[#allocation2 + $0x38] sm:$0xf]
        %v7182 = vld [vmem:[#allocation2 + $0x3c] sm:$0xf]
        %v7183 = vld [vmem:[#allocation2 + $0x40] sm:$0xf]
        %v7184 = vld [vmem:[#allocation2 + $0x44] sm:$0xf]
        %v7185 = vld [vmem:[#allocation2 + $0x48] sm:$0xf]
        %v7186 = vld [vmem:[#allocation2 + $0x4c] sm:$0xf]
        %v7187 = vld [vmem:[#allocation2 + $0x50] sm:$0xf]
        %v7188 = vld [vmem:[#allocation2 + $0x54] sm:$0xf]
        %v7189 = vld [vmem:[#allocation2 + $0x58] sm:$0xf]
        %v7190 = vld [vmem:[#allocation2 + $0x5c] sm:$0xf]
        %v7191 = vld [vmem:[#allocation2 + $0x60] sm:$0xf]
        %v7192 = vld [vmem:[#allocation2 + $0x64] sm:$0xf]
        %v7193 = vld [vmem:[#allocation2 + $0x68] sm:$0xf]
        %v7194 = vld [vmem:[#allocation2 + $0x6c] sm:$0xf]
        %v7195 = vld [vmem:[#allocation2 + $0x70] sm:$0xf]
        %v7196 = vld [vmem:[#allocation2 + $0x74] sm:$0xf]
        %v7197 = vld [vmem:[#allocation2 + $0x78] sm:$0xf]
        %v7198 = vld [vmem:[#allocation2 + $0x7c] sm:$0xf]
        %v7199 = vld [vmem:[#allocation2 + $0x80] sm:$0xf]
        %v7200 = vld [vmem:[#allocation2 + $0x84] sm:$0xf]
        %v7201 = vld [vmem:[#allocation2 + $0x88] sm:$0xf]
        %7202 = vst.msk [vmem:[#allocation3 + $0x4] sm:$0xf] %vm386, %v7170
        %7203 = vst.msk [vmem:[#allocation3 + $0x10] sm:$0xf] %vm386, %v7171
        %7204 = vst.msk [vmem:[#allocation3 + $0x1c] sm:$0xf] %vm386, %v7172
        %7205 = vst.msk [vmem:[#allocation3 + $0x28] sm:$0xf] %vm386, %v7173
        %7206 = vst.msk [vmem:[#allocation3 + $0x34] sm:$0xf] %vm386, %v7174
        %7207 = vst.msk [vmem:[#allocation3 + $0x40] sm:$0xf] %vm386, %v7175
        %7208 = vst.msk [vmem:[#allocation3 + $0x4c] sm:$0xf] %vm386, %v7176
        %7209 = vst.msk [vmem:[#allocation3 + $0x58] sm:$0xf] %vm386, %v7177
        %7210 = vst.msk [vmem:[#allocation3 + $0x64] sm:$0xf] %vm386, %v7178
        %7211 = vst.msk [vmem:[#allocation3 + $0x70] sm:$0xf] %vm386, %v7179
        %7212 = vst.msk [vmem:[#allocation3 + $0x7c] sm:$0xf] %vm386, %v7180
        %7213 = vst.msk [vmem:[#allocation3 + $0x88] sm:$0xf] %vm386, %v7181
        %7214 = vst.msk [vmem:[#allocation3 + $0x94] sm:$0xf] %vm386, %v7182
        %7215 = vst.msk [vmem:[#allocation3 + $0xa0] sm:$0xf] %vm386, %v7183
        %7216 = vst.msk [vmem:[#allocation3 + $0xac] sm:$0xf] %vm386, %v7184
        %7217 = vst.msk [vmem:[#allocation3 + $0xb8] sm:$0xf] %vm386, %v7185
        %7218 = vst.msk [vmem:[#allocation3 + $0xc4] sm:$0xf] %vm386, %v7186
        %7219 = vst.msk [vmem:[#allocation3 + $0xd0] sm:$0xf] %vm386, %v7187
        %7220 = vst.msk [vmem:[#allocation3 + $0xdc] sm:$0xf] %vm386, %v7188
        %7221 = vst.msk [vmem:[#allocation3 + $0xe8] sm:$0xf] %vm386, %v7189
        %7222 = vst.msk [vmem:[#allocation3 + $0xf4] sm:$0xf] %vm386, %v7190
        %7223 = vst.msk [vmem:[#allocation3 + $0x100] sm:$0xf] %vm386, %v7191
        %7224 = vst.msk [vmem:[#allocation3 + $0x10c] sm:$0xf] %vm386, %v7192
        %7225 = vst.msk [vmem:[#allocation3 + $0x118] sm:$0xf] %vm386, %v7193
        %7226 = vst.msk [vmem:[#allocation3 + $0x124] sm:$0xf] %vm386, %v7194
        %7227 = vst.msk [vmem:[#allocation3 + $0x130] sm:$0xf] %vm386, %v7195
        %7228 = vst.msk [vmem:[#allocation3 + $0x13c] sm:$0xf] %vm386, %v7196
        %7229 = vst.msk [vmem:[#allocation3 + $0x148] sm:$0xf] %vm386, %v7197
        %7230 = vst.msk [vmem:[#allocation3 + $0x154] sm:$0xf] %vm386, %v7198
        %7231 = vst.msk [vmem:[#allocation3 + $0x160] sm:$0xf] %vm386, %v7199
        %7232 = vst.msk [vmem:[#allocation3 + $0x16c] sm:$0xf] %vm386, %v7200
        %7233 = vst.msk [vmem:[#allocation3 + $0x178] sm:$0xf] %vm386, %v7201
        %v7234 = vld [vmem:[#allocation2 + $0xc] sm:$0xf]
        %v7235 = vld [vmem:[#allocation2 + $0x10] sm:$0xf]
        %v7236 = vld [vmem:[#allocation2 + $0x14] sm:$0xf]
        %v7237 = vld [vmem:[#allocation2 + $0x18] sm:$0xf]
        %v7238 = vld [vmem:[#allocation2 + $0x1c] sm:$0xf]
        %v7239 = vld [vmem:[#allocation2 + $0x20] sm:$0xf]
        %v7240 = vld [vmem:[#allocation2 + $0x24] sm:$0xf]
        %v7241 = vld [vmem:[#allocation2 + $0x28] sm:$0xf]
        %v7242 = vld [vmem:[#allocation2 + $0x2c] sm:$0xf]
        %v7243 = vld [vmem:[#allocation2 + $0x30] sm:$0xf]
        %v7244 = vld [vmem:[#allocation2 + $0x34] sm:$0xf]
        %v7245 = vld [vmem:[#allocation2 + $0x38] sm:$0xf]
        %v7246 = vld [vmem:[#allocation2 + $0x3c] sm:$0xf]
        %v7247 = vld [vmem:[#allocation2 + $0x40] sm:$0xf]
        %v7248 = vld [vmem:[#allocation2 + $0x44] sm:$0xf]
        %v7249 = vld [vmem:[#allocation2 + $0x48] sm:$0xf]
        %v7250 = vld [vmem:[#allocation2 + $0x4c] sm:$0xf]
        %v7251 = vld [vmem:[#allocation2 + $0x50] sm:$0xf]
        %v7252 = vld [vmem:[#allocation2 + $0x54] sm:$0xf]
        %v7253 = vld [vmem:[#allocation2 + $0x58] sm:$0xf]
        %v7254 = vld [vmem:[#allocation2 + $0x5c] sm:$0xf]
        %v7255 = vld [vmem:[#allocation2 + $0x60] sm:$0xf]
        %v7256 = vld [vmem:[#allocation2 + $0x64] sm:$0xf]
        %v7257 = vld [vmem:[#allocation2 + $0x68] sm:$0xf]
        %v7258 = vld [vmem:[#allocation2 + $0x6c] sm:$0xf]
        %v7259 = vld [vmem:[#allocation2 + $0x70] sm:$0xf]
        %v7260 = vld [vmem:[#allocation2 + $0x74] sm:$0xf]
        %v7261 = vld [vmem:[#allocation2 + $0x78] sm:$0xf]
        %v7262 = vld [vmem:[#allocation2 + $0x7c] sm:$0xf]
        %v7263 = vld [vmem:[#allocation2 + $0x80] sm:$0xf]
        %v7264 = vld [vmem:[#allocation2 + $0x84] sm:$0xf]
        %v7265 = vld [vmem:[#allocation2 + $0x88] sm:$0xf]
        %v7266 = vld [vmem:[#allocation2 + $0x8c] sm:$0x1]
        %v7267 = vmul.bf16 %v7234, %v1533
        %v7268 = vmul.bf16 %v7235, %v1542
        %v7269 = vmul.bf16 %v7236, %v1551
        %v7270 = vmul.bf16 %v7237, %v1560
        %v7271 = vmul.bf16 %v7238, %v1569
        %v7272 = vmul.bf16 %v7239, %v1578
        %v7273 = vmul.bf16 %v7240, %v1587
        %v7274 = vmul.bf16 %v7241, %v1596
        %v7275 = vmul.bf16 %v7242, %v1605
        %v7276 = vmul.bf16 %v7243, %v1614
        %v7277 = vmul.bf16 %v7244, %v1623
        %v7278 = vmul.bf16 %v7245, %v1632
        %v7279 = vmul.bf16 %v7246, %v1641
        %v7280 = vmul.bf16 %v7247, %v1650
        %v7281 = vmul.bf16 %v7248, %v1659
        %v7282 = vmul.bf16 %v7249, %v1668
        %v7283 = vmul.bf16 %v7250, %v1677
        %v7284 = vmul.bf16 %v7251, %v1686
        %v7285 = vmul.bf16 %v7252, %v1695
        %v7286 = vmul.bf16 %v7253, %v1704
        %v7287 = vmul.bf16 %v7254, %v1713
        %v7288 = vmul.bf16 %v7255, %v1722
        %v7289 = vmul.bf16 %v7256, %v1731
        %v7290 = vmul.bf16 %v7257, %v1740
        %v7291 = vmul.bf16 %v7258, %v1749
        %v7292 = vmul.bf16 %v7259, %v1758
        %v7293 = vmul.bf16 %v7260, %v1767
        %v7294 = vmul.bf16 %v7261, %v1776
        %v7295 = vmul.bf16 %v7262, %v1785
        %v7296 = vmul.bf16 %v7263, %v1794
        %v7297 = vmul.bf16 %v7264, %v1803
        %v7298 = vmul.bf16 %v7265, %v1812
        %v7299 = vmul.bf16 %v7266, %v1813
        %v7301 = vshrl.u32 %v7267, 16
        %v7303 = vrot.slane %v7301, 4
        %v7304 = vshll.u32 %v7267, 16
        %v7306 = vrot.slane %v7304, 5
        %v7307 = vor.u32 %v7303, %v7306
        %v7308 = vrot.slane %v7307, 4
        %v7310 = vshll.u32 %v7268, 16
        %v7312 = vrot.slane %v7310, 5
        %v7313 = vsel %vm556, %v7308, %v7312
        %v7314 = vshrl.u32 %v7268, 16
        %v7316 = vrot.slane %v7314, 4
        %v7317 = vor.u32 %v7316, %v7312
        %v7318 = vrot.slane %v7317, 4
        %v7320 = vshll.u32 %v7269, 16
        %v7322 = vrot.slane %v7320, 5
        %v7323 = vsel %vm556, %v7318, %v7322
        %v7324 = vshrl.u32 %v7269, 16
        %v7326 = vrot.slane %v7324, 4
        %v7327 = vor.u32 %v7326, %v7322
        %v7328 = vrot.slane %v7327, 4
        %v7330 = vshll.u32 %v7270, 16
        %v7332 = vrot.slane %v7330, 5
        %v7333 = vsel %vm556, %v7328, %v7332
        %v7334 = vshrl.u32 %v7270, 16
        %v7336 = vrot.slane %v7334, 4
        %v7337 = vor.u32 %v7336, %v7332
        %v7338 = vrot.slane %v7337, 4
        %v7340 = vshll.u32 %v7271, 16
        %v7342 = vrot.slane %v7340, 5
        %v7343 = vsel %vm556, %v7338, %v7342
        %v7344 = vshrl.u32 %v7271, 16
        %v7346 = vrot.slane %v7344, 4
        %v7347 = vor.u32 %v7346, %v7342
        %v7348 = vrot.slane %v7347, 4
        %v7350 = vshll.u32 %v7272, 16
        %v7352 = vrot.slane %v7350, 5
        %v7353 = vsel %vm556, %v7348, %v7352
        %v7354 = vshrl.u32 %v7272, 16
        %v7356 = vrot.slane %v7354, 4
        %v7357 = vor.u32 %v7356, %v7352
        %v7358 = vrot.slane %v7357, 4
        %v7360 = vshll.u32 %v7273, 16
        %v7362 = vrot.slane %v7360, 5
        %v7363 = vsel %vm556, %v7358, %v7362
        %v7364 = vshrl.u32 %v7273, 16
        %v7366 = vrot.slane %v7364, 4
        %v7367 = vor.u32 %v7366, %v7362
        %v7368 = vrot.slane %v7367, 4
        %v7370 = vshll.u32 %v7274, 16
        %v7372 = vrot.slane %v7370, 5
        %v7373 = vsel %vm556, %v7368, %v7372
        %v7374 = vshrl.u32 %v7274, 16
        %v7376 = vrot.slane %v7374, 4
        %v7377 = vor.u32 %v7376, %v7372
        %v7378 = vrot.slane %v7377, 4
        %v7380 = vshll.u32 %v7275, 16
        %v7382 = vrot.slane %v7380, 5
        %v7383 = vsel %vm556, %v7378, %v7382
        %v7384 = vshrl.u32 %v7275, 16
        %v7386 = vrot.slane %v7384, 4
        %v7387 = vor.u32 %v7386, %v7382
        %v7388 = vrot.slane %v7387, 4
        %v7390 = vshll.u32 %v7276, 16
        %v7392 = vrot.slane %v7390, 5
        %v7393 = vsel %vm556, %v7388, %v7392
        %v7394 = vshrl.u32 %v7276, 16
        %v7396 = vrot.slane %v7394, 4
        %v7397 = vor.u32 %v7396, %v7392
        %v7398 = vrot.slane %v7397, 4
        %v7400 = vshll.u32 %v7277, 16
        %v7402 = vrot.slane %v7400, 5
        %v7403 = vsel %vm556, %v7398, %v7402
        %v7404 = vshrl.u32 %v7277, 16
        %v7406 = vrot.slane %v7404, 4
        %v7407 = vor.u32 %v7406, %v7402
        %v7408 = vrot.slane %v7407, 4
        %v7410 = vshll.u32 %v7278, 16
        %v7412 = vrot.slane %v7410, 5
        %v7413 = vsel %vm556, %v7408, %v7412
        %v7414 = vshrl.u32 %v7278, 16
        %v7416 = vrot.slane %v7414, 4
        %v7417 = vor.u32 %v7416, %v7412
        %v7418 = vrot.slane %v7417, 4
        %v7420 = vshll.u32 %v7279, 16
        %v7422 = vrot.slane %v7420, 5
        %v7423 = vsel %vm556, %v7418, %v7422
        %v7424 = vshrl.u32 %v7279, 16
        %v7426 = vrot.slane %v7424, 4
        %v7427 = vor.u32 %v7426, %v7422
        %v7428 = vrot.slane %v7427, 4
        %v7430 = vshll.u32 %v7280, 16
        %v7432 = vrot.slane %v7430, 5
        %v7433 = vsel %vm556, %v7428, %v7432
        %v7434 = vshrl.u32 %v7280, 16
        %v7436 = vrot.slane %v7434, 4
        %v7437 = vor.u32 %v7436, %v7432
        %v7438 = vrot.slane %v7437, 4
        %v7440 = vshll.u32 %v7281, 16
        %v7442 = vrot.slane %v7440, 5
        %v7443 = vsel %vm556, %v7438, %v7442
        %v7444 = vshrl.u32 %v7281, 16
        %v7446 = vrot.slane %v7444, 4
        %v7447 = vor.u32 %v7446, %v7442
        %v7448 = vrot.slane %v7447, 4
        %v7450 = vshll.u32 %v7282, 16
        %v7452 = vrot.slane %v7450, 5
        %v7453 = vsel %vm556, %v7448, %v7452
        %v7454 = vshrl.u32 %v7282, 16
        %v7456 = vrot.slane %v7454, 4
        %v7457 = vor.u32 %v7456, %v7452
        %v7458 = vrot.slane %v7457, 4
        %v7460 = vshll.u32 %v7283, 16
        %v7462 = vrot.slane %v7460, 5
        %v7463 = vsel %vm556, %v7458, %v7462
        %v7464 = vshrl.u32 %v7283, 16
        %v7466 = vrot.slane %v7464, 4
        %v7467 = vor.u32 %v7466, %v7462
        %v7468 = vrot.slane %v7467, 4
        %v7470 = vshll.u32 %v7284, 16
        %v7472 = vrot.slane %v7470, 5
        %v7473 = vsel %vm556, %v7468, %v7472
        %v7474 = vshrl.u32 %v7284, 16
        %v7476 = vrot.slane %v7474, 4
        %v7477 = vor.u32 %v7476, %v7472
        %v7478 = vrot.slane %v7477, 4
        %v7480 = vshll.u32 %v7285, 16
        %v7482 = vrot.slane %v7480, 5
        %v7483 = vsel %vm556, %v7478, %v7482
        %v7484 = vshrl.u32 %v7285, 16
        %v7486 = vrot.slane %v7484, 4
        %v7487 = vor.u32 %v7486, %v7482
        %v7488 = vrot.slane %v7487, 4
        %v7490 = vshll.u32 %v7286, 16
        %v7492 = vrot.slane %v7490, 5
        %v7493 = vsel %vm556, %v7488, %v7492
        %v7494 = vshrl.u32 %v7286, 16
        %v7496 = vrot.slane %v7494, 4
        %v7497 = vor.u32 %v7496, %v7492
        %v7498 = vrot.slane %v7497, 4
        %v7500 = vshll.u32 %v7287, 16
        %v7502 = vrot.slane %v7500, 5
        %v7503 = vsel %vm556, %v7498, %v7502
        %v7504 = vshrl.u32 %v7287, 16
        %v7506 = vrot.slane %v7504, 4
        %v7507 = vor.u32 %v7506, %v7502
        %v7508 = vrot.slane %v7507, 4
        %v7510 = vshll.u32 %v7288, 16
        %v7512 = vrot.slane %v7510, 5
        %v7513 = vsel %vm556, %v7508, %v7512
        %v7514 = vshrl.u32 %v7288, 16
        %v7516 = vrot.slane %v7514, 4
        %v7517 = vor.u32 %v7516, %v7512
        %v7518 = vrot.slane %v7517, 4
        %v7520 = vshll.u32 %v7289, 16
        %v7522 = vrot.slane %v7520, 5
        %v7523 = vsel %vm556, %v7518, %v7522
        %v7524 = vshrl.u32 %v7289, 16
        %v7526 = vrot.slane %v7524, 4
        %v7527 = vor.u32 %v7526, %v7522
        %v7528 = vrot.slane %v7527, 4
        %v7530 = vshll.u32 %v7290, 16
        %v7532 = vrot.slane %v7530, 5
        %v7533 = vsel %vm556, %v7528, %v7532
        %v7534 = vshrl.u32 %v7290, 16
        %v7536 = vrot.slane %v7534, 4
        %v7537 = vor.u32 %v7536, %v7532
        %v7538 = vrot.slane %v7537, 4
        %v7540 = vshll.u32 %v7291, 16
        %v7542 = vrot.slane %v7540, 5
        %v7543 = vsel %vm556, %v7538, %v7542
        %v7544 = vshrl.u32 %v7291, 16
        %v7546 = vrot.slane %v7544, 4
        %v7547 = vor.u32 %v7546, %v7542
        %v7548 = vrot.slane %v7547, 4
        %v7550 = vshll.u32 %v7292, 16
        %v7552 = vrot.slane %v7550, 5
        %v7553 = vsel %vm556, %v7548, %v7552
        %v7554 = vshrl.u32 %v7292, 16
        %v7556 = vrot.slane %v7554, 4
        %v7557 = vor.u32 %v7556, %v7552
        %v7558 = vrot.slane %v7557, 4
        %v7560 = vshll.u32 %v7293, 16
        %v7562 = vrot.slane %v7560, 5
        %v7563 = vsel %vm556, %v7558, %v7562
        %v7564 = vshrl.u32 %v7293, 16
        %v7566 = vrot.slane %v7564, 4
        %v7567 = vor.u32 %v7566, %v7562
        %v7568 = vrot.slane %v7567, 4
        %v7570 = vshll.u32 %v7294, 16
        %v7572 = vrot.slane %v7570, 5
        %v7573 = vsel %vm556, %v7568, %v7572
        %v7574 = vshrl.u32 %v7294, 16
        %v7576 = vrot.slane %v7574, 4
        %v7577 = vor.u32 %v7576, %v7572
        %v7578 = vrot.slane %v7577, 4
        %v7580 = vshll.u32 %v7295, 16
        %v7582 = vrot.slane %v7580, 5
        %v7583 = vsel %vm556, %v7578, %v7582
        %v7584 = vshrl.u32 %v7295, 16
        %v7586 = vrot.slane %v7584, 4
        %v7587 = vor.u32 %v7586, %v7582
        %v7588 = vrot.slane %v7587, 4
        %v7590 = vshll.u32 %v7296, 16
        %v7592 = vrot.slane %v7590, 5
        %v7593 = vsel %vm556, %v7588, %v7592
        %v7594 = vshrl.u32 %v7296, 16
        %v7596 = vrot.slane %v7594, 4
        %v7597 = vor.u32 %v7596, %v7592
        %v7598 = vrot.slane %v7597, 4
        %v7600 = vshll.u32 %v7297, 16
        %v7602 = vrot.slane %v7600, 5
        %v7603 = vsel %vm556, %v7598, %v7602
        %v7604 = vshrl.u32 %v7297, 16
        %v7606 = vrot.slane %v7604, 4
        %v7607 = vor.u32 %v7606, %v7602
        %v7608 = vrot.slane %v7607, 4
        %v7610 = vshll.u32 %v7298, 16
        %v7612 = vrot.slane %v7610, 5
        %v7613 = vsel %vm556, %v7608, %v7612
        %v7614 = vshrl.u32 %v7298, 16
        %v7616 = vrot.slane %v7614, 4
        %v7617 = vor.u32 %v7616, %v7612
        %v7618 = vrot.slane %v7617, 4
        %v7620 = vshll.u32 %v7299, 16
        %v7622 = vrot.slane %v7620, 5
        %v7623 = vsel %vm556, %v7618, %v7622
        %7624 = vrot.lane.b32.xlu0 %v7313, 32
        %v7625 = vpop.permute.xlu0 %7624
        %7626 = vrot.lane.b32.xlu0 %v7323, 32
        %v7627 = vpop.permute.xlu0 %7626
        %7628 = vrot.lane.b32.xlu0 %v7333, 32
        %v7629 = vpop.permute.xlu0 %7628
        %7630 = vrot.lane.b32.xlu0 %v7343, 32
        %v7631 = vpop.permute.xlu0 %7630
        %7632 = vrot.lane.b32.xlu0 %v7353, 32
        %v7633 = vpop.permute.xlu0 %7632
        %7634 = vrot.lane.b32.xlu0 %v7363, 32
        %v7635 = vpop.permute.xlu0 %7634
        %7636 = vrot.lane.b32.xlu0 %v7373, 32
        %v7637 = vpop.permute.xlu0 %7636
        %7638 = vrot.lane.b32.xlu0 %v7383, 32
        %v7639 = vpop.permute.xlu0 %7638
        %7640 = vrot.lane.b32.xlu0 %v7393, 32
        %v7641 = vpop.permute.xlu0 %7640
        %7642 = vrot.lane.b32.xlu0 %v7403, 32
        %v7643 = vpop.permute.xlu0 %7642
        %7644 = vrot.lane.b32.xlu0 %v7413, 32
        %v7645 = vpop.permute.xlu0 %7644
        %7646 = vrot.lane.b32.xlu0 %v7423, 32
        %v7647 = vpop.permute.xlu0 %7646
        %7648 = vrot.lane.b32.xlu0 %v7433, 32
        %v7649 = vpop.permute.xlu0 %7648
        %7650 = vrot.lane.b32.xlu0 %v7443, 32
        %v7651 = vpop.permute.xlu0 %7650
        %7652 = vrot.lane.b32.xlu0 %v7453, 32
        %v7653 = vpop.permute.xlu0 %7652
        %7654 = vrot.lane.b32.xlu0 %v7463, 32
        %v7655 = vpop.permute.xlu0 %7654
        %7656 = vrot.lane.b32.xlu0 %v7473, 32
        %v7657 = vpop.permute.xlu0 %7656
        %7658 = vrot.lane.b32.xlu0 %v7483, 32
        %v7659 = vpop.permute.xlu0 %7658
        %7660 = vrot.lane.b32.xlu0 %v7493, 32
        %v7661 = vpop.permute.xlu0 %7660
        %7662 = vrot.lane.b32.xlu0 %v7503, 32
        %v7663 = vpop.permute.xlu0 %7662
        %7664 = vrot.lane.b32.xlu0 %v7513, 32
        %v7665 = vpop.permute.xlu0 %7664
        %7666 = vrot.lane.b32.xlu0 %v7523, 32
        %v7667 = vpop.permute.xlu0 %7666
        %7668 = vrot.lane.b32.xlu0 %v7533, 32
        %v7669 = vpop.permute.xlu0 %7668
        %7670 = vrot.lane.b32.xlu0 %v7543, 32
        %v7671 = vpop.permute.xlu0 %7670
        %7672 = vrot.lane.b32.xlu0 %v7553, 32
        %v7673 = vpop.permute.xlu0 %7672
        %7674 = vrot.lane.b32.xlu0 %v7563, 32
        %v7675 = vpop.permute.xlu0 %7674
        %7676 = vrot.lane.b32.xlu0 %v7573, 32
        %v7677 = vpop.permute.xlu0 %7676
        %7678 = vrot.lane.b32.xlu0 %v7583, 32
        %v7679 = vpop.permute.xlu0 %7678
        %7680 = vrot.lane.b32.xlu0 %v7593, 32
        %v7681 = vpop.permute.xlu0 %7680
        %7682 = vrot.lane.b32.xlu0 %v7603, 32
        %v7683 = vpop.permute.xlu0 %7682
        %7684 = vrot.lane.b32.xlu0 %v7613, 32
        %v7685 = vpop.permute.xlu0 %7684
        %7686 = vrot.lane.b32.xlu0 %v7623, 32
        %v7687 = vpop.permute.xlu0 %7686
        %7720 = vst.msk [vmem:[#allocation3 + $0x4] sm:$0xf] %vm1461, %v7625
        %7721 = vst.msk [vmem:[#allocation3 + $0x10] sm:$0xf] %vm1461, %v7627
        %7722 = vst.msk [vmem:[#allocation3 + $0x1c] sm:$0xf] %vm1461, %v7629
        %7723 = vst.msk [vmem:[#allocation3 + $0x28] sm:$0xf] %vm1461, %v7631
        %7724 = vst.msk [vmem:[#allocation3 + $0x34] sm:$0xf] %vm1461, %v7633
        %7725 = vst.msk [vmem:[#allocation3 + $0x40] sm:$0xf] %vm1461, %v7635
        %7726 = vst.msk [vmem:[#allocation3 + $0x4c] sm:$0xf] %vm1461, %v7637
        %7727 = vst.msk [vmem:[#allocation3 + $0x58] sm:$0xf] %vm1461, %v7639
        %7728 = vst.msk [vmem:[#allocation3 + $0x64] sm:$0xf] %vm1461, %v7641
        %7729 = vst.msk [vmem:[#allocation3 + $0x70] sm:$0xf] %vm1461, %v7643
        %7730 = vst.msk [vmem:[#allocation3 + $0x7c] sm:$0xf] %vm1461, %v7645
        %7731 = vst.msk [vmem:[#allocation3 + $0x88] sm:$0xf] %vm1461, %v7647
        %7732 = vst.msk [vmem:[#allocation3 + $0x94] sm:$0xf] %vm1461, %v7649
        %7733 = vst.msk [vmem:[#allocation3 + $0xa0] sm:$0xf] %vm1461, %v7651
        %7734 = vst.msk [vmem:[#allocation3 + $0xac] sm:$0xf] %vm1461, %v7653
        %7735 = vst.msk [vmem:[#allocation3 + $0xb8] sm:$0xf] %vm1461, %v7655
        %7736 = vst.msk [vmem:[#allocation3 + $0xc4] sm:$0xf] %vm1461, %v7657
        %7737 = vst.msk [vmem:[#allocation3 + $0xd0] sm:$0xf] %vm1461, %v7659
        %7738 = vst.msk [vmem:[#allocation3 + $0xdc] sm:$0xf] %vm1461, %v7661
        %7739 = vst.msk [vmem:[#allocation3 + $0xe8] sm:$0xf] %vm1461, %v7663
        %7740 = vst.msk [vmem:[#allocation3 + $0xf4] sm:$0xf] %vm1461, %v7665
        %7741 = vst.msk [vmem:[#allocation3 + $0x100] sm:$0xf] %vm1461, %v7667
        %7742 = vst.msk [vmem:[#allocation3 + $0x10c] sm:$0xf] %vm1461, %v7669
        %7743 = vst.msk [vmem:[#allocation3 + $0x118] sm:$0xf] %vm1461, %v7671
        %7744 = vst.msk [vmem:[#allocation3 + $0x124] sm:$0xf] %vm1461, %v7673
        %7745 = vst.msk [vmem:[#allocation3 + $0x130] sm:$0xf] %vm1461, %v7675
        %7746 = vst.msk [vmem:[#allocation3 + $0x13c] sm:$0xf] %vm1461, %v7677
        %7747 = vst.msk [vmem:[#allocation3 + $0x148] sm:$0xf] %vm1461, %v7679
        %7748 = vst.msk [vmem:[#allocation3 + $0x154] sm:$0xf] %vm1461, %v7681
        %7749 = vst.msk [vmem:[#allocation3 + $0x160] sm:$0xf] %vm1461, %v7683
        %7750 = vst.msk [vmem:[#allocation3 + $0x16c] sm:$0xf] %vm1461, %v7685
        %7751 = vst.msk [vmem:[#allocation3 + $0x178] sm:$0xf] %vm1461, %v7687
        %v7752 = vld [vmem:[#allocation2 + $0x10] sm:$0x8]
        %v7753 = vld [vmem:[#allocation2 + $0x14] sm:$0xf]
        %v7754 = vld [vmem:[#allocation2 + $0x18] sm:$0xf]
        %v7755 = vld [vmem:[#allocation2 + $0x1c] sm:$0xf]
        %v7756 = vld [vmem:[#allocation2 + $0x20] sm:$0xf]
        %v7757 = vld [vmem:[#allocation2 + $0x24] sm:$0xf]
        %v7758 = vld [vmem:[#allocation2 + $0x28] sm:$0xf]
        %v7759 = vld [vmem:[#allocation2 + $0x2c] sm:$0xf]
        %v7760 = vld [vmem:[#allocation2 + $0x30] sm:$0xf]
        %v7761 = vld [vmem:[#allocation2 + $0x34] sm:$0xf]
        %v7762 = vld [vmem:[#allocation2 + $0x38] sm:$0xf]
        %v7763 = vld [vmem:[#allocation2 + $0x3c] sm:$0xf]
        %v7764 = vld [vmem:[#allocation2 + $0x40] sm:$0xf]
        %v7765 = vld [vmem:[#allocation2 + $0x44] sm:$0xf]
        %v7766 = vld [vmem:[#allocation2 + $0x48] sm:$0xf]
        %v7767 = vld [vmem:[#allocation2 + $0x4c] sm:$0xf]
        %v7768 = vld [vmem:[#allocation2 + $0x50] sm:$0xf]
        %v7769 = vld [vmem:[#allocation2 + $0x54] sm:$0xf]
        %v7770 = vld [vmem:[#allocation2 + $0x58] sm:$0xf]
        %v7771 = vld [vmem:[#allocation2 + $0x5c] sm:$0xf]
        %v7772 = vld [vmem:[#allocation2 + $0x60] sm:$0xf]
        %v7773 = vld [vmem:[#allocation2 + $0x64] sm:$0xf]
        %v7774 = vld [vmem:[#allocation2 + $0x68] sm:$0xf]
        %v7775 = vld [vmem:[#allocation2 + $0x6c] sm:$0xf]
        %v7776 = vld [vmem:[#allocation2 + $0x70] sm:$0xf]
        %v7777 = vld [vmem:[#allocation2 + $0x74] sm:$0xf]
        %v7778 = vld [vmem:[#allocation2 + $0x78] sm:$0xf]
        %v7779 = vld [vmem:[#allocation2 + $0x7c] sm:$0xf]
        %v7780 = vld [vmem:[#allocation2 + $0x80] sm:$0xf]
        %v7781 = vld [vmem:[#allocation2 + $0x84] sm:$0xf]
        %v7782 = vld [vmem:[#allocation2 + $0x88] sm:$0xf]
        %v7783 = vld [vmem:[#allocation2 + $0x8c] sm:$0xf]
        %v7784 = vld [vmem:[#allocation2 + $0x90] sm:$0xf]
        %v7785 = vmul.bf16 %v7752, %v560
        %v7786 = vmul.bf16 %v7753, %v570
        %v7787 = vmul.bf16 %v7754, %v580
        %v7788 = vmul.bf16 %v7755, %v590
        %v7789 = vmul.bf16 %v7756, %v600
        %v7790 = vmul.bf16 %v7757, %v610
        %v7791 = vmul.bf16 %v7758, %v620
        %v7792 = vmul.bf16 %v7759, %v630
        %v7793 = vmul.bf16 %v7760, %v640
        %v7794 = vmul.bf16 %v7761, %v650
        %v7795 = vmul.bf16 %v7762, %v660
        %v7796 = vmul.bf16 %v7763, %v670
        %v7797 = vmul.bf16 %v7764, %v680
        %v7798 = vmul.bf16 %v7765, %v690
        %v7799 = vmul.bf16 %v7766, %v700
        %v7800 = vmul.bf16 %v7767, %v710
        %v7801 = vmul.bf16 %v7768, %v720
        %v7802 = vmul.bf16 %v7769, %v730
        %v7803 = vmul.bf16 %v7770, %v740
        %v7804 = vmul.bf16 %v7771, %v750
        %v7805 = vmul.bf16 %v7772, %v760
        %v7806 = vmul.bf16 %v7773, %v770
        %v7807 = vmul.bf16 %v7774, %v780
        %v7808 = vmul.bf16 %v7775, %v790
        %v7809 = vmul.bf16 %v7776, %v800
        %v7810 = vmul.bf16 %v7777, %v810
        %v7811 = vmul.bf16 %v7778, %v820
        %v7812 = vmul.bf16 %v7779, %v830
        %v7813 = vmul.bf16 %v7780, %v840
        %v7814 = vmul.bf16 %v7781, %v850
        %v7815 = vmul.bf16 %v7782, %v860
        %v7816 = vmul.bf16 %v7783, %v870
        %v7817 = vmul.bf16 %v7784, %v875
        %v7819 = vshrl.u32 %v7785, 16
        %v7821 = vrot.slane %v7819, 7
        %v7822 = vrot.slane %v7821, 4
        %v7824 = vshrl.u32 %v7786, 16
        %v7826 = vrot.slane %v7824, 7
        %v7827 = vshll.u32 %v7786, 16
        %v7829 = vor.u32 %v7826, %v7827
        %v7830 = vsel %vm944, %v7822, %v7829
        %v7831 = vrot.slane %v7826, 4
        %v7833 = vshrl.u32 %v7787, 16
        %v7835 = vrot.slane %v7833, 7
        %v7836 = vshll.u32 %v7787, 16
        %v7838 = vor.u32 %v7835, %v7836
        %v7839 = vsel %vm944, %v7831, %v7838
        %v7840 = vrot.slane %v7835, 4
        %v7842 = vshrl.u32 %v7788, 16
        %v7844 = vrot.slane %v7842, 7
        %v7845 = vshll.u32 %v7788, 16
        %v7847 = vor.u32 %v7844, %v7845
        %v7848 = vsel %vm944, %v7840, %v7847
        %v7849 = vrot.slane %v7844, 4
        %v7851 = vshrl.u32 %v7789, 16
        %v7853 = vrot.slane %v7851, 7
        %v7854 = vshll.u32 %v7789, 16
        %v7856 = vor.u32 %v7853, %v7854
        %v7857 = vsel %vm944, %v7849, %v7856
        %v7858 = vrot.slane %v7853, 4
        %v7860 = vshrl.u32 %v7790, 16
        %v7862 = vrot.slane %v7860, 7
        %v7863 = vshll.u32 %v7790, 16
        %v7865 = vor.u32 %v7862, %v7863
        %v7866 = vsel %vm944, %v7858, %v7865
        %v7867 = vrot.slane %v7862, 4
        %v7869 = vshrl.u32 %v7791, 16
        %v7871 = vrot.slane %v7869, 7
        %v7872 = vshll.u32 %v7791, 16
        %v7874 = vor.u32 %v7871, %v7872
        %v7875 = vsel %vm944, %v7867, %v7874
        %v7876 = vrot.slane %v7871, 4
        %v7878 = vshrl.u32 %v7792, 16
        %v7880 = vrot.slane %v7878, 7
        %v7881 = vshll.u32 %v7792, 16
        %v7883 = vor.u32 %v7880, %v7881
        %v7884 = vsel %vm944, %v7876, %v7883
        %v7885 = vrot.slane %v7880, 4
        %v7887 = vshrl.u32 %v7793, 16
        %v7889 = vrot.slane %v7887, 7
        %v7890 = vshll.u32 %v7793, 16
        %v7892 = vor.u32 %v7889, %v7890
        %v7893 = vsel %vm944, %v7885, %v7892
        %v7894 = vrot.slane %v7889, 4
        %v7896 = vshrl.u32 %v7794, 16
        %v7898 = vrot.slane %v7896, 7
        %v7899 = vshll.u32 %v7794, 16
        %v7901 = vor.u32 %v7898, %v7899
        %v7902 = vsel %vm944, %v7894, %v7901
        %v7903 = vrot.slane %v7898, 4
        %v7905 = vshrl.u32 %v7795, 16
        %v7907 = vrot.slane %v7905, 7
        %v7908 = vshll.u32 %v7795, 16
        %v7910 = vor.u32 %v7907, %v7908
        %v7911 = vsel %vm944, %v7903, %v7910
        %v7912 = vrot.slane %v7907, 4
        %v7914 = vshrl.u32 %v7796, 16
        %v7916 = vrot.slane %v7914, 7
        %v7917 = vshll.u32 %v7796, 16
        %v7919 = vor.u32 %v7916, %v7917
        %v7920 = vsel %vm944, %v7912, %v7919
        %v7921 = vrot.slane %v7916, 4
        %v7923 = vshrl.u32 %v7797, 16
        %v7925 = vrot.slane %v7923, 7
        %v7926 = vshll.u32 %v7797, 16
        %v7928 = vor.u32 %v7925, %v7926
        %v7929 = vsel %vm944, %v7921, %v7928
        %v7930 = vrot.slane %v7925, 4
        %v7932 = vshrl.u32 %v7798, 16
        %v7934 = vrot.slane %v7932, 7
        %v7935 = vshll.u32 %v7798, 16
        %v7937 = vor.u32 %v7934, %v7935
        %v7938 = vsel %vm944, %v7930, %v7937
        %v7939 = vrot.slane %v7934, 4
        %v7941 = vshrl.u32 %v7799, 16
        %v7943 = vrot.slane %v7941, 7
        %v7944 = vshll.u32 %v7799, 16
        %v7946 = vor.u32 %v7943, %v7944
        %v7947 = vsel %vm944, %v7939, %v7946
        %v7948 = vrot.slane %v7943, 4
        %v7950 = vshrl.u32 %v7800, 16
        %v7952 = vrot.slane %v7950, 7
        %v7953 = vshll.u32 %v7800, 16
        %v7955 = vor.u32 %v7952, %v7953
        %v7956 = vsel %vm944, %v7948, %v7955
        %v7957 = vrot.slane %v7952, 4
        %v7959 = vshrl.u32 %v7801, 16
        %v7961 = vrot.slane %v7959, 7
        %v7962 = vshll.u32 %v7801, 16
        %v7964 = vor.u32 %v7961, %v7962
        %v7965 = vsel %vm944, %v7957, %v7964
        %v7966 = vrot.slane %v7961, 4
        %v7968 = vshrl.u32 %v7802, 16
        %v7970 = vrot.slane %v7968, 7
        %v7971 = vshll.u32 %v7802, 16
        %v7973 = vor.u32 %v7970, %v7971
        %v7974 = vsel %vm944, %v7966, %v7973
        %v7975 = vrot.slane %v7970, 4
        %v7977 = vshrl.u32 %v7803, 16
        %v7979 = vrot.slane %v7977, 7
        %v7980 = vshll.u32 %v7803, 16
        %v7982 = vor.u32 %v7979, %v7980
        %v7983 = vsel %vm944, %v7975, %v7982
        %v7984 = vrot.slane %v7979, 4
        %v7986 = vshrl.u32 %v7804, 16
        %v7988 = vrot.slane %v7986, 7
        %v7989 = vshll.u32 %v7804, 16
        %v7991 = vor.u32 %v7988, %v7989
        %v7992 = vsel %vm944, %v7984, %v7991
        %v7993 = vrot.slane %v7988, 4
        %v7995 = vshrl.u32 %v7805, 16
        %v7997 = vrot.slane %v7995, 7
        %v7998 = vshll.u32 %v7805, 16
        %v8000 = vor.u32 %v7997, %v7998
        %v8001 = vsel %vm944, %v7993, %v8000
        %v8002 = vrot.slane %v7997, 4
        %v8004 = vshrl.u32 %v7806, 16
        %v8006 = vrot.slane %v8004, 7
        %v8007 = vshll.u32 %v7806, 16
        %v8009 = vor.u32 %v8006, %v8007
        %v8010 = vsel %vm944, %v8002, %v8009
        %v8011 = vrot.slane %v8006, 4
        %v8013 = vshrl.u32 %v7807, 16
        %v8015 = vrot.slane %v8013, 7
        %v8016 = vshll.u32 %v7807, 16
        %v8018 = vor.u32 %v8015, %v8016
        %v8019 = vsel %vm944, %v8011, %v8018
        %v8020 = vrot.slane %v8015, 4
        %v8022 = vshrl.u32 %v7808, 16
        %v8024 = vrot.slane %v8022, 7
        %v8025 = vshll.u32 %v7808, 16
        %v8027 = vor.u32 %v8024, %v8025
        %v8028 = vsel %vm944, %v8020, %v8027
        %v8029 = vrot.slane %v8024, 4
        %v8031 = vshrl.u32 %v7809, 16
        %v8033 = vrot.slane %v8031, 7
        %v8034 = vshll.u32 %v7809, 16
        %v8036 = vor.u32 %v8033, %v8034
        %v8037 = vsel %vm944, %v8029, %v8036
        %v8038 = vrot.slane %v8033, 4
        %v8040 = vshrl.u32 %v7810, 16
        %v8042 = vrot.slane %v8040, 7
        %v8043 = vshll.u32 %v7810, 16
        %v8045 = vor.u32 %v8042, %v8043
        %v8046 = vsel %vm944, %v8038, %v8045
        %v8047 = vrot.slane %v8042, 4
        %v8049 = vshrl.u32 %v7811, 16
        %v8051 = vrot.slane %v8049, 7
        %v8052 = vshll.u32 %v7811, 16
        %v8054 = vor.u32 %v8051, %v8052
        %v8055 = vsel %vm944, %v8047, %v8054
        %v8056 = vrot.slane %v8051, 4
        %v8058 = vshrl.u32 %v7812, 16
        %v8060 = vrot.slane %v8058, 7
        %v8061 = vshll.u32 %v7812, 16
        %v8063 = vor.u32 %v8060, %v8061
        %v8064 = vsel %vm944, %v8056, %v8063
        %v8065 = vrot.slane %v8060, 4
        %v8067 = vshrl.u32 %v7813, 16
        %v8069 = vrot.slane %v8067, 7
        %v8070 = vshll.u32 %v7813, 16
        %v8072 = vor.u32 %v8069, %v8070
        %v8073 = vsel %vm944, %v8065, %v8072
        %v8074 = vrot.slane %v8069, 4
        %v8076 = vshrl.u32 %v7814, 16
        %v8078 = vrot.slane %v8076, 7
        %v8079 = vshll.u32 %v7814, 16
        %v8081 = vor.u32 %v8078, %v8079
        %v8082 = vsel %vm944, %v8074, %v8081
        %v8083 = vrot.slane %v8078, 4
        %v8085 = vshrl.u32 %v7815, 16
        %v8087 = vrot.slane %v8085, 7
        %v8088 = vshll.u32 %v7815, 16
        %v8090 = vor.u32 %v8087, %v8088
        %v8091 = vsel %vm944, %v8083, %v8090
        %v8092 = vrot.slane %v8087, 4
        %v8094 = vshrl.u32 %v7816, 16
        %v8096 = vrot.slane %v8094, 7
        %v8097 = vshll.u32 %v7816, 16
        %v8099 = vor.u32 %v8096, %v8097
        %v8100 = vsel %vm944, %v8092, %v8099
        %v8101 = vrot.slane %v8096, 4
        %v8103 = vshrl.u32 %v7817, 16
        %v8105 = vrot.slane %v8103, 7
        %v8106 = vshll.u32 %v7817, 16
        %v8108 = vor.u32 %v8105, %v8106
        %v8109 = vsel %vm944, %v8101, %v8108
        %8110 = vrot.lane.b32.xlu0 %v7830, 64
        %v8111 = vpop.permute.xlu0 %8110
        %8112 = vrot.lane.b32.xlu0 %v7839, 64
        %v8113 = vpop.permute.xlu0 %8112
        %8114 = vrot.lane.b32.xlu0 %v7848, 64
        %v8115 = vpop.permute.xlu0 %8114
        %8116 = vrot.lane.b32.xlu0 %v7857, 64
        %v8117 = vpop.permute.xlu0 %8116
        %8118 = vrot.lane.b32.xlu0 %v7866, 64
        %v8119 = vpop.permute.xlu0 %8118
        %8120 = vrot.lane.b32.xlu0 %v7875, 64
        %v8121 = vpop.permute.xlu0 %8120
        %8122 = vrot.lane.b32.xlu0 %v7884, 64
        %v8123 = vpop.permute.xlu0 %8122
        %8124 = vrot.lane.b32.xlu0 %v7893, 64
        %v8125 = vpop.permute.xlu0 %8124
        %8126 = vrot.lane.b32.xlu0 %v7902, 64
        %v8127 = vpop.permute.xlu0 %8126
        %8128 = vrot.lane.b32.xlu0 %v7911, 64
        %v8129 = vpop.permute.xlu0 %8128
        %8130 = vrot.lane.b32.xlu0 %v7920, 64
        %v8131 = vpop.permute.xlu0 %8130
        %8132 = vrot.lane.b32.xlu0 %v7929, 64
        %v8133 = vpop.permute.xlu0 %8132
        %8134 = vrot.lane.b32.xlu0 %v7938, 64
        %v8135 = vpop.permute.xlu0 %8134
        %8136 = vrot.lane.b32.xlu0 %v7947, 64
        %v8137 = vpop.permute.xlu0 %8136
        %8138 = vrot.lane.b32.xlu0 %v7956, 64
        %v8139 = vpop.permute.xlu0 %8138
        %8140 = vrot.lane.b32.xlu0 %v7965, 64
        %v8141 = vpop.permute.xlu0 %8140
        %8142 = vrot.lane.b32.xlu0 %v7974, 64
        %v8143 = vpop.permute.xlu0 %8142
        %8144 = vrot.lane.b32.xlu0 %v7983, 64
        %v8145 = vpop.permute.xlu0 %8144
        %8146 = vrot.lane.b32.xlu0 %v7992, 64
        %v8147 = vpop.permute.xlu0 %8146
        %8148 = vrot.lane.b32.xlu0 %v8001, 64
        %v8149 = vpop.permute.xlu0 %8148
        %8150 = vrot.lane.b32.xlu0 %v8010, 64
        %v8151 = vpop.permute.xlu0 %8150
        %8152 = vrot.lane.b32.xlu0 %v8019, 64
        %v8153 = vpop.permute.xlu0 %8152
        %8154 = vrot.lane.b32.xlu0 %v8028, 64
        %v8155 = vpop.permute.xlu0 %8154
        %8156 = vrot.lane.b32.xlu0 %v8037, 64
        %v8157 = vpop.permute.xlu0 %8156
        %8158 = vrot.lane.b32.xlu0 %v8046, 64
        %v8159 = vpop.permute.xlu0 %8158
        %8160 = vrot.lane.b32.xlu0 %v8055, 64
        %v8161 = vpop.permute.xlu0 %8160
        %8162 = vrot.lane.b32.xlu0 %v8064, 64
        %v8163 = vpop.permute.xlu0 %8162
        %8164 = vrot.lane.b32.xlu0 %v8073, 64
        %v8165 = vpop.permute.xlu0 %8164
        %8166 = vrot.lane.b32.xlu0 %v8082, 64
        %v8167 = vpop.permute.xlu0 %8166
        %8168 = vrot.lane.b32.xlu0 %v8091, 64
        %v8169 = vpop.permute.xlu0 %8168
        %8170 = vrot.lane.b32.xlu0 %v8100, 64
        %v8171 = vpop.permute.xlu0 %8170
        %8172 = vrot.lane.b32.xlu0 %v8109, 64
        %v8173 = vpop.permute.xlu0 %8172
        %8206 = vst.msk [vmem:[#allocation3 + $0x4] sm:$0xf] %vm2300, %v8111
        %8207 = vst.msk [vmem:[#allocation3 + $0x10] sm:$0xf] %vm2300, %v8113
        %8208 = vst.msk [vmem:[#allocation3 + $0x1c] sm:$0xf] %vm2300, %v8115
        %8209 = vst.msk [vmem:[#allocation3 + $0x28] sm:$0xf] %vm2300, %v8117
        %8210 = vst.msk [vmem:[#allocation3 + $0x34] sm:$0xf] %vm2300, %v8119
        %8211 = vst.msk [vmem:[#allocation3 + $0x40] sm:$0xf] %vm2300, %v8121
        %8212 = vst.msk [vmem:[#allocation3 + $0x4c] sm:$0xf] %vm2300, %v8123
        %8213 = vst.msk [vmem:[#allocation3 + $0x58] sm:$0xf] %vm2300, %v8125
        %8214 = vst.msk [vmem:[#allocation3 + $0x64] sm:$0xf] %vm2300, %v8127
        %8215 = vst.msk [vmem:[#allocation3 + $0x70] sm:$0xf] %vm2300, %v8129
        %8216 = vst.msk [vmem:[#allocation3 + $0x7c] sm:$0xf] %vm2300, %v8131
        %8217 = vst.msk [vmem:[#allocation3 + $0x88] sm:$0xf] %vm2300, %v8133
        %8218 = vst.msk [vmem:[#allocation3 + $0x94] sm:$0xf] %vm2300, %v8135
        %8219 = vst.msk [vmem:[#allocation3 + $0xa0] sm:$0xf] %vm2300, %v8137
        %8220 = vst.msk [vmem:[#allocation3 + $0xac] sm:$0xf] %vm2300, %v8139
        %8221 = vst.msk [vmem:[#allocation3 + $0xb8] sm:$0xf] %vm2300, %v8141
        %8222 = vst.msk [vmem:[#allocation3 + $0xc4] sm:$0xf] %vm2300, %v8143
        %8223 = vst.msk [vmem:[#allocation3 + $0xd0] sm:$0xf] %vm2300, %v8145
        %8224 = vst.msk [vmem:[#allocation3 + $0xdc] sm:$0xf] %vm2300, %v8147
        %8225 = vst.msk [vmem:[#allocation3 + $0xe8] sm:$0xf] %vm2300, %v8149
        %8226 = vst.msk [vmem:[#allocation3 + $0xf4] sm:$0xf] %vm2300, %v8151
        %8227 = vst.msk [vmem:[#allocation3 + $0x100] sm:$0xf] %vm2300, %v8153
        %8228 = vst.msk [vmem:[#allocation3 + $0x10c] sm:$0xf] %vm2300, %v8155
        %8229 = vst.msk [vmem:[#allocation3 + $0x118] sm:$0xf] %vm2300, %v8157
        %8230 = vst.msk [vmem:[#allocation3 + $0x124] sm:$0xf] %vm2300, %v8159
        %8231 = vst.msk [vmem:[#allocation3 + $0x130] sm:$0xf] %vm2300, %v8161
        %8232 = vst.msk [vmem:[#allocation3 + $0x13c] sm:$0xf] %vm2300, %v8163
        %8233 = vst.msk [vmem:[#allocation3 + $0x148] sm:$0xf] %vm2300, %v8165
        %8234 = vst.msk [vmem:[#allocation3 + $0x154] sm:$0xf] %vm2300, %v8167
        %8235 = vst.msk [vmem:[#allocation3 + $0x160] sm:$0xf] %vm2300, %v8169
        %8236 = vst.msk [vmem:[#allocation3 + $0x16c] sm:$0xf] %vm2300, %v8171
        %8237 = vst.msk [vmem:[#allocation3 + $0x178] sm:$0xf] %vm2300, %v8173
        %v8238 = vld [vmem:[#allocation2 + $0x14] sm:$0xf]
        %v8239 = vld [vmem:[#allocation2 + $0x18] sm:$0xf]
        %v8240 = vld [vmem:[#allocation2 + $0x1c] sm:$0xf]
        %v8241 = vld [vmem:[#allocation2 + $0x20] sm:$0xf]
        %v8242 = vld [vmem:[#allocation2 + $0x24] sm:$0xf]
        %v8243 = vld [vmem:[#allocation2 + $0x28] sm:$0xf]
        %v8244 = vld [vmem:[#allocation2 + $0x2c] sm:$0xf]
        %v8245 = vld [vmem:[#allocation2 + $0x30] sm:$0xf]
        %v8246 = vld [vmem:[#allocation2 + $0x34] sm:$0xf]
        %v8247 = vld [vmem:[#allocation2 + $0x38] sm:$0xf]
        %v8248 = vld [vmem:[#allocation2 + $0x3c] sm:$0xf]
        %v8249 = vld [vmem:[#allocation2 + $0x40] sm:$0xf]
        %v8250 = vld [vmem:[#allocation2 + $0x44] sm:$0xf]
        %v8251 = vld [vmem:[#allocation2 + $0x48] sm:$0xf]
        %v8252 = vld [vmem:[#allocation2 + $0x4c] sm:$0xf]
        %v8253 = vld [vmem:[#allocation2 + $0x50] sm:$0xf]
        %v8254 = vld [vmem:[#allocation2 + $0x54] sm:$0xf]
        %v8255 = vld [vmem:[#allocation2 + $0x58] sm:$0xf]
        %v8256 = vld [vmem:[#allocation2 + $0x5c] sm:$0xf]
        %v8257 = vld [vmem:[#allocation2 + $0x60] sm:$0xf]
        %v8258 = vld [vmem:[#allocation2 + $0x64] sm:$0xf]
        %v8259 = vld [vmem:[#allocation2 + $0x68] sm:$0xf]
        %v8260 = vld [vmem:[#allocation2 + $0x6c] sm:$0xf]
        %v8261 = vld [vmem:[#allocation2 + $0x70] sm:$0xf]
        %v8262 = vld [vmem:[#allocation2 + $0x74] sm:$0xf]
        %v8263 = vld [vmem:[#allocation2 + $0x78] sm:$0xf]
        %v8264 = vld [vmem:[#allocation2 + $0x7c] sm:$0xf]
        %v8265 = vld [vmem:[#allocation2 + $0x80] sm:$0xf]
        %v8266 = vld [vmem:[#allocation2 + $0x84] sm:$0xf]
        %v8267 = vld [vmem:[#allocation2 + $0x88] sm:$0xf]
        %v8268 = vld [vmem:[#allocation2 + $0x8c] sm:$0xf]
        %v8269 = vld [vmem:[#allocation2 + $0x90] sm:$0xf]
        %8302 = vrot.lane.b32.xlu0 %v8238, 96
        %v8303 = vpop.permute.xlu0 %8302
        %8304 = vrot.lane.b32.xlu0 %v8239, 96
        %v8305 = vpop.permute.xlu0 %8304
        %8306 = vrot.lane.b32.xlu0 %v8240, 96
        %v8307 = vpop.permute.xlu0 %8306
        %8308 = vrot.lane.b32.xlu0 %v8241, 96
        %v8309 = vpop.permute.xlu0 %8308
        %8310 = vrot.lane.b32.xlu0 %v8242, 96
        %v8311 = vpop.permute.xlu0 %8310
        %8312 = vrot.lane.b32.xlu0 %v8243, 96
        %v8313 = vpop.permute.xlu0 %8312
        %8314 = vrot.lane.b32.xlu0 %v8244, 96
        %v8315 = vpop.permute.xlu0 %8314
        %8316 = vrot.lane.b32.xlu0 %v8245, 96
        %v8317 = vpop.permute.xlu0 %8316
        %8318 = vrot.lane.b32.xlu0 %v8246, 96
        %v8319 = vpop.permute.xlu0 %8318
        %8320 = vrot.lane.b32.xlu0 %v8247, 96
        %v8321 = vpop.permute.xlu0 %8320
        %8322 = vrot.lane.b32.xlu0 %v8248, 96
        %v8323 = vpop.permute.xlu0 %8322
        %8324 = vrot.lane.b32.xlu0 %v8249, 96
        %v8325 = vpop.permute.xlu0 %8324
        %8326 = vrot.lane.b32.xlu0 %v8250, 96
        %v8327 = vpop.permute.xlu0 %8326
        %8328 = vrot.lane.b32.xlu0 %v8251, 96
        %v8329 = vpop.permute.xlu0 %8328
        %8330 = vrot.lane.b32.xlu0 %v8252, 96
        %v8331 = vpop.permute.xlu0 %8330
        %8332 = vrot.lane.b32.xlu0 %v8253, 96
        %v8333 = vpop.permute.xlu0 %8332
        %8334 = vrot.lane.b32.xlu0 %v8254, 96
        %v8335 = vpop.permute.xlu0 %8334
        %8336 = vrot.lane.b32.xlu0 %v8255, 96
        %v8337 = vpop.permute.xlu0 %8336
        %8338 = vrot.lane.b32.xlu0 %v8256, 96
        %v8339 = vpop.permute.xlu0 %8338
        %8340 = vrot.lane.b32.xlu0 %v8257, 96
        %v8341 = vpop.permute.xlu0 %8340
        %8342 = vrot.lane.b32.xlu0 %v8258, 96
        %v8343 = vpop.permute.xlu0 %8342
        %8344 = vrot.lane.b32.xlu0 %v8259, 96
        %v8345 = vpop.permute.xlu0 %8344
        %8346 = vrot.lane.b32.xlu0 %v8260, 96
        %v8347 = vpop.permute.xlu0 %8346
        %8348 = vrot.lane.b32.xlu0 %v8261, 96
        %v8349 = vpop.permute.xlu0 %8348
        %8350 = vrot.lane.b32.xlu0 %v8262, 96
        %v8351 = vpop.permute.xlu0 %8350
        %8352 = vrot.lane.b32.xlu0 %v8263, 96
        %v8353 = vpop.permute.xlu0 %8352
        %8354 = vrot.lane.b32.xlu0 %v8264, 96
        %v8355 = vpop.permute.xlu0 %8354
        %8356 = vrot.lane.b32.xlu0 %v8265, 96
        %v8357 = vpop.permute.xlu0 %8356
        %8358 = vrot.lane.b32.xlu0 %v8266, 96
        %v8359 = vpop.permute.xlu0 %8358
        %8360 = vrot.lane.b32.xlu0 %v8267, 96
        %v8361 = vpop.permute.xlu0 %8360
        %8362 = vrot.lane.b32.xlu0 %v8268, 96
        %v8363 = vpop.permute.xlu0 %8362
        %8364 = vrot.lane.b32.xlu0 %v8269, 96
        %v8365 = vpop.permute.xlu0 %8364
        %8398 = vst.msk [vmem:[#allocation3 + $0x4] sm:$0xf] %vm2787, %v8303
        %8399 = vst.msk [vmem:[#allocation3 + $0x10] sm:$0xf] %vm2787, %v8305
        %8400 = vst.msk [vmem:[#allocation3 + $0x1c] sm:$0xf] %vm2787, %v8307
        %8401 = vst.msk [vmem:[#allocation3 + $0x28] sm:$0xf] %vm2787, %v8309
        %8402 = vst.msk [vmem:[#allocation3 + $0x34] sm:$0xf] %vm2787, %v8311
        %8403 = vst.msk [vmem:[#allocation3 + $0x40] sm:$0xf] %vm2787, %v8313
        %8404 = vst.msk [vmem:[#allocation3 + $0x4c] sm:$0xf] %vm2787, %v8315
        %8405 = vst.msk [vmem:[#allocation3 + $0x58] sm:$0xf] %vm2787, %v8317
        %8406 = vst.msk [vmem:[#allocation3 + $0x64] sm:$0xf] %vm2787, %v8319
        %8407 = vst.msk [vmem:[#allocation3 + $0x70] sm:$0xf] %vm2787, %v8321
        %8408 = vst.msk [vmem:[#allocation3 + $0x7c] sm:$0xf] %vm2787, %v8323
        %8409 = vst.msk [vmem:[#allocation3 + $0x88] sm:$0xf] %vm2787, %v8325
        %8410 = vst.msk [vmem:[#allocation3 + $0x94] sm:$0xf] %vm2787, %v8327
        %8411 = vst.msk [vmem:[#allocation3 + $0xa0] sm:$0xf] %vm2787, %v8329
        %8412 = vst.msk [vmem:[#allocation3 + $0xac] sm:$0xf] %vm2787, %v8331
        %8413 = vst.msk [vmem:[#allocation3 + $0xb8] sm:$0xf] %vm2787, %v8333
        %8414 = vst.msk [vmem:[#allocation3 + $0xc4] sm:$0xf] %vm2787, %v8335
        %8415 = vst.msk [vmem:[#allocation3 + $0xd0] sm:$0xf] %vm2787, %v8337
        %8416 = vst.msk [vmem:[#allocation3 + $0xdc] sm:$0xf] %vm2787, %v8339
        %8417 = vst.msk [vmem:[#allocation3 + $0xe8] sm:$0xf] %vm2787, %v8341
        %8418 = vst.msk [vmem:[#allocation3 + $0xf4] sm:$0xf] %vm2787, %v8343
        %8419 = vst.msk [vmem:[#allocation3 + $0x100] sm:$0xf] %vm2787, %v8345
        %8420 = vst.msk [vmem:[#allocation3 + $0x10c] sm:$0xf] %vm2787, %v8347
        %8421 = vst.msk [vmem:[#allocation3 + $0x118] sm:$0xf] %vm2787, %v8349
        %8422 = vst.msk [vmem:[#allocation3 + $0x124] sm:$0xf] %vm2787, %v8351
        %8423 = vst.msk [vmem:[#allocation3 + $0x130] sm:$0xf] %vm2787, %v8353
        %8424 = vst.msk [vmem:[#allocation3 + $0x13c] sm:$0xf] %vm2787, %v8355
        %8425 = vst.msk [vmem:[#allocation3 + $0x148] sm:$0xf] %vm2787, %v8357
        %8426 = vst.msk [vmem:[#allocation3 + $0x154] sm:$0xf] %vm2787, %v8359
        %8427 = vst.msk [vmem:[#allocation3 + $0x160] sm:$0xf] %vm2787, %v8361
        %8428 = vst.msk [vmem:[#allocation3 + $0x16c] sm:$0xf] %vm2787, %v8363
        %8429 = vst.msk [vmem:[#allocation3 + $0x178] sm:$0xf] %vm2787, %v8365
        %v8430 = vld [vmem:[#allocation2 + $0x14] sm:$0xf]
        %v8431 = vld [vmem:[#allocation2 + $0x18] sm:$0xf]
        %v8432 = vld [vmem:[#allocation2 + $0x1c] sm:$0xf]
        %v8433 = vld [vmem:[#allocation2 + $0x20] sm:$0xf]
        %v8434 = vld [vmem:[#allocation2 + $0x24] sm:$0xf]
        %v8435 = vld [vmem:[#allocation2 + $0x28] sm:$0xf]
        %v8436 = vld [vmem:[#allocation2 + $0x2c] sm:$0xf]
        %v8437 = vld [vmem:[#allocation2 + $0x30] sm:$0xf]
        %v8438 = vld [vmem:[#allocation2 + $0x34] sm:$0xf]
        %v8439 = vld [vmem:[#allocation2 + $0x38] sm:$0xf]
        %v8440 = vld [vmem:[#allocation2 + $0x3c] sm:$0xf]
        %v8441 = vld [vmem:[#allocation2 + $0x40] sm:$0xf]
        %v8442 = vld [vmem:[#allocation2 + $0x44] sm:$0xf]
        %v8443 = vld [vmem:[#allocation2 + $0x48] sm:$0xf]
        %v8444 = vld [vmem:[#allocation2 + $0x4c] sm:$0xf]
        %v8445 = vld [vmem:[#allocation2 + $0x50] sm:$0xf]
        %v8446 = vld [vmem:[#allocation2 + $0x54] sm:$0xf]
        %v8447 = vld [vmem:[#allocation2 + $0x58] sm:$0xf]
        %v8448 = vld [vmem:[#allocation2 + $0x5c] sm:$0xf]
        %v8449 = vld [vmem:[#allocation2 + $0x60] sm:$0xf]
        %v8450 = vld [vmem:[#allocation2 + $0x64] sm:$0xf]
        %v8451 = vld [vmem:[#allocation2 + $0x68] sm:$0xf]
        %v8452 = vld [vmem:[#allocation2 + $0x6c] sm:$0xf]
        %v8453 = vld [vmem:[#allocation2 + $0x70] sm:$0xf]
        %v8454 = vld [vmem:[#allocation2 + $0x74] sm:$0xf]
        %v8455 = vld [vmem:[#allocation2 + $0x78] sm:$0xf]
        %v8456 = vld [vmem:[#allocation2 + $0x7c] sm:$0xf]
        %v8457 = vld [vmem:[#allocation2 + $0x80] sm:$0xf]
        %v8458 = vld [vmem:[#allocation2 + $0x84] sm:$0xf]
        %v8459 = vld [vmem:[#allocation2 + $0x88] sm:$0xf]
        %v8460 = vld [vmem:[#allocation2 + $0x8c] sm:$0xf]
        %v8461 = vld [vmem:[#allocation2 + $0x90] sm:$0xf]
        %v8462 = vld [vmem:[#allocation2 + $0x94] sm:$0x1]
        %v8463 = vmul.bf16 %v8430, %v1533
        %v8464 = vmul.bf16 %v8431, %v1542
        %v8465 = vmul.bf16 %v8432, %v1551
        %v8466 = vmul.bf16 %v8433, %v1560
        %v8467 = vmul.bf16 %v8434, %v1569
        %v8468 = vmul.bf16 %v8435, %v1578
        %v8469 = vmul.bf16 %v8436, %v1587
        %v8470 = vmul.bf16 %v8437, %v1596
        %v8471 = vmul.bf16 %v8438, %v1605
        %v8472 = vmul.bf16 %v8439, %v1614
        %v8473 = vmul.bf16 %v8440, %v1623
        %v8474 = vmul.bf16 %v8441, %v1632
        %v8475 = vmul.bf16 %v8442, %v1641
        %v8476 = vmul.bf16 %v8443, %v1650
        %v8477 = vmul.bf16 %v8444, %v1659
        %v8478 = vmul.bf16 %v8445, %v1668
        %v8479 = vmul.bf16 %v8446, %v1677
        %v8480 = vmul.bf16 %v8447, %v1686
        %v8481 = vmul.bf16 %v8448, %v1695
        %v8482 = vmul.bf16 %v8449, %v1704
        %v8483 = vmul.bf16 %v8450, %v1713
        %v8484 = vmul.bf16 %v8451, %v1722
        %v8485 = vmul.bf16 %v8452, %v1731
        %v8486 = vmul.bf16 %v8453, %v1740
        %v8487 = vmul.bf16 %v8454, %v1749
        %v8488 = vmul.bf16 %v8455, %v1758
        %v8489 = vmul.bf16 %v8456, %v1767
        %v8490 = vmul.bf16 %v8457, %v1776
        %v8491 = vmul.bf16 %v8458, %v1785
        %v8492 = vmul.bf16 %v8459, %v1794
        %v8493 = vmul.bf16 %v8460, %v1803
        %v8494 = vmul.bf16 %v8461, %v1812
        %v8495 = vmul.bf16 %v8462, %v1813
        %v8497 = vshrl.u32 %v8463, 16
        %v8499 = vrot.slane %v8497, 4
        %v8500 = vshll.u32 %v8463, 16
        %v8502 = vrot.slane %v8500, 5
        %v8503 = vor.u32 %v8499, %v8502
        %v8504 = vrot.slane %v8503, 4
        %v8506 = vshll.u32 %v8464, 16
        %v8508 = vrot.slane %v8506, 5
        %v8509 = vsel %vm556, %v8504, %v8508
        %v8510 = vshrl.u32 %v8464, 16
        %v8512 = vrot.slane %v8510, 4
        %v8513 = vor.u32 %v8512, %v8508
        %v8514 = vrot.slane %v8513, 4
        %v8516 = vshll.u32 %v8465, 16
        %v8518 = vrot.slane %v8516, 5
        %v8519 = vsel %vm556, %v8514, %v8518
        %v8520 = vshrl.u32 %v8465, 16
        %v8522 = vrot.slane %v8520, 4
        %v8523 = vor.u32 %v8522, %v8518
        %v8524 = vrot.slane %v8523, 4
        %v8526 = vshll.u32 %v8466, 16
        %v8528 = vrot.slane %v8526, 5
        %v8529 = vsel %vm556, %v8524, %v8528
        %v8530 = vshrl.u32 %v8466, 16
        %v8532 = vrot.slane %v8530, 4
        %v8533 = vor.u32 %v8532, %v8528
        %v8534 = vrot.slane %v8533, 4
        %v8536 = vshll.u32 %v8467, 16
        %v8538 = vrot.slane %v8536, 5
        %v8539 = vsel %vm556, %v8534, %v8538
        %v8540 = vshrl.u32 %v8467, 16
        %v8542 = vrot.slane %v8540, 4
        %v8543 = vor.u32 %v8542, %v8538
        %v8544 = vrot.slane %v8543, 4
        %v8546 = vshll.u32 %v8468, 16
        %v8548 = vrot.slane %v8546, 5
        %v8549 = vsel %vm556, %v8544, %v8548
        %v8550 = vshrl.u32 %v8468, 16
        %v8552 = vrot.slane %v8550, 4
        %v8553 = vor.u32 %v8552, %v8548
        %v8554 = vrot.slane %v8553, 4
        %v8556 = vshll.u32 %v8469, 16
        %v8558 = vrot.slane %v8556, 5
        %v8559 = vsel %vm556, %v8554, %v8558
        %v8560 = vshrl.u32 %v8469, 16
        %v8562 = vrot.slane %v8560, 4
        %v8563 = vor.u32 %v8562, %v8558
        %v8564 = vrot.slane %v8563, 4
        %v8566 = vshll.u32 %v8470, 16
        %v8568 = vrot.slane %v8566, 5
        %v8569 = vsel %vm556, %v8564, %v8568
        %v8570 = vshrl.u32 %v8470, 16
        %v8572 = vrot.slane %v8570, 4
        %v8573 = vor.u32 %v8572, %v8568
        %v8574 = vrot.slane %v8573, 4
        %v8576 = vshll.u32 %v8471, 16
        %v8578 = vrot.slane %v8576, 5
        %v8579 = vsel %vm556, %v8574, %v8578
        %v8580 = vshrl.u32 %v8471, 16
        %v8582 = vrot.slane %v8580, 4
        %v8583 = vor.u32 %v8582, %v8578
        %v8584 = vrot.slane %v8583, 4
        %v8586 = vshll.u32 %v8472, 16
        %v8588 = vrot.slane %v8586, 5
        %v8589 = vsel %vm556, %v8584, %v8588
        %v8590 = vshrl.u32 %v8472, 16
        %v8592 = vrot.slane %v8590, 4
        %v8593 = vor.u32 %v8592, %v8588
        %v8594 = vrot.slane %v8593, 4
        %v8596 = vshll.u32 %v8473, 16
        %v8598 = vrot.slane %v8596, 5
        %v8599 = vsel %vm556, %v8594, %v8598
        %v8600 = vshrl.u32 %v8473, 16
        %v8602 = vrot.slane %v8600, 4
        %v8603 = vor.u32 %v8602, %v8598
        %v8604 = vrot.slane %v8603, 4
        %v8606 = vshll.u32 %v8474, 16
        %v8608 = vrot.slane %v8606, 5
        %v8609 = vsel %vm556, %v8604, %v8608
        %v8610 = vshrl.u32 %v8474, 16
        %v8612 = vrot.slane %v8610, 4
        %v8613 = vor.u32 %v8612, %v8608
        %v8614 = vrot.slane %v8613, 4
        %v8616 = vshll.u32 %v8475, 16
        %v8618 = vrot.slane %v8616, 5
        %v8619 = vsel %vm556, %v8614, %v8618
        %v8620 = vshrl.u32 %v8475, 16
        %v8622 = vrot.slane %v8620, 4
        %v8623 = vor.u32 %v8622, %v8618
        %v8624 = vrot.slane %v8623, 4
        %v8626 = vshll.u32 %v8476, 16
        %v8628 = vrot.slane %v8626, 5
        %v8629 = vsel %vm556, %v8624, %v8628
        %v8630 = vshrl.u32 %v8476, 16
        %v8632 = vrot.slane %v8630, 4
        %v8633 = vor.u32 %v8632, %v8628
        %v8634 = vrot.slane %v8633, 4
        %v8636 = vshll.u32 %v8477, 16
        %v8638 = vrot.slane %v8636, 5
        %v8639 = vsel %vm556, %v8634, %v8638
        %v8640 = vshrl.u32 %v8477, 16
        %v8642 = vrot.slane %v8640, 4
        %v8643 = vor.u32 %v8642, %v8638
        %v8644 = vrot.slane %v8643, 4
        %v8646 = vshll.u32 %v8478, 16
        %v8648 = vrot.slane %v8646, 5
        %v8649 = vsel %vm556, %v8644, %v8648
        %v8650 = vshrl.u32 %v8478, 16
        %v8652 = vrot.slane %v8650, 4
        %v8653 = vor.u32 %v8652, %v8648
        %v8654 = vrot.slane %v8653, 4
        %v8656 = vshll.u32 %v8479, 16
        %v8658 = vrot.slane %v8656, 5
        %v8659 = vsel %vm556, %v8654, %v8658
        %v8660 = vshrl.u32 %v8479, 16
        %v8662 = vrot.slane %v8660, 4
        %v8663 = vor.u32 %v8662, %v8658
        %v8664 = vrot.slane %v8663, 4
        %v8666 = vshll.u32 %v8480, 16
        %v8668 = vrot.slane %v8666, 5
        %v8669 = vsel %vm556, %v8664, %v8668
        %v8670 = vshrl.u32 %v8480, 16
        %v8672 = vrot.slane %v8670, 4
        %v8673 = vor.u32 %v8672, %v8668
        %v8674 = vrot.slane %v8673, 4
        %v8676 = vshll.u32 %v8481, 16
        %v8678 = vrot.slane %v8676, 5
        %v8679 = vsel %vm556, %v8674, %v8678
        %v8680 = vshrl.u32 %v8481, 16
        %v8682 = vrot.slane %v8680, 4
        %v8683 = vor.u32 %v8682, %v8678
        %v8684 = vrot.slane %v8683, 4
        %v8686 = vshll.u32 %v8482, 16
        %v8688 = vrot.slane %v8686, 5
        %v8689 = vsel %vm556, %v8684, %v8688
        %v8690 = vshrl.u32 %v8482, 16
        %v8692 = vrot.slane %v8690, 4
        %v8693 = vor.u32 %v8692, %v8688
        %v8694 = vrot.slane %v8693, 4
        %v8696 = vshll.u32 %v8483, 16
        %v8698 = vrot.slane %v8696, 5
        %v8699 = vsel %vm556, %v8694, %v8698
        %v8700 = vshrl.u32 %v8483, 16
        %v8702 = vrot.slane %v8700, 4
        %v8703 = vor.u32 %v8702, %v8698
        %v8704 = vrot.slane %v8703, 4
        %v8706 = vshll.u32 %v8484, 16
        %v8708 = vrot.slane %v8706, 5
        %v8709 = vsel %vm556, %v8704, %v8708
        %v8710 = vshrl.u32 %v8484, 16
        %v8712 = vrot.slane %v8710, 4
        %v8713 = vor.u32 %v8712, %v8708
        %v8714 = vrot.slane %v8713, 4
        %v8716 = vshll.u32 %v8485, 16
        %v8718 = vrot.slane %v8716, 5
        %v8719 = vsel %vm556, %v8714, %v8718
        %v8720 = vshrl.u32 %v8485, 16
        %v8722 = vrot.slane %v8720, 4
        %v8723 = vor.u32 %v8722, %v8718
        %v8724 = vrot.slane %v8723, 4
        %v8726 = vshll.u32 %v8486, 16
        %v8728 = vrot.slane %v8726, 5
        %v8729 = vsel %vm556, %v8724, %v8728
        %v8730 = vshrl.u32 %v8486, 16
        %v8732 = vrot.slane %v8730, 4
        %v8733 = vor.u32 %v8732, %v8728
        %v8734 = vrot.slane %v8733, 4
        %v8736 = vshll.u32 %v8487, 16
        %v8738 = vrot.slane %v8736, 5
        %v8739 = vsel %vm556, %v8734, %v8738
        %v8740 = vshrl.u32 %v8487, 16
        %v8742 = vrot.slane %v8740, 4
        %v8743 = vor.u32 %v8742, %v8738
        %v8744 = vrot.slane %v8743, 4
        %v8746 = vshll.u32 %v8488, 16
        %v8748 = vrot.slane %v8746, 5
        %v8749 = vsel %vm556, %v8744, %v8748
        %v8750 = vshrl.u32 %v8488, 16
        %v8752 = vrot.slane %v8750, 4
        %v8753 = vor.u32 %v8752, %v8748
        %v8754 = vrot.slane %v8753, 4
        %v8756 = vshll.u32 %v8489, 16
        %v8758 = vrot.slane %v8756, 5
        %v8759 = vsel %vm556, %v8754, %v8758
        %v8760 = vshrl.u32 %v8489, 16
        %v8762 = vrot.slane %v8760, 4
        %v8763 = vor.u32 %v8762, %v8758
        %v8764 = vrot.slane %v8763, 4
        %v8766 = vshll.u32 %v8490, 16
        %v8768 = vrot.slane %v8766, 5
        %v8769 = vsel %vm556, %v8764, %v8768
        %v8770 = vshrl.u32 %v8490, 16
        %v8772 = vrot.slane %v8770, 4
        %v8773 = vor.u32 %v8772, %v8768
        %v8774 = vrot.slane %v8773, 4
        %v8776 = vshll.u32 %v8491, 16
        %v8778 = vrot.slane %v8776, 5
        %v8779 = vsel %vm556, %v8774, %v8778
        %v8780 = vshrl.u32 %v8491, 16
        %v8782 = vrot.slane %v8780, 4
        %v8783 = vor.u32 %v8782, %v8778
        %v8784 = vrot.slane %v8783, 4
        %v8786 = vshll.u32 %v8492, 16
        %v8788 = vrot.slane %v8786, 5
        %v8789 = vsel %vm556, %v8784, %v8788
        %v8790 = vshrl.u32 %v8492, 16
        %v8792 = vrot.slane %v8790, 4
        %v8793 = vor.u32 %v8792, %v8788
        %v8794 = vrot.slane %v8793, 4
        %v8796 = vshll.u32 %v8493, 16
        %v8798 = vrot.slane %v8796, 5
        %v8799 = vsel %vm556, %v8794, %v8798
        %v8800 = vshrl.u32 %v8493, 16
        %v8802 = vrot.slane %v8800, 4
        %v8803 = vor.u32 %v8802, %v8798
        %v8804 = vrot.slane %v8803, 4
        %v8806 = vshll.u32 %v8494, 16
        %v8808 = vrot.slane %v8806, 5
        %v8809 = vsel %vm556, %v8804, %v8808
        %v8810 = vshrl.u32 %v8494, 16
        %v8812 = vrot.slane %v8810, 4
        %v8813 = vor.u32 %v8812, %v8808
        %v8814 = vrot.slane %v8813, 4
        %v8816 = vshll.u32 %v8495, 16
        %v8818 = vrot.slane %v8816, 5
        %v8819 = vsel %vm556, %v8814, %v8818
        %8852 = vst.msk [vmem:[#allocation3 + $0x8] sm:$0xf] %vm386, %v8509
        %8853 = vst.msk [vmem:[#allocation3 + $0x14] sm:$0xf] %vm386, %v8519
        %8854 = vst.msk [vmem:[#allocation3 + $0x20] sm:$0xf] %vm386, %v8529
        %8855 = vst.msk [vmem:[#allocation3 + $0x2c] sm:$0xf] %vm386, %v8539
        %8856 = vst.msk [vmem:[#allocation3 + $0x38] sm:$0xf] %vm386, %v8549
        %8857 = vst.msk [vmem:[#allocation3 + $0x44] sm:$0xf] %vm386, %v8559
        %8858 = vst.msk [vmem:[#allocation3 + $0x50] sm:$0xf] %vm386, %v8569
        %8859 = vst.msk [vmem:[#allocation3 + $0x5c] sm:$0xf] %vm386, %v8579
        %8860 = vst.msk [vmem:[#allocation3 + $0x68] sm:$0xf] %vm386, %v8589
        %8861 = vst.msk [vmem:[#allocation3 + $0x74] sm:$0xf] %vm386, %v8599
        %8862 = vst.msk [vmem:[#allocation3 + $0x80] sm:$0xf] %vm386, %v8609
        %8863 = vst.msk [vmem:[#allocation3 + $0x8c] sm:$0xf] %vm386, %v8619
        %8864 = vst.msk [vmem:[#allocation3 + $0x98] sm:$0xf] %vm386, %v8629
        %8865 = vst.msk [vmem:[#allocation3 + $0xa4] sm:$0xf] %vm386, %v8639
        %8866 = vst.msk [vmem:[#allocation3 + $0xb0] sm:$0xf] %vm386, %v8649
        %8867 = vst.msk [vmem:[#allocation3 + $0xbc] sm:$0xf] %vm386, %v8659
        %8868 = vst.msk [vmem:[#allocation3 + $0xc8] sm:$0xf] %vm386, %v8669
        %8869 = vst.msk [vmem:[#allocation3 + $0xd4] sm:$0xf] %vm386, %v8679
        %8870 = vst.msk [vmem:[#allocation3 + $0xe0] sm:$0xf] %vm386, %v8689
        %8871 = vst.msk [vmem:[#allocation3 + $0xec] sm:$0xf] %vm386, %v8699
        %8872 = vst.msk [vmem:[#allocation3 + $0xf8] sm:$0xf] %vm386, %v8709
        %8873 = vst.msk [vmem:[#allocation3 + $0x104] sm:$0xf] %vm386, %v8719
        %8874 = vst.msk [vmem:[#allocation3 + $0x110] sm:$0xf] %vm386, %v8729
        %8875 = vst.msk [vmem:[#allocation3 + $0x11c] sm:$0xf] %vm386, %v8739
        %8876 = vst.msk [vmem:[#allocation3 + $0x128] sm:$0xf] %vm386, %v8749
        %8877 = vst.msk [vmem:[#allocation3 + $0x134] sm:$0xf] %vm386, %v8759
        %8878 = vst.msk [vmem:[#allocation3 + $0x140] sm:$0xf] %vm386, %v8769
        %8879 = vst.msk [vmem:[#allocation3 + $0x14c] sm:$0xf] %vm386, %v8779
        %8880 = vst.msk [vmem:[#allocation3 + $0x158] sm:$0xf] %vm386, %v8789
        %8881 = vst.msk [vmem:[#allocation3 + $0x164] sm:$0xf] %vm386, %v8799
        %8882 = vst.msk [vmem:[#allocation3 + $0x170] sm:$0xf] %vm386, %v8809
        %8883 = vst.msk [vmem:[#allocation3 + $0x17c] sm:$0xf] %vm386, %v8819
        %v8884 = vld [vmem:[#allocation3] sm:$0xff]
        %v8885 = vld [vmem:[#allocation3 + $0x8] sm:$0xf]
        %v8886 = vld [vmem:[#allocation3 + $0xc] sm:$0xff]
        %v8887 = vld [vmem:[#allocation3 + $0x14] sm:$0xf]
        %v8888 = vld [vmem:[#allocation3 + $0x18] sm:$0xff]
        %v8889 = vld [vmem:[#allocation3 + $0x20] sm:$0xf]
        %v8890 = vld [vmem:[#allocation3 + $0x24] sm:$0xff]
        %v8891 = vld [vmem:[#allocation3 + $0x2c] sm:$0xf]
        %v8892 = vld [vmem:[#allocation3 + $0x30] sm:$0xff]
        %v8893 = vld [vmem:[#allocation3 + $0x38] sm:$0xf]
        %v8894 = vld [vmem:[#allocation3 + $0x3c] sm:$0xff]
        %v8895 = vld [vmem:[#allocation3 + $0x44] sm:$0xf]
        %v8896 = vld [vmem:[#allocation3 + $0x48] sm:$0xff]
        %v8897 = vld [vmem:[#allocation3 + $0x50] sm:$0xf]
        %v8898 = vld [vmem:[#allocation3 + $0x54] sm:$0xff]
        %v8899 = vld [vmem:[#allocation3 + $0x5c] sm:$0xf]
        %v8900 = vld [vmem:[#allocation3 + $0x60] sm:$0xff]
        %v8901 = vld [vmem:[#allocation3 + $0x68] sm:$0xf]
        %v8902 = vld [vmem:[#allocation3 + $0x6c] sm:$0xff]
        %v8903 = vld [vmem:[#allocation3 + $0x74] sm:$0xf]
        %v8904 = vld [vmem:[#allocation3 + $0x78] sm:$0xff]
        %v8905 = vld [vmem:[#allocation3 + $0x80] sm:$0xf]
        %v8906 = vld [vmem:[#allocation3 + $0x84] sm:$0xff]
        %v8907 = vld [vmem:[#allocation3 + $0x8c] sm:$0xf]
        %v8908 = vld [vmem:[#allocation3 + $0x90] sm:$0xff]
        %v8909 = vld [vmem:[#allocation3 + $0x98] sm:$0xf]
        %v8910 = vld [vmem:[#allocation3 + $0x9c] sm:$0xff]
        %v8911 = vld [vmem:[#allocation3 + $0xa4] sm:$0xf]
        %v8912 = vld [vmem:[#allocation3 + $0xa8] sm:$0xff]
        %v8913 = vld [vmem:[#allocation3 + $0xb0] sm:$0xf]
        %v8914 = vld [vmem:[#allocation3 + $0xb4] sm:$0xff]
        %v8915 = vld [vmem:[#allocation3 + $0xbc] sm:$0xf]
        %v8916 = vld [vmem:[#allocation3 + $0xc0] sm:$0xff]
        %v8917 = vld [vmem:[#allocation3 + $0xc8] sm:$0xf]
        %v8918 = vld [vmem:[#allocation3 + $0xcc] sm:$0xff]
        %v8919 = vld [vmem:[#allocation3 + $0xd4] sm:$0xf]
        %v8920 = vld [vmem:[#allocation3 + $0xd8] sm:$0xff]
        %v8921 = vld [vmem:[#allocation3 + $0xe0] sm:$0xf]
        %v8922 = vld [vmem:[#allocation3 + $0xe4] sm:$0xff]
        %v8923 = vld [vmem:[#allocation3 + $0xec] sm:$0xf]
        %v8924 = vld [vmem:[#allocation3 + $0xf0] sm:$0xff]
        %v8925 = vld [vmem:[#allocation3 + $0xf8] sm:$0xf]
        %v8926 = vld [vmem:[#allocation3 + $0xfc] sm:$0xff]
        %v8927 = vld [vmem:[#allocation3 + $0x104] sm:$0xf]
        %v8928 = vld [vmem:[#allocation3 + $0x108] sm:$0xff]
        %v8929 = vld [vmem:[#allocation3 + $0x110] sm:$0xf]
        %v8930 = vld [vmem:[#allocation3 + $0x114] sm:$0xff]
        %v8931 = vld [vmem:[#allocation3 + $0x11c] sm:$0xf]
        %v8932 = vld [vmem:[#allocation3 + $0x120] sm:$0xff]
        %v8933 = vld [vmem:[#allocation3 + $0x128] sm:$0xf]
        %v8934 = vld [vmem:[#allocation3 + $0x12c] sm:$0xff]
        %v8935 = vld [vmem:[#allocation3 + $0x134] sm:$0xf]
        %v8936 = vld [vmem:[#allocation3 + $0x138] sm:$0xff]
        %v8937 = vld [vmem:[#allocation3 + $0x140] sm:$0xf]
        %v8938 = vld [vmem:[#allocation3 + $0x144] sm:$0xff]
        %v8939 = vld [vmem:[#allocation3 + $0x14c] sm:$0xf]
        %v8940 = vld [vmem:[#allocation3 + $0x150] sm:$0xff]
        %v8941 = vld [vmem:[#allocation3 + $0x158] sm:$0xf]
        %v8942 = vld [vmem:[#allocation3 + $0x15c] sm:$0xff]
        %v8943 = vld [vmem:[#allocation3 + $0x164] sm:$0xf]
        %v8944 = vld [vmem:[#allocation3 + $0x168] sm:$0xff]
        %v8945 = vld [vmem:[#allocation3 + $0x170] sm:$0xf]
        %v8946 = vld [vmem:[#allocation3 + $0x174] sm:$0xff]
        %v8947 = vld [vmem:[#allocation3 + $0x17c] sm:$0xf]
        %v8948 = vld [vmem:[%s5] sm:$0xf]
        %v8949 = vld [vmem:[%s5 + $0x4] sm:$0xf]
        %v8950 = vld [vmem:[%s5 + $0x8] sm:$0xf]
        %v8951 = vld [vmem:[%s5 + $0xc] sm:$0xf]
        %v8952 = vld [vmem:[%s5 + $0x10] sm:$0xf]
        %v8953 = vld [vmem:[%s5 + $0x14] sm:$0xf]
        %v8954 = vld [vmem:[%s5 + $0x18] sm:$0xf]
        %v8955 = vld [vmem:[%s5 + $0x1c] sm:$0xf]
        %v8956 = vld [vmem:[%s5 + $0x20] sm:$0xf]
        %v8957 = vld [vmem:[%s5 + $0x24] sm:$0xf]
        %v8958 = vld [vmem:[%s5 + $0x28] sm:$0xf]
        %v8959 = vld [vmem:[%s5 + $0x2c] sm:$0xf]
        %v8960 = vld [vmem:[%s5 + $0x30] sm:$0xf]
        %v8961 = vld [vmem:[%s5 + $0x34] sm:$0xf]
        %v8962 = vld [vmem:[%s5 + $0x38] sm:$0xf]
        %v8963 = vld [vmem:[%s5 + $0x3c] sm:$0xf]
        %v8964 = vld [vmem:[%s5 + $0x40] sm:$0xf]
        %v8965 = vld [vmem:[%s5 + $0x44] sm:$0xf]
        %v8966 = vld [vmem:[%s5 + $0x48] sm:$0xf]
        %v8967 = vld [vmem:[%s5 + $0x4c] sm:$0xf]
        %v8968 = vld [vmem:[%s5 + $0x50] sm:$0xf]
        %v8969 = vld [vmem:[%s5 + $0x54] sm:$0xf]
        %v8970 = vld [vmem:[%s5 + $0x58] sm:$0xf]
        %v8971 = vld [vmem:[%s5 + $0x5c] sm:$0xf]
        %v8972 = vld [vmem:[%s5 + $0x60] sm:$0xf]
        %v8973 = vld [vmem:[%s5 + $0x64] sm:$0xf]
        %v8974 = vld [vmem:[%s5 + $0x68] sm:$0xf]
        %v8975 = vld [vmem:[%s5 + $0x6c] sm:$0xf]
        %v8976 = vld [vmem:[%s5 + $0x70] sm:$0xf]
        %v8977 = vld [vmem:[%s5 + $0x74] sm:$0xf]
        %v8978 = vld [vmem:[%s5 + $0x78] sm:$0xf]
        %v8979 = vld [vmem:[%s5 + $0x7c] sm:$0xf]
        %v8980 = vld [vmem:[%s5 + $0x80] sm:$0xf]
        %v8981 = vld [vmem:[%s5 + $0x84] sm:$0xf]
        %v8982 = vld [vmem:[%s5 + $0x88] sm:$0xf]
        %v8983 = vld [vmem:[%s5 + $0x8c] sm:$0xf]
        %v8984 = vld [vmem:[%s6] sm:$0x1]
        %v8986 = vlaneseq
        %v8987 = vshrl.u32 %v8986, 7
        %v8988 = vsub.s32 0, %v8987
        %v8989 = vrot.slane %v8984, %v8988
        %v9055 = vunpack.c.l.b16 %v8884
        %v9056 = vunpack.c.h.b16 %v8884
        %v9057 = vunpack.c.l.b16 %v8885
        %v9058 = vunpack.c.l.b16 %v8886
        %v9059 = vunpack.c.h.b16 %v8886
        %v9060 = vunpack.c.l.b16 %v8887
        %v9061 = vunpack.c.l.b16 %v8888
        %v9062 = vunpack.c.h.b16 %v8888
        %v9063 = vunpack.c.l.b16 %v8889
        %v9064 = vunpack.c.l.b16 %v8890
        %v9065 = vunpack.c.h.b16 %v8890
        %v9066 = vunpack.c.l.b16 %v8891
        %v9067 = vunpack.c.l.b16 %v8892
        %v9068 = vunpack.c.h.b16 %v8892
        %v9069 = vunpack.c.l.b16 %v8893
        %v9070 = vunpack.c.l.b16 %v8894
        %v9071 = vunpack.c.h.b16 %v8894
        %v9072 = vunpack.c.l.b16 %v8895
        %v9073 = vunpack.c.l.b16 %v8896
        %v9074 = vunpack.c.h.b16 %v8896
        %v9075 = vunpack.c.l.b16 %v8897
        %v9076 = vunpack.c.l.b16 %v8898
        %v9077 = vunpack.c.h.b16 %v8898
        %v9078 = vunpack.c.l.b16 %v8899
        %v9079 = vunpack.c.l.b16 %v8900
        %v9080 = vunpack.c.h.b16 %v8900
        %v9081 = vunpack.c.l.b16 %v8901
        %v9082 = vunpack.c.l.b16 %v8902
        %v9083 = vunpack.c.h.b16 %v8902
        %v9084 = vunpack.c.l.b16 %v8903
        %v9085 = vunpack.c.l.b16 %v8904
        %v9086 = vunpack.c.h.b16 %v8904
        %v9087 = vunpack.c.l.b16 %v8905
        %v9088 = vunpack.c.l.b16 %v8906
        %v9089 = vunpack.c.h.b16 %v8906
        %v9090 = vunpack.c.l.b16 %v8907
        %v9091 = vunpack.c.l.b16 %v8908
        %v9092 = vunpack.c.h.b16 %v8908
        %v9093 = vunpack.c.l.b16 %v8909
        %v9094 = vunpack.c.l.b16 %v8910
        %v9095 = vunpack.c.h.b16 %v8910
        %v9096 = vunpack.c.l.b16 %v8911
        %v9097 = vunpack.c.l.b16 %v8912
        %v9098 = vunpack.c.h.b16 %v8912
        %v9099 = vunpack.c.l.b16 %v8913
        %v9100 = vunpack.c.l.b16 %v8914
        %v9101 = vunpack.c.h.b16 %v8914
        %v9102 = vunpack.c.l.b16 %v8915
        %v9103 = vunpack.c.l.b16 %v8916
        %v9104 = vunpack.c.h.b16 %v8916
        %v9105 = vunpack.c.l.b16 %v8917
        %v9106 = vunpack.c.l.b16 %v8918
        %v9107 = vunpack.c.h.b16 %v8918
        %v9108 = vunpack.c.l.b16 %v8919
        %v9109 = vunpack.c.l.b16 %v8920
        %v9110 = vunpack.c.h.b16 %v8920
        %v9111 = vunpack.c.l.b16 %v8921
        %v9112 = vunpack.c.l.b16 %v8922
        %v9113 = vunpack.c.h.b16 %v8922
        %v9114 = vunpack.c.l.b16 %v8923
        %v9115 = vunpack.c.l.b16 %v8924
        %v9116 = vunpack.c.h.b16 %v8924
        %v9117 = vunpack.c.l.b16 %v8925
        %v9118 = vunpack.c.l.b16 %v8926
        %v9119 = vunpack.c.h.b16 %v8926
        %v9120 = vunpack.c.l.b16 %v8927
        %v9121 = vunpack.c.l.b16 %v8928
        %v9122 = vunpack.c.h.b16 %v8928
        %v9123 = vunpack.c.l.b16 %v8929
        %v9124 = vunpack.c.l.b16 %v8930
        %v9125 = vunpack.c.h.b16 %v8930
        %v9126 = vunpack.c.l.b16 %v8931
        %v9127 = vunpack.c.l.b16 %v8932
        %v9128 = vunpack.c.h.b16 %v8932
        %v9129 = vunpack.c.l.b16 %v8933
        %v9130 = vunpack.c.l.b16 %v8934
        %v9131 = vunpack.c.h.b16 %v8934
        %v9132 = vunpack.c.l.b16 %v8935
        %v9133 = vunpack.c.l.b16 %v8936
        %v9134 = vunpack.c.h.b16 %v8936
        %v9135 = vunpack.c.l.b16 %v8937
        %v9136 = vunpack.c.l.b16 %v8938
        %v9137 = vunpack.c.h.b16 %v8938
        %v9138 = vunpack.c.l.b16 %v8939
        %v9139 = vunpack.c.l.b16 %v8940
        %v9140 = vunpack.c.h.b16 %v8940
        %v9141 = vunpack.c.l.b16 %v8941
        %v9142 = vunpack.c.l.b16 %v8942
        %v9143 = vunpack.c.h.b16 %v8942
        %v9144 = vunpack.c.l.b16 %v8943
        %v9145 = vunpack.c.l.b16 %v8944
        %v9146 = vunpack.c.h.b16 %v8944
        %v9147 = vunpack.c.l.b16 %v8945
        %v9148 = vunpack.c.l.b16 %v8946
        %v9149 = vunpack.c.h.b16 %v8946
        %v9150 = vunpack.c.l.b16 %v8947
        %v9151 = vpack.c.b16 %v9058, %v9055
        %v9152 = vpack.c.b16 %v9059, %v9056
        %v9153 = vpack.c.b16 %v9060, %v9057
        %v9154 = vpack.c.b16 %v9064, %v9061
        %v9155 = vpack.c.b16 %v9065, %v9062
        %v9156 = vpack.c.b16 %v9066, %v9063
        %v9157 = vpack.c.b16 %v9070, %v9067
        %v9158 = vpack.c.b16 %v9071, %v9068
        %v9159 = vpack.c.b16 %v9072, %v9069
        %v9160 = vpack.c.b16 %v9076, %v9073
        %v9161 = vpack.c.b16 %v9077, %v9074
        %v9162 = vpack.c.b16 %v9078, %v9075
        %v9163 = vpack.c.b16 %v9082, %v9079
        %v9164 = vpack.c.b16 %v9083, %v9080
        %v9165 = vpack.c.b16 %v9084, %v9081
        %v9166 = vpack.c.b16 %v9088, %v9085
        %v9167 = vpack.c.b16 %v9089, %v9086
        %v9168 = vpack.c.b16 %v9090, %v9087
        %v9169 = vpack.c.b16 %v9094, %v9091
        %v9170 = vpack.c.b16 %v9095, %v9092
        %v9171 = vpack.c.b16 %v9096, %v9093
        %v9172 = vpack.c.b16 %v9100, %v9097
        %v9173 = vpack.c.b16 %v9101, %v9098
        %v9174 = vpack.c.b16 %v9102, %v9099
        %v9175 = vpack.c.b16 %v9106, %v9103
        %v9176 = vpack.c.b16 %v9107, %v9104
        %v9177 = vpack.c.b16 %v9108, %v9105
        %v9178 = vpack.c.b16 %v9112, %v9109
        %v9179 = vpack.c.b16 %v9113, %v9110
        %v9180 = vpack.c.b16 %v9114, %v9111
        %v9181 = vpack.c.b16 %v9118, %v9115
        %v9182 = vpack.c.b16 %v9119, %v9116
        %v9183 = vpack.c.b16 %v9120, %v9117
        %v9184 = vpack.c.b16 %v9124, %v9121
        %v9185 = vpack.c.b16 %v9125, %v9122
        %v9186 = vpack.c.b16 %v9126, %v9123
        %v9187 = vpack.c.b16 %v9130, %v9127
        %v9188 = vpack.c.b16 %v9131, %v9128
        %v9189 = vpack.c.b16 %v9132, %v9129
        %v9190 = vpack.c.b16 %v9136, %v9133
        %v9191 = vpack.c.b16 %v9137, %v9134
        %v9192 = vpack.c.b16 %v9138, %v9135
        %v9193 = vpack.c.b16 %v9142, %v9139
        %v9194 = vpack.c.b16 %v9143, %v9140
        %v9195 = vpack.c.b16 %v9144, %v9141
        %v9196 = vpack.c.b16 %v9148, %v9145
        %v9197 = vpack.c.b16 %v9149, %v9146
        %v9198 = vpack.c.b16 %v9150, %v9147
        %v9267 = vunpack.c.l.b16 %v8948
        %v9268 = vunpack.c.l.b16 %v8949
        %v9269 = vunpack.c.l.b16 %v8950
        %v9270 = vunpack.c.l.b16 %v8951
        %v9271 = vunpack.c.l.b16 %v8952
        %v9272 = vunpack.c.l.b16 %v8953
        %v9273 = vunpack.c.l.b16 %v8954
        %v9274 = vunpack.c.l.b16 %v8955
        %v9275 = vunpack.c.l.b16 %v8956
        %v9276 = vunpack.c.l.b16 %v8957
        %v9277 = vunpack.c.l.b16 %v8958
        %v9278 = vunpack.c.l.b16 %v8959
        %v9279 = vunpack.c.l.b16 %v8960
        %v9280 = vunpack.c.l.b16 %v8961
        %v9281 = vunpack.c.l.b16 %v8962
        %v9282 = vunpack.c.l.b16 %v8963
        %v9283 = vunpack.c.l.b16 %v8964
        %v9284 = vunpack.c.l.b16 %v8965
        %v9285 = vunpack.c.l.b16 %v8966
        %v9286 = vunpack.c.l.b16 %v8967
        %v9287 = vunpack.c.l.b16 %v8968
        %v9288 = vunpack.c.l.b16 %v8969
        %v9289 = vunpack.c.l.b16 %v8970
        %v9290 = vunpack.c.l.b16 %v8971
        %v9291 = vunpack.c.l.b16 %v8972
        %v9292 = vunpack.c.l.b16 %v8973
        %v9293 = vunpack.c.l.b16 %v8974
        %v9294 = vunpack.c.l.b16 %v8975
        %v9295 = vunpack.c.l.b16 %v8976
        %v9296 = vunpack.c.l.b16 %v8977
        %v9297 = vunpack.c.l.b16 %v8978
        %v9298 = vunpack.c.l.b16 %v8979
        %v9299 = vunpack.c.l.b16 %v8980
        %v9300 = vunpack.c.l.b16 %v8981
        %v9301 = vunpack.c.l.b16 %v8982
        %v9302 = vunpack.c.l.b16 %v8983
        %v9303 = vpack.c.b16 %v9268, %v9267
        %v9304 = vpack.c.b16 %v9270, %v9269
        %v9305 = vpack.c.b16 %v9272, %v9271
        %v9306 = vpack.c.b16 %v9274, %v9273
        %v9307 = vpack.c.b16 %v9276, %v9275
        %v9308 = vpack.c.b16 %v9278, %v9277
        %v9309 = vpack.c.b16 %v9280, %v9279
        %v9310 = vpack.c.b16 %v9282, %v9281
        %v9311 = vpack.c.b16 %v9284, %v9283
        %v9312 = vpack.c.b16 %v9286, %v9285
        %v9313 = vpack.c.b16 %v9288, %v9287
        %v9314 = vpack.c.b16 %v9290, %v9289
        %v9315 = vpack.c.b16 %v9292, %v9291
        %v9316 = vpack.c.b16 %v9294, %v9293
        %v9317 = vpack.c.b16 %v9296, %v9295
        %v9318 = vpack.c.b16 %v9298, %v9297
        %v9319 = vpack.c.b16 %v9300, %v9299
        %v9320 = vpack.c.b16 %v9302, %v9301
        %v9340 = vsel %vm4989, %v9153, 0
        %v9343 = vsel %vm4989, %v9156, 0
        %v9346 = vsel %vm4989, %v9159, 0
        %v9349 = vsel %vm4989, %v9162, 0
        %v9352 = vsel %vm4989, %v9165, 0
        %v9355 = vsel %vm4989, %v9168, 0
        %v9358 = vsel %vm4989, %v9171, 0
        %v9361 = vsel %vm4989, %v9174, 0
        %v9364 = vsel %vm4989, %v9177, 0
        %v9367 = vsel %vm4989, %v9180, 0
        %v9370 = vsel %vm4989, %v9183, 0
        %v9373 = vsel %vm4989, %v9186, 0
        %v9376 = vsel %vm4989, %v9189, 0
        %v9379 = vsel %vm4989, %v9192, 0
        %v9382 = vsel %vm4989, %v9195, 0
        %v9385 = vsel %vm4989, %v9198, 0
        %9387 = vmatprep.subr.bf16.mxu0 0
        %9388 = vmatpush1.bf16.msra.mxu0 %v9310
        %9389 = vmatprep.subr.bf16.mxu0 0
        %9390 = vmatpush1.bf16.msra.mxu0 %v9309
        %9391 = vmatprep.subr.bf16.mxu0 0
        %9392 = vmatpush1.bf16.msra.mxu0 %v9308
        %9393 = vmatprep.subr.bf16.mxu0 0
        %9394 = vmatpush1.bf16.msra.mxu0 %v9307
        %9395 = vmatprep.subr.bf16.mxu0 0
        %9396 = vmatpush1.bf16.msra.mxu0 %v9306
        %9397 = vmatprep.subr.bf16.mxu0 0
        %9398 = vmatpush1.bf16.msra.mxu0 %v9305
        %9399 = vmatprep.subr.bf16.mxu0 0
        %9400 = vmatpush1.bf16.msra.mxu0 %v9304
        %9401 = vmatprep.subr.bf16.mxu0 0
        %9402 = vmatpush1.bf16.msra.mxu0 %v9303
        %9403 = vmatprep.subr.bf16.mxu0 0
        %9404 = vmatpush2.bf16.msra.mxu0 %v9318
        %9405 = vmatprep.subr.bf16.mxu0 0
        %9406 = vmatpush2.bf16.msra.mxu0 %v9317
        %9407 = vmatprep.subr.bf16.mxu0 0
        %9408 = vmatpush2.bf16.msra.mxu0 %v9316
        %9409 = vmatprep.subr.bf16.mxu0 0
        %9410 = vmatpush2.bf16.msra.mxu0 %v9315
        %9411 = vmatprep.subr.bf16.mxu0 0
        %9412 = vmatpush2.bf16.msra.mxu0 %v9314
        %9413 = vmatprep.subr.bf16.mxu0 0
        %9414 = vmatpush2.bf16.msra.mxu0 %v9313
        %9415 = vmatprep.subr.bf16.mxu0 0
        %9416 = vmatpush2.bf16.msra.mxu0 %v9312
        %9417 = vmatprep.subr.bf16.mxu0 0
        %9418 = vmatpush2.bf16.msra.mxu0 %v9311
        %9419 = vmatprep.mubr.bf16.mxu0 %v9152
        %9420 = vmatmul.mubr.bf16.gmra.mxu0 %v9151
        %v9421 = vpop.f32.mrf.mxu0
        %v9422 = vadd.f32 %v8989, %v9421
        %v9423 = vpop.f32.mrf.mxu0
        %v9424 = vpop.f32.mrf.mxu0
        %v9425 = vadd.f32 %v8989, %v9424
        %v9426 = vpop.f32.mrf.mxu0
        %9427 = vmatprep.mubr.bf16.mxu0 %v9155
        %9428 = vmatmul.mubr.bf16.gmra.mxu0 %v9154
        %v9429 = vpop.f32.mrf.mxu0
        %v9430 = vadd.f32 %v8989, %v9429
        %v9431 = vpop.f32.mrf.mxu0
        %v9432 = vpop.f32.mrf.mxu0
        %v9433 = vadd.f32 %v8989, %v9432
        %v9434 = vpop.f32.mrf.mxu0
        %9435 = vmatprep.mubr.bf16.mxu0 %v9158
        %9436 = vmatmul.mubr.bf16.gmra.mxu0 %v9157
        %v9437 = vpop.f32.mrf.mxu0
        %v9438 = vadd.f32 %v8989, %v9437
        %v9439 = vpop.f32.mrf.mxu0
        %v9440 = vpop.f32.mrf.mxu0
        %v9441 = vadd.f32 %v8989, %v9440
        %v9442 = vpop.f32.mrf.mxu0
        %9443 = vmatprep.mubr.bf16.mxu0 %v9161
        %9444 = vmatmul.mubr.bf16.gmra.mxu0 %v9160
        %v9445 = vpop.f32.mrf.mxu0
        %v9446 = vadd.f32 %v8989, %v9445
        %v9447 = vpop.f32.mrf.mxu0
        %v9448 = vpop.f32.mrf.mxu0
        %v9449 = vadd.f32 %v8989, %v9448
        %v9450 = vpop.f32.mrf.mxu0
        %9451 = vmatprep.mubr.bf16.mxu0 %v9164
        %9452 = vmatmul.mubr.bf16.gmra.mxu0 %v9163
        %v9453 = vpop.f32.mrf.mxu0
        %v9454 = vadd.f32 %v8989, %v9453
        %v9455 = vpop.f32.mrf.mxu0
        %v9456 = vpop.f32.mrf.mxu0
        %v9457 = vadd.f32 %v8989, %v9456
        %v9458 = vpop.f32.mrf.mxu0
        %9459 = vmatprep.mubr.bf16.mxu0 %v9167
        %9460 = vmatmul.mubr.bf16.gmra.mxu0 %v9166
        %v9461 = vpop.f32.mrf.mxu0
        %v9462 = vadd.f32 %v8989, %v9461
        %v9463 = vpop.f32.mrf.mxu0
        %v9464 = vpop.f32.mrf.mxu0
        %v9465 = vadd.f32 %v8989, %v9464
        %v9466 = vpop.f32.mrf.mxu0
        %9467 = vmatprep.mubr.bf16.mxu0 %v9170
        %9468 = vmatmul.mubr.bf16.gmra.mxu0 %v9169
        %v9469 = vpop.f32.mrf.mxu0
        %v9470 = vadd.f32 %v8989, %v9469
        %v9471 = vpop.f32.mrf.mxu0
        %v9472 = vpop.f32.mrf.mxu0
        %v9473 = vadd.f32 %v8989, %v9472
        %v9474 = vpop.f32.mrf.mxu0
        %9475 = vmatprep.mubr.bf16.mxu0 %v9173
        %9476 = vmatmul.mubr.bf16.gmra.mxu0 %v9172
        %v9477 = vpop.f32.mrf.mxu0
        %v9478 = vadd.f32 %v8989, %v9477
        %v9479 = vpop.f32.mrf.mxu0
        %v9480 = vpop.f32.mrf.mxu0
        %v9481 = vadd.f32 %v8989, %v9480
        %v9482 = vpop.f32.mrf.mxu0
        %9483 = vmatprep.mubr.bf16.mxu0 %v9176
        %9484 = vmatmul.mubr.bf16.gmra.mxu0 %v9175
        %v9485 = vpop.f32.mrf.mxu0
        %v9486 = vadd.f32 %v8989, %v9485
        %v9487 = vpop.f32.mrf.mxu0
        %v9488 = vpop.f32.mrf.mxu0
        %v9489 = vadd.f32 %v8989, %v9488
        %v9490 = vpop.f32.mrf.mxu0
        %9491 = vmatprep.mubr.bf16.mxu0 %v9179
        %9492 = vmatmul.mubr.bf16.gmra.mxu0 %v9178
        %v9493 = vpop.f32.mrf.mxu0
        %v9494 = vadd.f32 %v8989, %v9493
        %v9495 = vpop.f32.mrf.mxu0
        %v9496 = vpop.f32.mrf.mxu0
        %v9497 = vadd.f32 %v8989, %v9496
        %v9498 = vpop.f32.mrf.mxu0
        %9499 = vmatprep.mubr.bf16.mxu0 %v9182
        %9500 = vmatmul.mubr.bf16.gmra.mxu0 %v9181
        %v9501 = vpop.f32.mrf.mxu0
        %v9502 = vadd.f32 %v8989, %v9501
        %v9503 = vpop.f32.mrf.mxu0
        %v9504 = vpop.f32.mrf.mxu0
        %v9505 = vadd.f32 %v8989, %v9504
        %v9506 = vpop.f32.mrf.mxu0
        %9507 = vmatprep.mubr.bf16.mxu0 %v9185
        %9508 = vmatmul.mubr.bf16.gmra.mxu0 %v9184
        %v9509 = vpop.f32.mrf.mxu0
        %v9510 = vadd.f32 %v8989, %v9509
        %v9511 = vpop.f32.mrf.mxu0
        %v9512 = vpop.f32.mrf.mxu0
        %v9513 = vadd.f32 %v8989, %v9512
        %v9514 = vpop.f32.mrf.mxu0
        %9515 = vmatprep.mubr.bf16.mxu0 %v9188
        %9516 = vmatmul.mubr.bf16.gmra.mxu0 %v9187
        %v9517 = vpop.f32.mrf.mxu0
        %v9518 = vadd.f32 %v8989, %v9517
        %v9519 = vpop.f32.mrf.mxu0
        %v9520 = vpop.f32.mrf.mxu0
        %v9521 = vadd.f32 %v8989, %v9520
        %v9522 = vpop.f32.mrf.mxu0
        %9523 = vmatprep.mubr.bf16.mxu0 %v9191
        %9524 = vmatmul.mubr.bf16.gmra.mxu0 %v9190
        %v9525 = vpop.f32.mrf.mxu0
        %v9526 = vadd.f32 %v8989, %v9525
        %v9527 = vpop.f32.mrf.mxu0
        %v9528 = vpop.f32.mrf.mxu0
        %v9529 = vadd.f32 %v8989, %v9528
        %v9530 = vpop.f32.mrf.mxu0
        %9531 = vmatprep.mubr.bf16.mxu0 %v9194
        %9532 = vmatmul.mubr.bf16.gmra.mxu0 %v9193
        %v9533 = vpop.f32.mrf.mxu0
        %v9534 = vadd.f32 %v8989, %v9533
        %v9535 = vpop.f32.mrf.mxu0
        %v9536 = vpop.f32.mrf.mxu0
        %v9537 = vadd.f32 %v8989, %v9536
        %v9538 = vpop.f32.mrf.mxu0
        %9539 = vmatprep.mubr.bf16.mxu0 %v9197
        %9540 = vmatmul.mubr.bf16.gmra.mxu0 %v9196
        %v9541 = vpop.f32.mrf.mxu0
        %v9542 = vadd.f32 %v8989, %v9541
        %v9543 = vpop.f32.mrf.mxu0
        %v9544 = vpop.f32.mrf.mxu0
        %v9545 = vadd.f32 %v8989, %v9544
        %v9546 = vpop.f32.mrf.mxu0
        %9547 = vdwg.mxu0
        %9548 = vmatprep.subr.bf16.mxu0 0
        %9549 = vmatpush1.bf16.msra.mxu0 0
        %9550 = vmatprep.subr.bf16.mxu0 0
        %9551 = vmatpush1.bf16.msra.mxu0 0
        %9552 = vmatprep.subr.bf16.mxu0 0
        %9553 = vmatpush1.bf16.msra.mxu0 0
        %9554 = vmatprep.subr.bf16.mxu0 0
        %9555 = vmatpush1.bf16.msra.mxu0 0
        %9556 = vmatprep.subr.bf16.mxu0 0
        %9557 = vmatpush1.bf16.msra.mxu0 0
        %9558 = vmatprep.subr.bf16.mxu0 0
        %9559 = vmatpush1.bf16.msra.mxu0 0
        %9560 = vmatprep.subr.bf16.mxu0 0
        %9561 = vmatpush1.bf16.msra.mxu0 %v9320
        %9562 = vmatprep.subr.bf16.mxu0 0
        %9563 = vmatpush1.bf16.msra.mxu0 %v9319
        %9564 = vmatprep.subr.bf16.mxu0 0
        %9565 = vmatpush2.bf16.msra.mxu0 0
        %9566 = vmatprep.subr.bf16.mxu0 0
        %9567 = vmatpush2.bf16.msra.mxu0 0
        %9568 = vmatprep.subr.bf16.mxu0 0
        %9569 = vmatpush2.bf16.msra.mxu0 0
        %9570 = vmatprep.subr.bf16.mxu0 0
        %9571 = vmatpush2.bf16.msra.mxu0 0
        %9572 = vmatprep.subr.bf16.mxu0 0
        %9573 = vmatpush2.bf16.msra.mxu0 0
        %9574 = vmatprep.subr.bf16.mxu0 0
        %9575 = vmatpush2.bf16.msra.mxu0 0
        %9576 = vmatprep.subr.bf16.mxu0 0
        %9577 = vmatpush2.bf16.msra.mxu0 0
        %9578 = vmatprep.subr.bf16.mxu0 0
        %9579 = vmatpush2.bf16.msra.mxu0 0
        %9580 = vmatprep.mubr.bf16.mxu0 0
        %9581 = vmatmul.mubr.bf16.gmra.mxu0 %v9340
        %v9582 = vpop.f32.mrf.mxu0
        %v9583 = vadd.f32 %v9422, %v9582
        %v9584 = vpop.f32.mrf.mxu0
        %v9585 = vpop.f32.mrf.mxu0
        %v9586 = vadd.f32 %v9425, %v9585
        %v9587 = vpop.f32.mrf.mxu0
        %9588 = vmatprep.mubr.bf16.mxu0 0
        %9589 = vmatmul.mubr.bf16.gmra.mxu0 %v9343
        %v9590 = vpop.f32.mrf.mxu0
        %v9591 = vadd.f32 %v9430, %v9590
        %v9592 = vpop.f32.mrf.mxu0
        %v9593 = vpop.f32.mrf.mxu0
        %v9594 = vadd.f32 %v9433, %v9593
        %v9595 = vpop.f32.mrf.mxu0
        %9596 = vmatprep.mubr.bf16.mxu0 0
        %9597 = vmatmul.mubr.bf16.gmra.mxu0 %v9346
        %v9598 = vpop.f32.mrf.mxu0
        %v9599 = vadd.f32 %v9438, %v9598
        %v9600 = vpop.f32.mrf.mxu0
        %v9601 = vpop.f32.mrf.mxu0
        %v9602 = vadd.f32 %v9441, %v9601
        %v9603 = vpop.f32.mrf.mxu0
        %9604 = vmatprep.mubr.bf16.mxu0 0
        %9605 = vmatmul.mubr.bf16.gmra.mxu0 %v9349
        %v9606 = vpop.f32.mrf.mxu0
        %v9607 = vadd.f32 %v9446, %v9606
        %v9608 = vpop.f32.mrf.mxu0
        %v9609 = vpop.f32.mrf.mxu0
        %v9610 = vadd.f32 %v9449, %v9609
        %v9611 = vpop.f32.mrf.mxu0
        %9612 = vmatprep.mubr.bf16.mxu0 0
        %9613 = vmatmul.mubr.bf16.gmra.mxu0 %v9352
        %v9614 = vpop.f32.mrf.mxu0
        %v9615 = vadd.f32 %v9454, %v9614
        %v9616 = vpop.f32.mrf.mxu0
        %v9617 = vpop.f32.mrf.mxu0
        %v9618 = vadd.f32 %v9457, %v9617
        %v9619 = vpop.f32.mrf.mxu0
        %9620 = vmatprep.mubr.bf16.mxu0 0
        %9621 = vmatmul.mubr.bf16.gmra.mxu0 %v9355
        %v9622 = vpop.f32.mrf.mxu0
        %v9623 = vadd.f32 %v9462, %v9622
        %v9624 = vpop.f32.mrf.mxu0
        %v9625 = vpop.f32.mrf.mxu0
        %v9626 = vadd.f32 %v9465, %v9625
        %v9627 = vpop.f32.mrf.mxu0
        %9628 = vmatprep.mubr.bf16.mxu0 0
        %9629 = vmatmul.mubr.bf16.gmra.mxu0 %v9358
        %v9630 = vpop.f32.mrf.mxu0
        %v9631 = vadd.f32 %v9470, %v9630
        %v9632 = vpop.f32.mrf.mxu0
        %v9633 = vpop.f32.mrf.mxu0
        %v9634 = vadd.f32 %v9473, %v9633
        %v9635 = vpop.f32.mrf.mxu0
        %9636 = vmatprep.mubr.bf16.mxu0 0
        %9637 = vmatmul.mubr.bf16.gmra.mxu0 %v9361
        %v9638 = vpop.f32.mrf.mxu0
        %v9639 = vadd.f32 %v9478, %v9638
        %v9640 = vpop.f32.mrf.mxu0
        %v9641 = vpop.f32.mrf.mxu0
        %v9642 = vadd.f32 %v9481, %v9641
        %v9643 = vpop.f32.mrf.mxu0
        %9644 = vmatprep.mubr.bf16.mxu0 0
        %9645 = vmatmul.mubr.bf16.gmra.mxu0 %v9364
        %v9646 = vpop.f32.mrf.mxu0
        %v9647 = vadd.f32 %v9486, %v9646
        %v9648 = vpop.f32.mrf.mxu0
        %v9649 = vpop.f32.mrf.mxu0
        %v9650 = vadd.f32 %v9489, %v9649
        %v9651 = vpop.f32.mrf.mxu0
        %9652 = vmatprep.mubr.bf16.mxu0 0
        %9653 = vmatmul.mubr.bf16.gmra.mxu0 %v9367
        %v9654 = vpop.f32.mrf.mxu0
        %v9655 = vadd.f32 %v9494, %v9654
        %v9656 = vpop.f32.mrf.mxu0
        %v9657 = vpop.f32.mrf.mxu0
        %v9658 = vadd.f32 %v9497, %v9657
        %v9659 = vpop.f32.mrf.mxu0
        %9660 = vmatprep.mubr.bf16.mxu0 0
        %9661 = vmatmul.mubr.bf16.gmra.mxu0 %v9370
        %v9662 = vpop.f32.mrf.mxu0
        %v9663 = vadd.f32 %v9502, %v9662
        %v9664 = vpop.f32.mrf.mxu0
        %v9665 = vpop.f32.mrf.mxu0
        %v9666 = vadd.f32 %v9505, %v9665
        %v9667 = vpop.f32.mrf.mxu0
        %9668 = vmatprep.mubr.bf16.mxu0 0
        %9669 = vmatmul.mubr.bf16.gmra.mxu0 %v9373
        %v9670 = vpop.f32.mrf.mxu0
        %v9671 = vadd.f32 %v9510, %v9670
        %v9672 = vpop.f32.mrf.mxu0
        %v9673 = vpop.f32.mrf.mxu0
        %v9674 = vadd.f32 %v9513, %v9673
        %v9675 = vpop.f32.mrf.mxu0
        %9676 = vmatprep.mubr.bf16.mxu0 0
        %9677 = vmatmul.mubr.bf16.gmra.mxu0 %v9376
        %v9678 = vpop.f32.mrf.mxu0
        %v9679 = vadd.f32 %v9518, %v9678
        %v9680 = vpop.f32.mrf.mxu0
        %v9681 = vpop.f32.mrf.mxu0
        %v9682 = vadd.f32 %v9521, %v9681
        %v9683 = vpop.f32.mrf.mxu0
        %9684 = vmatprep.mubr.bf16.mxu0 0
        %9685 = vmatmul.mubr.bf16.gmra.mxu0 %v9379
        %v9686 = vpop.f32.mrf.mxu0
        %v9687 = vadd.f32 %v9526, %v9686
        %v9688 = vpop.f32.mrf.mxu0
        %v9689 = vpop.f32.mrf.mxu0
        %v9690 = vadd.f32 %v9529, %v9689
        %v9691 = vpop.f32.mrf.mxu0
        %9692 = vmatprep.mubr.bf16.mxu0 0
        %9693 = vmatmul.mubr.bf16.gmra.mxu0 %v9382
        %v9694 = vpop.f32.mrf.mxu0
        %v9695 = vadd.f32 %v9534, %v9694
        %v9696 = vpop.f32.mrf.mxu0
        %v9697 = vpop.f32.mrf.mxu0
        %v9698 = vadd.f32 %v9537, %v9697
        %v9699 = vpop.f32.mrf.mxu0
        %9700 = vmatprep.mubr.bf16.mxu0 0
        %9701 = vmatmul.mubr.bf16.gmra.mxu0 %v9385
        %v9702 = vpop.f32.mrf.mxu0
        %v9703 = vadd.f32 %v9542, %v9702
        %v9704 = vpop.f32.mrf.mxu0
        %v9705 = vpop.f32.mrf.mxu0
        %v9706 = vadd.f32 %v9545, %v9705
        %v9707 = vpop.f32.mrf.mxu0
        %9708 = vdwg.mxu0
        %v9709 = vsel %vm4989, %v9583, 0.0
        %v9710 = vsel %vm4989, %v9586, 0.0
        %v9711 = vadd.f32 %v9709, %v9710
        %v9712 = vsel %vm4989, %v9591, 0.0
        %v9713 = vadd.f32 %v9711, %v9712
        %v9714 = vsel %vm4989, %v9594, 0.0
        %v9715 = vadd.f32 %v9713, %v9714
        %v9716 = vsel %vm4989, %v9599, 0.0
        %v9717 = vadd.f32 %v9715, %v9716
        %v9718 = vsel %vm4989, %v9602, 0.0
        %v9719 = vadd.f32 %v9717, %v9718
        %v9720 = vsel %vm4989, %v9607, 0.0
        %v9721 = vadd.f32 %v9719, %v9720
        %v9722 = vsel %vm4989, %v9610, 0.0
        %v9723 = vadd.f32 %v9721, %v9722
        %v9724 = vsel %vm4989, %v9615, 0.0
        %v9725 = vadd.f32 %v9723, %v9724
        %v9726 = vsel %vm4989, %v9618, 0.0
        %v9727 = vadd.f32 %v9725, %v9726
        %v9728 = vsel %vm4989, %v9623, 0.0
        %v9729 = vadd.f32 %v9727, %v9728
        %v9730 = vsel %vm4989, %v9626, 0.0
        %v9731 = vadd.f32 %v9729, %v9730
        %v9732 = vsel %vm4989, %v9631, 0.0
        %v9733 = vadd.f32 %v9731, %v9732
        %v9734 = vsel %vm4989, %v9634, 0.0
        %v9735 = vadd.f32 %v9733, %v9734
        %v9736 = vsel %vm4989, %v9639, 0.0
        %v9737 = vadd.f32 %v9735, %v9736
        %v9738 = vsel %vm4989, %v9642, 0.0
        %v9739 = vadd.f32 %v9737, %v9738
        %v9740 = vsel %vm4989, %v9647, 0.0
        %v9741 = vadd.f32 %v9739, %v9740
        %v9742 = vsel %vm4989, %v9650, 0.0
        %v9743 = vadd.f32 %v9741, %v9742
        %v9744 = vsel %vm4989, %v9655, 0.0
        %v9745 = vadd.f32 %v9743, %v9744
        %v9746 = vsel %vm4989, %v9658, 0.0
        %v9747 = vadd.f32 %v9745, %v9746
        %v9748 = vsel %vm4989, %v9663, 0.0
        %v9749 = vadd.f32 %v9747, %v9748
        %v9750 = vsel %vm4989, %v9666, 0.0
        %v9751 = vadd.f32 %v9749, %v9750
        %v9752 = vsel %vm4989, %v9671, 0.0
        %v9753 = vadd.f32 %v9751, %v9752
        %v9754 = vsel %vm4989, %v9674, 0.0
        %v9755 = vadd.f32 %v9753, %v9754
        %v9756 = vsel %vm4989, %v9679, 0.0
        %v9757 = vadd.f32 %v9755, %v9756
        %v9758 = vsel %vm4989, %v9682, 0.0
        %v9759 = vadd.f32 %v9757, %v9758
        %v9760 = vsel %vm4989, %v9687, 0.0
        %v9761 = vadd.f32 %v9759, %v9760
        %v9762 = vsel %vm4989, %v9690, 0.0
        %v9763 = vadd.f32 %v9761, %v9762
        %v9764 = vsel %vm4989, %v9695, 0.0
        %v9765 = vadd.f32 %v9763, %v9764
        %v9766 = vsel %vm4989, %v9698, 0.0
        %v9767 = vadd.f32 %v9765, %v9766
        %v9768 = vsel %vm4989, %v9703, 0.0
        %v9769 = vadd.f32 %v9767, %v9768
        %v9770 = vsel %vm4989, %v9706, 0.0
        %v9771 = vadd.f32 %v9769, %v9770
        %v9772 = vrot.slane %v9771, 4
        %v9773 = vadd.f32 %v9771, %v9772
        %v9774 = vrot.slane %v9773, 2
        %v9775 = vadd.f32 %v9773, %v9774
        %v9776 = vrot.slane %v9775, 1
        %v9777 = vadd.f32 %v9775, %v9776
        %v9778 = vrcp.pop 256.0
        %v9779 = vmul.f32 %v9777, %v9778
        %v9780 = vld [vmem:[%s7] sm:$0xff]
        %v9781 = vld [vmem:[%s7 + $0x8] sm:$0xff]
        %v9782 = vld [vmem:[%s7 + $0x10] sm:$0xff]
        %v9783 = vld [vmem:[%s7 + $0x18] sm:$0xff]
        %v9784 = vld [vmem:[%s8] sm:$0x1]
        %v9786 = vsel %vm4989, %v9779, 0
        %9788 = vmatprep.subr.mxu0 0.0
        %9789 = vmatpush1.msra.mxu0 0.0
        %9790 = vmatprep.subr.mxu0 0.0
        %9791 = vmatpush1.msra.mxu0 0.0
        %9792 = vmatprep.subr.mxu0 0.0
        %9793 = vmatpush1.msra.mxu0 0.0
        %9794 = vmatprep.subr.mxu0 0.0
        %9795 = vmatpush1.msra.mxu0 0.0
        %9796 = vmatprep.subr.mxu0 0.0
        %9797 = vmatpush1.msra.mxu0 0.0
        %9798 = vmatprep.subr.mxu0 0.0
        %9799 = vmatpush1.msra.mxu0 0.0
        %9800 = vmatprep.subr.mxu0 0.0
        %9801 = vmatpush1.msra.mxu0 0.0
        %9802 = vmatprep.subr.mxu0 0.0
        %9803 = vmatpush1.msra.mxu0 0.0
        %9804 = vmatprep.subr.mxu0 0.0
        %9805 = vmatpush1.msra.mxu0 0.0
        %9806 = vmatprep.subr.mxu0 0.0
        %9807 = vmatpush1.msra.mxu0 0.0
        %9808 = vmatprep.subr.mxu0 0.0
        %9809 = vmatpush1.msra.mxu0 0.0
        %9810 = vmatprep.subr.mxu0 0.0
        %9811 = vmatpush1.msra.mxu0 0.0
        %9812 = vmatprep.subr.mxu0 0.0
        %9813 = vmatpush1.msra.mxu0 %v9783
        %9814 = vmatprep.subr.mxu0 0.0
        %9815 = vmatpush1.msra.mxu0 %v9782
        %9816 = vmatprep.subr.mxu0 0.0
        %9817 = vmatpush1.msra.mxu0 %v9781
        %9818 = vmatprep.subr.mxu0 0.0
        %9819 = vmatpush1.msra.mxu0 %v9780
        %9820 = vmatprep.subr.mxu0 0.0
        %9821 = vmatpush2.msra.mxu0 0.0
        %9822 = vmatprep.subr.mxu0 0.0
        %9823 = vmatpush2.msra.mxu0 0.0
        %9824 = vmatprep.subr.mxu0 0.0
        %9825 = vmatpush2.msra.mxu0 0.0
        %9826 = vmatprep.subr.mxu0 0.0
        %9827 = vmatpush2.msra.mxu0 0.0
        %9828 = vmatprep.subr.mxu0 0.0
        %9829 = vmatpush2.msra.mxu0 0.0
        %9830 = vmatprep.subr.mxu0 0.0
        %9831 = vmatpush2.msra.mxu0 0.0
        %9832 = vmatprep.subr.mxu0 0.0
        %9833 = vmatpush2.msra.mxu0 0.0
        %9834 = vmatprep.subr.mxu0 0.0
        %9835 = vmatpush2.msra.mxu0 0.0
        %9836 = vmatprep.subr.mxu0 0.0
        %9837 = vmatpush2.msra.mxu0 0.0
        %9838 = vmatprep.subr.mxu0 0.0
        %9839 = vmatpush2.msra.mxu0 0.0
        %9840 = vmatprep.subr.mxu0 0.0
        %9841 = vmatpush2.msra.mxu0 0.0
        %9842 = vmatprep.subr.mxu0 0.0
        %9843 = vmatpush2.msra.mxu0 0.0
        %9844 = vmatprep.subr.mxu0 0.0
        %9845 = vmatpush2.msra.mxu0 0.0
        %9846 = vmatprep.subr.mxu0 0.0
        %9847 = vmatpush2.msra.mxu0 0.0
        %9848 = vmatprep.subr.mxu0 0.0
        %9849 = vmatpush2.msra.mxu0 0.0
        %9850 = vmatprep.subr.mxu0 0.0
        %9851 = vmatpush2.msra.mxu0 0.0
        %9852 = vmatprep.mubr.f32.mxu0 0.0
        %9853 = vmatmul.mubr.f32.gmra.mxu0 %v9786
        %v9854 = vpop.f32.mrf.mxu0
        %v9855 = vadd.f32 %v9784, %v9854
        %v9856 = vpop.f32.mrf.mxu0
        %9857 = vdwg.mxu0
        %v9858 = vmax.f32 %v9855, 0.0
        %v9859 = vld [vmem:[%s9] sm:$0xff]
        %v9860 = vld [vmem:[%s10] sm:$0x1]
        %vm9861 = vcmask 64512
        %v9863 = vsel %vm9861, %v9858, 0
        %9865 = vmatprep.subr.mxu0 0.0
        %9866 = vmatpush1.msra.mxu0 0.0
        %9867 = vmatprep.subr.mxu0 0.0
        %9868 = vmatpush1.msra.mxu0 0.0
        %9869 = vmatprep.subr.mxu0 0.0
        %9870 = vmatpush1.msra.mxu0 0.0
        %9871 = vmatprep.subr.mxu0 0.0
        %9872 = vmatpush1.msra.mxu0 0.0
        %9873 = vmatprep.subr.mxu0 0.0
        %9874 = vmatpush1.msra.mxu0 0.0
        %9875 = vmatprep.subr.mxu0 0.0
        %9876 = vmatpush1.msra.mxu0 0.0
        %9877 = vmatprep.subr.mxu0 0.0
        %9878 = vmatpush1.msra.mxu0 0.0
        %9879 = vmatprep.subr.mxu0 0.0
        %9880 = vmatpush1.msra.mxu0 0.0
        %9881 = vmatprep.subr.mxu0 0.0
        %9882 = vmatpush1.msra.mxu0 0.0
        %9883 = vmatprep.subr.mxu0 0.0
        %9884 = vmatpush1.msra.mxu0 0.0
        %9885 = vmatprep.subr.mxu0 0.0
        %9886 = vmatpush1.msra.mxu0 0.0
        %9887 = vmatprep.subr.mxu0 0.0
        %9888 = vmatpush1.msra.mxu0 0.0
        %9889 = vmatprep.subr.mxu0 0.0
        %9890 = vmatpush1.msra.mxu0 0.0
        %9891 = vmatprep.subr.mxu0 0.0
        %9892 = vmatpush1.msra.mxu0 0.0
        %9893 = vmatprep.subr.mxu0 0.0
        %9894 = vmatpush1.msra.mxu0 0.0
        %9895 = vmatprep.subr.mxu0 0.0
        %9896 = vmatpush1.msra.mxu0 %v9859
        %9897 = vmatprep.subr.mxu0 0.0
        %9898 = vmatpush2.msra.mxu0 0.0
        %9899 = vmatprep.subr.mxu0 0.0
        %9900 = vmatpush2.msra.mxu0 0.0
        %9901 = vmatprep.subr.mxu0 0.0
        %9902 = vmatpush2.msra.mxu0 0.0
        %9903 = vmatprep.subr.mxu0 0.0
        %9904 = vmatpush2.msra.mxu0 0.0
        %9905 = vmatprep.subr.mxu0 0.0
        %9906 = vmatpush2.msra.mxu0 0.0
        %9907 = vmatprep.subr.mxu0 0.0
        %9908 = vmatpush2.msra.mxu0 0.0
        %9909 = vmatprep.subr.mxu0 0.0
        %9910 = vmatpush2.msra.mxu0 0.0
        %9911 = vmatprep.subr.mxu0 0.0
        %9912 = vmatpush2.msra.mxu0 0.0
        %9913 = vmatprep.subr.mxu0 0.0
        %9914 = vmatpush2.msra.mxu0 0.0
        %9915 = vmatprep.subr.mxu0 0.0
        %9916 = vmatpush2.msra.mxu0 0.0
        %9917 = vmatprep.subr.mxu0 0.0
        %9918 = vmatpush2.msra.mxu0 0.0
        %9919 = vmatprep.subr.mxu0 0.0
        %9920 = vmatpush2.msra.mxu0 0.0
        %9921 = vmatprep.subr.mxu0 0.0
        %9922 = vmatpush2.msra.mxu0 0.0
        %9923 = vmatprep.subr.mxu0 0.0
        %9924 = vmatpush2.msra.mxu0 0.0
        %9925 = vmatprep.subr.mxu0 0.0
        %9926 = vmatpush2.msra.mxu0 0.0
        %9927 = vmatprep.subr.mxu0 0.0
        %9928 = vmatpush2.msra.mxu0 0.0
        %9929 = vmatprep.mubr.f32.mxu0 0.0
        %9930 = vmatmul.mubr.f32.gmra.mxu0 %v9863
        %v9931 = vpop.f32.mrf.mxu0
        %v9932 = vadd.f32 %v9860, %v9931
        %v9933 = vpop.f32.mrf.mxu0
        %9934 = vdwg.mxu0
        %v9935 = vxor.u32 %v9932, 2147483648
        %v9936 = vmul.f32 %v9935, 1.442695
        %v9937 = vpow.pop %v9936
        %v9938 = vadd.f32 %v9937, 1.0
        %v9939 = vrcp.pop %v9938
        %v9940 = vmul.f32 1.0, %v9939
        %v9941 = vlaneseq
        %v9942 = vshrl.u32 %v9941, 7
        %v9943 = vsub.s32 0, %v9942
        %v9944 = vrot.slane %v9940, %v9943
        %v9945 = vmul.f32 %v9583, %v9944
        %v9946 = vmul.f32 %v9586, %v9944
        %v9947 = vmul.f32 %v9591, %v9944
        %v9948 = vmul.f32 %v9594, %v9944
        %v9949 = vmul.f32 %v9599, %v9944
        %v9950 = vmul.f32 %v9602, %v9944
        %v9951 = vmul.f32 %v9607, %v9944
        %v9952 = vmul.f32 %v9610, %v9944
        %v9953 = vmul.f32 %v9615, %v9944
        %v9954 = vmul.f32 %v9618, %v9944
        %v9955 = vmul.f32 %v9623, %v9944
        %v9956 = vmul.f32 %v9626, %v9944
        %v9957 = vmul.f32 %v9631, %v9944
        %v9958 = vmul.f32 %v9634, %v9944
        %v9959 = vmul.f32 %v9639, %v9944
        %v9960 = vmul.f32 %v9642, %v9944
        %v9961 = vmul.f32 %v9647, %v9944
        %v9962 = vmul.f32 %v9650, %v9944
        %v9963 = vmul.f32 %v9655, %v9944
        %v9964 = vmul.f32 %v9658, %v9944
        %v9965 = vmul.f32 %v9663, %v9944
        %v9966 = vmul.f32 %v9666, %v9944
        %v9967 = vmul.f32 %v9671, %v9944
        %v9968 = vmul.f32 %v9674, %v9944
        %v9969 = vmul.f32 %v9679, %v9944
        %v9970 = vmul.f32 %v9682, %v9944
        %v9971 = vmul.f32 %v9687, %v9944
        %v9972 = vmul.f32 %v9690, %v9944
        %v9973 = vmul.f32 %v9695, %v9944
        %v9974 = vmul.f32 %v9698, %v9944
        %v9975 = vmul.f32 %v9703, %v9944
        %v9976 = vmul.f32 %v9706, %v9944
        %v9977 = vunpack.c.l.bf16 %v457
        %v9978 = vunpack.c.l.bf16 %v458
        %v9979 = vunpack.c.l.bf16 %v459
        %v9980 = vunpack.c.l.bf16 %v460
        %v9981 = vunpack.c.l.bf16 %v461
        %v9982 = vunpack.c.l.bf16 %v462
        %v9983 = vunpack.c.l.bf16 %v463
        %v9984 = vunpack.c.l.bf16 %v464
        %v9985 = vunpack.c.l.bf16 %v465
        %v9986 = vunpack.c.l.bf16 %v466
        %v9987 = vunpack.c.l.bf16 %v467
        %v9988 = vunpack.c.l.bf16 %v468
        %v9989 = vunpack.c.l.bf16 %v469
        %v9990 = vunpack.c.l.bf16 %v470
        %v9991 = vunpack.c.l.bf16 %v471
        %v9992 = vunpack.c.l.bf16 %v472
        %v9993 = vunpack.c.l.bf16 %v473
        %v9994 = vunpack.c.l.bf16 %v474
        %v9995 = vunpack.c.l.bf16 %v475
        %v9996 = vunpack.c.l.bf16 %v476
        %v9997 = vunpack.c.l.bf16 %v477
        %v9998 = vunpack.c.l.bf16 %v478
        %v9999 = vunpack.c.l.bf16 %v479
        %v10000 = vunpack.c.l.bf16 %v480
        %v10001 = vunpack.c.l.bf16 %v481
        %v10002 = vunpack.c.l.bf16 %v482
        %v10003 = vunpack.c.l.bf16 %v483
        %v10004 = vunpack.c.l.bf16 %v484
        %v10005 = vunpack.c.l.bf16 %v485
        %v10006 = vunpack.c.l.bf16 %v486
        %v10007 = vunpack.c.l.bf16 %v487
        %v10008 = vunpack.c.l.bf16 %v488
        %v10009 = vadd.f32 %v9945, %v9977
        %v10010 = vadd.f32 %v9946, %v9978
        %v10011 = vadd.f32 %v9947, %v9979
        %v10012 = vadd.f32 %v9948, %v9980
        %v10013 = vadd.f32 %v9949, %v9981
        %v10014 = vadd.f32 %v9950, %v9982
        %v10015 = vadd.f32 %v9951, %v9983
        %v10016 = vadd.f32 %v9952, %v9984
        %v10017 = vadd.f32 %v9953, %v9985
        %v10018 = vadd.f32 %v9954, %v9986
        %v10019 = vadd.f32 %v9955, %v9987
        %v10020 = vadd.f32 %v9956, %v9988
        %v10021 = vadd.f32 %v9957, %v9989
        %v10022 = vadd.f32 %v9958, %v9990
        %v10023 = vadd.f32 %v9959, %v9991
        %v10024 = vadd.f32 %v9960, %v9992
        %v10025 = vadd.f32 %v9961, %v9993
        %v10026 = vadd.f32 %v9962, %v9994
        %v10027 = vadd.f32 %v9963, %v9995
        %v10028 = vadd.f32 %v9964, %v9996
        %v10029 = vadd.f32 %v9965, %v9997
        %v10030 = vadd.f32 %v9966, %v9998
        %v10031 = vadd.f32 %v9967, %v9999
        %v10032 = vadd.f32 %v9968, %v10000
        %v10033 = vadd.f32 %v9969, %v10001
        %v10034 = vadd.f32 %v9970, %v10002
        %v10035 = vadd.f32 %v9971, %v10003
        %v10036 = vadd.f32 %v9972, %v10004
        %v10037 = vadd.f32 %v9973, %v10005
        %v10038 = vadd.f32 %v9974, %v10006
        %v10039 = vadd.f32 %v9975, %v10007
        %v10040 = vadd.f32 %v9976, %v10008
        %10041 = vst.msk [vmem:[%s379] sm:$0xff] %vm4989, %v10009
        %10042 = vst.msk [vmem:[%s379 + $0x8] sm:$0xff] %vm4989, %v10010
        %10043 = vst.msk [vmem:[%s379 + $0x10] sm:$0xff] %vm4989, %v10011
        %10044 = vst.msk [vmem:[%s379 + $0x18] sm:$0xff] %vm4989, %v10012
        %10045 = vst.msk [vmem:[%s379 + $0x20] sm:$0xff] %vm4989, %v10013
        %10046 = vst.msk [vmem:[%s379 + $0x28] sm:$0xff] %vm4989, %v10014
        %10047 = vst.msk [vmem:[%s379 + $0x30] sm:$0xff] %vm4989, %v10015
        %10048 = vst.msk [vmem:[%s379 + $0x38] sm:$0xff] %vm4989, %v10016
        %10049 = vst.msk [vmem:[%s379 + $0x40] sm:$0xff] %vm4989, %v10017
        %10050 = vst.msk [vmem:[%s379 + $0x48] sm:$0xff] %vm4989, %v10018
        %10051 = vst.msk [vmem:[%s379 + $0x50] sm:$0xff] %vm4989, %v10019
        %10052 = vst.msk [vmem:[%s379 + $0x58] sm:$0xff] %vm4989, %v10020
        %10053 = vst.msk [vmem:[%s379 + $0x60] sm:$0xff] %vm4989, %v10021
        %10054 = vst.msk [vmem:[%s379 + $0x68] sm:$0xff] %vm4989, %v10022
        %10055 = vst.msk [vmem:[%s379 + $0x70] sm:$0xff] %vm4989, %v10023
        %10056 = vst.msk [vmem:[%s379 + $0x78] sm:$0xff] %vm4989, %v10024
        %10057 = vst.msk [vmem:[%s379 + $0x80] sm:$0xff] %vm4989, %v10025
        %10058 = vst.msk [vmem:[%s379 + $0x88] sm:$0xff] %vm4989, %v10026
        %10059 = vst.msk [vmem:[%s379 + $0x90] sm:$0xff] %vm4989, %v10027
        %10060 = vst.msk [vmem:[%s379 + $0x98] sm:$0xff] %vm4989, %v10028
        %10061 = vst.msk [vmem:[%s379 + $0xa0] sm:$0xff] %vm4989, %v10029
        %10062 = vst.msk [vmem:[%s379 + $0xa8] sm:$0xff] %vm4989, %v10030
        %10063 = vst.msk [vmem:[%s379 + $0xb0] sm:$0xff] %vm4989, %v10031
        %10064 = vst.msk [vmem:[%s379 + $0xb8] sm:$0xff] %vm4989, %v10032
        %10065 = vst.msk [vmem:[%s379 + $0xc0] sm:$0xff] %vm4989, %v10033
        %10066 = vst.msk [vmem:[%s379 + $0xc8] sm:$0xff] %vm4989, %v10034
        %10067 = vst.msk [vmem:[%s379 + $0xd0] sm:$0xff] %vm4989, %v10035
        %10068 = vst.msk [vmem:[%s379 + $0xd8] sm:$0xff] %vm4989, %v10036
        %10069 = vst.msk [vmem:[%s379 + $0xe0] sm:$0xff] %vm4989, %v10037
        %10070 = vst.msk [vmem:[%s379 + $0xe8] sm:$0xff] %vm4989, %v10038
        %10071 = vst.msk [vmem:[%s379 + $0xf0] sm:$0xff] %vm4989, %v10039
        %10072 = vst.msk [vmem:[%s379 + $0xf8] sm:$0xff] %vm4989, %v10040
        %s10073 = sand.u32 %s269, 1
        %s10074 = scalar_lea.sflag [#allocation5], %s10073
        %s10075 = sand.u32 %s269, 1
        %s10076 = smul.addr %s10075, 256
        %s10077 = scalar_lea.vmem [#allocation4], %s10076
        // Predicated region
        $region65: #{rcab_forward.1} parent=63 // pred_check
          %p10078 = pneg %p279
        $region66: #{rcab_forward.1} parent=63 // pred_check_branch
          %10080 = sbr.rel (%p10078) target = $region68
        $region67: #{rcab_forward.1} parent=63 // pred_region
          %s10082 = ssub.s32 4096, 4096
          %10083 = vsyncadd %s10074, %s10082
          %s10084 = smul.addr %s25, 32
          %s10085 = smul.addr %s10084, 128
          %s10086 = scalar_lea.hbm %s11, %s10085
          %s10087 = sshll.u32 %s10077, 4
          %s10088 = int_to_ptr.vmem [resolvable:$true] %s10087
          %10093 = dma.vmem_to_hbm [thread:$0]  %s10088, 4096, %s10086, %s10074, 128, 128, 8
        $region68: #{rcab_forward.1} parent=63 // pred_fallthru
          _
      $region64: #{rcab_forward.1} parent=5 // pred_fallthru
        _
      %p10094 = scmp.le.s32.totalorder 2, %s20
      // Predicated region
      $region69: #{rcab_forward.1} parent=5 // pred_check
        %p10095 = pneg %p10094
      $region70: #{rcab_forward.1} parent=5 // pred_check_branch
        %10097 = sbr.rel (%p10095) target = $region72
      $region71: #{rcab_forward.1} parent=5 // pred_region
        %s10098 = ssub.s32 %s20, 2
        // Predicated region
        $region73: #{rcab_forward.1} parent=71 // pred_check
          %p10099 = pneg %p285
        $region74: #{rcab_forward.1} parent=71 // pred_check_branch
          %10101 = sbr.rel (%p10099) target = $region76
        $region75: #{rcab_forward.1} parent=71 // pred_region
          %s10102 = sand.u32 %s270, 1
          %s10103 = scalar_lea.sflag [#allocation5], %s10102
          %s10104 = sand.u32 %s270, 1
          %s10105 = smul.addr %s10104, 256
          %s10106 = scalar_lea.vmem [#allocation4], %s10105
          %10107 = dma.done %s10103, 4096
        $region76: #{rcab_forward.1} parent=71 // pred_fallthru
          _
      $region72: #{rcab_forward.1} parent=5 // pred_fallthru
        _
    $region6: #{rcab_forward.1} parent=1 // loop_footer
      %s24 = sadd.s32 1, %s20
    $region7: #{rcab_forward.1} parent=1 // loop_footer_branch
      %19 = sbr.rel target = $region3
    $region8: #{rcab_forward.1} parent=1 // loop_exit
      _
    %10108 = vsyncpa [#allocation5], 1
    %s10109 = scalar_lea.sflag [#allocation5], 1
    %10110 = vsyncpa %s10109, 1

</llo_original>
